<compile_context>
chip_gen: v7x
topology: tpu7x:2x2x1
jax: 0.10.0
libtpu: 0.0.40
codegen_flags: <defaults>
</compile_context>

<pallas_src>
import functools

import jax
import jax.numpy as jnp
from jax.experimental import pallas as pl
from jax.experimental.pallas import tpu as pltpu


# ---------------------------------------------------------------------------
# Plain-JAX glue: relative-position bias index + window partition (reference)
# ---------------------------------------------------------------------------
def make_relative_position_index(window_size):
    # Standard Swin/StyleSwin indexing (multiply for the first coordinate), as
    # requested in an earlier review; both the kernel and the reference use it.
    coords_h = jnp.arange(window_size)
    coords_w = jnp.arange(window_size)
    coords = jnp.stack(jnp.meshgrid(coords_h, coords_w, indexing="ij"))  # (2,Wh,Ww)
    coords = coords.reshape(2, -1)                                       # (2, N)
    relative_coords = coords[:, :, None] - coords[:, None, :]            # (2, N, N)
    relative_coords = jnp.transpose(relative_coords, (1, 2, 0))          # (N, N, 2)
    relative_coords = relative_coords.at[:, :, 0].add(window_size - 1)
    relative_coords = relative_coords.at[:, :, 1].add(window_size - 1)
    relative_coords = relative_coords.at[:, :, 0].multiply(2 * window_size - 1)
    return relative_coords.sum(-1)                                       # (N, N)


def window_partition(x, window_size):
    """x: (B, H, W, C) -> (num_windows*B, ws, ws, C). Used by the reference."""
    B, H, W, C = x.shape
    x = x.reshape(B, H // window_size, window_size, W // window_size, window_size, C)
    return jnp.transpose(x, (0, 1, 3, 2, 4, 5)).reshape(-1, window_size, window_size, C)


# ---------------------------------------------------------------------------
# Pallas kernel: one batch image x wcols window-columns x all heads per step
# ---------------------------------------------------------------------------
def _window_attn_kernel(bias_ref, qkv_ref, o_ref, acc_ref, *, ws, n_wh, wcols,
                        n_heads, head_dim, qk_scale, prescale_q):
    """Refs:
      bias_ref: (n_heads, N, N) f32, resident in VMEM (constant index_map).
      qkv_ref : (3, 1, H, wcols*ws, C) block read straight from (3, B, H, W, C).
      o_ref   : (1, n_wh, wcols, N, C) output block (module's window order).
      acc_ref : (n_wh, wcols, N, C) f32 VMEM scratch (per-head lane-slice writes).
    """
    N = ws * ws

    for j in range(wcols):                      # static: window-columns in block
        c0 = j * ws
        for h in range(n_heads):                # static: heads
            lo = h * head_dim
            hi = lo + head_dim
            # (H, ws, head_dim) slice of the resident block -> (n_wh, N, hd):
            # fused window partition + head split; the minor dim is untouched,
            # so the reshape is a sublane relabel rather than a copy.
            qh = qkv_ref[0, 0, :, c0:c0 + ws, lo:hi].reshape(n_wh, N, head_dim)
            kh = qkv_ref[1, 0, :, c0:c0 + ws, lo:hi].reshape(n_wh, N, head_dim)
            vh = qkv_ref[2, 0, :, c0:c0 + ws, lo:hi].reshape(n_wh, N, head_dim)
            if prescale_q:                      # exact when inputs are f32
                qh = qh * qk_scale

            # scores: contract head_dim directly (no k transpose), f32 accumulate
            s = jnp.einsum("wnd,wmd->wnm", qh, kh,
                           preferred_element_type=jnp.float32)
            if not prescale_q:                  # bf16 inputs: scale f32 scores
                s = s * qk_scale
            s = s + bias_ref[h][None]           # resident (N, N) bias, head h

            # numerically-stable softmax with DEFERRED normalization: p stays
            # unnormalized; 1/denom (exact) is applied to the small (N, hd)
            # PV result instead of the (N, N) probabilities.
            m = jnp.max(s, axis=-1, keepdims=True)
            p = jnp.exp(s - m)
            denom = jnp.sum(p, axis=-1, keepdims=True)
            pv = jnp.einsum("wnm,wmd->wnd", p.astype(vh.dtype), vh,
                            preferred_element_type=jnp.float32)
            acc_ref[:, j, :, lo:hi] = pv * pl.reciprocal(denom, approx=False)

    # single cast+store of the whole block, already in the module's
    # (b, window_row, window_col, N, C) order.
    o_ref[0] = acc_ref[...].astype(o_ref.dtype)


def window_attention_forward(qkv, rel_pos_bias_table, window_size, n_heads,
                             qk_scale=None, wcols=None, vmem_limit_bytes=None):
    """Replicates WindowAttention.forward (mask=None; attn_drop = identity).

    qkv: (3, B, H, W, C);  rel_pos_bias_table: ((2*ws-1)**2, n_heads)
    returns: (num_windows*B, window_size**2, C)

    `wcols` = window-columns processed per grid step (default: all of them,
    i.e. one whole image per step -> fully contiguous qkv DMA).  If reduced
    (e.g. to balance v7x TensorCores or fit v7x's 64 MiB VMEM), wcols*ws must
    be a multiple of 8 or equal to W.
    """
    three, B, H, W, C = qkv.shape
    assert three == 3
    ws = window_size
    assert H % ws == 0 and W % ws == 0 and C % n_heads == 0
    head_dim = C // n_heads
    scale = float(qk_scale) if qk_scale is not None else head_dim ** (-0.5)
    N = ws * ws
    n_wh, n_ww = H // ws, W // ws

    if wcols is None:
        wcols = n_ww                      # whole image per grid step
    assert n_ww % wcols == 0
    assert (wcols * ws) % 8 == 0 or wcols * ws == W  # (8,128) sublane rule

    # relative-position bias, (n_heads, N, N), computed once (tiny, stays f32)
    rel_idx = make_relative_position_index(ws)
    bias = rel_pos_bias_table[rel_idx.reshape(-1)].reshape(N, N, n_heads)
    bias = jnp.transpose(bias, (2, 0, 1)).astype(jnp.float32)

    # Pre-scale q only when it is exact (f32 inputs); otherwise scale f32 scores.
    prescale_q = bool(qkv.dtype == jnp.float32)

    kernel = functools.partial(_window_attn_kernel, ws=ws, n_wh=n_wh,
                               wcols=wcols, n_heads=n_heads, head_dim=head_dim,
                               qk_scale=scale, prescale_q=prescale_q)

    cparams = dict(dimension_semantics=("parallel", "parallel"))
    if vmem_limit_bytes is not None:      # raise for whole-image blocks at big C
        cparams["vmem_limit_bytes"] = vmem_limit_bytes

    out = pl.pallas_call(
        kernel,
        out_shape=jax.ShapeDtypeStruct((B, n_wh, n_ww, N, C), qkv.dtype),
        grid_spec=pltpu.PrefetchScalarGridSpec(
            num_scalar_prefetch=0,
            grid=(B, n_ww // wcols),
            in_specs=[
                # bias: constant index_map -> DMA'd once, resident in VMEM
                pl.BlockSpec((n_heads, N, N), lambda b, w: (0, 0, 0)),
                # q/k/v read straight from the (3, B, H, W, C) layout: one
                # image's wcols window-columns (all rows, all heads) per step.
                pl.BlockSpec((3, 1, H, wcols * ws, C),
                             lambda b, w: (0, b, 0, w, 0)),
            ],
            # output written directly in the module's (b, wh, ww) window order
            out_specs=pl.BlockSpec((1, n_wh, wcols, N, C),
                                   lambda b, w: (b, 0, w, 0, 0)),
            # persistent f32 staging slab: per-head lane-slice writes, one store
            scratch_shapes=[pltpu.VMEM((n_wh, wcols, N, C), jnp.float32)],
        ),
        compiler_params=pltpu.CompilerParams(**cparams),
    )(bias, qkv)

    # free leading-axis collapse: (B, nWh, nWw, N, C) -> (B*nWh*nWw, N, C)
    return out.reshape(B * n_wh * n_ww, N, C)


# ---------------------------------------------------------------------------
# Pure-JAX reference (for the in-script sanity check)
# ---------------------------------------------------------------------------
def window_attention_reference(qkv, rel_pos_bias_table, window_size, n_heads,
                               qk_scale=None):
    q, k, v = qkv[0], qkv[1], qkv[2]
    B, H, W, C = q.shape
    head_dim = C // n_heads
    scale = qk_scale if qk_scale is not None else head_dim ** (-0.5)
    N = window_size * window_size

    def prep(x):
        xw = window_partition(x, window_size).reshape(-1, N, C)
        BW = xw.shape[0]
        return jnp.transpose(xw.reshape(BW, N, n_heads, head_dim), (0, 2, 1, 3))

    qh, kh, vh = prep(q), prep(k), prep(v)
    attn = jnp.einsum("bhnd,bhmd->bhnm", qh, kh) * scale
    rel_idx = make_relative_position_index(window_size)
    bias = rel_pos_bias_table[rel_idx.reshape(-1)].reshape(N, N, n_heads)
    attn = attn + jnp.transpose(bias, (2, 0, 1))[None]
    attn = jax.nn.softmax(attn, axis=-1)
    x = jnp.einsum("bhnm,bhmd->bhnd", attn, vh)
    return jnp.transpose(x, (0, 2, 1, 3)).reshape(-1, N, C)


# ---------------------------------------------------------------------------
if __name__ == "__main__":
    # small shapes consistent with the module (ws=8 is the StyleSwin default)
    B, Hs, Ws, C = 2, 16, 16, 32
    window_size = 8
    n_heads = 4

    key = jax.random.PRNGKey(0)
    k_qkv, k_bias = jax.random.split(key)

    qkv = jax.random.normal(k_qkv, (3, B, Hs, Ws, C), dtype=jnp.float32)

    # deterministic trunc_normal(std=0.02) init for the bias table
    table_shape = ((2 * window_size - 1) ** 2, n_heads)
    rel_pos_bias_table = (
        jax.random.truncated_normal(k_bias, -2.0, 2.0, table_shape, jnp.float32) * 0.02
    )

    out = window_attention_forward(qkv, rel_pos_bias_table, window_size, n_heads)
    out = jax.block_until_ready(out)

    ref = window_attention_reference(qkv, rel_pos_bias_table, window_size, n_heads)
    n_windows = (Hs // window_size) * (Ws // window_size) * B
    assert out.shape == ref.shape == (n_windows, window_size ** 2, C)
    # exact softmax reciprocal now -> tight tolerance
    assert jnp.allclose(out, ref, atol=1e-4, rtol=1e-4)

    print("KERNEL_OK")
</pallas_src>

<mosaic_0001>
module attributes {stable_mosaic.version = 11 : i64} {
  func.func @_window_attn_kernel(%arg0: i32, %arg1: i32, %arg2: memref<4x64x64xf32, #tpu.memory_space<vmem>>, %arg3: memref<3x1x16x16x32xf32, #tpu.memory_space<vmem>>, %arg4: memref<1x2x2x64x32xf32, #tpu.memory_space<vmem>>, %arg5: memref<2x2x64x32xf32, #tpu.memory_space<vmem>>) attributes {dimension_semantics = [#tpu.dimension_semantics<parallel>, #tpu.dimension_semantics<parallel>], iteration_bounds = array<i64: 2, 1>, scalar_prefetch = 0 : i64, scratch_operands = 1 : i64, tpu.core_type = #tpu.core_type<tc>, window_params = [{pipeline_mode = #tpu.pipeline_mode<synchronous>, transform_indices = @transform_0, window_bounds = array<i64: 4, 64, 64>}, {transform_indices = @transform_1, window_bounds = array<i64: 3, 1, 16, 16, 32>}, {transform_indices = @transform_2, window_bounds = array<i64: 1, 2, 2, 64, 32>}]} {
    %c0 = arith.constant 0 : index
    %c0_0 = arith.constant 0 : index
    %c0_1 = arith.constant 0 : index
    %c0_2 = arith.constant 0 : index
    %c0_3 = arith.constant 0 : index
    %0 = vector.load %arg3[%c0, %c0_0, %c0_1, %c0_2, %c0_3] : memref<3x1x16x16x32xf32, #tpu.memory_space<vmem>>, vector<1x1x16x8x8xf32>
    %1 = vector.shape_cast %0 : vector<1x1x16x8x8xf32> to vector<16x8x8xf32>
    %2 = vector.shape_cast %1 : vector<16x8x8xf32> to vector<2x64x8xf32>
    %c1 = arith.constant 1 : index
    %c0_4 = arith.constant 0 : index
    %c0_5 = arith.constant 0 : index
    %c0_6 = arith.constant 0 : index
    %c0_7 = arith.constant 0 : index
    %3 = vector.load %arg3[%c1, %c0_4, %c0_5, %c0_6, %c0_7] : memref<3x1x16x16x32xf32, #tpu.memory_space<vmem>>, vector<1x1x16x8x8xf32>
    %4 = vector.shape_cast %3 : vector<1x1x16x8x8xf32> to vector<16x8x8xf32>
    %5 = vector.shape_cast %4 : vector<16x8x8xf32> to vector<2x64x8xf32>
    %c2 = arith.constant 2 : index
    %c0_8 = arith.constant 0 : index
    %c0_9 = arith.constant 0 : index
    %c0_10 = arith.constant 0 : index
    %c0_11 = arith.constant 0 : index
    %6 = vector.load %arg3[%c2, %c0_8, %c0_9, %c0_10, %c0_11] : memref<3x1x16x16x32xf32, #tpu.memory_space<vmem>>, vector<1x1x16x8x8xf32>
    %7 = vector.shape_cast %6 : vector<1x1x16x8x8xf32> to vector<16x8x8xf32>
    %8 = vector.shape_cast %7 : vector<16x8x8xf32> to vector<2x64x8xf32>
    %cst = arith.constant 0.353553385 : f32
    %9 = vector.broadcast %cst : f32 to vector<2x64x8xf32>
    %10 = arith.mulf %2, %9 : vector<2x64x8xf32>
    "tpu.trace_start"() <{level = 10 : i32, message = "wnd,wmd->wnm"}> : () -> ()
    %cst_12 = arith.constant dense<0.000000e+00> : vector<2x64x64xf32>
    %11 = tpu.matmul %10, %5, %cst_12 {dimension_numbers = #tpu.dot_dimension_numbers<[2], [2], [1], [1], [0, 0, 0, 1, 1, 1], [0], [0]>} : vector<2x64x8xf32>, vector<2x64x8xf32>, vector<2x64x64xf32> -> vector<2x64x64xf32>
    "tpu.trace_stop"() : () -> ()
    %c0_13 = arith.constant 0 : index
    %c0_14 = arith.constant 0 : index
    %c0_15 = arith.constant 0 : index
    %12 = vector.load %arg2[%c0_13, %c0_14, %c0_15] : memref<4x64x64xf32, #tpu.memory_space<vmem>>, vector<1x64x64xf32>
    %13 = vector.shape_cast %12 : vector<1x64x64xf32> to vector<64x64xf32>
    %14 = vector.shape_cast %13 : vector<64x64xf32> to vector<1x64x64xf32>
    %15 = vector.broadcast %14 : vector<1x64x64xf32> to vector<2x64x64xf32>
    %16 = arith.addf %11, %15 : vector<2x64x64xf32>
    %cst_16 = arith.constant dense<0xFF800000> : vector<2x64xf32>
    %17 = vector.multi_reduction <maximumf>, %16, %cst_16 [2] : vector<2x64x64xf32> to vector<2x64xf32>
    %18 = vector.shape_cast %17 : vector<2x64xf32> to vector<2x64x1xf32>
    %19 = vector.broadcast %18 : vector<2x64x1xf32> to vector<2x64x64xf32>
    %20 = arith.subf %16, %19 : vector<2x64x64xf32>
    %21 = math.exp %20 : vector<2x64x64xf32>
    %cst_17 = arith.constant dense<0.000000e+00> : vector<2x64xf32>
    %22 = vector.multi_reduction <add>, %21, %cst_17 [2] : vector<2x64x64xf32> to vector<2x64xf32>
    %23 = vector.shape_cast %22 : vector<2x64xf32> to vector<2x64x1xf32>
    "tpu.trace_start"() <{level = 10 : i32, message = "wnm,wmd->wnd"}> : () -> ()
    %cst_18 = arith.constant dense<0.000000e+00> : vector<2x64x8xf32>
    %24 = tpu.matmul %21, %8, %cst_18 {dimension_numbers = #tpu.dot_dimension_numbers<[2], [1], [1], [2], [0, 0, 0, 1, 1, 2], [0], [0]>} : vector<2x64x64xf32>, vector<2x64x8xf32>, vector<2x64x8xf32> -> vector<2x64x8xf32>
    "tpu.trace_stop"() : () -> ()
    %25 = tpu.reciprocal %23 : vector<2x64x1xf32> -> vector<2x64x1xf32>
    %26 = vector.broadcast %25 : vector<2x64x1xf32> to vector<2x64x8xf32>
    %27 = arith.mulf %24, %26 : vector<2x64x8xf32>
    %c0_19 = arith.constant 0 : index
    %c0_20 = arith.constant 0 : index
    %c0_21 = arith.constant 0 : index
    %c0_22 = arith.constant 0 : index
    %28 = vector.load %arg5[%c0_19, %c0_20, %c0_21, %c0_22] : memref<2x2x64x32xf32, #tpu.memory_space<vmem>>, vector<2x1x64x8xf32>
    %29 = vector.shape_cast %28 : vector<2x1x64x8xf32> to vector<2x64x8xf32>
    %30 = vector.shape_cast %27 : vector<2x64x8xf32> to vector<2x1x64x8xf32>
    tpu.vector_store %arg5[%c0_19, %c0_20, %c0_21, %c0_22], %30 {strides = array<i32>} : memref<2x2x64x32xf32, #tpu.memory_space<vmem>>, vector<2x1x64x8xf32>,
    %c0_23 = arith.constant 0 : index
    %c0_24 = arith.constant 0 : index
    %c0_25 = arith.constant 0 : index
    %c0_26 = arith.constant 0 : index
    %c8 = arith.constant 8 : index
    %31 = vector.load %arg3[%c0_23, %c0_24, %c0_25, %c0_26, %c8] : memref<3x1x16x16x32xf32, #tpu.memory_space<vmem>>, vector<1x1x16x8x8xf32>
    %32 = vector.shape_cast %31 : vector<1x1x16x8x8xf32> to vector<16x8x8xf32>
    %33 = vector.shape_cast %32 : vector<16x8x8xf32> to vector<2x64x8xf32>
    %c1_27 = arith.constant 1 : index
    %c0_28 = arith.constant 0 : index
    %c0_29 = arith.constant 0 : index
    %c0_30 = arith.constant 0 : index
    %c8_31 = arith.constant 8 : index
    %34 = vector.load %arg3[%c1_27, %c0_28, %c0_29, %c0_30, %c8_31] : memref<3x1x16x16x32xf32, #tpu.memory_space<vmem>>, vector<1x1x16x8x8xf32>
    %35 = vector.shape_cast %34 : vector<1x1x16x8x8xf32> to vector<16x8x8xf32>
    %36 = vector.shape_cast %35 : vector<16x8x8xf32> to vector<2x64x8xf32>
    %c2_32 = arith.constant 2 : index
    %c0_33 = arith.constant 0 : index
    %c0_34 = arith.constant 0 : index
    %c0_35 = arith.constant 0 : index
    %c8_36 = arith.constant 8 : index
    %37 = vector.load %arg3[%c2_32, %c0_33, %c0_34, %c0_35, %c8_36] : memref<3x1x16x16x32xf32, #tpu.memory_space<vmem>>, vector<1x1x16x8x8xf32>
    %38 = vector.shape_cast %37 : vector<1x1x16x8x8xf32> to vector<16x8x8xf32>
    %39 = vector.shape_cast %38 : vector<16x8x8xf32> to vector<2x64x8xf32>
    %cst_37 = arith.constant 0.353553385 : f32
    %40 = vector.broadcast %cst_37 : f32 to vector<2x64x8xf32>
    %41 = arith.mulf %33, %40 : vector<2x64x8xf32>
    "tpu.trace_start"() <{level = 10 : i32, message = "wnd,wmd->wnm"}> : () -> ()
    %cst_38 = arith.constant dense<0.000000e+00> : vector<2x64x64xf32>
    %42 = tpu.matmul %41, %36, %cst_38 {dimension_numbers = #tpu.dot_dimension_numbers<[2], [2], [1], [1], [0, 0, 0, 1, 1, 1], [0], [0]>} : vector<2x64x8xf32>, vector<2x64x8xf32>, vector<2x64x64xf32> -> vector<2x64x64xf32>
    "tpu.trace_stop"() : () -> ()
    %c1_39 = arith.constant 1 : index
    %c0_40 = arith.constant 0 : index
    %c0_41 = arith.constant 0 : index
    %43 = vector.load %arg2[%c1_39, %c0_40, %c0_41] : memref<4x64x64xf32, #tpu.memory_space<vmem>>, vector<1x64x64xf32>
    %44 = vector.shape_cast %43 : vector<1x64x64xf32> to vector<64x64xf32>
    %45 = vector.shape_cast %44 : vector<64x64xf32> to vector<1x64x64xf32>
    %46 = vector.broadcast %45 : vector<1x64x64xf32> to vector<2x64x64xf32>
    %47 = arith.addf %42, %46 : vector<2x64x64xf32>
    %cst_42 = arith.constant dense<0xFF800000> : vector<2x64xf32>
    %48 = vector.multi_reduction <maximumf>, %47, %cst_42 [2] : vector<2x64x64xf32> to vector<2x64xf32>
    %49 = vector.shape_cast %48 : vector<2x64xf32> to vector<2x64x1xf32>
    %50 = vector.broadcast %49 : vector<2x64x1xf32> to vector<2x64x64xf32>
    %51 = arith.subf %47, %50 : vector<2x64x64xf32>
    %52 = math.exp %51 : vector<2x64x64xf32>
    %cst_43 = arith.constant dense<0.000000e+00> : vector<2x64xf32>
    %53 = vector.multi_reduction <add>, %52, %cst_43 [2] : vector<2x64x64xf32> to vector<2x64xf32>
    %54 = vector.shape_cast %53 : vector<2x64xf32> to vector<2x64x1xf32>
    "tpu.trace_start"() <{level = 10 : i32, message = "wnm,wmd->wnd"}> : () -> ()
    %cst_44 = arith.constant dense<0.000000e+00> : vector<2x64x8xf32>
    %55 = tpu.matmul %52, %39, %cst_44 {dimension_numbers = #tpu.dot_dimension_numbers<[2], [1], [1], [2], [0, 0, 0, 1, 1, 2], [0], [0]>} : vector<2x64x64xf32>, vector<2x64x8xf32>, vector<2x64x8xf32> -> vector<2x64x8xf32>
    "tpu.trace_stop"() : () -> ()
    %56 = tpu.reciprocal %54 : vector<2x64x1xf32> -> vector<2x64x1xf32>
    %57 = vector.broadcast %56 : vector<2x64x1xf32> to vector<2x64x8xf32>
    %58 = arith.mulf %55, %57 : vector<2x64x8xf32>
    %c0_45 = arith.constant 0 : index
    %c0_46 = arith.constant 0 : index
    %c0_47 = arith.constant 0 : index
    %c8_48 = arith.constant 8 : index
    %59 = vector.load %arg5[%c0_45, %c0_46, %c0_47, %c8_48] : memref<2x2x64x32xf32, #tpu.memory_space<vmem>>, vector<2x1x64x8xf32>
    %60 = vector.shape_cast %59 : vector<2x1x64x8xf32> to vector<2x64x8xf32>
    %61 = vector.shape_cast %58 : vector<2x64x8xf32> to vector<2x1x64x8xf32>
    tpu.vector_store %arg5[%c0_45, %c0_46, %c0_47, %c8_48], %61 {strides = array<i32>} : memref<2x2x64x32xf32, #tpu.memory_space<vmem>>, vector<2x1x64x8xf32>,
    %c0_49 = arith.constant 0 : index
    %c0_50 = arith.constant 0 : index
    %c0_51 = arith.constant 0 : index
    %c0_52 = arith.constant 0 : index
    %c16 = arith.constant 16 : index
    %62 = vector.load %arg3[%c0_49, %c0_50, %c0_51, %c0_52, %c16] : memref<3x1x16x16x32xf32, #tpu.memory_space<vmem>>, vector<1x1x16x8x8xf32>
    %63 = vector.shape_cast %62 : vector<1x1x16x8x8xf32> to vector<16x8x8xf32>
    %64 = vector.shape_cast %63 : vector<16x8x8xf32> to vector<2x64x8xf32>
    %c1_53 = arith.constant 1 : index
    %c0_54 = arith.constant 0 : index
    %c0_55 = arith.constant 0 : index
    %c0_56 = arith.constant 0 : index
    %c16_57 = arith.constant 16 : index
    %65 = vector.load %arg3[%c1_53, %c0_54, %c0_55, %c0_56, %c16_57] : memref<3x1x16x16x32xf32, #tpu.memory_space<vmem>>, vector<1x1x16x8x8xf32>
    %66 = vector.shape_cast %65 : vector<1x1x16x8x8xf32> to vector<16x8x8xf32>
    %67 = vector.shape_cast %66 : vector<16x8x8xf32> to vector<2x64x8xf32>
    %c2_58 = arith.constant 2 : index
    %c0_59 = arith.constant 0 : index
    %c0_60 = arith.constant 0 : index
    %c0_61 = arith.constant 0 : index
    %c16_62 = arith.constant 16 : index
    %68 = vector.load %arg3[%c2_58, %c0_59, %c0_60, %c0_61, %c16_62] : memref<3x1x16x16x32xf32, #tpu.memory_space<vmem>>, vector<1x1x16x8x8xf32>
    %69 = vector.shape_cast %68 : vector<1x1x16x8x8xf32> to vector<16x8x8xf32>
    %70 = vector.shape_cast %69 : vector<16x8x8xf32> to vector<2x64x8xf32>
    %cst_63 = arith.constant 0.353553385 : f32
    %71 = vector.broadcast %cst_63 : f32 to vector<2x64x8xf32>
    %72 = arith.mulf %64, %71 : vector<2x64x8xf32>
    "tpu.trace_start"() <{level = 10 : i32, message = "wnd,wmd->wnm"}> : () -> ()
    %cst_64 = arith.constant dense<0.000000e+00> : vector<2x64x64xf32>
    %73 = tpu.matmul %72, %67, %cst_64 {dimension_numbers = #tpu.dot_dimension_numbers<[2], [2], [1], [1], [0, 0, 0, 1, 1, 1], [0], [0]>} : vector<2x64x8xf32>, vector<2x64x8xf32>, vector<2x64x64xf32> -> vector<2x64x64xf32>
    "tpu.trace_stop"() : () -> ()
    %c2_65 = arith.constant 2 : index
    %c0_66 = arith.constant 0 : index
    %c0_67 = arith.constant 0 : index
    %74 = vector.load %arg2[%c2_65, %c0_66, %c0_67] : memref<4x64x64xf32, #tpu.memory_space<vmem>>, vector<1x64x64xf32>
    %75 = vector.shape_cast %74 : vector<1x64x64xf32> to vector<64x64xf32>
    %76 = vector.shape_cast %75 : vector<64x64xf32> to vector<1x64x64xf32>
    %77 = vector.broadcast %76 : vector<1x64x64xf32> to vector<2x64x64xf32>
    %78 = arith.addf %73, %77 : vector<2x64x64xf32>
    %cst_68 = arith.constant dense<0xFF800000> : vector<2x64xf32>
    %79 = vector.multi_reduction <maximumf>, %78, %cst_68 [2] : vector<2x64x64xf32> to vector<2x64xf32>
    %80 = vector.shape_cast %79 : vector<2x64xf32> to vector<2x64x1xf32>
    %81 = vector.broadcast %80 : vector<2x64x1xf32> to vector<2x64x64xf32>
    %82 = arith.subf %78, %81 : vector<2x64x64xf32>
    %83 = math.exp %82 : vector<2x64x64xf32>
    %cst_69 = arith.constant dense<0.000000e+00> : vector<2x64xf32>
    %84 = vector.multi_reduction <add>, %83, %cst_69 [2] : vector<2x64x64xf32> to vector<2x64xf32>
    %85 = vector.shape_cast %84 : vector<2x64xf32> to vector<2x64x1xf32>
    "tpu.trace_start"() <{level = 10 : i32, message = "wnm,wmd->wnd"}> : () -> ()
    %cst_70 = arith.constant dense<0.000000e+00> : vector<2x64x8xf32>
    %86 = tpu.matmul %83, %70, %cst_70 {dimension_numbers = #tpu.dot_dimension_numbers<[2], [1], [1], [2], [0, 0, 0, 1, 1, 2], [0], [0]>} : vector<2x64x64xf32>, vector<2x64x8xf32>, vector<2x64x8xf32> -> vector<2x64x8xf32>
    "tpu.trace_stop"() : () -> ()
    %87 = tpu.reciprocal %85 : vector<2x64x1xf32> -> vector<2x64x1xf32>
    %88 = vector.broadcast %87 : vector<2x64x1xf32> to vector<2x64x8xf32>
    %89 = arith.mulf %86, %88 : vector<2x64x8xf32>
    %c0_71 = arith.constant 0 : index
    %c0_72 = arith.constant 0 : index
    %c0_73 = arith.constant 0 : index
    %c16_74 = arith.constant 16 : index
    %90 = vector.load %arg5[%c0_71, %c0_72, %c0_73, %c16_74] : memref<2x2x64x32xf32, #tpu.memory_space<vmem>>, vector<2x1x64x8xf32>
    %91 = vector.shape_cast %90 : vector<2x1x64x8xf32> to vector<2x64x8xf32>
    %92 = vector.shape_cast %89 : vector<2x64x8xf32> to vector<2x1x64x8xf32>
    tpu.vector_store %arg5[%c0_71, %c0_72, %c0_73, %c16_74], %92 {strides = array<i32>} : memref<2x2x64x32xf32, #tpu.memory_space<vmem>>, vector<2x1x64x8xf32>,
    %c0_75 = arith.constant 0 : index
    %c0_76 = arith.constant 0 : index
    %c0_77 = arith.constant 0 : index
    %c0_78 = arith.constant 0 : index
    %c24 = arith.constant 24 : index
    %93 = vector.load %arg3[%c0_75, %c0_76, %c0_77, %c0_78, %c24] : memref<3x1x16x16x32xf32, #tpu.memory_space<vmem>>, vector<1x1x16x8x8xf32>
    %94 = vector.shape_cast %93 : vector<1x1x16x8x8xf32> to vector<16x8x8xf32>
    %95 = vector.shape_cast %94 : vector<16x8x8xf32> to vector<2x64x8xf32>
    %c1_79 = arith.constant 1 : index
    %c0_80 = arith.constant 0 : index
    %c0_81 = arith.constant 0 : index
    %c0_82 = arith.constant 0 : index
    %c24_83 = arith.constant 24 : index
    %96 = vector.load %arg3[%c1_79, %c0_80, %c0_81, %c0_82, %c24_83] : memref<3x1x16x16x32xf32, #tpu.memory_space<vmem>>, vector<1x1x16x8x8xf32>
    %97 = vector.shape_cast %96 : vector<1x1x16x8x8xf32> to vector<16x8x8xf32>
    %98 = vector.shape_cast %97 : vector<16x8x8xf32> to vector<2x64x8xf32>
    %c2_84 = arith.constant 2 : index
    %c0_85 = arith.constant 0 : index
    %c0_86 = arith.constant 0 : index
    %c0_87 = arith.constant 0 : index
    %c24_88 = arith.constant 24 : index
    %99 = vector.load %arg3[%c2_84, %c0_85, %c0_86, %c0_87, %c24_88] : memref<3x1x16x16x32xf32, #tpu.memory_space<vmem>>, vector<1x1x16x8x8xf32>
    %100 = vector.shape_cast %99 : vector<1x1x16x8x8xf32> to vector<16x8x8xf32>
    %101 = vector.shape_cast %100 : vector<16x8x8xf32> to vector<2x64x8xf32>
    %cst_89 = arith.constant 0.353553385 : f32
    %102 = vector.broadcast %cst_89 : f32 to vector<2x64x8xf32>
    %103 = arith.mulf %95, %102 : vector<2x64x8xf32>
    "tpu.trace_start"() <{level = 10 : i32, message = "wnd,wmd->wnm"}> : () -> ()
    %cst_90 = arith.constant dense<0.000000e+00> : vector<2x64x64xf32>
    %104 = tpu.matmul %103, %98, %cst_90 {dimension_numbers = #tpu.dot_dimension_numbers<[2], [2], [1], [1], [0, 0, 0, 1, 1, 1], [0], [0]>} : vector<2x64x8xf32>, vector<2x64x8xf32>, vector<2x64x64xf32> -> vector<2x64x64xf32>
    "tpu.trace_stop"() : () -> ()
    %c3 = arith.constant 3 : index
    %c0_91 = arith.constant 0 : index
    %c0_92 = arith.constant 0 : index
    %105 = vector.load %arg2[%c3, %c0_91, %c0_92] : memref<4x64x64xf32, #tpu.memory_space<vmem>>, vector<1x64x64xf32>
    %106 = vector.shape_cast %105 : vector<1x64x64xf32> to vector<64x64xf32>
    %107 = vector.shape_cast %106 : vector<64x64xf32> to vector<1x64x64xf32>
    %108 = vector.broadcast %107 : vector<1x64x64xf32> to vector<2x64x64xf32>
    %109 = arith.addf %104, %108 : vector<2x64x64xf32>
    %cst_93 = arith.constant dense<0xFF800000> : vector<2x64xf32>
    %110 = vector.multi_reduction <maximumf>, %109, %cst_93 [2] : vector<2x64x64xf32> to vector<2x64xf32>
    %111 = vector.shape_cast %110 : vector<2x64xf32> to vector<2x64x1xf32>
    %112 = vector.broadcast %111 : vector<2x64x1xf32> to vector<2x64x64xf32>
    %113 = arith.subf %109, %112 : vector<2x64x64xf32>
    %114 = math.exp %113 : vector<2x64x64xf32>
    %cst_94 = arith.constant dense<0.000000e+00> : vector<2x64xf32>
    %115 = vector.multi_reduction <add>, %114, %cst_94 [2] : vector<2x64x64xf32> to vector<2x64xf32>
    %116 = vector.shape_cast %115 : vector<2x64xf32> to vector<2x64x1xf32>
    "tpu.trace_start"() <{level = 10 : i32, message = "wnm,wmd->wnd"}> : () -> ()
    %cst_95 = arith.constant dense<0.000000e+00> : vector<2x64x8xf32>
    %117 = tpu.matmul %114, %101, %cst_95 {dimension_numbers = #tpu.dot_dimension_numbers<[2], [1], [1], [2], [0, 0, 0, 1, 1, 2], [0], [0]>} : vector<2x64x64xf32>, vector<2x64x8xf32>, vector<2x64x8xf32> -> vector<2x64x8xf32>
    "tpu.trace_stop"() : () -> ()
    %118 = tpu.reciprocal %116 : vector<2x64x1xf32> -> vector<2x64x1xf32>
    %119 = vector.broadcast %118 : vector<2x64x1xf32> to vector<2x64x8xf32>
    %120 = arith.mulf %117, %119 : vector<2x64x8xf32>
    %c0_96 = arith.constant 0 : index
    %c0_97 = arith.constant 0 : index
    %c0_98 = arith.constant 0 : index
    %c24_99 = arith.constant 24 : index
    %121 = vector.load %arg5[%c0_96, %c0_97, %c0_98, %c24_99] : memref<2x2x64x32xf32, #tpu.memory_space<vmem>>, vector<2x1x64x8xf32>
    %122 = vector.shape_cast %121 : vector<2x1x64x8xf32> to vector<2x64x8xf32>
    %123 = vector.shape_cast %120 : vector<2x64x8xf32> to vector<2x1x64x8xf32>
    tpu.vector_store %arg5[%c0_96, %c0_97, %c0_98, %c24_99], %123 {strides = array<i32>} : memref<2x2x64x32xf32, #tpu.memory_space<vmem>>, vector<2x1x64x8xf32>,
    %c0_100 = arith.constant 0 : index
    %c0_101 = arith.constant 0 : index
    %c0_102 = arith.constant 0 : index
    %c8_103 = arith.constant 8 : index
    %c0_104 = arith.constant 0 : index
    %124 = vector.load %arg3[%c0_100, %c0_101, %c0_102, %c8_103, %c0_104] : memref<3x1x16x16x32xf32, #tpu.memory_space<vmem>>, vector<1x1x16x8x8xf32>
    %125 = vector.shape_cast %124 : vector<1x1x16x8x8xf32> to vector<16x8x8xf32>
    %126 = vector.shape_cast %125 : vector<16x8x8xf32> to vector<2x64x8xf32>
    %c1_105 = arith.constant 1 : index
    %c0_106 = arith.constant 0 : index
    %c0_107 = arith.constant 0 : index
    %c8_108 = arith.constant 8 : index
    %c0_109 = arith.constant 0 : index
    %127 = vector.load %arg3[%c1_105, %c0_106, %c0_107, %c8_108, %c0_109] : memref<3x1x16x16x32xf32, #tpu.memory_space<vmem>>, vector<1x1x16x8x8xf32>
    %128 = vector.shape_cast %127 : vector<1x1x16x8x8xf32> to vector<16x8x8xf32>
    %129 = vector.shape_cast %128 : vector<16x8x8xf32> to vector<2x64x8xf32>
    %c2_110 = arith.constant 2 : index
    %c0_111 = arith.constant 0 : index
    %c0_112 = arith.constant 0 : index
    %c8_113 = arith.constant 8 : index
    %c0_114 = arith.constant 0 : index
    %130 = vector.load %arg3[%c2_110, %c0_111, %c0_112, %c8_113, %c0_114] : memref<3x1x16x16x32xf32, #tpu.memory_space<vmem>>, vector<1x1x16x8x8xf32>
    %131 = vector.shape_cast %130 : vector<1x1x16x8x8xf32> to vector<16x8x8xf32>
    %132 = vector.shape_cast %131 : vector<16x8x8xf32> to vector<2x64x8xf32>
    %cst_115 = arith.constant 0.353553385 : f32
    %133 = vector.broadcast %cst_115 : f32 to vector<2x64x8xf32>
    %134 = arith.mulf %126, %133 : vector<2x64x8xf32>
    "tpu.trace_start"() <{level = 10 : i32, message = "wnd,wmd->wnm"}> : () -> ()
    %cst_116 = arith.constant dense<0.000000e+00> : vector<2x64x64xf32>
    %135 = tpu.matmul %134, %129, %cst_116 {dimension_numbers = #tpu.dot_dimension_numbers<[2], [2], [1], [1], [0, 0, 0, 1, 1, 1], [0], [0]>} : vector<2x64x8xf32>, vector<2x64x8xf32>, vector<2x64x64xf32> -> vector<2x64x64xf32>
    "tpu.trace_stop"() : () -> ()
    %c0_117 = arith.constant 0 : index
    %c0_118 = arith.constant 0 : index
    %c0_119 = arith.constant 0 : index
    %136 = vector.load %arg2[%c0_117, %c0_118, %c0_119] : memref<4x64x64xf32, #tpu.memory_space<vmem>>, vector<1x64x64xf32>
    %137 = vector.shape_cast %136 : vector<1x64x64xf32> to vector<64x64xf32>
    %138 = vector.shape_cast %137 : vector<64x64xf32> to vector<1x64x64xf32>
    %139 = vector.broadcast %138 : vector<1x64x64xf32> to vector<2x64x64xf32>
    %140 = arith.addf %135, %139 : vector<2x64x64xf32>
    %cst_120 = arith.constant dense<0xFF800000> : vector<2x64xf32>
    %141 = vector.multi_reduction <maximumf>, %140, %cst_120 [2] : vector<2x64x64xf32> to vector<2x64xf32>
    %142 = vector.shape_cast %141 : vector<2x64xf32> to vector<2x64x1xf32>
    %143 = vector.broadcast %142 : vector<2x64x1xf32> to vector<2x64x64xf32>
    %144 = arith.subf %140, %143 : vector<2x64x64xf32>
    %145 = math.exp %144 : vector<2x64x64xf32>
    %cst_121 = arith.constant dense<0.000000e+00> : vector<2x64xf32>
    %146 = vector.multi_reduction <add>, %145, %cst_121 [2] : vector<2x64x64xf32> to vector<2x64xf32>
    %147 = vector.shape_cast %146 : vector<2x64xf32> to vector<2x64x1xf32>
    "tpu.trace_start"() <{level = 10 : i32, message = "wnm,wmd->wnd"}> : () -> ()
    %cst_122 = arith.constant dense<0.000000e+00> : vector<2x64x8xf32>
    %148 = tpu.matmul %145, %132, %cst_122 {dimension_numbers = #tpu.dot_dimension_numbers<[2], [1], [1], [2], [0, 0, 0, 1, 1, 2], [0], [0]>} : vector<2x64x64xf32>, vector<2x64x8xf32>, vector<2x64x8xf32> -> vector<2x64x8xf32>
    "tpu.trace_stop"() : () -> ()
    %149 = tpu.reciprocal %147 : vector<2x64x1xf32> -> vector<2x64x1xf32>
    %150 = vector.broadcast %149 : vector<2x64x1xf32> to vector<2x64x8xf32>
    %151 = arith.mulf %148, %150 : vector<2x64x8xf32>
    %c0_123 = arith.constant 0 : index
    %c1_124 = arith.constant 1 : index
    %c0_125 = arith.constant 0 : index
    %c0_126 = arith.constant 0 : index
    %152 = vector.load %arg5[%c0_123, %c1_124, %c0_125, %c0_126] : memref<2x2x64x32xf32, #tpu.memory_space<vmem>>, vector<2x1x64x8xf32>
    %153 = vector.shape_cast %152 : vector<2x1x64x8xf32> to vector<2x64x8xf32>
    %154 = vector.shape_cast %151 : vector<2x64x8xf32> to vector<2x1x64x8xf32>
    tpu.vector_store %arg5[%c0_123, %c1_124, %c0_125, %c0_126], %154 {strides = array<i32>} : memref<2x2x64x32xf32, #tpu.memory_space<vmem>>, vector<2x1x64x8xf32>,
    %c0_127 = arith.constant 0 : index
    %c0_128 = arith.constant 0 : index
    %c0_129 = arith.constant 0 : index
    %c8_130 = arith.constant 8 : index
    %c8_131 = arith.constant 8 : index
    %155 = vector.load %arg3[%c0_127, %c0_128, %c0_129, %c8_130, %c8_131] : memref<3x1x16x16x32xf32, #tpu.memory_space<vmem>>, vector<1x1x16x8x8xf32>
    %156 = vector.shape_cast %155 : vector<1x1x16x8x8xf32> to vector<16x8x8xf32>
    %157 = vector.shape_cast %156 : vector<16x8x8xf32> to vector<2x64x8xf32>
    %c1_132 = arith.constant 1 : index
    %c0_133 = arith.constant 0 : index
    %c0_134 = arith.constant 0 : index
    %c8_135 = arith.constant 8 : index
    %c8_136 = arith.constant 8 : index
    %158 = vector.load %arg3[%c1_132, %c0_133, %c0_134, %c8_135, %c8_136] : memref<3x1x16x16x32xf32, #tpu.memory_space<vmem>>, vector<1x1x16x8x8xf32>
    %159 = vector.shape_cast %158 : vector<1x1x16x8x8xf32> to vector<16x8x8xf32>
    %160 = vector.shape_cast %159 : vector<16x8x8xf32> to vector<2x64x8xf32>
    %c2_137 = arith.constant 2 : index
    %c0_138 = arith.constant 0 : index
    %c0_139 = arith.constant 0 : index
    %c8_140 = arith.constant 8 : index
    %c8_141 = arith.constant 8 : index
    %161 = vector.load %arg3[%c2_137, %c0_138, %c0_139, %c8_140, %c8_141] : memref<3x1x16x16x32xf32, #tpu.memory_space<vmem>>, vector<1x1x16x8x8xf32>
    %162 = vector.shape_cast %161 : vector<1x1x16x8x8xf32> to vector<16x8x8xf32>
    %163 = vector.shape_cast %162 : vector<16x8x8xf32> to vector<2x64x8xf32>
    %cst_142 = arith.constant 0.353553385 : f32
    %164 = vector.broadcast %cst_142 : f32 to vector<2x64x8xf32>
    %165 = arith.mulf %157, %164 : vector<2x64x8xf32>
    "tpu.trace_start"() <{level = 10 : i32, message = "wnd,wmd->wnm"}> : () -> ()
    %cst_143 = arith.constant dense<0.000000e+00> : vector<2x64x64xf32>
    %166 = tpu.matmul %165, %160, %cst_143 {dimension_numbers = #tpu.dot_dimension_numbers<[2], [2], [1], [1], [0, 0, 0, 1, 1, 1], [0], [0]>} : vector<2x64x8xf32>, vector<2x64x8xf32>, vector<2x64x64xf32> -> vector<2x64x64xf32>
    "tpu.trace_stop"() : () -> ()
    %c1_144 = arith.constant 1 : index
    %c0_145 = arith.constant 0 : index
    %c0_146 = arith.constant 0 : index
    %167 = vector.load %arg2[%c1_144, %c0_145, %c0_146] : memref<4x64x64xf32, #tpu.memory_space<vmem>>, vector<1x64x64xf32>
    %168 = vector.shape_cast %167 : vector<1x64x64xf32> to vector<64x64xf32>
    %169 = vector.shape_cast %168 : vector<64x64xf32> to vector<1x64x64xf32>
    %170 = vector.broadcast %169 : vector<1x64x64xf32> to vector<2x64x64xf32>
    %171 = arith.addf %166, %170 : vector<2x64x64xf32>
    %cst_147 = arith.constant dense<0xFF800000> : vector<2x64xf32>
    %172 = vector.multi_reduction <maximumf>, %171, %cst_147 [2] : vector<2x64x64xf32> to vector<2x64xf32>
    %173 = vector.shape_cast %172 : vector<2x64xf32> to vector<2x64x1xf32>
    %174 = vector.broadcast %173 : vector<2x64x1xf32> to vector<2x64x64xf32>
    %175 = arith.subf %171, %174 : vector<2x64x64xf32>
    %176 = math.exp %175 : vector<2x64x64xf32>
    %cst_148 = arith.constant dense<0.000000e+00> : vector<2x64xf32>
    %177 = vector.multi_reduction <add>, %176, %cst_148 [2] : vector<2x64x64xf32> to vector<2x64xf32>
    %178 = vector.shape_cast %177 : vector<2x64xf32> to vector<2x64x1xf32>
    "tpu.trace_start"() <{level = 10 : i32, message = "wnm,wmd->wnd"}> : () -> ()
    %cst_149 = arith.constant dense<0.000000e+00> : vector<2x64x8xf32>
    %179 = tpu.matmul %176, %163, %cst_149 {dimension_numbers = #tpu.dot_dimension_numbers<[2], [1], [1], [2], [0, 0, 0, 1, 1, 2], [0], [0]>} : vector<2x64x64xf32>, vector<2x64x8xf32>, vector<2x64x8xf32> -> vector<2x64x8xf32>
    "tpu.trace_stop"() : () -> ()
    %180 = tpu.reciprocal %178 : vector<2x64x1xf32> -> vector<2x64x1xf32>
    %181 = vector.broadcast %180 : vector<2x64x1xf32> to vector<2x64x8xf32>
    %182 = arith.mulf %179, %181 : vector<2x64x8xf32>
    %c0_150 = arith.constant 0 : index
    %c1_151 = arith.constant 1 : index
    %c0_152 = arith.constant 0 : index
    %c8_153 = arith.constant 8 : index
    %183 = vector.load %arg5[%c0_150, %c1_151, %c0_152, %c8_153] : memref<2x2x64x32xf32, #tpu.memory_space<vmem>>, vector<2x1x64x8xf32>
    %184 = vector.shape_cast %183 : vector<2x1x64x8xf32> to vector<2x64x8xf32>
    %185 = vector.shape_cast %182 : vector<2x64x8xf32> to vector<2x1x64x8xf32>
    tpu.vector_store %arg5[%c0_150, %c1_151, %c0_152, %c8_153], %185 {strides = array<i32>} : memref<2x2x64x32xf32, #tpu.memory_space<vmem>>, vector<2x1x64x8xf32>,
    %c0_154 = arith.constant 0 : index
    %c0_155 = arith.constant 0 : index
    %c0_156 = arith.constant 0 : index
    %c8_157 = arith.constant 8 : index
    %c16_158 = arith.constant 16 : index
    %186 = vector.load %arg3[%c0_154, %c0_155, %c0_156, %c8_157, %c16_158] : memref<3x1x16x16x32xf32, #tpu.memory_space<vmem>>, vector<1x1x16x8x8xf32>
    %187 = vector.shape_cast %186 : vector<1x1x16x8x8xf32> to vector<16x8x8xf32>
    %188 = vector.shape_cast %187 : vector<16x8x8xf32> to vector<2x64x8xf32>
    %c1_159 = arith.constant 1 : index
    %c0_160 = arith.constant 0 : index
    %c0_161 = arith.constant 0 : index
    %c8_162 = arith.constant 8 : index
    %c16_163 = arith.constant 16 : index
    %189 = vector.load %arg3[%c1_159, %c0_160, %c0_161, %c8_162, %c16_163] : memref<3x1x16x16x32xf32, #tpu.memory_space<vmem>>, vector<1x1x16x8x8xf32>
    %190 = vector.shape_cast %189 : vector<1x1x16x8x8xf32> to vector<16x8x8xf32>
    %191 = vector.shape_cast %190 : vector<16x8x8xf32> to vector<2x64x8xf32>
    %c2_164 = arith.constant 2 : index
    %c0_165 = arith.constant 0 : index
    %c0_166 = arith.constant 0 : index
    %c8_167 = arith.constant 8 : index
    %c16_168 = arith.constant 16 : index
    %192 = vector.load %arg3[%c2_164, %c0_165, %c0_166, %c8_167, %c16_168] : memref<3x1x16x16x32xf32, #tpu.memory_space<vmem>>, vector<1x1x16x8x8xf32>
    %193 = vector.shape_cast %192 : vector<1x1x16x8x8xf32> to vector<16x8x8xf32>
    %194 = vector.shape_cast %193 : vector<16x8x8xf32> to vector<2x64x8xf32>
    %cst_169 = arith.constant 0.353553385 : f32
    %195 = vector.broadcast %cst_169 : f32 to vector<2x64x8xf32>
    %196 = arith.mulf %188, %195 : vector<2x64x8xf32>
    "tpu.trace_start"() <{level = 10 : i32, message = "wnd,wmd->wnm"}> : () -> ()
    %cst_170 = arith.constant dense<0.000000e+00> : vector<2x64x64xf32>
    %197 = tpu.matmul %196, %191, %cst_170 {dimension_numbers = #tpu.dot_dimension_numbers<[2], [2], [1], [1], [0, 0, 0, 1, 1, 1], [0], [0]>} : vector<2x64x8xf32>, vector<2x64x8xf32>, vector<2x64x64xf32> -> vector<2x64x64xf32>
    "tpu.trace_stop"() : () -> ()
    %c2_171 = arith.constant 2 : index
    %c0_172 = arith.constant 0 : index
    %c0_173 = arith.constant 0 : index
    %198 = vector.load %arg2[%c2_171, %c0_172, %c0_173] : memref<4x64x64xf32, #tpu.memory_space<vmem>>, vector<1x64x64xf32>
    %199 = vector.shape_cast %198 : vector<1x64x64xf32> to vector<64x64xf32>
    %200 = vector.shape_cast %199 : vector<64x64xf32> to vector<1x64x64xf32>
    %201 = vector.broadcast %200 : vector<1x64x64xf32> to vector<2x64x64xf32>
    %202 = arith.addf %197, %201 : vector<2x64x64xf32>
    %cst_174 = arith.constant dense<0xFF800000> : vector<2x64xf32>
    %203 = vector.multi_reduction <maximumf>, %202, %cst_174 [2] : vector<2x64x64xf32> to vector<2x64xf32>
    %204 = vector.shape_cast %203 : vector<2x64xf32> to vector<2x64x1xf32>
    %205 = vector.broadcast %204 : vector<2x64x1xf32> to vector<2x64x64xf32>
    %206 = arith.subf %202, %205 : vector<2x64x64xf32>
    %207 = math.exp %206 : vector<2x64x64xf32>
    %cst_175 = arith.constant dense<0.000000e+00> : vector<2x64xf32>
    %208 = vector.multi_reduction <add>, %207, %cst_175 [2] : vector<2x64x64xf32> to vector<2x64xf32>
    %209 = vector.shape_cast %208 : vector<2x64xf32> to vector<2x64x1xf32>
    "tpu.trace_start"() <{level = 10 : i32, message = "wnm,wmd->wnd"}> : () -> ()
    %cst_176 = arith.constant dense<0.000000e+00> : vector<2x64x8xf32>
    %210 = tpu.matmul %207, %194, %cst_176 {dimension_numbers = #tpu.dot_dimension_numbers<[2], [1], [1], [2], [0, 0, 0, 1, 1, 2], [0], [0]>} : vector<2x64x64xf32>, vector<2x64x8xf32>, vector<2x64x8xf32> -> vector<2x64x8xf32>
    "tpu.trace_stop"() : () -> ()
    %211 = tpu.reciprocal %209 : vector<2x64x1xf32> -> vector<2x64x1xf32>
    %212 = vector.broadcast %211 : vector<2x64x1xf32> to vector<2x64x8xf32>
    %213 = arith.mulf %210, %212 : vector<2x64x8xf32>
    %c0_177 = arith.constant 0 : index
    %c1_178 = arith.constant 1 : index
    %c0_179 = arith.constant 0 : index
    %c16_180 = arith.constant 16 : index
    %214 = vector.load %arg5[%c0_177, %c1_178, %c0_179, %c16_180] : memref<2x2x64x32xf32, #tpu.memory_space<vmem>>, vector<2x1x64x8xf32>
    %215 = vector.shape_cast %214 : vector<2x1x64x8xf32> to vector<2x64x8xf32>
    %216 = vector.shape_cast %213 : vector<2x64x8xf32> to vector<2x1x64x8xf32>
    tpu.vector_store %arg5[%c0_177, %c1_178, %c0_179, %c16_180], %216 {strides = array<i32>} : memref<2x2x64x32xf32, #tpu.memory_space<vmem>>, vector<2x1x64x8xf32>,
    %c0_181 = arith.constant 0 : index
    %c0_182 = arith.constant 0 : index
    %c0_183 = arith.constant 0 : index
    %c8_184 = arith.constant 8 : index
    %c24_185 = arith.constant 24 : index
    %217 = vector.load %arg3[%c0_181, %c0_182, %c0_183, %c8_184, %c24_185] : memref<3x1x16x16x32xf32, #tpu.memory_space<vmem>>, vector<1x1x16x8x8xf32>
    %218 = vector.shape_cast %217 : vector<1x1x16x8x8xf32> to vector<16x8x8xf32>
    %219 = vector.shape_cast %218 : vector<16x8x8xf32> to vector<2x64x8xf32>
    %c1_186 = arith.constant 1 : index
    %c0_187 = arith.constant 0 : index
    %c0_188 = arith.constant 0 : index
    %c8_189 = arith.constant 8 : index
    %c24_190 = arith.constant 24 : index
    %220 = vector.load %arg3[%c1_186, %c0_187, %c0_188, %c8_189, %c24_190] : memref<3x1x16x16x32xf32, #tpu.memory_space<vmem>>, vector<1x1x16x8x8xf32>
    %221 = vector.shape_cast %220 : vector<1x1x16x8x8xf32> to vector<16x8x8xf32>
    %222 = vector.shape_cast %221 : vector<16x8x8xf32> to vector<2x64x8xf32>
    %c2_191 = arith.constant 2 : index
    %c0_192 = arith.constant 0 : index
    %c0_193 = arith.constant 0 : index
    %c8_194 = arith.constant 8 : index
    %c24_195 = arith.constant 24 : index
    %223 = vector.load %arg3[%c2_191, %c0_192, %c0_193, %c8_194, %c24_195] : memref<3x1x16x16x32xf32, #tpu.memory_space<vmem>>, vector<1x1x16x8x8xf32>
    %224 = vector.shape_cast %223 : vector<1x1x16x8x8xf32> to vector<16x8x8xf32>
    %225 = vector.shape_cast %224 : vector<16x8x8xf32> to vector<2x64x8xf32>
    %cst_196 = arith.constant 0.353553385 : f32
    %226 = vector.broadcast %cst_196 : f32 to vector<2x64x8xf32>
    %227 = arith.mulf %219, %226 : vector<2x64x8xf32>
    "tpu.trace_start"() <{level = 10 : i32, message = "wnd,wmd->wnm"}> : () -> ()
    %cst_197 = arith.constant dense<0.000000e+00> : vector<2x64x64xf32>
    %228 = tpu.matmul %227, %222, %cst_197 {dimension_numbers = #tpu.dot_dimension_numbers<[2], [2], [1], [1], [0, 0, 0, 1, 1, 1], [0], [0]>} : vector<2x64x8xf32>, vector<2x64x8xf32>, vector<2x64x64xf32> -> vector<2x64x64xf32>
    "tpu.trace_stop"() : () -> ()
    %c3_198 = arith.constant 3 : index
    %c0_199 = arith.constant 0 : index
    %c0_200 = arith.constant 0 : index
    %229 = vector.load %arg2[%c3_198, %c0_199, %c0_200] : memref<4x64x64xf32, #tpu.memory_space<vmem>>, vector<1x64x64xf32>
    %230 = vector.shape_cast %229 : vector<1x64x64xf32> to vector<64x64xf32>
    %231 = vector.shape_cast %230 : vector<64x64xf32> to vector<1x64x64xf32>
    %232 = vector.broadcast %231 : vector<1x64x64xf32> to vector<2x64x64xf32>
    %233 = arith.addf %228, %232 : vector<2x64x64xf32>
    %cst_201 = arith.constant dense<0xFF800000> : vector<2x64xf32>
    %234 = vector.multi_reduction <maximumf>, %233, %cst_201 [2] : vector<2x64x64xf32> to vector<2x64xf32>
    %235 = vector.shape_cast %234 : vector<2x64xf32> to vector<2x64x1xf32>
    %236 = vector.broadcast %235 : vector<2x64x1xf32> to vector<2x64x64xf32>
    %237 = arith.subf %233, %236 : vector<2x64x64xf32>
    %238 = math.exp %237 : vector<2x64x64xf32>
    %cst_202 = arith.constant dense<0.000000e+00> : vector<2x64xf32>
    %239 = vector.multi_reduction <add>, %238, %cst_202 [2] : vector<2x64x64xf32> to vector<2x64xf32>
    %240 = vector.shape_cast %239 : vector<2x64xf32> to vector<2x64x1xf32>
    "tpu.trace_start"() <{level = 10 : i32, message = "wnm,wmd->wnd"}> : () -> ()
    %cst_203 = arith.constant dense<0.000000e+00> : vector<2x64x8xf32>
    %241 = tpu.matmul %238, %225, %cst_203 {dimension_numbers = #tpu.dot_dimension_numbers<[2], [1], [1], [2], [0, 0, 0, 1, 1, 2], [0], [0]>} : vector<2x64x64xf32>, vector<2x64x8xf32>, vector<2x64x8xf32> -> vector<2x64x8xf32>
    "tpu.trace_stop"() : () -> ()
    %242 = tpu.reciprocal %240 : vector<2x64x1xf32> -> vector<2x64x1xf32>
    %243 = vector.broadcast %242 : vector<2x64x1xf32> to vector<2x64x8xf32>
    %244 = arith.mulf %241, %243 : vector<2x64x8xf32>
    %c0_204 = arith.constant 0 : index
    %c1_205 = arith.constant 1 : index
    %c0_206 = arith.constant 0 : index
    %c24_207 = arith.constant 24 : index
    %245 = vector.load %arg5[%c0_204, %c1_205, %c0_206, %c24_207] : memref<2x2x64x32xf32, #tpu.memory_space<vmem>>, vector<2x1x64x8xf32>
    %246 = vector.shape_cast %245 : vector<2x1x64x8xf32> to vector<2x64x8xf32>
    %247 = vector.shape_cast %244 : vector<2x64x8xf32> to vector<2x1x64x8xf32>
    tpu.vector_store %arg5[%c0_204, %c1_205, %c0_206, %c24_207], %247 {strides = array<i32>} : memref<2x2x64x32xf32, #tpu.memory_space<vmem>>, vector<2x1x64x8xf32>,
    %c0_208 = arith.constant 0 : index
    %c0_209 = arith.constant 0 : index
    %c0_210 = arith.constant 0 : index
    %c0_211 = arith.constant 0 : index
    %248 = vector.load %arg5[%c0_208, %c0_209, %c0_210, %c0_211] : memref<2x2x64x32xf32, #tpu.memory_space<vmem>>, vector<2x2x64x32xf32>
    %c0_212 = arith.constant 0 : index
    %c0_213 = arith.constant 0 : index
    %c0_214 = arith.constant 0 : index
    %c0_215 = arith.constant 0 : index
    %c0_216 = arith.constant 0 : index
    %249 = vector.load %arg4[%c0_212, %c0_213, %c0_214, %c0_215, %c0_216] : memref<1x2x2x64x32xf32, #tpu.memory_space<vmem>>, vector<1x2x2x64x32xf32>
    %250 = vector.shape_cast %249 : vector<1x2x2x64x32xf32> to vector<2x2x64x32xf32>
    %251 = vector.shape_cast %248 : vector<2x2x64x32xf32> to vector<1x2x2x64x32xf32>
    tpu.vector_store %arg4[%c0_212, %c0_213, %c0_214, %c0_215, %c0_216], %251 {strides = array<i32>} : memref<1x2x2x64x32xf32, #tpu.memory_space<vmem>>, vector<1x2x2x64x32xf32>,
    return
  }
  func.func @transform_0(%arg0: i32, %arg1: i32) -> (i32, i32, i32) {
    %c0_i32 = arith.constant 0 : i32
    %c0_i32_0 = arith.constant 0 : i32
    %c0_i32_1 = arith.constant 0 : i32
    %c0_i32_2 = arith.constant 0 : i32
    return %c0_i32, %c0_i32_0, %c0_i32_1 : i32, i32, i32
  }
  func.func @transform_1(%arg0: i32, %arg1: i32) -> (i32, i32, i32, i32, i32) {
    %c0_i32 = arith.constant 0 : i32
    %c0_i32_0 = arith.constant 0 : i32
    %c0_i32_1 = arith.constant 0 : i32
    %c0_i32_2 = arith.constant 0 : i32
    return %c0_i32, %arg0, %c0_i32_0, %arg1, %c0_i32_1 : i32, i32, i32, i32, i32
  }
  func.func @transform_2(%arg0: i32, %arg1: i32) -> (i32, i32, i32, i32, i32) {
    %c0_i32 = arith.constant 0 : i32
    %c0_i32_0 = arith.constant 0 : i32
    %c0_i32_1 = arith.constant 0 : i32
    %c0_i32_2 = arith.constant 0 : i32
    return %arg0, %c0_i32, %arg1, %c0_i32_0, %c0_i32_1 : i32, i32, i32, i32, i32
  }
}

</mosaic_0001>

<llo_original>
// kernel: tpu_custom_call.1
$region0: #{tpu_custom_call.1}
  #allocation0 [shape = 'u32[]', space=smem, size = 0x4, offset = 0x4, fixed_abs, tag = 'smem constant byte address 0x4 - core index']
  #allocation1 [shape = 'u32[144,128]{1,0:T(1,128)}', space=vmem, size = 0x12000, scoped, tag = 'internal scratch']
  #allocation2 [shape = 'f32[2,2,64,32]{3,2,1,0:T(8,128)}', space=vmem, size = 0x20000, scoped, tag = 'scratch operand']
  #allocation7 [shape = 's32[]', space=sflag, size = 0x4, offset = 0, fixed_abs, tag = 'sflag constant byte address 0x0 - dummy sync flag']
  %s0 = inlined_call_operand.hbm [shape: f32[4,64,64], index: 0, kind: input, shape index: {}]
  %s1 = inlined_call_operand.hbm [shape: f32[3,2,16,16,32], index: 1, kind: input, shape index: {}]
  %s2 = inlined_call_operand.vmem [shape: f32[2,2,2,64,32], index: 2, kind: output, shape index: {}]
  %s3 = sld [smem:[#allocation0]]
  $region49: #{tpu_custom_call.1} parent=0
    _
  %s5 = ssub.s32 1, %s3
  %s6 = scalar_select 0, %s5, %s3
  $region1: #{tpu_custom_call.1} parent=0
    #allocation3 [shape = 'u8[131072]{0}', space=vmem, size = 0x20000, scoped, tag = 'input window, operand 0, single buffered']
    #allocation4 [shape = 's32[2]{0}', space=sflag, size = 0x8, scoped, tag = 'scoped memory for tpu_custom_call.1']
    #allocation5 [shape = 'u8[786432]{0}', space=vmem, size = 0xc0000, scoped, tag = 'input window, operand 1']
    #allocation6 [shape = 's32[2]{0}', space=sflag, size = 0x8, scoped, tag = 'scoped memory for tpu_custom_call.1']
    %7 = vsyncpa [#allocation4], 0
    %8 = vsyncpa [#allocation6], 0
    %s9 = scalar_lea.sflag [#allocation6], 1
    %10 = vsyncpa %s9, 0
    loop: start=0, step=1, limit=4
    $region2: #{tpu_custom_call.1} parent=1 // loop_pre_header
      _
    $region3: #{tpu_custom_call.1} parent=1 // loop_header
      %s12 = sphi 0, %s16
      %p13 = scmp.ge.s32.totalorder %s12, 4
      %s19 = sphi 0, %s31
      %s20 = sphi 0, %s27
      %s21 = sphi 0, %s19
      %s22 = sphi 0, %s20
      %s23 = sphi 0, %s21
      %s24 = sphi 0, %s22
      %s32 = sphi 0, %s32
      %s34 = sphi 0, %s32
      %s35 = sphi 0, %s34
      %s49 = sphi 0, %s35
      %s57 = sphi 0, %s59
      %s60 = sphi 0, %s57
      %s61 = sphi 0, %s60
      %s77 = sphi 0, %s61
      %s85 = sphi 0, %s87
      %s88 = sphi 0, %s85
      %s89 = sphi 0, %s88
      %s105 = sphi 0, %s89
    $region4: #{tpu_custom_call.1} parent=1 // loop_header_branch
      %15 = sbr.rel (%p13) target = $region8
    $region5: #{tpu_custom_call.1} parent=1 // loop_body
      %s17 = ssub.s32 %s12, 1
      %s18 = ssub.s32 %s12, 2
      %s25 = sadd.s32 1, %s20
      %p26 = scmp.ge.s32.totalorder %s25, 1
      %s27 = scalar_select %p26, 0, %s25
      %s28 = sadd.s32 1, %s19
      %s29 = scalar_select %p26, %s28, %s19
      %p30 = scmp.ge.s32.totalorder %s29, 2
      %s31 = scalar_select %p30, 0, %s29
      %s33 = sadd.s32 %s32, 1
      %p36 = scmp.eq.s32.totalorder %s12, 1
      %p37 = scmp.ne.s32.totalorder %s32, %s34
      %p38 = scmp.eq.s32.totalorder %s12, 0
      %p39 = por %p37, %p38
      %p40 = scmp.ne.s32.totalorder %s32, %s34
      %p41 = scmp.eq.s32.totalorder %s17, 1
      %p42 = por %p40, %p41
      %p43 = scmp.ne.s32.totalorder %s34, %s35
      %p44 = scmp.eq.s32.totalorder %s17, 0
      %p45 = por %p43, %p44
      %p46 = scmp.ne.s32.totalorder %s34, %s35
      %p47 = scmp.eq.s32.totalorder %s18, 1
      %p48 = por %p46, %p47
      %p50 = scmp.ne.s32.totalorder %s35, %s49
      %p51 = scmp.eq.s32.totalorder %s18, 0
      %p52 = por %p50, %p51
      %s53 = ssub.s32 %s19, %s31
      %s54 = ssub.s32 %s20, %s27
      %s55 = sor.u32 %s53, %s54
      %p56 = scmp.eq.s32.totalorder %s55, 0
      %s58 = sadd.s32 %s57, 1
      %s59 = scalar_select %p56, %s57, %s58
      %p62 = pneg %p56
      %p63 = scmp.eq.s32.totalorder %s12, 1
      %p64 = por %p62, %p63
      %p65 = scmp.ne.s32.totalorder %s57, %s60
      %p66 = scmp.eq.s32.totalorder %s12, 0
      %p67 = por %p65, %p66
      %p68 = scmp.ne.s32.totalorder %s57, %s60
      %p69 = scmp.eq.s32.totalorder %s17, 1
      %p70 = por %p68, %p69
      %p71 = scmp.ne.s32.totalorder %s60, %s61
      %p72 = scmp.eq.s32.totalorder %s17, 0
      %p73 = por %p71, %p72
      %p74 = scmp.ne.s32.totalorder %s60, %s61
      %p75 = scmp.eq.s32.totalorder %s18, 1
      %p76 = por %p74, %p75
      %p78 = scmp.ne.s32.totalorder %s61, %s77
      %p79 = scmp.eq.s32.totalorder %s18, 0
      %p80 = por %p78, %p79
      %s81 = ssub.s32 %s19, %s31
      %s82 = ssub.s32 %s20, %s27
      %s83 = sor.u32 %s81, %s82
      %p84 = scmp.eq.s32.totalorder %s83, 0
      %s86 = sadd.s32 %s85, 1
      %s87 = scalar_select %p84, %s85, %s86
      %p90 = pneg %p84
      %p91 = scmp.eq.s32.totalorder %s12, 1
      %p92 = por %p90, %p91
      %p93 = scmp.ne.s32.totalorder %s85, %s88
      %p94 = scmp.eq.s32.totalorder %s12, 0
      %p95 = por %p93, %p94
      %p96 = scmp.ne.s32.totalorder %s85, %s88
      %p97 = scmp.eq.s32.totalorder %s17, 1
      %p98 = por %p96, %p97
      %p99 = scmp.ne.s32.totalorder %s88, %s89
      %p100 = scmp.eq.s32.totalorder %s17, 0
      %p101 = por %p99, %p100
      %p102 = scmp.ne.s32.totalorder %s88, %s89
      %p103 = scmp.eq.s32.totalorder %s18, 1
      %p104 = por %p102, %p103
      %p106 = scmp.ne.s32.totalorder %s89, %s105
      %p107 = scmp.eq.s32.totalorder %s18, 0
      %p108 = por %p106, %p107
      %p109 = scmp.le.s32.totalorder 1, %s12
      %p110 = scmp.lt.s32.totalorder %s12, 3
      %p111 = pnand %p109, %p110
      %p112 = pneg %p111
      // Predicated region
      $region9: #{tpu_custom_call.1} parent=5 // pred_check
        _
      $region10: #{tpu_custom_call.1} parent=5 // pred_check_branch
        %114 = sbr.rel (%p111) target = $region12
      $region11: #{tpu_custom_call.1} parent=5 // pred_region
        %s115 = ssub.s32 %s12, 1
        // Predicated region
        $region13: #{tpu_custom_call.1} parent=11 // pred_check
          %p116 = pneg %p45
        $region14: #{tpu_custom_call.1} parent=11 // pred_check_branch
          %118 = sbr.rel (%p116) target = $region16
        $region15: #{tpu_custom_call.1} parent=11 // pred_region
          %s120 = ssub.s32 4096, 4096
          %121 = vsyncadd [#allocation4], %s120
          %s122 = sshll.u32 [#allocation3], 4
          %s123 = int_to_ptr.vmem [resolvable:$true] %s122
          %128 = dma.hbm_to_vmem [thread:$0]  %s0, 4096, %s123, [#allocation4], 128, 128, 8
        $region16: #{tpu_custom_call.1} parent=11 // pred_fallthru
          _
      $region12: #{tpu_custom_call.1} parent=5 // pred_fallthru
        _
      %p129 = scmp.lt.s32.totalorder %s12, 2
      // Predicated region
      $region17: #{tpu_custom_call.1} parent=5 // pred_check
        %p130 = pneg %p129
      $region18: #{tpu_custom_call.1} parent=5 // pred_check_branch
        %132 = sbr.rel (%p130) target = $region20
      $region19: #{tpu_custom_call.1} parent=5 // pred_region
        // Predicated region
        $region21: #{tpu_custom_call.1} parent=19 // pred_check
          %p133 = pneg %p67
        $region22: #{tpu_custom_call.1} parent=19 // pred_check_branch
          %135 = sbr.rel (%p133) target = $region24
        $region23: #{tpu_custom_call.1} parent=19 // pred_region
          #allocation8 [shape = 'u32[6]{0}', space=smem, size = 0x18, scoped, tag = 'DMA stride descriptor']
          %s136 = sand.u32 %s57, 1
          %s137 = scalar_lea.sflag [#allocation6], %s136
          %s138 = sand.u32 %s57, 1
          %s139 = smul.addr %s138, 768
          %s140 = scalar_lea.vmem [#allocation5], %s139
          %s141 = smul.u32 2, %s20
          %s143 = ssub.s32 12288, 12288
          %144 = vsyncadd %s137, %s143
          %s145 = smul.addr %s19, 32
          %s146 = sadd.s32 %s141, %s145
          %s147 = smul.addr %s146, 128
          %s148 = scalar_lea.hbm %s1, %s147
          %s150 = sshll.u32 1, 14
          %s151 = sxor.u32 4294967295, %s150
          %s153 = sld [smem:[#allocation0]]
          %s154 = sadd.s32 2, %s153
          %s156 = sshll.u32 7, 26
          %s157 = sxor.u32 4294967295, %s156
          %s158 = sand.u32 0, %s157
          %s159 = sshll.u32 %s154, 26
          %s160 = sor.u32 %s158, %s159
          %s161 = sshll.u32 %s140, 4
          %s162 = int_to_ptr.vmem [resolvable:$true] %s161
          %168 = sst [smem:[#allocation8]] 8192
          %s169 = scalar_lea.smem [#allocation8], 1
          %170 = sst [smem:[%s169]] 4096
          %s171 = scalar_lea.smem [#allocation8], 2
          %172 = sst [smem:[%s171]] 32
          %s173 = scalar_lea.smem [#allocation8], 3
          %174 = sst [smem:[%s173]] 128
          %s175 = scalar_lea.smem [#allocation8], 4
          %176 = sst [smem:[%s175]] 128
          %s177 = scalar_lea.smem [#allocation8], 5
          %178 = sst [smem:[%s177]] 8
          %180 = dma.general %s148, 12288, %s162, %s137, [#allocation7], [#allocation8], %s160, 0
        $region24: #{tpu_custom_call.1} parent=19 // pred_fallthru
          _
      $region20: #{tpu_custom_call.1} parent=5 // pred_fallthru
        _
      %p181 = scmp.le.s32.totalorder 1, %s12
      %p182 = scmp.lt.s32.totalorder %s12, 3
      %p183 = pnand %p181, %p182
      %p184 = pneg %p183
      // Predicated region
      $region25: #{tpu_custom_call.1} parent=5 // pred_check
        _
      $region26: #{tpu_custom_call.1} parent=5 // pred_check_branch
        %186 = sbr.rel (%p183) target = $region28
      $region27: #{tpu_custom_call.1} parent=5 // pred_region
        %s187 = ssub.s32 %s12, 1
        // Predicated region
        $region29: #{tpu_custom_call.1} parent=27 // pred_check
          %p188 = pneg %p45
        $region30: #{tpu_custom_call.1} parent=27 // pred_check_branch
          %190 = sbr.rel (%p188) target = $region32
        $region31: #{tpu_custom_call.1} parent=27 // pred_region
          %191 = dma.done [#allocation4], 4096
        $region32: #{tpu_custom_call.1} parent=27 // pred_fallthru
          _
        %s192 = sand.u32 %s60, 1
        %s193 = scalar_lea.sflag [#allocation6], %s192
        %s194 = sand.u32 %s60, 1
        %s195 = smul.addr %s194, 768
        %s196 = scalar_lea.vmem [#allocation5], %s195
        // Predicated region
        $region33: #{tpu_custom_call.1} parent=27 // pred_check
          %p197 = pneg %p73
        $region34: #{tpu_custom_call.1} parent=27 // pred_check_branch
          %199 = sbr.rel (%p197) target = $region36
        $region35: #{tpu_custom_call.1} parent=27 // pred_region
          %200 = dma.done %s193, 12288
        $region36: #{tpu_custom_call.1} parent=27 // pred_fallthru
          _
        %p201 = pneg %p45
        %p202 = pneg %p42
        %s203 = sand.u32 %s60, 1
        %s204 = scalar_lea.sflag [#allocation6], %s203
        %s205 = sand.u32 %s60, 1
        %s206 = smul.addr %s205, 768
        %s207 = scalar_lea.vmem [#allocation5], %s206
        %p208 = pneg %p73
        %p209 = pneg %p70
        %p210 = pneg %p101
        %p211 = pneg %p98
        %s212 = smul.u32 2, %s22
        %p213 = scmp.lt.s32.totalorder %s21, 1
        %s214 = scalar_select %p213, %s21, 1
        %p215 = scmp.lt.s32.totalorder %s212, 1
        %s216 = scalar_select %p215, %s212, 1
        %s217 = smul.addr %s216, 8
        %s218 = smul.addr %s214, 32
        %s219 = sadd.s32 %s217, %s218
        %s220 = smul.addr %s219, 8
        %s221 = scalar_lea.vmem %s2, %s220
        %s222 = smul.u32 2, %s22
        %s223 = smul.u32 2, %s22
        %p224 = scmp.lt.s32.totalorder %s21, 1
        %s225 = scalar_select %p224, %s21, 1
        %p226 = scmp.lt.s32.totalorder %s223, 1
        %s227 = scalar_select %p226, %s223, 1
        %s228 = smul.addr %s227, 8
        %s229 = smul.addr %s225, 32
        %s230 = sadd.s32 %s228, %s229
        %s231 = smul.addr %s230, 8
        %s232 = scalar_lea.vmem %s2, %s231
        %s233 = smul.u32 2, %s22
        %v234 = vld [vmem:[%s196] sm:$0xff]
        %v235 = vld [vmem:[%s196 + $0x10] sm:$0xff]
        %v236 = vld [vmem:[%s196 + $0x20] sm:$0xff]
        %v237 = vld [vmem:[%s196 + $0x30] sm:$0xff]
        %v238 = vld [vmem:[%s196 + $0x40] sm:$0xff]
        %v239 = vld [vmem:[%s196 + $0x50] sm:$0xff]
        %v240 = vld [vmem:[%s196 + $0x60] sm:$0xff]
        %v241 = vld [vmem:[%s196 + $0x70] sm:$0xff]
        %v242 = vld [vmem:[%s196 + $0x80] sm:$0xff]
        %v243 = vld [vmem:[%s196 + $0x90] sm:$0xff]
        %v244 = vld [vmem:[%s196 + $0xa0] sm:$0xff]
        %v245 = vld [vmem:[%s196 + $0xb0] sm:$0xff]
        %v246 = vld [vmem:[%s196 + $0xc0] sm:$0xff]
        %v247 = vld [vmem:[%s196 + $0xd0] sm:$0xff]
        %v248 = vld [vmem:[%s196 + $0xe0] sm:$0xff]
        %v249 = vld [vmem:[%s196 + $0xf0] sm:$0xff]
        %s250 = scalar_lea.vmem %s196, 256 [#allocation5]
        %v251 = vld [vmem:[%s250] sm:$0xff]
        %v252 = vld [vmem:[%s250 + $0x10] sm:$0xff]
        %v253 = vld [vmem:[%s250 + $0x20] sm:$0xff]
        %v254 = vld [vmem:[%s250 + $0x30] sm:$0xff]
        %v255 = vld [vmem:[%s250 + $0x40] sm:$0xff]
        %v256 = vld [vmem:[%s250 + $0x50] sm:$0xff]
        %v257 = vld [vmem:[%s250 + $0x60] sm:$0xff]
        %v258 = vld [vmem:[%s250 + $0x70] sm:$0xff]
        %v259 = vld [vmem:[%s250 + $0x80] sm:$0xff]
        %v260 = vld [vmem:[%s250 + $0x90] sm:$0xff]
        %v261 = vld [vmem:[%s250 + $0xa0] sm:$0xff]
        %v262 = vld [vmem:[%s250 + $0xb0] sm:$0xff]
        %v263 = vld [vmem:[%s250 + $0xc0] sm:$0xff]
        %v264 = vld [vmem:[%s250 + $0xd0] sm:$0xff]
        %v265 = vld [vmem:[%s250 + $0xe0] sm:$0xff]
        %v266 = vld [vmem:[%s250 + $0xf0] sm:$0xff]
        %s267 = scalar_lea.vmem %s196, 512 [#allocation5]
        %v268 = vld [vmem:[%s267] sm:$0xff]
        %v269 = vld [vmem:[%s267 + $0x10] sm:$0xff]
        %v270 = vld [vmem:[%s267 + $0x20] sm:$0xff]
        %v271 = vld [vmem:[%s267 + $0x30] sm:$0xff]
        %v272 = vld [vmem:[%s267 + $0x40] sm:$0xff]
        %v273 = vld [vmem:[%s267 + $0x50] sm:$0xff]
        %v274 = vld [vmem:[%s267 + $0x60] sm:$0xff]
        %v275 = vld [vmem:[%s267 + $0x70] sm:$0xff]
        %v276 = vld [vmem:[%s267 + $0x80] sm:$0xff]
        %v277 = vld [vmem:[%s267 + $0x90] sm:$0xff]
        %v278 = vld [vmem:[%s267 + $0xa0] sm:$0xff]
        %v279 = vld [vmem:[%s267 + $0xb0] sm:$0xff]
        %v280 = vld [vmem:[%s267 + $0xc0] sm:$0xff]
        %v281 = vld [vmem:[%s267 + $0xd0] sm:$0xff]
        %v282 = vld [vmem:[%s267 + $0xe0] sm:$0xff]
        %v283 = vld [vmem:[%s267 + $0xf0] sm:$0xff]
        %v284 = vmul.f32 %v234, 0.35355338
        %v285 = vmul.f32 %v235, 0.35355338
        %v286 = vmul.f32 %v236, 0.35355338
        %v287 = vmul.f32 %v237, 0.35355338
        %v288 = vmul.f32 %v238, 0.35355338
        %v289 = vmul.f32 %v239, 0.35355338
        %v290 = vmul.f32 %v240, 0.35355338
        %v291 = vmul.f32 %v241, 0.35355338
        %v292 = vmul.f32 %v242, 0.35355338
        %v293 = vmul.f32 %v243, 0.35355338
        %v294 = vmul.f32 %v244, 0.35355338
        %v295 = vmul.f32 %v245, 0.35355338
        %v296 = vmul.f32 %v246, 0.35355338
        %v297 = vmul.f32 %v247, 0.35355338
        %v298 = vmul.f32 %v248, 0.35355338
        %v299 = vmul.f32 %v249, 0.35355338
        %v300 = vld [vmem:[#allocation3] sm:$0xff]
        %v301 = vld [vmem:[#allocation3 + $0x8] sm:$0xff]
        %v302 = vld [vmem:[#allocation3 + $0x10] sm:$0xff]
        %v303 = vld [vmem:[#allocation3 + $0x18] sm:$0xff]
        %v304 = vld [vmem:[#allocation3 + $0x20] sm:$0xff]
        %v305 = vld [vmem:[#allocation3 + $0x28] sm:$0xff]
        %v306 = vld [vmem:[#allocation3 + $0x30] sm:$0xff]
        %v307 = vld [vmem:[#allocation3 + $0x38] sm:$0xff]
        %vm308 = vcmask 64512
        %v310 = vsel %vm308, %v284, 0
        %v313 = vsel %vm308, %v285, 0
        %v316 = vsel %vm308, %v286, 0
        %v319 = vsel %vm308, %v287, 0
        %v322 = vsel %vm308, %v288, 0
        %v325 = vsel %vm308, %v289, 0
        %v328 = vsel %vm308, %v290, 0
        %v331 = vsel %vm308, %v291, 0
        %v334 = vsel %vm308, %v251, 0
        %v337 = vsel %vm308, %v252, 0
        %v340 = vsel %vm308, %v253, 0
        %v343 = vsel %vm308, %v254, 0
        %v346 = vsel %vm308, %v255, 0
        %v349 = vsel %vm308, %v256, 0
        %v352 = vsel %vm308, %v257, 0
        %v355 = vsel %vm308, %v258, 0
        %357 = vmatprep.subr.mxu0 0.0
        %358 = vmatpush1.xpose.msra.mxu0 %v334
        %359 = vmatprep.subr.mxu0 0.0
        %360 = vmatpush1.xpose.msra.mxu0 %v337
        %361 = vmatprep.subr.mxu0 0.0
        %362 = vmatpush1.xpose.msra.mxu0 %v340
        %363 = vmatprep.subr.mxu0 0.0
        %364 = vmatpush1.xpose.msra.mxu0 %v343
        %365 = vmatprep.subr.mxu0 0.0
        %366 = vmatpush1.xpose.msra.mxu0 %v346
        %367 = vmatprep.subr.mxu0 0.0
        %368 = vmatpush1.xpose.msra.mxu0 %v349
        %369 = vmatprep.subr.mxu0 0.0
        %370 = vmatpush1.xpose.msra.mxu0 %v352
        %371 = vmatprep.subr.mxu0 0.0
        %372 = vmatpush1.xpose.msra.mxu0 %v355
        %373 = vmatprep.subr.mxu0 0.0
        %374 = vmatpush1.xpose.msra.mxu0 0.0
        %375 = vmatprep.subr.mxu0 0.0
        %376 = vmatpush1.xpose.msra.mxu0 0.0
        %377 = vmatprep.subr.mxu0 0.0
        %378 = vmatpush1.xpose.msra.mxu0 0.0
        %379 = vmatprep.subr.mxu0 0.0
        %380 = vmatpush1.xpose.msra.mxu0 0.0
        %381 = vmatprep.subr.mxu0 0.0
        %382 = vmatpush1.xpose.msra.mxu0 0.0
        %383 = vmatprep.subr.mxu0 0.0
        %384 = vmatpush1.xpose.msra.mxu0 0.0
        %385 = vmatprep.subr.mxu0 0.0
        %386 = vmatpush1.xpose.msra.mxu0 0.0
        %387 = vmatprep.subr.mxu0 0.0
        %388 = vmatpush1.xpose.msra.mxu0 0.0
        %389 = vmatprep.subr.mxu0 0.0
        %390 = vmatpush1.xpose.msra.mxu0 0.0
        %391 = vmatprep.subr.mxu0 0.0
        %392 = vmatpush1.xpose.msra.mxu0 0.0
        %393 = vmatprep.subr.mxu0 0.0
        %394 = vmatpush1.xpose.msra.mxu0 0.0
        %395 = vmatprep.subr.mxu0 0.0
        %396 = vmatpush1.xpose.msra.mxu0 0.0
        %397 = vmatprep.subr.mxu0 0.0
        %398 = vmatpush1.xpose.msra.mxu0 0.0
        %399 = vmatprep.subr.mxu0 0.0
        %400 = vmatpush1.xpose.msra.mxu0 0.0
        %401 = vmatprep.subr.mxu0 0.0
        %402 = vmatpush1.xpose.msra.mxu0 0.0
        %403 = vmatprep.subr.mxu0 0.0
        %404 = vmatpush1.xpose.msra.mxu0 0.0
        %405 = vmatprep.subr.mxu0 0.0
        %406 = vmatpush1.xpose.msra.mxu0 0.0
        %407 = vmatprep.subr.mxu0 0.0
        %408 = vmatpush1.xpose.msra.mxu0 0.0
        %409 = vmatprep.subr.mxu0 0.0
        %410 = vmatpush1.xpose.msra.mxu0 0.0
        %411 = vmatprep.subr.mxu0 0.0
        %412 = vmatpush1.xpose.msra.mxu0 0.0
        %413 = vmatprep.subr.mxu0 0.0
        %414 = vmatpush1.xpose.msra.mxu0 0.0
        %415 = vmatprep.subr.mxu0 0.0
        %416 = vmatpush1.xpose.msra.mxu0 0.0
        %417 = vmatprep.subr.mxu0 0.0
        %418 = vmatpush1.xpose.msra.mxu0 0.0
        %419 = vmatprep.subr.mxu0 0.0
        %420 = vmatpush1.xpose.msra.mxu0 0.0
        %421 = vmatprep.mubr.f32.mxu0 0.0
        %422 = vmatmul.mubr.f32.gmra.mrb[0].mxu0 %v310
        %v423 = vpop.f32.mrb[0].mxu0
        %v424 = vadd.f32 %v300, %v423
        %v425 = vpop.f32.mrb[0].mxu0
        %426 = vmatprep.mubr.f32.mxu0 0.0
        %427 = vmatmul.mubr.f32.gmra.mrb[0].mxu0 %v313
        %v428 = vpop.f32.mrb[0].mxu0
        %v429 = vadd.f32 %v301, %v428
        %v430 = vpop.f32.mrb[0].mxu0
        %431 = vmatprep.mubr.f32.mxu0 0.0
        %432 = vmatmul.mubr.f32.gmra.mrb[0].mxu0 %v316
        %v433 = vpop.f32.mrb[0].mxu0
        %v434 = vadd.f32 %v302, %v433
        %v435 = vpop.f32.mrb[0].mxu0
        %436 = vmatprep.mubr.f32.mxu0 0.0
        %437 = vmatmul.mubr.f32.gmra.mrb[0].mxu0 %v319
        %v438 = vpop.f32.mrb[0].mxu0
        %v439 = vadd.f32 %v303, %v438
        %v440 = vpop.f32.mrb[0].mxu0
        %441 = vmatprep.mubr.f32.mxu0 0.0
        %442 = vmatmul.mubr.f32.gmra.mrb[0].mxu0 %v322
        %v443 = vpop.f32.mrb[0].mxu0
        %v444 = vadd.f32 %v304, %v443
        %v445 = vpop.f32.mrb[0].mxu0
        %446 = vmatprep.mubr.f32.mxu0 0.0
        %447 = vmatmul.mubr.f32.gmra.mrb[0].mxu0 %v325
        %v448 = vpop.f32.mrb[0].mxu0
        %v449 = vadd.f32 %v305, %v448
        %v450 = vpop.f32.mrb[0].mxu0
        %451 = vmatprep.mubr.f32.mxu0 0.0
        %452 = vmatmul.mubr.f32.gmra.mrb[0].mxu0 %v328
        %v453 = vpop.f32.mrb[0].mxu0
        %v454 = vadd.f32 %v306, %v453
        %v455 = vpop.f32.mrb[0].mxu0
        %456 = vmatprep.mubr.f32.mxu0 0.0
        %457 = vmatmul.mubr.f32.gmra.mrb[0].mxu0 %v331
        %v458 = vpop.f32.mrb[0].mxu0
        %v459 = vadd.f32 %v307, %v458
        %v460 = vpop.f32.mrb[0].mxu0
        %461 = vdwg.mxu0
        %v463 = vsel %vm308, %v292, 0
        %v466 = vsel %vm308, %v293, 0
        %v469 = vsel %vm308, %v294, 0
        %v472 = vsel %vm308, %v295, 0
        %v475 = vsel %vm308, %v296, 0
        %v478 = vsel %vm308, %v297, 0
        %v481 = vsel %vm308, %v298, 0
        %v484 = vsel %vm308, %v299, 0
        %v487 = vsel %vm308, %v259, 0
        %v490 = vsel %vm308, %v260, 0
        %v493 = vsel %vm308, %v261, 0
        %v496 = vsel %vm308, %v262, 0
        %v499 = vsel %vm308, %v263, 0
        %v502 = vsel %vm308, %v264, 0
        %v505 = vsel %vm308, %v265, 0
        %v508 = vsel %vm308, %v266, 0
        %510 = vmatprep.subr.mxu0 0.0
        %511 = vmatpush1.xpose.msra.mxu0 %v487
        %512 = vmatprep.subr.mxu0 0.0
        %513 = vmatpush1.xpose.msra.mxu0 %v490
        %514 = vmatprep.subr.mxu0 0.0
        %515 = vmatpush1.xpose.msra.mxu0 %v493
        %516 = vmatprep.subr.mxu0 0.0
        %517 = vmatpush1.xpose.msra.mxu0 %v496
        %518 = vmatprep.subr.mxu0 0.0
        %519 = vmatpush1.xpose.msra.mxu0 %v499
        %520 = vmatprep.subr.mxu0 0.0
        %521 = vmatpush1.xpose.msra.mxu0 %v502
        %522 = vmatprep.subr.mxu0 0.0
        %523 = vmatpush1.xpose.msra.mxu0 %v505
        %524 = vmatprep.subr.mxu0 0.0
        %525 = vmatpush1.xpose.msra.mxu0 %v508
        %526 = vmatprep.subr.mxu0 0.0
        %527 = vmatpush1.xpose.msra.mxu0 0.0
        %528 = vmatprep.subr.mxu0 0.0
        %529 = vmatpush1.xpose.msra.mxu0 0.0
        %530 = vmatprep.subr.mxu0 0.0
        %531 = vmatpush1.xpose.msra.mxu0 0.0
        %532 = vmatprep.subr.mxu0 0.0
        %533 = vmatpush1.xpose.msra.mxu0 0.0
        %534 = vmatprep.subr.mxu0 0.0
        %535 = vmatpush1.xpose.msra.mxu0 0.0
        %536 = vmatprep.subr.mxu0 0.0
        %537 = vmatpush1.xpose.msra.mxu0 0.0
        %538 = vmatprep.subr.mxu0 0.0
        %539 = vmatpush1.xpose.msra.mxu0 0.0
        %540 = vmatprep.subr.mxu0 0.0
        %541 = vmatpush1.xpose.msra.mxu0 0.0
        %542 = vmatprep.subr.mxu0 0.0
        %543 = vmatpush1.xpose.msra.mxu0 0.0
        %544 = vmatprep.subr.mxu0 0.0
        %545 = vmatpush1.xpose.msra.mxu0 0.0
        %546 = vmatprep.subr.mxu0 0.0
        %547 = vmatpush1.xpose.msra.mxu0 0.0
        %548 = vmatprep.subr.mxu0 0.0
        %549 = vmatpush1.xpose.msra.mxu0 0.0
        %550 = vmatprep.subr.mxu0 0.0
        %551 = vmatpush1.xpose.msra.mxu0 0.0
        %552 = vmatprep.subr.mxu0 0.0
        %553 = vmatpush1.xpose.msra.mxu0 0.0
        %554 = vmatprep.subr.mxu0 0.0
        %555 = vmatpush1.xpose.msra.mxu0 0.0
        %556 = vmatprep.subr.mxu0 0.0
        %557 = vmatpush1.xpose.msra.mxu0 0.0
        %558 = vmatprep.subr.mxu0 0.0
        %559 = vmatpush1.xpose.msra.mxu0 0.0
        %560 = vmatprep.subr.mxu0 0.0
        %561 = vmatpush1.xpose.msra.mxu0 0.0
        %562 = vmatprep.subr.mxu0 0.0
        %563 = vmatpush1.xpose.msra.mxu0 0.0
        %564 = vmatprep.subr.mxu0 0.0
        %565 = vmatpush1.xpose.msra.mxu0 0.0
        %566 = vmatprep.subr.mxu0 0.0
        %567 = vmatpush1.xpose.msra.mxu0 0.0
        %568 = vmatprep.subr.mxu0 0.0
        %569 = vmatpush1.xpose.msra.mxu0 0.0
        %570 = vmatprep.subr.mxu0 0.0
        %571 = vmatpush1.xpose.msra.mxu0 0.0
        %572 = vmatprep.subr.mxu0 0.0
        %573 = vmatpush1.xpose.msra.mxu0 0.0
        %574 = vmatprep.mubr.f32.mxu0 0.0
        %575 = vmatmul.mubr.f32.gmra.mrb[0].mxu0 %v463
        %v576 = vpop.f32.mrb[0].mxu0
        %v577 = vadd.f32 %v300, %v576
        %v578 = vpop.f32.mrb[0].mxu0
        %579 = vmatprep.mubr.f32.mxu0 0.0
        %580 = vmatmul.mubr.f32.gmra.mrb[0].mxu0 %v466
        %v581 = vpop.f32.mrb[0].mxu0
        %v582 = vadd.f32 %v301, %v581
        %v583 = vpop.f32.mrb[0].mxu0
        %584 = vmatprep.mubr.f32.mxu0 0.0
        %585 = vmatmul.mubr.f32.gmra.mrb[0].mxu0 %v469
        %v586 = vpop.f32.mrb[0].mxu0
        %v587 = vadd.f32 %v302, %v586
        %v588 = vpop.f32.mrb[0].mxu0
        %589 = vmatprep.mubr.f32.mxu0 0.0
        %590 = vmatmul.mubr.f32.gmra.mrb[0].mxu0 %v472
        %v591 = vpop.f32.mrb[0].mxu0
        %v592 = vadd.f32 %v303, %v591
        %v593 = vpop.f32.mrb[0].mxu0
        %594 = vmatprep.mubr.f32.mxu0 0.0
        %595 = vmatmul.mubr.f32.gmra.mrb[0].mxu0 %v475
        %v596 = vpop.f32.mrb[0].mxu0
        %v597 = vadd.f32 %v304, %v596
        %v598 = vpop.f32.mrb[0].mxu0
        %599 = vmatprep.mubr.f32.mxu0 0.0
        %600 = vmatmul.mubr.f32.gmra.mrb[0].mxu0 %v478
        %v601 = vpop.f32.mrb[0].mxu0
        %v602 = vadd.f32 %v305, %v601
        %v603 = vpop.f32.mrb[0].mxu0
        %604 = vmatprep.mubr.f32.mxu0 0.0
        %605 = vmatmul.mubr.f32.gmra.mrb[0].mxu0 %v481
        %v606 = vpop.f32.mrb[0].mxu0
        %v607 = vadd.f32 %v306, %v606
        %v608 = vpop.f32.mrb[0].mxu0
        %609 = vmatprep.mubr.f32.mxu0 0.0
        %610 = vmatmul.mubr.f32.gmra.mrb[0].mxu0 %v484
        %v611 = vpop.f32.mrb[0].mxu0
        %v612 = vadd.f32 %v307, %v611
        %v613 = vpop.f32.mrb[0].mxu0
        %614 = vdwg.mxu0
        %vm615 = vcmask 523264
        %v616 = vsel %vm615, %v424, -inf
        %617 = vmax.xlane.f32.xlu0 %v616
        %v618 = vpop.xlane.xlu0 %617
        %v619 = vsel %vm615, %v429, -inf
        %620 = vmax.xlane.f32.xlu0 %v619
        %v621 = vpop.xlane.xlu0 %620
        %v622 = vsel %vm615, %v434, -inf
        %623 = vmax.xlane.f32.xlu0 %v622
        %v624 = vpop.xlane.xlu0 %623
        %v625 = vsel %vm615, %v439, -inf
        %626 = vmax.xlane.f32.xlu0 %v625
        %v627 = vpop.xlane.xlu0 %626
        %v628 = vsel %vm615, %v444, -inf
        %629 = vmax.xlane.f32.xlu0 %v628
        %v630 = vpop.xlane.xlu0 %629
        %v631 = vsel %vm615, %v449, -inf
        %632 = vmax.xlane.f32.xlu0 %v631
        %v633 = vpop.xlane.xlu0 %632
        %v634 = vsel %vm615, %v454, -inf
        %635 = vmax.xlane.f32.xlu0 %v634
        %v636 = vpop.xlane.xlu0 %635
        %v637 = vsel %vm615, %v459, -inf
        %638 = vmax.xlane.f32.xlu0 %v637
        %v639 = vpop.xlane.xlu0 %638
        %v640 = vsel %vm615, %v577, -inf
        %641 = vmax.xlane.f32.xlu0 %v640
        %v642 = vpop.xlane.xlu0 %641
        %v643 = vsel %vm615, %v582, -inf
        %644 = vmax.xlane.f32.xlu0 %v643
        %v645 = vpop.xlane.xlu0 %644
        %v646 = vsel %vm615, %v587, -inf
        %647 = vmax.xlane.f32.xlu0 %v646
        %v648 = vpop.xlane.xlu0 %647
        %v649 = vsel %vm615, %v592, -inf
        %650 = vmax.xlane.f32.xlu0 %v649
        %v651 = vpop.xlane.xlu0 %650
        %v652 = vsel %vm615, %v597, -inf
        %653 = vmax.xlane.f32.xlu0 %v652
        %v654 = vpop.xlane.xlu0 %653
        %v655 = vsel %vm615, %v602, -inf
        %656 = vmax.xlane.f32.xlu0 %v655
        %v657 = vpop.xlane.xlu0 %656
        %v658 = vsel %vm615, %v607, -inf
        %659 = vmax.xlane.f32.xlu0 %v658
        %v660 = vpop.xlane.xlu0 %659
        %v661 = vsel %vm615, %v612, -inf
        %662 = vmax.xlane.f32.xlu0 %v661
        %v663 = vpop.xlane.xlu0 %662
        %v664 = vsub.f32 %v424, %v618
        %v665 = vsub.f32 %v429, %v621
        %v666 = vsub.f32 %v434, %v624
        %v667 = vsub.f32 %v439, %v627
        %v668 = vsub.f32 %v444, %v630
        %v669 = vsub.f32 %v449, %v633
        %v670 = vsub.f32 %v454, %v636
        %v671 = vsub.f32 %v459, %v639
        %v672 = vsub.f32 %v577, %v642
        %v673 = vsub.f32 %v582, %v645
        %v674 = vsub.f32 %v587, %v648
        %v675 = vsub.f32 %v592, %v651
        %v676 = vsub.f32 %v597, %v654
        %v677 = vsub.f32 %v602, %v657
        %v678 = vsub.f32 %v607, %v660
        %v679 = vsub.f32 %v612, %v663
        %v680 = vmul.f32 %v664, 1.442695
        %v681 = vpow.pop %v680
        %v682 = vmul.f32 %v665, 1.442695
        %v683 = vpow.pop %v682
        %v684 = vmul.f32 %v666, 1.442695
        %v685 = vpow.pop %v684
        %v686 = vmul.f32 %v667, 1.442695
        %v687 = vpow.pop %v686
        %v688 = vmul.f32 %v668, 1.442695
        %v689 = vpow.pop %v688
        %v690 = vmul.f32 %v669, 1.442695
        %v691 = vpow.pop %v690
        %v692 = vmul.f32 %v670, 1.442695
        %v693 = vpow.pop %v692
        %v694 = vmul.f32 %v671, 1.442695
        %v695 = vpow.pop %v694
        %v696 = vmul.f32 %v672, 1.442695
        %v697 = vpow.pop %v696
        %v698 = vmul.f32 %v673, 1.442695
        %v699 = vpow.pop %v698
        %v700 = vmul.f32 %v674, 1.442695
        %v701 = vpow.pop %v700
        %v702 = vmul.f32 %v675, 1.442695
        %v703 = vpow.pop %v702
        %v704 = vmul.f32 %v676, 1.442695
        %v705 = vpow.pop %v704
        %v706 = vmul.f32 %v677, 1.442695
        %v707 = vpow.pop %v706
        %v708 = vmul.f32 %v678, 1.442695
        %v709 = vpow.pop %v708
        %v710 = vmul.f32 %v679, 1.442695
        %v711 = vpow.pop %v710
        %v712 = vsel %vm615, %v681, 0.0
        %713 = vadd.xlane.f32.xlu0 %v712
        %v714 = vpop.xlane.xlu0 %713
        %v715 = vsel %vm615, %v683, 0.0
        %716 = vadd.xlane.f32.xlu0 %v715
        %v717 = vpop.xlane.xlu0 %716
        %v718 = vsel %vm615, %v685, 0.0
        %719 = vadd.xlane.f32.xlu0 %v718
        %v720 = vpop.xlane.xlu0 %719
        %v721 = vsel %vm615, %v687, 0.0
        %722 = vadd.xlane.f32.xlu0 %v721
        %v723 = vpop.xlane.xlu0 %722
        %v724 = vsel %vm615, %v689, 0.0
        %725 = vadd.xlane.f32.xlu0 %v724
        %v726 = vpop.xlane.xlu0 %725
        %v727 = vsel %vm615, %v691, 0.0
        %728 = vadd.xlane.f32.xlu0 %v727
        %v729 = vpop.xlane.xlu0 %728
        %v730 = vsel %vm615, %v693, 0.0
        %731 = vadd.xlane.f32.xlu0 %v730
        %v732 = vpop.xlane.xlu0 %731
        %v733 = vsel %vm615, %v695, 0.0
        %734 = vadd.xlane.f32.xlu0 %v733
        %v735 = vpop.xlane.xlu0 %734
        %v736 = vsel %vm615, %v697, 0.0
        %737 = vadd.xlane.f32.xlu0 %v736
        %v738 = vpop.xlane.xlu0 %737
        %v739 = vsel %vm615, %v699, 0.0
        %740 = vadd.xlane.f32.xlu0 %v739
        %v741 = vpop.xlane.xlu0 %740
        %v742 = vsel %vm615, %v701, 0.0
        %743 = vadd.xlane.f32.xlu0 %v742
        %v744 = vpop.xlane.xlu0 %743
        %v745 = vsel %vm615, %v703, 0.0
        %746 = vadd.xlane.f32.xlu0 %v745
        %v747 = vpop.xlane.xlu0 %746
        %v748 = vsel %vm615, %v705, 0.0
        %749 = vadd.xlane.f32.xlu0 %v748
        %v750 = vpop.xlane.xlu0 %749
        %v751 = vsel %vm615, %v707, 0.0
        %752 = vadd.xlane.f32.xlu0 %v751
        %v753 = vpop.xlane.xlu0 %752
        %v754 = vsel %vm615, %v709, 0.0
        %755 = vadd.xlane.f32.xlu0 %v754
        %v756 = vpop.xlane.xlu0 %755
        %v757 = vsel %vm615, %v711, 0.0
        %758 = vadd.xlane.f32.xlu0 %v757
        %v759 = vpop.xlane.xlu0 %758
        %v761 = vsel %vm615, %v681, 0
        %v764 = vsel %vm615, %v683, 0
        %v767 = vsel %vm615, %v685, 0
        %v770 = vsel %vm615, %v687, 0
        %v773 = vsel %vm615, %v689, 0
        %v776 = vsel %vm615, %v691, 0
        %v779 = vsel %vm615, %v693, 0
        %v782 = vsel %vm615, %v695, 0
        %784 = vmatprep.subr.mxu0 0.0
        %785 = vmatpush1.msra.mxu0 %v268
        %786 = vmatprep.subr.mxu0 0.0
        %787 = vmatpush1.msra.mxu0 %v269
        %788 = vmatprep.subr.mxu0 0.0
        %789 = vmatpush1.msra.mxu0 %v270
        %790 = vmatprep.subr.mxu0 0.0
        %791 = vmatpush1.msra.mxu0 %v271
        %792 = vmatprep.subr.mxu0 0.0
        %793 = vmatpush1.msra.mxu0 %v272
        %794 = vmatprep.subr.mxu0 0.0
        %795 = vmatpush1.msra.mxu0 %v273
        %796 = vmatprep.subr.mxu0 0.0
        %797 = vmatpush1.msra.mxu0 %v274
        %798 = vmatprep.subr.mxu0 0.0
        %799 = vmatpush1.msra.mxu0 %v275
        %800 = vmatprep.subr.mxu0 0.0
        %801 = vmatpush1.msra.mxu0 0.0
        %802 = vmatprep.subr.mxu0 0.0
        %803 = vmatpush1.msra.mxu0 0.0
        %804 = vmatprep.subr.mxu0 0.0
        %805 = vmatpush1.msra.mxu0 0.0
        %806 = vmatprep.subr.mxu0 0.0
        %807 = vmatpush1.msra.mxu0 0.0
        %808 = vmatprep.subr.mxu0 0.0
        %809 = vmatpush1.msra.mxu0 0.0
        %810 = vmatprep.subr.mxu0 0.0
        %811 = vmatpush1.msra.mxu0 0.0
        %812 = vmatprep.subr.mxu0 0.0
        %813 = vmatpush1.msra.mxu0 0.0
        %814 = vmatprep.subr.mxu0 0.0
        %815 = vmatpush1.msra.mxu0 0.0
        %816 = vmatprep.subr.mxu0 0.0
        %817 = vmatpush1.msra.mxu0 0.0
        %818 = vmatprep.subr.mxu0 0.0
        %819 = vmatpush1.msra.mxu0 0.0
        %820 = vmatprep.subr.mxu0 0.0
        %821 = vmatpush1.msra.mxu0 0.0
        %822 = vmatprep.subr.mxu0 0.0
        %823 = vmatpush1.msra.mxu0 0.0
        %824 = vmatprep.subr.mxu0 0.0
        %825 = vmatpush1.msra.mxu0 0.0
        %826 = vmatprep.subr.mxu0 0.0
        %827 = vmatpush1.msra.mxu0 0.0
        %828 = vmatprep.subr.mxu0 0.0
        %829 = vmatpush1.msra.mxu0 0.0
        %830 = vmatprep.subr.mxu0 0.0
        %831 = vmatpush1.msra.mxu0 0.0
        %832 = vmatprep.subr.mxu0 0.0
        %833 = vmatpush1.msra.mxu0 0.0
        %834 = vmatprep.subr.mxu0 0.0
        %835 = vmatpush1.msra.mxu0 0.0
        %836 = vmatprep.subr.mxu0 0.0
        %837 = vmatpush1.msra.mxu0 0.0
        %838 = vmatprep.subr.mxu0 0.0
        %839 = vmatpush1.msra.mxu0 0.0
        %840 = vmatprep.subr.mxu0 0.0
        %841 = vmatpush1.msra.mxu0 0.0
        %842 = vmatprep.subr.mxu0 0.0
        %843 = vmatpush1.msra.mxu0 0.0
        %844 = vmatprep.subr.mxu0 0.0
        %845 = vmatpush1.msra.mxu0 0.0
        %846 = vmatprep.subr.mxu0 0.0
        %847 = vmatpush1.msra.mxu0 0.0
        %848 = vmatprep.mubr.f32.mxu0 0.0
        %849 = vmatmul.mubr.f32.gmra.mrb[0].mxu0 %v761
        %v850 = vpop.f32.mrb[0].mxu0
        %v851 = vadd.f32 0.0, %v850
        %v852 = vpop.f32.mrb[0].mxu0
        %853 = vmatprep.mubr.f32.mxu0 0.0
        %854 = vmatmul.mubr.f32.gmra.mrb[0].mxu0 %v764
        %v855 = vpop.f32.mrb[0].mxu0
        %v856 = vadd.f32 0.0, %v855
        %v857 = vpop.f32.mrb[0].mxu0
        %858 = vmatprep.mubr.f32.mxu0 0.0
        %859 = vmatmul.mubr.f32.gmra.mrb[0].mxu0 %v767
        %v860 = vpop.f32.mrb[0].mxu0
        %v861 = vadd.f32 0.0, %v860
        %v862 = vpop.f32.mrb[0].mxu0
        %863 = vmatprep.mubr.f32.mxu0 0.0
        %864 = vmatmul.mubr.f32.gmra.mrb[0].mxu0 %v770
        %v865 = vpop.f32.mrb[0].mxu0
        %v866 = vadd.f32 0.0, %v865
        %v867 = vpop.f32.mrb[0].mxu0
        %868 = vmatprep.mubr.f32.mxu0 0.0
        %869 = vmatmul.mubr.f32.gmra.mrb[0].mxu0 %v773
        %v870 = vpop.f32.mrb[0].mxu0
        %v871 = vadd.f32 0.0, %v870
        %v872 = vpop.f32.mrb[0].mxu0
        %873 = vmatprep.mubr.f32.mxu0 0.0
        %874 = vmatmul.mubr.f32.gmra.mrb[0].mxu0 %v776
        %v875 = vpop.f32.mrb[0].mxu0
        %v876 = vadd.f32 0.0, %v875
        %v877 = vpop.f32.mrb[0].mxu0
        %878 = vmatprep.mubr.f32.mxu0 0.0
        %879 = vmatmul.mubr.f32.gmra.mrb[0].mxu0 %v779
        %v880 = vpop.f32.mrb[0].mxu0
        %v881 = vadd.f32 0.0, %v880
        %v882 = vpop.f32.mrb[0].mxu0
        %883 = vmatprep.mubr.f32.mxu0 0.0
        %884 = vmatmul.mubr.f32.gmra.mrb[0].mxu0 %v782
        %v885 = vpop.f32.mrb[0].mxu0
        %v886 = vadd.f32 0.0, %v885
        %v887 = vpop.f32.mrb[0].mxu0
        %888 = vdwg.mxu0
        %v890 = vsel %vm615, %v697, 0
        %v893 = vsel %vm615, %v699, 0
        %v896 = vsel %vm615, %v701, 0
        %v899 = vsel %vm615, %v703, 0
        %v902 = vsel %vm615, %v705, 0
        %v905 = vsel %vm615, %v707, 0
        %v908 = vsel %vm615, %v709, 0
        %v911 = vsel %vm615, %v711, 0
        %913 = vmatprep.subr.mxu0 0.0
        %914 = vmatpush1.msra.mxu0 %v276
        %915 = vmatprep.subr.mxu0 0.0
        %916 = vmatpush1.msra.mxu0 %v277
        %917 = vmatprep.subr.mxu0 0.0
        %918 = vmatpush1.msra.mxu0 %v278
        %919 = vmatprep.subr.mxu0 0.0
        %920 = vmatpush1.msra.mxu0 %v279
        %921 = vmatprep.subr.mxu0 0.0
        %922 = vmatpush1.msra.mxu0 %v280
        %923 = vmatprep.subr.mxu0 0.0
        %924 = vmatpush1.msra.mxu0 %v281
        %925 = vmatprep.subr.mxu0 0.0
        %926 = vmatpush1.msra.mxu0 %v282
        %927 = vmatprep.subr.mxu0 0.0
        %928 = vmatpush1.msra.mxu0 %v283
        %929 = vmatprep.subr.mxu0 0.0
        %930 = vmatpush1.msra.mxu0 0.0
        %931 = vmatprep.subr.mxu0 0.0
        %932 = vmatpush1.msra.mxu0 0.0
        %933 = vmatprep.subr.mxu0 0.0
        %934 = vmatpush1.msra.mxu0 0.0
        %935 = vmatprep.subr.mxu0 0.0
        %936 = vmatpush1.msra.mxu0 0.0
        %937 = vmatprep.subr.mxu0 0.0
        %938 = vmatpush1.msra.mxu0 0.0
        %939 = vmatprep.subr.mxu0 0.0
        %940 = vmatpush1.msra.mxu0 0.0
        %941 = vmatprep.subr.mxu0 0.0
        %942 = vmatpush1.msra.mxu0 0.0
        %943 = vmatprep.subr.mxu0 0.0
        %944 = vmatpush1.msra.mxu0 0.0
        %945 = vmatprep.subr.mxu0 0.0
        %946 = vmatpush1.msra.mxu0 0.0
        %947 = vmatprep.subr.mxu0 0.0
        %948 = vmatpush1.msra.mxu0 0.0
        %949 = vmatprep.subr.mxu0 0.0
        %950 = vmatpush1.msra.mxu0 0.0
        %951 = vmatprep.subr.mxu0 0.0
        %952 = vmatpush1.msra.mxu0 0.0
        %953 = vmatprep.subr.mxu0 0.0
        %954 = vmatpush1.msra.mxu0 0.0
        %955 = vmatprep.subr.mxu0 0.0
        %956 = vmatpush1.msra.mxu0 0.0
        %957 = vmatprep.subr.mxu0 0.0
        %958 = vmatpush1.msra.mxu0 0.0
        %959 = vmatprep.subr.mxu0 0.0
        %960 = vmatpush1.msra.mxu0 0.0
        %961 = vmatprep.subr.mxu0 0.0
        %962 = vmatpush1.msra.mxu0 0.0
        %963 = vmatprep.subr.mxu0 0.0
        %964 = vmatpush1.msra.mxu0 0.0
        %965 = vmatprep.subr.mxu0 0.0
        %966 = vmatpush1.msra.mxu0 0.0
        %967 = vmatprep.subr.mxu0 0.0
        %968 = vmatpush1.msra.mxu0 0.0
        %969 = vmatprep.subr.mxu0 0.0
        %970 = vmatpush1.msra.mxu0 0.0
        %971 = vmatprep.subr.mxu0 0.0
        %972 = vmatpush1.msra.mxu0 0.0
        %973 = vmatprep.subr.mxu0 0.0
        %974 = vmatpush1.msra.mxu0 0.0
        %975 = vmatprep.subr.mxu0 0.0
        %976 = vmatpush1.msra.mxu0 0.0
        %977 = vmatprep.mubr.f32.mxu0 0.0
        %978 = vmatmul.mubr.f32.gmra.mrb[0].mxu0 %v890
        %v979 = vpop.f32.mrb[0].mxu0
        %v980 = vadd.f32 0.0, %v979
        %v981 = vpop.f32.mrb[0].mxu0
        %982 = vmatprep.mubr.f32.mxu0 0.0
        %983 = vmatmul.mubr.f32.gmra.mrb[0].mxu0 %v893
        %v984 = vpop.f32.mrb[0].mxu0
        %v985 = vadd.f32 0.0, %v984
        %v986 = vpop.f32.mrb[0].mxu0
        %987 = vmatprep.mubr.f32.mxu0 0.0
        %988 = vmatmul.mubr.f32.gmra.mrb[0].mxu0 %v896
        %v989 = vpop.f32.mrb[0].mxu0
        %v990 = vadd.f32 0.0, %v989
        %v991 = vpop.f32.mrb[0].mxu0
        %992 = vmatprep.mubr.f32.mxu0 0.0
        %993 = vmatmul.mubr.f32.gmra.mrb[0].mxu0 %v899
        %v994 = vpop.f32.mrb[0].mxu0
        %v995 = vadd.f32 0.0, %v994
        %v996 = vpop.f32.mrb[0].mxu0
        %997 = vmatprep.mubr.f32.mxu0 0.0
        %998 = vmatmul.mubr.f32.gmra.mrb[0].mxu0 %v902
        %v999 = vpop.f32.mrb[0].mxu0
        %v1000 = vadd.f32 0.0, %v999
        %v1001 = vpop.f32.mrb[0].mxu0
        %1002 = vmatprep.mubr.f32.mxu0 0.0
        %1003 = vmatmul.mubr.f32.gmra.mrb[0].mxu0 %v905
        %v1004 = vpop.f32.mrb[0].mxu0
        %v1005 = vadd.f32 0.0, %v1004
        %v1006 = vpop.f32.mrb[0].mxu0
        %1007 = vmatprep.mubr.f32.mxu0 0.0
        %1008 = vmatmul.mubr.f32.gmra.mrb[0].mxu0 %v908
        %v1009 = vpop.f32.mrb[0].mxu0
        %v1010 = vadd.f32 0.0, %v1009
        %v1011 = vpop.f32.mrb[0].mxu0
        %1012 = vmatprep.mubr.f32.mxu0 0.0
        %1013 = vmatmul.mubr.f32.gmra.mrb[0].mxu0 %v911
        %v1014 = vpop.f32.mrb[0].mxu0
        %v1015 = vadd.f32 0.0, %v1014
        %v1016 = vpop.f32.mrb[0].mxu0
        %1017 = vdwg.mxu0
        %v1018 = vrcp.pop %v714
        %v1019 = vrcp.pop %v717
        %v1020 = vrcp.pop %v720
        %v1021 = vrcp.pop %v723
        %v1022 = vrcp.pop %v726
        %v1023 = vrcp.pop %v729
        %v1024 = vrcp.pop %v732
        %v1025 = vrcp.pop %v735
        %v1026 = vrcp.pop %v738
        %v1027 = vrcp.pop %v741
        %v1028 = vrcp.pop %v744
        %v1029 = vrcp.pop %v747
        %v1030 = vrcp.pop %v750
        %v1031 = vrcp.pop %v753
        %v1032 = vrcp.pop %v756
        %v1033 = vrcp.pop %v759
        %v1034 = vmul.f32 %v851, %v1018
        %v1035 = vmul.f32 %v856, %v1019
        %v1036 = vmul.f32 %v861, %v1020
        %v1037 = vmul.f32 %v866, %v1021
        %v1038 = vmul.f32 %v871, %v1022
        %v1039 = vmul.f32 %v876, %v1023
        %v1040 = vmul.f32 %v881, %v1024
        %v1041 = vmul.f32 %v886, %v1025
        %v1042 = vmul.f32 %v980, %v1026
        %v1043 = vmul.f32 %v985, %v1027
        %v1044 = vmul.f32 %v990, %v1028
        %v1045 = vmul.f32 %v995, %v1029
        %v1046 = vmul.f32 %v1000, %v1030
        %v1047 = vmul.f32 %v1005, %v1031
        %v1048 = vmul.f32 %v1010, %v1032
        %v1049 = vmul.f32 %v1015, %v1033
        %1050 = vst.msk [vmem:[#allocation2] sm:$0xff] %vm308, %v1034
        %1051 = vst.msk [vmem:[#allocation2 + $0x8] sm:$0xff] %vm308, %v1035
        %1052 = vst.msk [vmem:[#allocation2 + $0x10] sm:$0xff] %vm308, %v1036
        %1053 = vst.msk [vmem:[#allocation2 + $0x18] sm:$0xff] %vm308, %v1037
        %1054 = vst.msk [vmem:[#allocation2 + $0x20] sm:$0xff] %vm308, %v1038
        %1055 = vst.msk [vmem:[#allocation2 + $0x28] sm:$0xff] %vm308, %v1039
        %1056 = vst.msk [vmem:[#allocation2 + $0x30] sm:$0xff] %vm308, %v1040
        %1057 = vst.msk [vmem:[#allocation2 + $0x38] sm:$0xff] %vm308, %v1041
        %1058 = vst.msk [vmem:[#allocation2 + $0x80] sm:$0xff] %vm308, %v1042
        %1059 = vst.msk [vmem:[#allocation2 + $0x88] sm:$0xff] %vm308, %v1043
        %1060 = vst.msk [vmem:[#allocation2 + $0x90] sm:$0xff] %vm308, %v1044
        %1061 = vst.msk [vmem:[#allocation2 + $0x98] sm:$0xff] %vm308, %v1045
        %1062 = vst.msk [vmem:[#allocation2 + $0xa0] sm:$0xff] %vm308, %v1046
        %1063 = vst.msk [vmem:[#allocation2 + $0xa8] sm:$0xff] %vm308, %v1047
        %1064 = vst.msk [vmem:[#allocation2 + $0xb0] sm:$0xff] %vm308, %v1048
        %1065 = vst.msk [vmem:[#allocation2 + $0xb8] sm:$0xff] %vm308, %v1049
        %v1066 = vld [vmem:[%s196] sm:$0xff]
        %v1067 = vld [vmem:[%s196 + $0x10] sm:$0xff]
        %v1068 = vld [vmem:[%s196 + $0x20] sm:$0xff]
        %v1069 = vld [vmem:[%s196 + $0x30] sm:$0xff]
        %v1070 = vld [vmem:[%s196 + $0x40] sm:$0xff]
        %v1071 = vld [vmem:[%s196 + $0x50] sm:$0xff]
        %v1072 = vld [vmem:[%s196 + $0x60] sm:$0xff]
        %v1073 = vld [vmem:[%s196 + $0x70] sm:$0xff]
        %v1074 = vld [vmem:[%s196 + $0x80] sm:$0xff]
        %v1075 = vld [vmem:[%s196 + $0x90] sm:$0xff]
        %v1076 = vld [vmem:[%s196 + $0xa0] sm:$0xff]
        %v1077 = vld [vmem:[%s196 + $0xb0] sm:$0xff]
        %v1078 = vld [vmem:[%s196 + $0xc0] sm:$0xff]
        %v1079 = vld [vmem:[%s196 + $0xd0] sm:$0xff]
        %v1080 = vld [vmem:[%s196 + $0xe0] sm:$0xff]
        %v1081 = vld [vmem:[%s196 + $0xf0] sm:$0xff]
        %v1082 = vld [vmem:[%s250] sm:$0xff]
        %v1083 = vld [vmem:[%s250 + $0x10] sm:$0xff]
        %v1084 = vld [vmem:[%s250 + $0x20] sm:$0xff]
        %v1085 = vld [vmem:[%s250 + $0x30] sm:$0xff]
        %v1086 = vld [vmem:[%s250 + $0x40] sm:$0xff]
        %v1087 = vld [vmem:[%s250 + $0x50] sm:$0xff]
        %v1088 = vld [vmem:[%s250 + $0x60] sm:$0xff]
        %v1089 = vld [vmem:[%s250 + $0x70] sm:$0xff]
        %v1090 = vld [vmem:[%s250 + $0x80] sm:$0xff]
        %v1091 = vld [vmem:[%s250 + $0x90] sm:$0xff]
        %v1092 = vld [vmem:[%s250 + $0xa0] sm:$0xff]
        %v1093 = vld [vmem:[%s250 + $0xb0] sm:$0xff]
        %v1094 = vld [vmem:[%s250 + $0xc0] sm:$0xff]
        %v1095 = vld [vmem:[%s250 + $0xd0] sm:$0xff]
        %v1096 = vld [vmem:[%s250 + $0xe0] sm:$0xff]
        %v1097 = vld [vmem:[%s250 + $0xf0] sm:$0xff]
        %v1098 = vld [vmem:[%s267] sm:$0xff]
        %v1099 = vld [vmem:[%s267 + $0x10] sm:$0xff]
        %v1100 = vld [vmem:[%s267 + $0x20] sm:$0xff]
        %v1101 = vld [vmem:[%s267 + $0x30] sm:$0xff]
        %v1102 = vld [vmem:[%s267 + $0x40] sm:$0xff]
        %v1103 = vld [vmem:[%s267 + $0x50] sm:$0xff]
        %v1104 = vld [vmem:[%s267 + $0x60] sm:$0xff]
        %v1105 = vld [vmem:[%s267 + $0x70] sm:$0xff]
        %v1106 = vld [vmem:[%s267 + $0x80] sm:$0xff]
        %v1107 = vld [vmem:[%s267 + $0x90] sm:$0xff]
        %v1108 = vld [vmem:[%s267 + $0xa0] sm:$0xff]
        %v1109 = vld [vmem:[%s267 + $0xb0] sm:$0xff]
        %v1110 = vld [vmem:[%s267 + $0xc0] sm:$0xff]
        %v1111 = vld [vmem:[%s267 + $0xd0] sm:$0xff]
        %v1112 = vld [vmem:[%s267 + $0xe0] sm:$0xff]
        %v1113 = vld [vmem:[%s267 + $0xf0] sm:$0xff]
        %v1114 = vmul.f32 %v1066, 0.35355338
        %v1115 = vmul.f32 %v1067, 0.35355338
        %v1116 = vmul.f32 %v1068, 0.35355338
        %v1117 = vmul.f32 %v1069, 0.35355338
        %v1118 = vmul.f32 %v1070, 0.35355338
        %v1119 = vmul.f32 %v1071, 0.35355338
        %v1120 = vmul.f32 %v1072, 0.35355338
        %v1121 = vmul.f32 %v1073, 0.35355338
        %v1122 = vmul.f32 %v1074, 0.35355338
        %v1123 = vmul.f32 %v1075, 0.35355338
        %v1124 = vmul.f32 %v1076, 0.35355338
        %v1125 = vmul.f32 %v1077, 0.35355338
        %v1126 = vmul.f32 %v1078, 0.35355338
        %v1127 = vmul.f32 %v1079, 0.35355338
        %v1128 = vmul.f32 %v1080, 0.35355338
        %v1129 = vmul.f32 %v1081, 0.35355338
        %s1130 = scalar_lea.vmem [#allocation3], 64
        %v1131 = vld [vmem:[%s1130] sm:$0xff]
        %v1132 = vld [vmem:[%s1130 + $0x8] sm:$0xff]
        %v1133 = vld [vmem:[%s1130 + $0x10] sm:$0xff]
        %v1134 = vld [vmem:[%s1130 + $0x18] sm:$0xff]
        %v1135 = vld [vmem:[%s1130 + $0x20] sm:$0xff]
        %v1136 = vld [vmem:[%s1130 + $0x28] sm:$0xff]
        %v1137 = vld [vmem:[%s1130 + $0x30] sm:$0xff]
        %v1138 = vld [vmem:[%s1130 + $0x38] sm:$0xff]
        %1147 = vrot.lane.b32.xlu0 %v1114, 120
        %v1148 = vpop.permute.xlu0 %1147
        %1149 = vrot.lane.b32.xlu0 %v1115, 120
        %v1150 = vpop.permute.xlu0 %1149
        %1151 = vrot.lane.b32.xlu0 %v1116, 120
        %v1152 = vpop.permute.xlu0 %1151
        %1153 = vrot.lane.b32.xlu0 %v1117, 120
        %v1154 = vpop.permute.xlu0 %1153
        %1155 = vrot.lane.b32.xlu0 %v1118, 120
        %v1156 = vpop.permute.xlu0 %1155
        %1157 = vrot.lane.b32.xlu0 %v1119, 120
        %v1158 = vpop.permute.xlu0 %1157
        %1159 = vrot.lane.b32.xlu0 %v1120, 120
        %v1160 = vpop.permute.xlu0 %1159
        %1161 = vrot.lane.b32.xlu0 %v1121, 120
        %v1162 = vpop.permute.xlu0 %1161
        %1171 = vrot.lane.b32.xlu0 %v1082, 120
        %v1172 = vpop.permute.xlu0 %1171
        %1173 = vrot.lane.b32.xlu0 %v1083, 120
        %v1174 = vpop.permute.xlu0 %1173
        %1175 = vrot.lane.b32.xlu0 %v1084, 120
        %v1176 = vpop.permute.xlu0 %1175
        %1177 = vrot.lane.b32.xlu0 %v1085, 120
        %v1178 = vpop.permute.xlu0 %1177
        %1179 = vrot.lane.b32.xlu0 %v1086, 120
        %v1180 = vpop.permute.xlu0 %1179
        %1181 = vrot.lane.b32.xlu0 %v1087, 120
        %v1182 = vpop.permute.xlu0 %1181
        %1183 = vrot.lane.b32.xlu0 %v1088, 120
        %v1184 = vpop.permute.xlu0 %1183
        %1185 = vrot.lane.b32.xlu0 %v1089, 120
        %v1186 = vpop.permute.xlu0 %1185
        %v1187 = vsel %vm308, %v1148, 0
        %v1189 = vsel %vm308, %v1150, 0
        %v1191 = vsel %vm308, %v1152, 0
        %v1193 = vsel %vm308, %v1154, 0
        %v1195 = vsel %vm308, %v1156, 0
        %v1197 = vsel %vm308, %v1158, 0
        %v1199 = vsel %vm308, %v1160, 0
        %v1201 = vsel %vm308, %v1162, 0
        %v1203 = vsel %vm308, %v1172, 0
        %v1205 = vsel %vm308, %v1174, 0
        %v1207 = vsel %vm308, %v1176, 0
        %v1209 = vsel %vm308, %v1178, 0
        %v1211 = vsel %vm308, %v1180, 0
        %v1213 = vsel %vm308, %v1182, 0
        %v1215 = vsel %vm308, %v1184, 0
        %v1217 = vsel %vm308, %v1186, 0
        %1219 = vmatprep.subr.mxu0 0.0
        %1220 = vmatpush1.xpose.msra.mxu0 %v1203
        %1221 = vmatprep.subr.mxu0 0.0
        %1222 = vmatpush1.xpose.msra.mxu0 %v1205
        %1223 = vmatprep.subr.mxu0 0.0
        %1224 = vmatpush1.xpose.msra.mxu0 %v1207
        %1225 = vmatprep.subr.mxu0 0.0
        %1226 = vmatpush1.xpose.msra.mxu0 %v1209
        %1227 = vmatprep.subr.mxu0 0.0
        %1228 = vmatpush1.xpose.msra.mxu0 %v1211
        %1229 = vmatprep.subr.mxu0 0.0
        %1230 = vmatpush1.xpose.msra.mxu0 %v1213
        %1231 = vmatprep.subr.mxu0 0.0
        %1232 = vmatpush1.xpose.msra.mxu0 %v1215
        %1233 = vmatprep.subr.mxu0 0.0
        %1234 = vmatpush1.xpose.msra.mxu0 %v1217
        %1235 = vmatprep.subr.mxu0 0.0
        %1236 = vmatpush1.xpose.msra.mxu0 0.0
        %1237 = vmatprep.subr.mxu0 0.0
        %1238 = vmatpush1.xpose.msra.mxu0 0.0
        %1239 = vmatprep.subr.mxu0 0.0
        %1240 = vmatpush1.xpose.msra.mxu0 0.0
        %1241 = vmatprep.subr.mxu0 0.0
        %1242 = vmatpush1.xpose.msra.mxu0 0.0
        %1243 = vmatprep.subr.mxu0 0.0
        %1244 = vmatpush1.xpose.msra.mxu0 0.0
        %1245 = vmatprep.subr.mxu0 0.0
        %1246 = vmatpush1.xpose.msra.mxu0 0.0
        %1247 = vmatprep.subr.mxu0 0.0
        %1248 = vmatpush1.xpose.msra.mxu0 0.0
        %1249 = vmatprep.subr.mxu0 0.0
        %1250 = vmatpush1.xpose.msra.mxu0 0.0
        %1251 = vmatprep.subr.mxu0 0.0
        %1252 = vmatpush1.xpose.msra.mxu0 0.0
        %1253 = vmatprep.subr.mxu0 0.0
        %1254 = vmatpush1.xpose.msra.mxu0 0.0
        %1255 = vmatprep.subr.mxu0 0.0
        %1256 = vmatpush1.xpose.msra.mxu0 0.0
        %1257 = vmatprep.subr.mxu0 0.0
        %1258 = vmatpush1.xpose.msra.mxu0 0.0
        %1259 = vmatprep.subr.mxu0 0.0
        %1260 = vmatpush1.xpose.msra.mxu0 0.0
        %1261 = vmatprep.subr.mxu0 0.0
        %1262 = vmatpush1.xpose.msra.mxu0 0.0
        %1263 = vmatprep.subr.mxu0 0.0
        %1264 = vmatpush1.xpose.msra.mxu0 0.0
        %1265 = vmatprep.subr.mxu0 0.0
        %1266 = vmatpush1.xpose.msra.mxu0 0.0
        %1267 = vmatprep.subr.mxu0 0.0
        %1268 = vmatpush1.xpose.msra.mxu0 0.0
        %1269 = vmatprep.subr.mxu0 0.0
        %1270 = vmatpush1.xpose.msra.mxu0 0.0
        %1271 = vmatprep.subr.mxu0 0.0
        %1272 = vmatpush1.xpose.msra.mxu0 0.0
        %1273 = vmatprep.subr.mxu0 0.0
        %1274 = vmatpush1.xpose.msra.mxu0 0.0
        %1275 = vmatprep.subr.mxu0 0.0
        %1276 = vmatpush1.xpose.msra.mxu0 0.0
        %1277 = vmatprep.subr.mxu0 0.0
        %1278 = vmatpush1.xpose.msra.mxu0 0.0
        %1279 = vmatprep.subr.mxu0 0.0
        %1280 = vmatpush1.xpose.msra.mxu0 0.0
        %1281 = vmatprep.subr.mxu0 0.0
        %1282 = vmatpush1.xpose.msra.mxu0 0.0
        %1283 = vmatprep.mubr.f32.mxu0 0.0
        %1284 = vmatmul.mubr.f32.gmra.mrb[0].mxu0 %v1187
        %v1285 = vpop.f32.mrb[0].mxu0
        %v1286 = vadd.f32 %v1131, %v1285
        %v1287 = vpop.f32.mrb[0].mxu0
        %1288 = vmatprep.mubr.f32.mxu0 0.0
        %1289 = vmatmul.mubr.f32.gmra.mrb[0].mxu0 %v1189
        %v1290 = vpop.f32.mrb[0].mxu0
        %v1291 = vadd.f32 %v1132, %v1290
        %v1292 = vpop.f32.mrb[0].mxu0
        %1293 = vmatprep.mubr.f32.mxu0 0.0
        %1294 = vmatmul.mubr.f32.gmra.mrb[0].mxu0 %v1191
        %v1295 = vpop.f32.mrb[0].mxu0
        %v1296 = vadd.f32 %v1133, %v1295
        %v1297 = vpop.f32.mrb[0].mxu0
        %1298 = vmatprep.mubr.f32.mxu0 0.0
        %1299 = vmatmul.mubr.f32.gmra.mrb[0].mxu0 %v1193
        %v1300 = vpop.f32.mrb[0].mxu0
        %v1301 = vadd.f32 %v1134, %v1300
        %v1302 = vpop.f32.mrb[0].mxu0
        %1303 = vmatprep.mubr.f32.mxu0 0.0
        %1304 = vmatmul.mubr.f32.gmra.mrb[0].mxu0 %v1195
        %v1305 = vpop.f32.mrb[0].mxu0
        %v1306 = vadd.f32 %v1135, %v1305
        %v1307 = vpop.f32.mrb[0].mxu0
        %1308 = vmatprep.mubr.f32.mxu0 0.0
        %1309 = vmatmul.mubr.f32.gmra.mrb[0].mxu0 %v1197
        %v1310 = vpop.f32.mrb[0].mxu0
        %v1311 = vadd.f32 %v1136, %v1310
        %v1312 = vpop.f32.mrb[0].mxu0
        %1313 = vmatprep.mubr.f32.mxu0 0.0
        %1314 = vmatmul.mubr.f32.gmra.mrb[0].mxu0 %v1199
        %v1315 = vpop.f32.mrb[0].mxu0
        %v1316 = vadd.f32 %v1137, %v1315
        %v1317 = vpop.f32.mrb[0].mxu0
        %1318 = vmatprep.mubr.f32.mxu0 0.0
        %1319 = vmatmul.mubr.f32.gmra.mrb[0].mxu0 %v1201
        %v1320 = vpop.f32.mrb[0].mxu0
        %v1321 = vadd.f32 %v1138, %v1320
        %v1322 = vpop.f32.mrb[0].mxu0
        %1323 = vdwg.mxu0
        %1332 = vrot.lane.b32.xlu0 %v1122, 120
        %v1333 = vpop.permute.xlu0 %1332
        %1334 = vrot.lane.b32.xlu0 %v1123, 120
        %v1335 = vpop.permute.xlu0 %1334
        %1336 = vrot.lane.b32.xlu0 %v1124, 120
        %v1337 = vpop.permute.xlu0 %1336
        %1338 = vrot.lane.b32.xlu0 %v1125, 120
        %v1339 = vpop.permute.xlu0 %1338
        %1340 = vrot.lane.b32.xlu0 %v1126, 120
        %v1341 = vpop.permute.xlu0 %1340
        %1342 = vrot.lane.b32.xlu0 %v1127, 120
        %v1343 = vpop.permute.xlu0 %1342
        %1344 = vrot.lane.b32.xlu0 %v1128, 120
        %v1345 = vpop.permute.xlu0 %1344
        %1346 = vrot.lane.b32.xlu0 %v1129, 120
        %v1347 = vpop.permute.xlu0 %1346
        %1356 = vrot.lane.b32.xlu0 %v1090, 120
        %v1357 = vpop.permute.xlu0 %1356
        %1358 = vrot.lane.b32.xlu0 %v1091, 120
        %v1359 = vpop.permute.xlu0 %1358
        %1360 = vrot.lane.b32.xlu0 %v1092, 120
        %v1361 = vpop.permute.xlu0 %1360
        %1362 = vrot.lane.b32.xlu0 %v1093, 120
        %v1363 = vpop.permute.xlu0 %1362
        %1364 = vrot.lane.b32.xlu0 %v1094, 120
        %v1365 = vpop.permute.xlu0 %1364
        %1366 = vrot.lane.b32.xlu0 %v1095, 120
        %v1367 = vpop.permute.xlu0 %1366
        %1368 = vrot.lane.b32.xlu0 %v1096, 120
        %v1369 = vpop.permute.xlu0 %1368
        %1370 = vrot.lane.b32.xlu0 %v1097, 120
        %v1371 = vpop.permute.xlu0 %1370
        %v1372 = vsel %vm308, %v1333, 0
        %v1374 = vsel %vm308, %v1335, 0
        %v1376 = vsel %vm308, %v1337, 0
        %v1378 = vsel %vm308, %v1339, 0
        %v1380 = vsel %vm308, %v1341, 0
        %v1382 = vsel %vm308, %v1343, 0
        %v1384 = vsel %vm308, %v1345, 0
        %v1386 = vsel %vm308, %v1347, 0
        %v1388 = vsel %vm308, %v1357, 0
        %v1390 = vsel %vm308, %v1359, 0
        %v1392 = vsel %vm308, %v1361, 0
        %v1394 = vsel %vm308, %v1363, 0
        %v1396 = vsel %vm308, %v1365, 0
        %v1398 = vsel %vm308, %v1367, 0
        %v1400 = vsel %vm308, %v1369, 0
        %v1402 = vsel %vm308, %v1371, 0
        %1404 = vmatprep.subr.mxu0 0.0
        %1405 = vmatpush1.xpose.msra.mxu0 %v1388
        %1406 = vmatprep.subr.mxu0 0.0
        %1407 = vmatpush1.xpose.msra.mxu0 %v1390
        %1408 = vmatprep.subr.mxu0 0.0
        %1409 = vmatpush1.xpose.msra.mxu0 %v1392
        %1410 = vmatprep.subr.mxu0 0.0
        %1411 = vmatpush1.xpose.msra.mxu0 %v1394
        %1412 = vmatprep.subr.mxu0 0.0
        %1413 = vmatpush1.xpose.msra.mxu0 %v1396
        %1414 = vmatprep.subr.mxu0 0.0
        %1415 = vmatpush1.xpose.msra.mxu0 %v1398
        %1416 = vmatprep.subr.mxu0 0.0
        %1417 = vmatpush1.xpose.msra.mxu0 %v1400
        %1418 = vmatprep.subr.mxu0 0.0
        %1419 = vmatpush1.xpose.msra.mxu0 %v1402
        %1420 = vmatprep.subr.mxu0 0.0
        %1421 = vmatpush1.xpose.msra.mxu0 0.0
        %1422 = vmatprep.subr.mxu0 0.0
        %1423 = vmatpush1.xpose.msra.mxu0 0.0
        %1424 = vmatprep.subr.mxu0 0.0
        %1425 = vmatpush1.xpose.msra.mxu0 0.0
        %1426 = vmatprep.subr.mxu0 0.0
        %1427 = vmatpush1.xpose.msra.mxu0 0.0
        %1428 = vmatprep.subr.mxu0 0.0
        %1429 = vmatpush1.xpose.msra.mxu0 0.0
        %1430 = vmatprep.subr.mxu0 0.0
        %1431 = vmatpush1.xpose.msra.mxu0 0.0
        %1432 = vmatprep.subr.mxu0 0.0
        %1433 = vmatpush1.xpose.msra.mxu0 0.0
        %1434 = vmatprep.subr.mxu0 0.0
        %1435 = vmatpush1.xpose.msra.mxu0 0.0
        %1436 = vmatprep.subr.mxu0 0.0
        %1437 = vmatpush1.xpose.msra.mxu0 0.0
        %1438 = vmatprep.subr.mxu0 0.0
        %1439 = vmatpush1.xpose.msra.mxu0 0.0
        %1440 = vmatprep.subr.mxu0 0.0
        %1441 = vmatpush1.xpose.msra.mxu0 0.0
        %1442 = vmatprep.subr.mxu0 0.0
        %1443 = vmatpush1.xpose.msra.mxu0 0.0
        %1444 = vmatprep.subr.mxu0 0.0
        %1445 = vmatpush1.xpose.msra.mxu0 0.0
        %1446 = vmatprep.subr.mxu0 0.0
        %1447 = vmatpush1.xpose.msra.mxu0 0.0
        %1448 = vmatprep.subr.mxu0 0.0
        %1449 = vmatpush1.xpose.msra.mxu0 0.0
        %1450 = vmatprep.subr.mxu0 0.0
        %1451 = vmatpush1.xpose.msra.mxu0 0.0
        %1452 = vmatprep.subr.mxu0 0.0
        %1453 = vmatpush1.xpose.msra.mxu0 0.0
        %1454 = vmatprep.subr.mxu0 0.0
        %1455 = vmatpush1.xpose.msra.mxu0 0.0
        %1456 = vmatprep.subr.mxu0 0.0
        %1457 = vmatpush1.xpose.msra.mxu0 0.0
        %1458 = vmatprep.subr.mxu0 0.0
        %1459 = vmatpush1.xpose.msra.mxu0 0.0
        %1460 = vmatprep.subr.mxu0 0.0
        %1461 = vmatpush1.xpose.msra.mxu0 0.0
        %1462 = vmatprep.subr.mxu0 0.0
        %1463 = vmatpush1.xpose.msra.mxu0 0.0
        %1464 = vmatprep.subr.mxu0 0.0
        %1465 = vmatpush1.xpose.msra.mxu0 0.0
        %1466 = vmatprep.subr.mxu0 0.0
        %1467 = vmatpush1.xpose.msra.mxu0 0.0
        %1468 = vmatprep.mubr.f32.mxu0 0.0
        %1469 = vmatmul.mubr.f32.gmra.mrb[0].mxu0 %v1372
        %v1470 = vpop.f32.mrb[0].mxu0
        %v1471 = vadd.f32 %v1131, %v1470
        %v1472 = vpop.f32.mrb[0].mxu0
        %1473 = vmatprep.mubr.f32.mxu0 0.0
        %1474 = vmatmul.mubr.f32.gmra.mrb[0].mxu0 %v1374
        %v1475 = vpop.f32.mrb[0].mxu0
        %v1476 = vadd.f32 %v1132, %v1475
        %v1477 = vpop.f32.mrb[0].mxu0
        %1478 = vmatprep.mubr.f32.mxu0 0.0
        %1479 = vmatmul.mubr.f32.gmra.mrb[0].mxu0 %v1376
        %v1480 = vpop.f32.mrb[0].mxu0
        %v1481 = vadd.f32 %v1133, %v1480
        %v1482 = vpop.f32.mrb[0].mxu0
        %1483 = vmatprep.mubr.f32.mxu0 0.0
        %1484 = vmatmul.mubr.f32.gmra.mrb[0].mxu0 %v1378
        %v1485 = vpop.f32.mrb[0].mxu0
        %v1486 = vadd.f32 %v1134, %v1485
        %v1487 = vpop.f32.mrb[0].mxu0
        %1488 = vmatprep.mubr.f32.mxu0 0.0
        %1489 = vmatmul.mubr.f32.gmra.mrb[0].mxu0 %v1380
        %v1490 = vpop.f32.mrb[0].mxu0
        %v1491 = vadd.f32 %v1135, %v1490
        %v1492 = vpop.f32.mrb[0].mxu0
        %1493 = vmatprep.mubr.f32.mxu0 0.0
        %1494 = vmatmul.mubr.f32.gmra.mrb[0].mxu0 %v1382
        %v1495 = vpop.f32.mrb[0].mxu0
        %v1496 = vadd.f32 %v1136, %v1495
        %v1497 = vpop.f32.mrb[0].mxu0
        %1498 = vmatprep.mubr.f32.mxu0 0.0
        %1499 = vmatmul.mubr.f32.gmra.mrb[0].mxu0 %v1384
        %v1500 = vpop.f32.mrb[0].mxu0
        %v1501 = vadd.f32 %v1137, %v1500
        %v1502 = vpop.f32.mrb[0].mxu0
        %1503 = vmatprep.mubr.f32.mxu0 0.0
        %1504 = vmatmul.mubr.f32.gmra.mrb[0].mxu0 %v1386
        %v1505 = vpop.f32.mrb[0].mxu0
        %v1506 = vadd.f32 %v1138, %v1505
        %v1507 = vpop.f32.mrb[0].mxu0
        %1508 = vdwg.mxu0
        %v1509 = vsel %vm615, %v1286, -inf
        %1510 = vmax.xlane.f32.xlu0 %v1509
        %v1511 = vpop.xlane.xlu0 %1510
        %v1512 = vsel %vm615, %v1291, -inf
        %1513 = vmax.xlane.f32.xlu0 %v1512
        %v1514 = vpop.xlane.xlu0 %1513
        %v1515 = vsel %vm615, %v1296, -inf
        %1516 = vmax.xlane.f32.xlu0 %v1515
        %v1517 = vpop.xlane.xlu0 %1516
        %v1518 = vsel %vm615, %v1301, -inf
        %1519 = vmax.xlane.f32.xlu0 %v1518
        %v1520 = vpop.xlane.xlu0 %1519
        %v1521 = vsel %vm615, %v1306, -inf
        %1522 = vmax.xlane.f32.xlu0 %v1521
        %v1523 = vpop.xlane.xlu0 %1522
        %v1524 = vsel %vm615, %v1311, -inf
        %1525 = vmax.xlane.f32.xlu0 %v1524
        %v1526 = vpop.xlane.xlu0 %1525
        %v1527 = vsel %vm615, %v1316, -inf
        %1528 = vmax.xlane.f32.xlu0 %v1527
        %v1529 = vpop.xlane.xlu0 %1528
        %v1530 = vsel %vm615, %v1321, -inf
        %1531 = vmax.xlane.f32.xlu0 %v1530
        %v1532 = vpop.xlane.xlu0 %1531
        %v1533 = vsel %vm615, %v1471, -inf
        %1534 = vmax.xlane.f32.xlu0 %v1533
        %v1535 = vpop.xlane.xlu0 %1534
        %v1536 = vsel %vm615, %v1476, -inf
        %1537 = vmax.xlane.f32.xlu0 %v1536
        %v1538 = vpop.xlane.xlu0 %1537
        %v1539 = vsel %vm615, %v1481, -inf
        %1540 = vmax.xlane.f32.xlu0 %v1539
        %v1541 = vpop.xlane.xlu0 %1540
        %v1542 = vsel %vm615, %v1486, -inf
        %1543 = vmax.xlane.f32.xlu0 %v1542
        %v1544 = vpop.xlane.xlu0 %1543
        %v1545 = vsel %vm615, %v1491, -inf
        %1546 = vmax.xlane.f32.xlu0 %v1545
        %v1547 = vpop.xlane.xlu0 %1546
        %v1548 = vsel %vm615, %v1496, -inf
        %1549 = vmax.xlane.f32.xlu0 %v1548
        %v1550 = vpop.xlane.xlu0 %1549
        %v1551 = vsel %vm615, %v1501, -inf
        %1552 = vmax.xlane.f32.xlu0 %v1551
        %v1553 = vpop.xlane.xlu0 %1552
        %v1554 = vsel %vm615, %v1506, -inf
        %1555 = vmax.xlane.f32.xlu0 %v1554
        %v1556 = vpop.xlane.xlu0 %1555
        %v1557 = vsub.f32 %v1286, %v1511
        %v1558 = vsub.f32 %v1291, %v1514
        %v1559 = vsub.f32 %v1296, %v1517
        %v1560 = vsub.f32 %v1301, %v1520
        %v1561 = vsub.f32 %v1306, %v1523
        %v1562 = vsub.f32 %v1311, %v1526
        %v1563 = vsub.f32 %v1316, %v1529
        %v1564 = vsub.f32 %v1321, %v1532
        %v1565 = vsub.f32 %v1471, %v1535
        %v1566 = vsub.f32 %v1476, %v1538
        %v1567 = vsub.f32 %v1481, %v1541
        %v1568 = vsub.f32 %v1486, %v1544
        %v1569 = vsub.f32 %v1491, %v1547
        %v1570 = vsub.f32 %v1496, %v1550
        %v1571 = vsub.f32 %v1501, %v1553
        %v1572 = vsub.f32 %v1506, %v1556
        %v1573 = vmul.f32 %v1557, 1.442695
        %v1574 = vpow.pop %v1573
        %v1575 = vmul.f32 %v1558, 1.442695
        %v1576 = vpow.pop %v1575
        %v1577 = vmul.f32 %v1559, 1.442695
        %v1578 = vpow.pop %v1577
        %v1579 = vmul.f32 %v1560, 1.442695
        %v1580 = vpow.pop %v1579
        %v1581 = vmul.f32 %v1561, 1.442695
        %v1582 = vpow.pop %v1581
        %v1583 = vmul.f32 %v1562, 1.442695
        %v1584 = vpow.pop %v1583
        %v1585 = vmul.f32 %v1563, 1.442695
        %v1586 = vpow.pop %v1585
        %v1587 = vmul.f32 %v1564, 1.442695
        %v1588 = vpow.pop %v1587
        %v1589 = vmul.f32 %v1565, 1.442695
        %v1590 = vpow.pop %v1589
        %v1591 = vmul.f32 %v1566, 1.442695
        %v1592 = vpow.pop %v1591
        %v1593 = vmul.f32 %v1567, 1.442695
        %v1594 = vpow.pop %v1593
        %v1595 = vmul.f32 %v1568, 1.442695
        %v1596 = vpow.pop %v1595
        %v1597 = vmul.f32 %v1569, 1.442695
        %v1598 = vpow.pop %v1597
        %v1599 = vmul.f32 %v1570, 1.442695
        %v1600 = vpow.pop %v1599
        %v1601 = vmul.f32 %v1571, 1.442695
        %v1602 = vpow.pop %v1601
        %v1603 = vmul.f32 %v1572, 1.442695
        %v1604 = vpow.pop %v1603
        %v1605 = vsel %vm615, %v1574, 0.0
        %1606 = vadd.xlane.f32.xlu0 %v1605
        %v1607 = vpop.xlane.xlu0 %1606
        %v1608 = vsel %vm615, %v1576, 0.0
        %1609 = vadd.xlane.f32.xlu0 %v1608
        %v1610 = vpop.xlane.xlu0 %1609
        %v1611 = vsel %vm615, %v1578, 0.0
        %1612 = vadd.xlane.f32.xlu0 %v1611
        %v1613 = vpop.xlane.xlu0 %1612
        %v1614 = vsel %vm615, %v1580, 0.0
        %1615 = vadd.xlane.f32.xlu0 %v1614
        %v1616 = vpop.xlane.xlu0 %1615
        %v1617 = vsel %vm615, %v1582, 0.0
        %1618 = vadd.xlane.f32.xlu0 %v1617
        %v1619 = vpop.xlane.xlu0 %1618
        %v1620 = vsel %vm615, %v1584, 0.0
        %1621 = vadd.xlane.f32.xlu0 %v1620
        %v1622 = vpop.xlane.xlu0 %1621
        %v1623 = vsel %vm615, %v1586, 0.0
        %1624 = vadd.xlane.f32.xlu0 %v1623
        %v1625 = vpop.xlane.xlu0 %1624
        %v1626 = vsel %vm615, %v1588, 0.0
        %1627 = vadd.xlane.f32.xlu0 %v1626
        %v1628 = vpop.xlane.xlu0 %1627
        %v1629 = vsel %vm615, %v1590, 0.0
        %1630 = vadd.xlane.f32.xlu0 %v1629
        %v1631 = vpop.xlane.xlu0 %1630
        %v1632 = vsel %vm615, %v1592, 0.0
        %1633 = vadd.xlane.f32.xlu0 %v1632
        %v1634 = vpop.xlane.xlu0 %1633
        %v1635 = vsel %vm615, %v1594, 0.0
        %1636 = vadd.xlane.f32.xlu0 %v1635
        %v1637 = vpop.xlane.xlu0 %1636
        %v1638 = vsel %vm615, %v1596, 0.0
        %1639 = vadd.xlane.f32.xlu0 %v1638
        %v1640 = vpop.xlane.xlu0 %1639
        %v1641 = vsel %vm615, %v1598, 0.0
        %1642 = vadd.xlane.f32.xlu0 %v1641
        %v1643 = vpop.xlane.xlu0 %1642
        %v1644 = vsel %vm615, %v1600, 0.0
        %1645 = vadd.xlane.f32.xlu0 %v1644
        %v1646 = vpop.xlane.xlu0 %1645
        %v1647 = vsel %vm615, %v1602, 0.0
        %1648 = vadd.xlane.f32.xlu0 %v1647
        %v1649 = vpop.xlane.xlu0 %1648
        %v1650 = vsel %vm615, %v1604, 0.0
        %1651 = vadd.xlane.f32.xlu0 %v1650
        %v1652 = vpop.xlane.xlu0 %1651
        %1661 = vrot.lane.b32.xlu0 %v1098, 120
        %v1662 = vpop.permute.xlu0 %1661
        %1663 = vrot.lane.b32.xlu0 %v1099, 120
        %v1664 = vpop.permute.xlu0 %1663
        %1665 = vrot.lane.b32.xlu0 %v1100, 120
        %v1666 = vpop.permute.xlu0 %1665
        %1667 = vrot.lane.b32.xlu0 %v1101, 120
        %v1668 = vpop.permute.xlu0 %1667
        %1669 = vrot.lane.b32.xlu0 %v1102, 120
        %v1670 = vpop.permute.xlu0 %1669
        %1671 = vrot.lane.b32.xlu0 %v1103, 120
        %v1672 = vpop.permute.xlu0 %1671
        %1673 = vrot.lane.b32.xlu0 %v1104, 120
        %v1674 = vpop.permute.xlu0 %1673
        %1675 = vrot.lane.b32.xlu0 %v1105, 120
        %v1676 = vpop.permute.xlu0 %1675
        %v1686 = vsel %vm615, %v1574, 0
        %v1689 = vsel %vm615, %v1576, 0
        %v1692 = vsel %vm615, %v1578, 0
        %v1695 = vsel %vm615, %v1580, 0
        %v1698 = vsel %vm615, %v1582, 0
        %v1701 = vsel %vm615, %v1584, 0
        %v1704 = vsel %vm615, %v1586, 0
        %v1707 = vsel %vm615, %v1588, 0
        %1709 = vmatprep.subr.mxu0 0.0
        %1710 = vmatpush1.msra.mxu0 %v1662
        %1711 = vmatprep.subr.mxu0 0.0
        %1712 = vmatpush1.msra.mxu0 %v1664
        %1713 = vmatprep.subr.mxu0 0.0
        %1714 = vmatpush1.msra.mxu0 %v1666
        %1715 = vmatprep.subr.mxu0 0.0
        %1716 = vmatpush1.msra.mxu0 %v1668
        %1717 = vmatprep.subr.mxu0 0.0
        %1718 = vmatpush1.msra.mxu0 %v1670
        %1719 = vmatprep.subr.mxu0 0.0
        %1720 = vmatpush1.msra.mxu0 %v1672
        %1721 = vmatprep.subr.mxu0 0.0
        %1722 = vmatpush1.msra.mxu0 %v1674
        %1723 = vmatprep.subr.mxu0 0.0
        %1724 = vmatpush1.msra.mxu0 %v1676
        %1725 = vmatprep.subr.mxu0 0.0
        %1726 = vmatpush1.msra.mxu0 0.0
        %1727 = vmatprep.subr.mxu0 0.0
        %1728 = vmatpush1.msra.mxu0 0.0
        %1729 = vmatprep.subr.mxu0 0.0
        %1730 = vmatpush1.msra.mxu0 0.0
        %1731 = vmatprep.subr.mxu0 0.0
        %1732 = vmatpush1.msra.mxu0 0.0
        %1733 = vmatprep.subr.mxu0 0.0
        %1734 = vmatpush1.msra.mxu0 0.0
        %1735 = vmatprep.subr.mxu0 0.0
        %1736 = vmatpush1.msra.mxu0 0.0
        %1737 = vmatprep.subr.mxu0 0.0
        %1738 = vmatpush1.msra.mxu0 0.0
        %1739 = vmatprep.subr.mxu0 0.0
        %1740 = vmatpush1.msra.mxu0 0.0
        %1741 = vmatprep.subr.mxu0 0.0
        %1742 = vmatpush1.msra.mxu0 0.0
        %1743 = vmatprep.subr.mxu0 0.0
        %1744 = vmatpush1.msra.mxu0 0.0
        %1745 = vmatprep.subr.mxu0 0.0
        %1746 = vmatpush1.msra.mxu0 0.0
        %1747 = vmatprep.subr.mxu0 0.0
        %1748 = vmatpush1.msra.mxu0 0.0
        %1749 = vmatprep.subr.mxu0 0.0
        %1750 = vmatpush1.msra.mxu0 0.0
        %1751 = vmatprep.subr.mxu0 0.0
        %1752 = vmatpush1.msra.mxu0 0.0
        %1753 = vmatprep.subr.mxu0 0.0
        %1754 = vmatpush1.msra.mxu0 0.0
        %1755 = vmatprep.subr.mxu0 0.0
        %1756 = vmatpush1.msra.mxu0 0.0
        %1757 = vmatprep.subr.mxu0 0.0
        %1758 = vmatpush1.msra.mxu0 0.0
        %1759 = vmatprep.subr.mxu0 0.0
        %1760 = vmatpush1.msra.mxu0 0.0
        %1761 = vmatprep.subr.mxu0 0.0
        %1762 = vmatpush1.msra.mxu0 0.0
        %1763 = vmatprep.subr.mxu0 0.0
        %1764 = vmatpush1.msra.mxu0 0.0
        %1765 = vmatprep.subr.mxu0 0.0
        %1766 = vmatpush1.msra.mxu0 0.0
        %1767 = vmatprep.subr.mxu0 0.0
        %1768 = vmatpush1.msra.mxu0 0.0
        %1769 = vmatprep.subr.mxu0 0.0
        %1770 = vmatpush1.msra.mxu0 0.0
        %1771 = vmatprep.subr.mxu0 0.0
        %1772 = vmatpush1.msra.mxu0 0.0
        %1773 = vmatprep.mubr.f32.mxu0 0.0
        %1774 = vmatmul.mubr.f32.gmra.mrb[0].mxu0 %v1686
        %v1775 = vpop.f32.mrb[0].mxu0
        %v1776 = vadd.f32 0.0, %v1775
        %v1777 = vpop.f32.mrb[0].mxu0
        %1778 = vmatprep.mubr.f32.mxu0 0.0
        %1779 = vmatmul.mubr.f32.gmra.mrb[0].mxu0 %v1689
        %v1780 = vpop.f32.mrb[0].mxu0
        %v1781 = vadd.f32 0.0, %v1780
        %v1782 = vpop.f32.mrb[0].mxu0
        %1783 = vmatprep.mubr.f32.mxu0 0.0
        %1784 = vmatmul.mubr.f32.gmra.mrb[0].mxu0 %v1692
        %v1785 = vpop.f32.mrb[0].mxu0
        %v1786 = vadd.f32 0.0, %v1785
        %v1787 = vpop.f32.mrb[0].mxu0
        %1788 = vmatprep.mubr.f32.mxu0 0.0
        %1789 = vmatmul.mubr.f32.gmra.mrb[0].mxu0 %v1695
        %v1790 = vpop.f32.mrb[0].mxu0
        %v1791 = vadd.f32 0.0, %v1790
        %v1792 = vpop.f32.mrb[0].mxu0
        %1793 = vmatprep.mubr.f32.mxu0 0.0
        %1794 = vmatmul.mubr.f32.gmra.mrb[0].mxu0 %v1698
        %v1795 = vpop.f32.mrb[0].mxu0
        %v1796 = vadd.f32 0.0, %v1795
        %v1797 = vpop.f32.mrb[0].mxu0
        %1798 = vmatprep.mubr.f32.mxu0 0.0
        %1799 = vmatmul.mubr.f32.gmra.mrb[0].mxu0 %v1701
        %v1800 = vpop.f32.mrb[0].mxu0
        %v1801 = vadd.f32 0.0, %v1800
        %v1802 = vpop.f32.mrb[0].mxu0
        %1803 = vmatprep.mubr.f32.mxu0 0.0
        %1804 = vmatmul.mubr.f32.gmra.mrb[0].mxu0 %v1704
        %v1805 = vpop.f32.mrb[0].mxu0
        %v1806 = vadd.f32 0.0, %v1805
        %v1807 = vpop.f32.mrb[0].mxu0
        %1808 = vmatprep.mubr.f32.mxu0 0.0
        %1809 = vmatmul.mubr.f32.gmra.mrb[0].mxu0 %v1707
        %v1810 = vpop.f32.mrb[0].mxu0
        %v1811 = vadd.f32 0.0, %v1810
        %v1812 = vpop.f32.mrb[0].mxu0
        %1813 = vdwg.mxu0
        %1822 = vrot.lane.b32.xlu0 %v1106, 120
        %v1823 = vpop.permute.xlu0 %1822
        %1824 = vrot.lane.b32.xlu0 %v1107, 120
        %v1825 = vpop.permute.xlu0 %1824
        %1826 = vrot.lane.b32.xlu0 %v1108, 120
        %v1827 = vpop.permute.xlu0 %1826
        %1828 = vrot.lane.b32.xlu0 %v1109, 120
        %v1829 = vpop.permute.xlu0 %1828
        %1830 = vrot.lane.b32.xlu0 %v1110, 120
        %v1831 = vpop.permute.xlu0 %1830
        %1832 = vrot.lane.b32.xlu0 %v1111, 120
        %v1833 = vpop.permute.xlu0 %1832
        %1834 = vrot.lane.b32.xlu0 %v1112, 120
        %v1835 = vpop.permute.xlu0 %1834
        %1836 = vrot.lane.b32.xlu0 %v1113, 120
        %v1837 = vpop.permute.xlu0 %1836
        %v1847 = vsel %vm615, %v1590, 0
        %v1850 = vsel %vm615, %v1592, 0
        %v1853 = vsel %vm615, %v1594, 0
        %v1856 = vsel %vm615, %v1596, 0
        %v1859 = vsel %vm615, %v1598, 0
        %v1862 = vsel %vm615, %v1600, 0
        %v1865 = vsel %vm615, %v1602, 0
        %v1868 = vsel %vm615, %v1604, 0
        %1870 = vmatprep.subr.mxu0 0.0
        %1871 = vmatpush1.msra.mxu0 %v1823
        %1872 = vmatprep.subr.mxu0 0.0
        %1873 = vmatpush1.msra.mxu0 %v1825
        %1874 = vmatprep.subr.mxu0 0.0
        %1875 = vmatpush1.msra.mxu0 %v1827
        %1876 = vmatprep.subr.mxu0 0.0
        %1877 = vmatpush1.msra.mxu0 %v1829
        %1878 = vmatprep.subr.mxu0 0.0
        %1879 = vmatpush1.msra.mxu0 %v1831
        %1880 = vmatprep.subr.mxu0 0.0
        %1881 = vmatpush1.msra.mxu0 %v1833
        %1882 = vmatprep.subr.mxu0 0.0
        %1883 = vmatpush1.msra.mxu0 %v1835
        %1884 = vmatprep.subr.mxu0 0.0
        %1885 = vmatpush1.msra.mxu0 %v1837
        %1886 = vmatprep.subr.mxu0 0.0
        %1887 = vmatpush1.msra.mxu0 0.0
        %1888 = vmatprep.subr.mxu0 0.0
        %1889 = vmatpush1.msra.mxu0 0.0
        %1890 = vmatprep.subr.mxu0 0.0
        %1891 = vmatpush1.msra.mxu0 0.0
        %1892 = vmatprep.subr.mxu0 0.0
        %1893 = vmatpush1.msra.mxu0 0.0
        %1894 = vmatprep.subr.mxu0 0.0
        %1895 = vmatpush1.msra.mxu0 0.0
        %1896 = vmatprep.subr.mxu0 0.0
        %1897 = vmatpush1.msra.mxu0 0.0
        %1898 = vmatprep.subr.mxu0 0.0
        %1899 = vmatpush1.msra.mxu0 0.0
        %1900 = vmatprep.subr.mxu0 0.0
        %1901 = vmatpush1.msra.mxu0 0.0
        %1902 = vmatprep.subr.mxu0 0.0
        %1903 = vmatpush1.msra.mxu0 0.0
        %1904 = vmatprep.subr.mxu0 0.0
        %1905 = vmatpush1.msra.mxu0 0.0
        %1906 = vmatprep.subr.mxu0 0.0
        %1907 = vmatpush1.msra.mxu0 0.0
        %1908 = vmatprep.subr.mxu0 0.0
        %1909 = vmatpush1.msra.mxu0 0.0
        %1910 = vmatprep.subr.mxu0 0.0
        %1911 = vmatpush1.msra.mxu0 0.0
        %1912 = vmatprep.subr.mxu0 0.0
        %1913 = vmatpush1.msra.mxu0 0.0
        %1914 = vmatprep.subr.mxu0 0.0
        %1915 = vmatpush1.msra.mxu0 0.0
        %1916 = vmatprep.subr.mxu0 0.0
        %1917 = vmatpush1.msra.mxu0 0.0
        %1918 = vmatprep.subr.mxu0 0.0
        %1919 = vmatpush1.msra.mxu0 0.0
        %1920 = vmatprep.subr.mxu0 0.0
        %1921 = vmatpush1.msra.mxu0 0.0
        %1922 = vmatprep.subr.mxu0 0.0
        %1923 = vmatpush1.msra.mxu0 0.0
        %1924 = vmatprep.subr.mxu0 0.0
        %1925 = vmatpush1.msra.mxu0 0.0
        %1926 = vmatprep.subr.mxu0 0.0
        %1927 = vmatpush1.msra.mxu0 0.0
        %1928 = vmatprep.subr.mxu0 0.0
        %1929 = vmatpush1.msra.mxu0 0.0
        %1930 = vmatprep.subr.mxu0 0.0
        %1931 = vmatpush1.msra.mxu0 0.0
        %1932 = vmatprep.subr.mxu0 0.0
        %1933 = vmatpush1.msra.mxu0 0.0
        %1934 = vmatprep.mubr.f32.mxu0 0.0
        %1935 = vmatmul.mubr.f32.gmra.mrb[0].mxu0 %v1847
        %v1936 = vpop.f32.mrb[0].mxu0
        %v1937 = vadd.f32 0.0, %v1936
        %v1938 = vpop.f32.mrb[0].mxu0
        %1939 = vmatprep.mubr.f32.mxu0 0.0
        %1940 = vmatmul.mubr.f32.gmra.mrb[0].mxu0 %v1850
        %v1941 = vpop.f32.mrb[0].mxu0
        %v1942 = vadd.f32 0.0, %v1941
        %v1943 = vpop.f32.mrb[0].mxu0
        %1944 = vmatprep.mubr.f32.mxu0 0.0
        %1945 = vmatmul.mubr.f32.gmra.mrb[0].mxu0 %v1853
        %v1946 = vpop.f32.mrb[0].mxu0
        %v1947 = vadd.f32 0.0, %v1946
        %v1948 = vpop.f32.mrb[0].mxu0
        %1949 = vmatprep.mubr.f32.mxu0 0.0
        %1950 = vmatmul.mubr.f32.gmra.mrb[0].mxu0 %v1856
        %v1951 = vpop.f32.mrb[0].mxu0
        %v1952 = vadd.f32 0.0, %v1951
        %v1953 = vpop.f32.mrb[0].mxu0
        %1954 = vmatprep.mubr.f32.mxu0 0.0
        %1955 = vmatmul.mubr.f32.gmra.mrb[0].mxu0 %v1859
        %v1956 = vpop.f32.mrb[0].mxu0
        %v1957 = vadd.f32 0.0, %v1956
        %v1958 = vpop.f32.mrb[0].mxu0
        %1959 = vmatprep.mubr.f32.mxu0 0.0
        %1960 = vmatmul.mubr.f32.gmra.mrb[0].mxu0 %v1862
        %v1961 = vpop.f32.mrb[0].mxu0
        %v1962 = vadd.f32 0.0, %v1961
        %v1963 = vpop.f32.mrb[0].mxu0
        %1964 = vmatprep.mubr.f32.mxu0 0.0
        %1965 = vmatmul.mubr.f32.gmra.mrb[0].mxu0 %v1865
        %v1966 = vpop.f32.mrb[0].mxu0
        %v1967 = vadd.f32 0.0, %v1966
        %v1968 = vpop.f32.mrb[0].mxu0
        %1969 = vmatprep.mubr.f32.mxu0 0.0
        %1970 = vmatmul.mubr.f32.gmra.mrb[0].mxu0 %v1868
        %v1971 = vpop.f32.mrb[0].mxu0
        %v1972 = vadd.f32 0.0, %v1971
        %v1973 = vpop.f32.mrb[0].mxu0
        %1974 = vdwg.mxu0
        %v1975 = vrcp.pop %v1607
        %v1976 = vrcp.pop %v1610
        %v1977 = vrcp.pop %v1613
        %v1978 = vrcp.pop %v1616
        %v1979 = vrcp.pop %v1619
        %v1980 = vrcp.pop %v1622
        %v1981 = vrcp.pop %v1625
        %v1982 = vrcp.pop %v1628
        %v1983 = vrcp.pop %v1631
        %v1984 = vrcp.pop %v1634
        %v1985 = vrcp.pop %v1637
        %v1986 = vrcp.pop %v1640
        %v1987 = vrcp.pop %v1643
        %v1988 = vrcp.pop %v1646
        %v1989 = vrcp.pop %v1649
        %v1990 = vrcp.pop %v1652
        %v1991 = vmul.f32 %v1776, %v1975
        %v1992 = vmul.f32 %v1781, %v1976
        %v1993 = vmul.f32 %v1786, %v1977
        %v1994 = vmul.f32 %v1791, %v1978
        %v1995 = vmul.f32 %v1796, %v1979
        %v1996 = vmul.f32 %v1801, %v1980
        %v1997 = vmul.f32 %v1806, %v1981
        %v1998 = vmul.f32 %v1811, %v1982
        %v1999 = vmul.f32 %v1937, %v1983
        %v2000 = vmul.f32 %v1942, %v1984
        %v2001 = vmul.f32 %v1947, %v1985
        %v2002 = vmul.f32 %v1952, %v1986
        %v2003 = vmul.f32 %v1957, %v1987
        %v2004 = vmul.f32 %v1962, %v1988
        %v2005 = vmul.f32 %v1967, %v1989
        %v2006 = vmul.f32 %v1972, %v1990
        %2023 = vrot.lane.b32.xlu0 %v1991, 8
        %v2024 = vpop.permute.xlu0 %2023
        %2025 = vrot.lane.b32.xlu0 %v1992, 8
        %v2026 = vpop.permute.xlu0 %2025
        %2027 = vrot.lane.b32.xlu0 %v1993, 8
        %v2028 = vpop.permute.xlu0 %2027
        %2029 = vrot.lane.b32.xlu0 %v1994, 8
        %v2030 = vpop.permute.xlu0 %2029
        %2031 = vrot.lane.b32.xlu0 %v1995, 8
        %v2032 = vpop.permute.xlu0 %2031
        %2033 = vrot.lane.b32.xlu0 %v1996, 8
        %v2034 = vpop.permute.xlu0 %2033
        %2035 = vrot.lane.b32.xlu0 %v1997, 8
        %v2036 = vpop.permute.xlu0 %2035
        %2037 = vrot.lane.b32.xlu0 %v1998, 8
        %v2038 = vpop.permute.xlu0 %2037
        %2039 = vrot.lane.b32.xlu0 %v1999, 8
        %v2040 = vpop.permute.xlu0 %2039
        %2041 = vrot.lane.b32.xlu0 %v2000, 8
        %v2042 = vpop.permute.xlu0 %2041
        %2043 = vrot.lane.b32.xlu0 %v2001, 8
        %v2044 = vpop.permute.xlu0 %2043
        %2045 = vrot.lane.b32.xlu0 %v2002, 8
        %v2046 = vpop.permute.xlu0 %2045
        %2047 = vrot.lane.b32.xlu0 %v2003, 8
        %v2048 = vpop.permute.xlu0 %2047
        %2049 = vrot.lane.b32.xlu0 %v2004, 8
        %v2050 = vpop.permute.xlu0 %2049
        %2051 = vrot.lane.b32.xlu0 %v2005, 8
        %v2052 = vpop.permute.xlu0 %2051
        %2053 = vrot.lane.b32.xlu0 %v2006, 8
        %v2054 = vpop.permute.xlu0 %2053
        %vm2071 = vcmask 130112
        %2072 = vst.msk [vmem:[#allocation2] sm:$0xff] %vm2071, %v2024
        %2073 = vst.msk [vmem:[#allocation2 + $0x8] sm:$0xff] %vm2071, %v2026
        %2074 = vst.msk [vmem:[#allocation2 + $0x10] sm:$0xff] %vm2071, %v2028
        %2075 = vst.msk [vmem:[#allocation2 + $0x18] sm:$0xff] %vm2071, %v2030
        %2076 = vst.msk [vmem:[#allocation2 + $0x20] sm:$0xff] %vm2071, %v2032
        %2077 = vst.msk [vmem:[#allocation2 + $0x28] sm:$0xff] %vm2071, %v2034
        %2078 = vst.msk [vmem:[#allocation2 + $0x30] sm:$0xff] %vm2071, %v2036
        %2079 = vst.msk [vmem:[#allocation2 + $0x38] sm:$0xff] %vm2071, %v2038
        %2080 = vst.msk [vmem:[#allocation2 + $0x80] sm:$0xff] %vm2071, %v2040
        %2081 = vst.msk [vmem:[#allocation2 + $0x88] sm:$0xff] %vm2071, %v2042
        %2082 = vst.msk [vmem:[#allocation2 + $0x90] sm:$0xff] %vm2071, %v2044
        %2083 = vst.msk [vmem:[#allocation2 + $0x98] sm:$0xff] %vm2071, %v2046
        %2084 = vst.msk [vmem:[#allocation2 + $0xa0] sm:$0xff] %vm2071, %v2048
        %2085 = vst.msk [vmem:[#allocation2 + $0xa8] sm:$0xff] %vm2071, %v2050
        %2086 = vst.msk [vmem:[#allocation2 + $0xb0] sm:$0xff] %vm2071, %v2052
        %2087 = vst.msk [vmem:[#allocation2 + $0xb8] sm:$0xff] %vm2071, %v2054
        %v2088 = vld [vmem:[%s196] sm:$0xff]
        %v2089 = vld [vmem:[%s196 + $0x10] sm:$0xff]
        %v2090 = vld [vmem:[%s196 + $0x20] sm:$0xff]
        %v2091 = vld [vmem:[%s196 + $0x30] sm:$0xff]
        %v2092 = vld [vmem:[%s196 + $0x40] sm:$0xff]
        %v2093 = vld [vmem:[%s196 + $0x50] sm:$0xff]
        %v2094 = vld [vmem:[%s196 + $0x60] sm:$0xff]
        %v2095 = vld [vmem:[%s196 + $0x70] sm:$0xff]
        %v2096 = vld [vmem:[%s196 + $0x80] sm:$0xff]
        %v2097 = vld [vmem:[%s196 + $0x90] sm:$0xff]
        %v2098 = vld [vmem:[%s196 + $0xa0] sm:$0xff]
        %v2099 = vld [vmem:[%s196 + $0xb0] sm:$0xff]
        %v2100 = vld [vmem:[%s196 + $0xc0] sm:$0xff]
        %v2101 = vld [vmem:[%s196 + $0xd0] sm:$0xff]
        %v2102 = vld [vmem:[%s196 + $0xe0] sm:$0xff]
        %v2103 = vld [vmem:[%s196 + $0xf0] sm:$0xff]
        %v2104 = vld [vmem:[%s250] sm:$0xff]
        %v2105 = vld [vmem:[%s250 + $0x10] sm:$0xff]
        %v2106 = vld [vmem:[%s250 + $0x20] sm:$0xff]
        %v2107 = vld [vmem:[%s250 + $0x30] sm:$0xff]
        %v2108 = vld [vmem:[%s250 + $0x40] sm:$0xff]
        %v2109 = vld [vmem:[%s250 + $0x50] sm:$0xff]
        %v2110 = vld [vmem:[%s250 + $0x60] sm:$0xff]
        %v2111 = vld [vmem:[%s250 + $0x70] sm:$0xff]
        %v2112 = vld [vmem:[%s250 + $0x80] sm:$0xff]
        %v2113 = vld [vmem:[%s250 + $0x90] sm:$0xff]
        %v2114 = vld [vmem:[%s250 + $0xa0] sm:$0xff]
        %v2115 = vld [vmem:[%s250 + $0xb0] sm:$0xff]
        %v2116 = vld [vmem:[%s250 + $0xc0] sm:$0xff]
        %v2117 = vld [vmem:[%s250 + $0xd0] sm:$0xff]
        %v2118 = vld [vmem:[%s250 + $0xe0] sm:$0xff]
        %v2119 = vld [vmem:[%s250 + $0xf0] sm:$0xff]
        %v2120 = vld [vmem:[%s267] sm:$0xff]
        %v2121 = vld [vmem:[%s267 + $0x10] sm:$0xff]
        %v2122 = vld [vmem:[%s267 + $0x20] sm:$0xff]
        %v2123 = vld [vmem:[%s267 + $0x30] sm:$0xff]
        %v2124 = vld [vmem:[%s267 + $0x40] sm:$0xff]
        %v2125 = vld [vmem:[%s267 + $0x50] sm:$0xff]
        %v2126 = vld [vmem:[%s267 + $0x60] sm:$0xff]
        %v2127 = vld [vmem:[%s267 + $0x70] sm:$0xff]
        %v2128 = vld [vmem:[%s267 + $0x80] sm:$0xff]
        %v2129 = vld [vmem:[%s267 + $0x90] sm:$0xff]
        %v2130 = vld [vmem:[%s267 + $0xa0] sm:$0xff]
        %v2131 = vld [vmem:[%s267 + $0xb0] sm:$0xff]
        %v2132 = vld [vmem:[%s267 + $0xc0] sm:$0xff]
        %v2133 = vld [vmem:[%s267 + $0xd0] sm:$0xff]
        %v2134 = vld [vmem:[%s267 + $0xe0] sm:$0xff]
        %v2135 = vld [vmem:[%s267 + $0xf0] sm:$0xff]
        %v2136 = vmul.f32 %v2088, 0.35355338
        %v2137 = vmul.f32 %v2089, 0.35355338
        %v2138 = vmul.f32 %v2090, 0.35355338
        %v2139 = vmul.f32 %v2091, 0.35355338
        %v2140 = vmul.f32 %v2092, 0.35355338
        %v2141 = vmul.f32 %v2093, 0.35355338
        %v2142 = vmul.f32 %v2094, 0.35355338
        %v2143 = vmul.f32 %v2095, 0.35355338
        %v2144 = vmul.f32 %v2096, 0.35355338
        %v2145 = vmul.f32 %v2097, 0.35355338
        %v2146 = vmul.f32 %v2098, 0.35355338
        %v2147 = vmul.f32 %v2099, 0.35355338
        %v2148 = vmul.f32 %v2100, 0.35355338
        %v2149 = vmul.f32 %v2101, 0.35355338
        %v2150 = vmul.f32 %v2102, 0.35355338
        %v2151 = vmul.f32 %v2103, 0.35355338
        %s2152 = scalar_lea.vmem [#allocation3], 128
        %v2153 = vld [vmem:[%s2152] sm:$0xff]
        %v2154 = vld [vmem:[%s2152 + $0x8] sm:$0xff]
        %v2155 = vld [vmem:[%s2152 + $0x10] sm:$0xff]
        %v2156 = vld [vmem:[%s2152 + $0x18] sm:$0xff]
        %v2157 = vld [vmem:[%s2152 + $0x20] sm:$0xff]
        %v2158 = vld [vmem:[%s2152 + $0x28] sm:$0xff]
        %v2159 = vld [vmem:[%s2152 + $0x30] sm:$0xff]
        %v2160 = vld [vmem:[%s2152 + $0x38] sm:$0xff]
        %2169 = vrot.lane.b32.xlu0 %v2136, 112
        %v2170 = vpop.permute.xlu0 %2169
        %2171 = vrot.lane.b32.xlu0 %v2137, 112
        %v2172 = vpop.permute.xlu0 %2171
        %2173 = vrot.lane.b32.xlu0 %v2138, 112
        %v2174 = vpop.permute.xlu0 %2173
        %2175 = vrot.lane.b32.xlu0 %v2139, 112
        %v2176 = vpop.permute.xlu0 %2175
        %2177 = vrot.lane.b32.xlu0 %v2140, 112
        %v2178 = vpop.permute.xlu0 %2177
        %2179 = vrot.lane.b32.xlu0 %v2141, 112
        %v2180 = vpop.permute.xlu0 %2179
        %2181 = vrot.lane.b32.xlu0 %v2142, 112
        %v2182 = vpop.permute.xlu0 %2181
        %2183 = vrot.lane.b32.xlu0 %v2143, 112
        %v2184 = vpop.permute.xlu0 %2183
        %2193 = vrot.lane.b32.xlu0 %v2104, 112
        %v2194 = vpop.permute.xlu0 %2193
        %2195 = vrot.lane.b32.xlu0 %v2105, 112
        %v2196 = vpop.permute.xlu0 %2195
        %2197 = vrot.lane.b32.xlu0 %v2106, 112
        %v2198 = vpop.permute.xlu0 %2197
        %2199 = vrot.lane.b32.xlu0 %v2107, 112
        %v2200 = vpop.permute.xlu0 %2199
        %2201 = vrot.lane.b32.xlu0 %v2108, 112
        %v2202 = vpop.permute.xlu0 %2201
        %2203 = vrot.lane.b32.xlu0 %v2109, 112
        %v2204 = vpop.permute.xlu0 %2203
        %2205 = vrot.lane.b32.xlu0 %v2110, 112
        %v2206 = vpop.permute.xlu0 %2205
        %2207 = vrot.lane.b32.xlu0 %v2111, 112
        %v2208 = vpop.permute.xlu0 %2207
        %v2209 = vsel %vm308, %v2170, 0
        %v2211 = vsel %vm308, %v2172, 0
        %v2213 = vsel %vm308, %v2174, 0
        %v2215 = vsel %vm308, %v2176, 0
        %v2217 = vsel %vm308, %v2178, 0
        %v2219 = vsel %vm308, %v2180, 0
        %v2221 = vsel %vm308, %v2182, 0
        %v2223 = vsel %vm308, %v2184, 0
        %v2225 = vsel %vm308, %v2194, 0
        %v2227 = vsel %vm308, %v2196, 0
        %v2229 = vsel %vm308, %v2198, 0
        %v2231 = vsel %vm308, %v2200, 0
        %v2233 = vsel %vm308, %v2202, 0
        %v2235 = vsel %vm308, %v2204, 0
        %v2237 = vsel %vm308, %v2206, 0
        %v2239 = vsel %vm308, %v2208, 0
        %2241 = vmatprep.subr.mxu0 0.0
        %2242 = vmatpush1.xpose.msra.mxu0 %v2225
        %2243 = vmatprep.subr.mxu0 0.0
        %2244 = vmatpush1.xpose.msra.mxu0 %v2227
        %2245 = vmatprep.subr.mxu0 0.0
        %2246 = vmatpush1.xpose.msra.mxu0 %v2229
        %2247 = vmatprep.subr.mxu0 0.0
        %2248 = vmatpush1.xpose.msra.mxu0 %v2231
        %2249 = vmatprep.subr.mxu0 0.0
        %2250 = vmatpush1.xpose.msra.mxu0 %v2233
        %2251 = vmatprep.subr.mxu0 0.0
        %2252 = vmatpush1.xpose.msra.mxu0 %v2235
        %2253 = vmatprep.subr.mxu0 0.0
        %2254 = vmatpush1.xpose.msra.mxu0 %v2237
        %2255 = vmatprep.subr.mxu0 0.0
        %2256 = vmatpush1.xpose.msra.mxu0 %v2239
        %2257 = vmatprep.subr.mxu0 0.0
        %2258 = vmatpush1.xpose.msra.mxu0 0.0
        %2259 = vmatprep.subr.mxu0 0.0
        %2260 = vmatpush1.xpose.msra.mxu0 0.0
        %2261 = vmatprep.subr.mxu0 0.0
        %2262 = vmatpush1.xpose.msra.mxu0 0.0
        %2263 = vmatprep.subr.mxu0 0.0
        %2264 = vmatpush1.xpose.msra.mxu0 0.0
        %2265 = vmatprep.subr.mxu0 0.0
        %2266 = vmatpush1.xpose.msra.mxu0 0.0
        %2267 = vmatprep.subr.mxu0 0.0
        %2268 = vmatpush1.xpose.msra.mxu0 0.0
        %2269 = vmatprep.subr.mxu0 0.0
        %2270 = vmatpush1.xpose.msra.mxu0 0.0
        %2271 = vmatprep.subr.mxu0 0.0
        %2272 = vmatpush1.xpose.msra.mxu0 0.0
        %2273 = vmatprep.subr.mxu0 0.0
        %2274 = vmatpush1.xpose.msra.mxu0 0.0
        %2275 = vmatprep.subr.mxu0 0.0
        %2276 = vmatpush1.xpose.msra.mxu0 0.0
        %2277 = vmatprep.subr.mxu0 0.0
        %2278 = vmatpush1.xpose.msra.mxu0 0.0
        %2279 = vmatprep.subr.mxu0 0.0
        %2280 = vmatpush1.xpose.msra.mxu0 0.0
        %2281 = vmatprep.subr.mxu0 0.0
        %2282 = vmatpush1.xpose.msra.mxu0 0.0
        %2283 = vmatprep.subr.mxu0 0.0
        %2284 = vmatpush1.xpose.msra.mxu0 0.0
        %2285 = vmatprep.subr.mxu0 0.0
        %2286 = vmatpush1.xpose.msra.mxu0 0.0
        %2287 = vmatprep.subr.mxu0 0.0
        %2288 = vmatpush1.xpose.msra.mxu0 0.0
        %2289 = vmatprep.subr.mxu0 0.0
        %2290 = vmatpush1.xpose.msra.mxu0 0.0
        %2291 = vmatprep.subr.mxu0 0.0
        %2292 = vmatpush1.xpose.msra.mxu0 0.0
        %2293 = vmatprep.subr.mxu0 0.0
        %2294 = vmatpush1.xpose.msra.mxu0 0.0
        %2295 = vmatprep.subr.mxu0 0.0
        %2296 = vmatpush1.xpose.msra.mxu0 0.0
        %2297 = vmatprep.subr.mxu0 0.0
        %2298 = vmatpush1.xpose.msra.mxu0 0.0
        %2299 = vmatprep.subr.mxu0 0.0
        %2300 = vmatpush1.xpose.msra.mxu0 0.0
        %2301 = vmatprep.subr.mxu0 0.0
        %2302 = vmatpush1.xpose.msra.mxu0 0.0
        %2303 = vmatprep.subr.mxu0 0.0
        %2304 = vmatpush1.xpose.msra.mxu0 0.0
        %2305 = vmatprep.mubr.f32.mxu0 0.0
        %2306 = vmatmul.mubr.f32.gmra.mrb[0].mxu0 %v2209
        %v2307 = vpop.f32.mrb[0].mxu0
        %v2308 = vadd.f32 %v2153, %v2307
        %v2309 = vpop.f32.mrb[0].mxu0
        %2310 = vmatprep.mubr.f32.mxu0 0.0
        %2311 = vmatmul.mubr.f32.gmra.mrb[0].mxu0 %v2211
        %v2312 = vpop.f32.mrb[0].mxu0
        %v2313 = vadd.f32 %v2154, %v2312
        %v2314 = vpop.f32.mrb[0].mxu0
        %2315 = vmatprep.mubr.f32.mxu0 0.0
        %2316 = vmatmul.mubr.f32.gmra.mrb[0].mxu0 %v2213
        %v2317 = vpop.f32.mrb[0].mxu0
        %v2318 = vadd.f32 %v2155, %v2317
        %v2319 = vpop.f32.mrb[0].mxu0
        %2320 = vmatprep.mubr.f32.mxu0 0.0
        %2321 = vmatmul.mubr.f32.gmra.mrb[0].mxu0 %v2215
        %v2322 = vpop.f32.mrb[0].mxu0
        %v2323 = vadd.f32 %v2156, %v2322
        %v2324 = vpop.f32.mrb[0].mxu0
        %2325 = vmatprep.mubr.f32.mxu0 0.0
        %2326 = vmatmul.mubr.f32.gmra.mrb[0].mxu0 %v2217
        %v2327 = vpop.f32.mrb[0].mxu0
        %v2328 = vadd.f32 %v2157, %v2327
        %v2329 = vpop.f32.mrb[0].mxu0
        %2330 = vmatprep.mubr.f32.mxu0 0.0
        %2331 = vmatmul.mubr.f32.gmra.mrb[0].mxu0 %v2219
        %v2332 = vpop.f32.mrb[0].mxu0
        %v2333 = vadd.f32 %v2158, %v2332
        %v2334 = vpop.f32.mrb[0].mxu0
        %2335 = vmatprep.mubr.f32.mxu0 0.0
        %2336 = vmatmul.mubr.f32.gmra.mrb[0].mxu0 %v2221
        %v2337 = vpop.f32.mrb[0].mxu0
        %v2338 = vadd.f32 %v2159, %v2337
        %v2339 = vpop.f32.mrb[0].mxu0
        %2340 = vmatprep.mubr.f32.mxu0 0.0
        %2341 = vmatmul.mubr.f32.gmra.mrb[0].mxu0 %v2223
        %v2342 = vpop.f32.mrb[0].mxu0
        %v2343 = vadd.f32 %v2160, %v2342
        %v2344 = vpop.f32.mrb[0].mxu0
        %2345 = vdwg.mxu0
        %2354 = vrot.lane.b32.xlu0 %v2144, 112
        %v2355 = vpop.permute.xlu0 %2354
        %2356 = vrot.lane.b32.xlu0 %v2145, 112
        %v2357 = vpop.permute.xlu0 %2356
        %2358 = vrot.lane.b32.xlu0 %v2146, 112
        %v2359 = vpop.permute.xlu0 %2358
        %2360 = vrot.lane.b32.xlu0 %v2147, 112
        %v2361 = vpop.permute.xlu0 %2360
        %2362 = vrot.lane.b32.xlu0 %v2148, 112
        %v2363 = vpop.permute.xlu0 %2362
        %2364 = vrot.lane.b32.xlu0 %v2149, 112
        %v2365 = vpop.permute.xlu0 %2364
        %2366 = vrot.lane.b32.xlu0 %v2150, 112
        %v2367 = vpop.permute.xlu0 %2366
        %2368 = vrot.lane.b32.xlu0 %v2151, 112
        %v2369 = vpop.permute.xlu0 %2368
        %2378 = vrot.lane.b32.xlu0 %v2112, 112
        %v2379 = vpop.permute.xlu0 %2378
        %2380 = vrot.lane.b32.xlu0 %v2113, 112
        %v2381 = vpop.permute.xlu0 %2380
        %2382 = vrot.lane.b32.xlu0 %v2114, 112
        %v2383 = vpop.permute.xlu0 %2382
        %2384 = vrot.lane.b32.xlu0 %v2115, 112
        %v2385 = vpop.permute.xlu0 %2384
        %2386 = vrot.lane.b32.xlu0 %v2116, 112
        %v2387 = vpop.permute.xlu0 %2386
        %2388 = vrot.lane.b32.xlu0 %v2117, 112
        %v2389 = vpop.permute.xlu0 %2388
        %2390 = vrot.lane.b32.xlu0 %v2118, 112
        %v2391 = vpop.permute.xlu0 %2390
        %2392 = vrot.lane.b32.xlu0 %v2119, 112
        %v2393 = vpop.permute.xlu0 %2392
        %v2394 = vsel %vm308, %v2355, 0
        %v2396 = vsel %vm308, %v2357, 0
        %v2398 = vsel %vm308, %v2359, 0
        %v2400 = vsel %vm308, %v2361, 0
        %v2402 = vsel %vm308, %v2363, 0
        %v2404 = vsel %vm308, %v2365, 0
        %v2406 = vsel %vm308, %v2367, 0
        %v2408 = vsel %vm308, %v2369, 0
        %v2410 = vsel %vm308, %v2379, 0
        %v2412 = vsel %vm308, %v2381, 0
        %v2414 = vsel %vm308, %v2383, 0
        %v2416 = vsel %vm308, %v2385, 0
        %v2418 = vsel %vm308, %v2387, 0
        %v2420 = vsel %vm308, %v2389, 0
        %v2422 = vsel %vm308, %v2391, 0
        %v2424 = vsel %vm308, %v2393, 0
        %2426 = vmatprep.subr.mxu0 0.0
        %2427 = vmatpush1.xpose.msra.mxu0 %v2410
        %2428 = vmatprep.subr.mxu0 0.0
        %2429 = vmatpush1.xpose.msra.mxu0 %v2412
        %2430 = vmatprep.subr.mxu0 0.0
        %2431 = vmatpush1.xpose.msra.mxu0 %v2414
        %2432 = vmatprep.subr.mxu0 0.0
        %2433 = vmatpush1.xpose.msra.mxu0 %v2416
        %2434 = vmatprep.subr.mxu0 0.0
        %2435 = vmatpush1.xpose.msra.mxu0 %v2418
        %2436 = vmatprep.subr.mxu0 0.0
        %2437 = vmatpush1.xpose.msra.mxu0 %v2420
        %2438 = vmatprep.subr.mxu0 0.0
        %2439 = vmatpush1.xpose.msra.mxu0 %v2422
        %2440 = vmatprep.subr.mxu0 0.0
        %2441 = vmatpush1.xpose.msra.mxu0 %v2424
        %2442 = vmatprep.subr.mxu0 0.0
        %2443 = vmatpush1.xpose.msra.mxu0 0.0
        %2444 = vmatprep.subr.mxu0 0.0
        %2445 = vmatpush1.xpose.msra.mxu0 0.0
        %2446 = vmatprep.subr.mxu0 0.0
        %2447 = vmatpush1.xpose.msra.mxu0 0.0
        %2448 = vmatprep.subr.mxu0 0.0
        %2449 = vmatpush1.xpose.msra.mxu0 0.0
        %2450 = vmatprep.subr.mxu0 0.0
        %2451 = vmatpush1.xpose.msra.mxu0 0.0
        %2452 = vmatprep.subr.mxu0 0.0
        %2453 = vmatpush1.xpose.msra.mxu0 0.0
        %2454 = vmatprep.subr.mxu0 0.0
        %2455 = vmatpush1.xpose.msra.mxu0 0.0
        %2456 = vmatprep.subr.mxu0 0.0
        %2457 = vmatpush1.xpose.msra.mxu0 0.0
        %2458 = vmatprep.subr.mxu0 0.0
        %2459 = vmatpush1.xpose.msra.mxu0 0.0
        %2460 = vmatprep.subr.mxu0 0.0
        %2461 = vmatpush1.xpose.msra.mxu0 0.0
        %2462 = vmatprep.subr.mxu0 0.0
        %2463 = vmatpush1.xpose.msra.mxu0 0.0
        %2464 = vmatprep.subr.mxu0 0.0
        %2465 = vmatpush1.xpose.msra.mxu0 0.0
        %2466 = vmatprep.subr.mxu0 0.0
        %2467 = vmatpush1.xpose.msra.mxu0 0.0
        %2468 = vmatprep.subr.mxu0 0.0
        %2469 = vmatpush1.xpose.msra.mxu0 0.0
        %2470 = vmatprep.subr.mxu0 0.0
        %2471 = vmatpush1.xpose.msra.mxu0 0.0
        %2472 = vmatprep.subr.mxu0 0.0
        %2473 = vmatpush1.xpose.msra.mxu0 0.0
        %2474 = vmatprep.subr.mxu0 0.0
        %2475 = vmatpush1.xpose.msra.mxu0 0.0
        %2476 = vmatprep.subr.mxu0 0.0
        %2477 = vmatpush1.xpose.msra.mxu0 0.0
        %2478 = vmatprep.subr.mxu0 0.0
        %2479 = vmatpush1.xpose.msra.mxu0 0.0
        %2480 = vmatprep.subr.mxu0 0.0
        %2481 = vmatpush1.xpose.msra.mxu0 0.0
        %2482 = vmatprep.subr.mxu0 0.0
        %2483 = vmatpush1.xpose.msra.mxu0 0.0
        %2484 = vmatprep.subr.mxu0 0.0
        %2485 = vmatpush1.xpose.msra.mxu0 0.0
        %2486 = vmatprep.subr.mxu0 0.0
        %2487 = vmatpush1.xpose.msra.mxu0 0.0
        %2488 = vmatprep.subr.mxu0 0.0
        %2489 = vmatpush1.xpose.msra.mxu0 0.0
        %2490 = vmatprep.mubr.f32.mxu0 0.0
        %2491 = vmatmul.mubr.f32.gmra.mrb[0].mxu0 %v2394
        %v2492 = vpop.f32.mrb[0].mxu0
        %v2493 = vadd.f32 %v2153, %v2492
        %v2494 = vpop.f32.mrb[0].mxu0
        %2495 = vmatprep.mubr.f32.mxu0 0.0
        %2496 = vmatmul.mubr.f32.gmra.mrb[0].mxu0 %v2396
        %v2497 = vpop.f32.mrb[0].mxu0
        %v2498 = vadd.f32 %v2154, %v2497
        %v2499 = vpop.f32.mrb[0].mxu0
        %2500 = vmatprep.mubr.f32.mxu0 0.0
        %2501 = vmatmul.mubr.f32.gmra.mrb[0].mxu0 %v2398
        %v2502 = vpop.f32.mrb[0].mxu0
        %v2503 = vadd.f32 %v2155, %v2502
        %v2504 = vpop.f32.mrb[0].mxu0
        %2505 = vmatprep.mubr.f32.mxu0 0.0
        %2506 = vmatmul.mubr.f32.gmra.mrb[0].mxu0 %v2400
        %v2507 = vpop.f32.mrb[0].mxu0
        %v2508 = vadd.f32 %v2156, %v2507
        %v2509 = vpop.f32.mrb[0].mxu0
        %2510 = vmatprep.mubr.f32.mxu0 0.0
        %2511 = vmatmul.mubr.f32.gmra.mrb[0].mxu0 %v2402
        %v2512 = vpop.f32.mrb[0].mxu0
        %v2513 = vadd.f32 %v2157, %v2512
        %v2514 = vpop.f32.mrb[0].mxu0
        %2515 = vmatprep.mubr.f32.mxu0 0.0
        %2516 = vmatmul.mubr.f32.gmra.mrb[0].mxu0 %v2404
        %v2517 = vpop.f32.mrb[0].mxu0
        %v2518 = vadd.f32 %v2158, %v2517
        %v2519 = vpop.f32.mrb[0].mxu0
        %2520 = vmatprep.mubr.f32.mxu0 0.0
        %2521 = vmatmul.mubr.f32.gmra.mrb[0].mxu0 %v2406
        %v2522 = vpop.f32.mrb[0].mxu0
        %v2523 = vadd.f32 %v2159, %v2522
        %v2524 = vpop.f32.mrb[0].mxu0
        %2525 = vmatprep.mubr.f32.mxu0 0.0
        %2526 = vmatmul.mubr.f32.gmra.mrb[0].mxu0 %v2408
        %v2527 = vpop.f32.mrb[0].mxu0
        %v2528 = vadd.f32 %v2160, %v2527
        %v2529 = vpop.f32.mrb[0].mxu0
        %2530 = vdwg.mxu0
        %v2531 = vsel %vm615, %v2308, -inf
        %2532 = vmax.xlane.f32.xlu0 %v2531
        %v2533 = vpop.xlane.xlu0 %2532
        %v2534 = vsel %vm615, %v2313, -inf
        %2535 = vmax.xlane.f32.xlu0 %v2534
        %v2536 = vpop.xlane.xlu0 %2535
        %v2537 = vsel %vm615, %v2318, -inf
        %2538 = vmax.xlane.f32.xlu0 %v2537
        %v2539 = vpop.xlane.xlu0 %2538
        %v2540 = vsel %vm615, %v2323, -inf
        %2541 = vmax.xlane.f32.xlu0 %v2540
        %v2542 = vpop.xlane.xlu0 %2541
        %v2543 = vsel %vm615, %v2328, -inf
        %2544 = vmax.xlane.f32.xlu0 %v2543
        %v2545 = vpop.xlane.xlu0 %2544
        %v2546 = vsel %vm615, %v2333, -inf
        %2547 = vmax.xlane.f32.xlu0 %v2546
        %v2548 = vpop.xlane.xlu0 %2547
        %v2549 = vsel %vm615, %v2338, -inf
        %2550 = vmax.xlane.f32.xlu0 %v2549
        %v2551 = vpop.xlane.xlu0 %2550
        %v2552 = vsel %vm615, %v2343, -inf
        %2553 = vmax.xlane.f32.xlu0 %v2552
        %v2554 = vpop.xlane.xlu0 %2553
        %v2555 = vsel %vm615, %v2493, -inf
        %2556 = vmax.xlane.f32.xlu0 %v2555
        %v2557 = vpop.xlane.xlu0 %2556
        %v2558 = vsel %vm615, %v2498, -inf
        %2559 = vmax.xlane.f32.xlu0 %v2558
        %v2560 = vpop.xlane.xlu0 %2559
        %v2561 = vsel %vm615, %v2503, -inf
        %2562 = vmax.xlane.f32.xlu0 %v2561
        %v2563 = vpop.xlane.xlu0 %2562
        %v2564 = vsel %vm615, %v2508, -inf
        %2565 = vmax.xlane.f32.xlu0 %v2564
        %v2566 = vpop.xlane.xlu0 %2565
        %v2567 = vsel %vm615, %v2513, -inf
        %2568 = vmax.xlane.f32.xlu0 %v2567
        %v2569 = vpop.xlane.xlu0 %2568
        %v2570 = vsel %vm615, %v2518, -inf
        %2571 = vmax.xlane.f32.xlu0 %v2570
        %v2572 = vpop.xlane.xlu0 %2571
        %v2573 = vsel %vm615, %v2523, -inf
        %2574 = vmax.xlane.f32.xlu0 %v2573
        %v2575 = vpop.xlane.xlu0 %2574
        %v2576 = vsel %vm615, %v2528, -inf
        %2577 = vmax.xlane.f32.xlu0 %v2576
        %v2578 = vpop.xlane.xlu0 %2577
        %v2579 = vsub.f32 %v2308, %v2533
        %v2580 = vsub.f32 %v2313, %v2536
        %v2581 = vsub.f32 %v2318, %v2539
        %v2582 = vsub.f32 %v2323, %v2542
        %v2583 = vsub.f32 %v2328, %v2545
        %v2584 = vsub.f32 %v2333, %v2548
        %v2585 = vsub.f32 %v2338, %v2551
        %v2586 = vsub.f32 %v2343, %v2554
        %v2587 = vsub.f32 %v2493, %v2557
        %v2588 = vsub.f32 %v2498, %v2560
        %v2589 = vsub.f32 %v2503, %v2563
        %v2590 = vsub.f32 %v2508, %v2566
        %v2591 = vsub.f32 %v2513, %v2569
        %v2592 = vsub.f32 %v2518, %v2572
        %v2593 = vsub.f32 %v2523, %v2575
        %v2594 = vsub.f32 %v2528, %v2578
        %v2595 = vmul.f32 %v2579, 1.442695
        %v2596 = vpow.pop %v2595
        %v2597 = vmul.f32 %v2580, 1.442695
        %v2598 = vpow.pop %v2597
        %v2599 = vmul.f32 %v2581, 1.442695
        %v2600 = vpow.pop %v2599
        %v2601 = vmul.f32 %v2582, 1.442695
        %v2602 = vpow.pop %v2601
        %v2603 = vmul.f32 %v2583, 1.442695
        %v2604 = vpow.pop %v2603
        %v2605 = vmul.f32 %v2584, 1.442695
        %v2606 = vpow.pop %v2605
        %v2607 = vmul.f32 %v2585, 1.442695
        %v2608 = vpow.pop %v2607
        %v2609 = vmul.f32 %v2586, 1.442695
        %v2610 = vpow.pop %v2609
        %v2611 = vmul.f32 %v2587, 1.442695
        %v2612 = vpow.pop %v2611
        %v2613 = vmul.f32 %v2588, 1.442695
        %v2614 = vpow.pop %v2613
        %v2615 = vmul.f32 %v2589, 1.442695
        %v2616 = vpow.pop %v2615
        %v2617 = vmul.f32 %v2590, 1.442695
        %v2618 = vpow.pop %v2617
        %v2619 = vmul.f32 %v2591, 1.442695
        %v2620 = vpow.pop %v2619
        %v2621 = vmul.f32 %v2592, 1.442695
        %v2622 = vpow.pop %v2621
        %v2623 = vmul.f32 %v2593, 1.442695
        %v2624 = vpow.pop %v2623
        %v2625 = vmul.f32 %v2594, 1.442695
        %v2626 = vpow.pop %v2625
        %v2627 = vsel %vm615, %v2596, 0.0
        %2628 = vadd.xlane.f32.xlu0 %v2627
        %v2629 = vpop.xlane.xlu0 %2628
        %v2630 = vsel %vm615, %v2598, 0.0
        %2631 = vadd.xlane.f32.xlu0 %v2630
        %v2632 = vpop.xlane.xlu0 %2631
        %v2633 = vsel %vm615, %v2600, 0.0
        %2634 = vadd.xlane.f32.xlu0 %v2633
        %v2635 = vpop.xlane.xlu0 %2634
        %v2636 = vsel %vm615, %v2602, 0.0
        %2637 = vadd.xlane.f32.xlu0 %v2636
        %v2638 = vpop.xlane.xlu0 %2637
        %v2639 = vsel %vm615, %v2604, 0.0
        %2640 = vadd.xlane.f32.xlu0 %v2639
        %v2641 = vpop.xlane.xlu0 %2640
        %v2642 = vsel %vm615, %v2606, 0.0
        %2643 = vadd.xlane.f32.xlu0 %v2642
        %v2644 = vpop.xlane.xlu0 %2643
        %v2645 = vsel %vm615, %v2608, 0.0
        %2646 = vadd.xlane.f32.xlu0 %v2645
        %v2647 = vpop.xlane.xlu0 %2646
        %v2648 = vsel %vm615, %v2610, 0.0
        %2649 = vadd.xlane.f32.xlu0 %v2648
        %v2650 = vpop.xlane.xlu0 %2649
        %v2651 = vsel %vm615, %v2612, 0.0
        %2652 = vadd.xlane.f32.xlu0 %v2651
        %v2653 = vpop.xlane.xlu0 %2652
        %v2654 = vsel %vm615, %v2614, 0.0
        %2655 = vadd.xlane.f32.xlu0 %v2654
        %v2656 = vpop.xlane.xlu0 %2655
        %v2657 = vsel %vm615, %v2616, 0.0
        %2658 = vadd.xlane.f32.xlu0 %v2657
        %v2659 = vpop.xlane.xlu0 %2658
        %v2660 = vsel %vm615, %v2618, 0.0
        %2661 = vadd.xlane.f32.xlu0 %v2660
        %v2662 = vpop.xlane.xlu0 %2661
        %v2663 = vsel %vm615, %v2620, 0.0
        %2664 = vadd.xlane.f32.xlu0 %v2663
        %v2665 = vpop.xlane.xlu0 %2664
        %v2666 = vsel %vm615, %v2622, 0.0
        %2667 = vadd.xlane.f32.xlu0 %v2666
        %v2668 = vpop.xlane.xlu0 %2667
        %v2669 = vsel %vm615, %v2624, 0.0
        %2670 = vadd.xlane.f32.xlu0 %v2669
        %v2671 = vpop.xlane.xlu0 %2670
        %v2672 = vsel %vm615, %v2626, 0.0
        %2673 = vadd.xlane.f32.xlu0 %v2672
        %v2674 = vpop.xlane.xlu0 %2673
        %2683 = vrot.lane.b32.xlu0 %v2120, 112
        %v2684 = vpop.permute.xlu0 %2683
        %2685 = vrot.lane.b32.xlu0 %v2121, 112
        %v2686 = vpop.permute.xlu0 %2685
        %2687 = vrot.lane.b32.xlu0 %v2122, 112
        %v2688 = vpop.permute.xlu0 %2687
        %2689 = vrot.lane.b32.xlu0 %v2123, 112
        %v2690 = vpop.permute.xlu0 %2689
        %2691 = vrot.lane.b32.xlu0 %v2124, 112
        %v2692 = vpop.permute.xlu0 %2691
        %2693 = vrot.lane.b32.xlu0 %v2125, 112
        %v2694 = vpop.permute.xlu0 %2693
        %2695 = vrot.lane.b32.xlu0 %v2126, 112
        %v2696 = vpop.permute.xlu0 %2695
        %2697 = vrot.lane.b32.xlu0 %v2127, 112
        %v2698 = vpop.permute.xlu0 %2697
        %v2708 = vsel %vm615, %v2596, 0
        %v2711 = vsel %vm615, %v2598, 0
        %v2714 = vsel %vm615, %v2600, 0
        %v2717 = vsel %vm615, %v2602, 0
        %v2720 = vsel %vm615, %v2604, 0
        %v2723 = vsel %vm615, %v2606, 0
        %v2726 = vsel %vm615, %v2608, 0
        %v2729 = vsel %vm615, %v2610, 0
        %2731 = vmatprep.subr.mxu0 0.0
        %2732 = vmatpush1.msra.mxu0 %v2684
        %2733 = vmatprep.subr.mxu0 0.0
        %2734 = vmatpush1.msra.mxu0 %v2686
        %2735 = vmatprep.subr.mxu0 0.0
        %2736 = vmatpush1.msra.mxu0 %v2688
        %2737 = vmatprep.subr.mxu0 0.0
        %2738 = vmatpush1.msra.mxu0 %v2690
        %2739 = vmatprep.subr.mxu0 0.0
        %2740 = vmatpush1.msra.mxu0 %v2692
        %2741 = vmatprep.subr.mxu0 0.0
        %2742 = vmatpush1.msra.mxu0 %v2694
        %2743 = vmatprep.subr.mxu0 0.0
        %2744 = vmatpush1.msra.mxu0 %v2696
        %2745 = vmatprep.subr.mxu0 0.0
        %2746 = vmatpush1.msra.mxu0 %v2698
        %2747 = vmatprep.subr.mxu0 0.0
        %2748 = vmatpush1.msra.mxu0 0.0
        %2749 = vmatprep.subr.mxu0 0.0
        %2750 = vmatpush1.msra.mxu0 0.0
        %2751 = vmatprep.subr.mxu0 0.0
        %2752 = vmatpush1.msra.mxu0 0.0
        %2753 = vmatprep.subr.mxu0 0.0
        %2754 = vmatpush1.msra.mxu0 0.0
        %2755 = vmatprep.subr.mxu0 0.0
        %2756 = vmatpush1.msra.mxu0 0.0
        %2757 = vmatprep.subr.mxu0 0.0
        %2758 = vmatpush1.msra.mxu0 0.0
        %2759 = vmatprep.subr.mxu0 0.0
        %2760 = vmatpush1.msra.mxu0 0.0
        %2761 = vmatprep.subr.mxu0 0.0
        %2762 = vmatpush1.msra.mxu0 0.0
        %2763 = vmatprep.subr.mxu0 0.0
        %2764 = vmatpush1.msra.mxu0 0.0
        %2765 = vmatprep.subr.mxu0 0.0
        %2766 = vmatpush1.msra.mxu0 0.0
        %2767 = vmatprep.subr.mxu0 0.0
        %2768 = vmatpush1.msra.mxu0 0.0
        %2769 = vmatprep.subr.mxu0 0.0
        %2770 = vmatpush1.msra.mxu0 0.0
        %2771 = vmatprep.subr.mxu0 0.0
        %2772 = vmatpush1.msra.mxu0 0.0
        %2773 = vmatprep.subr.mxu0 0.0
        %2774 = vmatpush1.msra.mxu0 0.0
        %2775 = vmatprep.subr.mxu0 0.0
        %2776 = vmatpush1.msra.mxu0 0.0
        %2777 = vmatprep.subr.mxu0 0.0
        %2778 = vmatpush1.msra.mxu0 0.0
        %2779 = vmatprep.subr.mxu0 0.0
        %2780 = vmatpush1.msra.mxu0 0.0
        %2781 = vmatprep.subr.mxu0 0.0
        %2782 = vmatpush1.msra.mxu0 0.0
        %2783 = vmatprep.subr.mxu0 0.0
        %2784 = vmatpush1.msra.mxu0 0.0
        %2785 = vmatprep.subr.mxu0 0.0
        %2786 = vmatpush1.msra.mxu0 0.0
        %2787 = vmatprep.subr.mxu0 0.0
        %2788 = vmatpush1.msra.mxu0 0.0
        %2789 = vmatprep.subr.mxu0 0.0
        %2790 = vmatpush1.msra.mxu0 0.0
        %2791 = vmatprep.subr.mxu0 0.0
        %2792 = vmatpush1.msra.mxu0 0.0
        %2793 = vmatprep.subr.mxu0 0.0
        %2794 = vmatpush1.msra.mxu0 0.0
        %2795 = vmatprep.mubr.f32.mxu0 0.0
        %2796 = vmatmul.mubr.f32.gmra.mrb[0].mxu0 %v2708
        %v2797 = vpop.f32.mrb[0].mxu0
        %v2798 = vadd.f32 0.0, %v2797
        %v2799 = vpop.f32.mrb[0].mxu0
        %2800 = vmatprep.mubr.f32.mxu0 0.0
        %2801 = vmatmul.mubr.f32.gmra.mrb[0].mxu0 %v2711
        %v2802 = vpop.f32.mrb[0].mxu0
        %v2803 = vadd.f32 0.0, %v2802
        %v2804 = vpop.f32.mrb[0].mxu0
        %2805 = vmatprep.mubr.f32.mxu0 0.0
        %2806 = vmatmul.mubr.f32.gmra.mrb[0].mxu0 %v2714
        %v2807 = vpop.f32.mrb[0].mxu0
        %v2808 = vadd.f32 0.0, %v2807
        %v2809 = vpop.f32.mrb[0].mxu0
        %2810 = vmatprep.mubr.f32.mxu0 0.0
        %2811 = vmatmul.mubr.f32.gmra.mrb[0].mxu0 %v2717
        %v2812 = vpop.f32.mrb[0].mxu0
        %v2813 = vadd.f32 0.0, %v2812
        %v2814 = vpop.f32.mrb[0].mxu0
        %2815 = vmatprep.mubr.f32.mxu0 0.0
        %2816 = vmatmul.mubr.f32.gmra.mrb[0].mxu0 %v2720
        %v2817 = vpop.f32.mrb[0].mxu0
        %v2818 = vadd.f32 0.0, %v2817
        %v2819 = vpop.f32.mrb[0].mxu0
        %2820 = vmatprep.mubr.f32.mxu0 0.0
        %2821 = vmatmul.mubr.f32.gmra.mrb[0].mxu0 %v2723
        %v2822 = vpop.f32.mrb[0].mxu0
        %v2823 = vadd.f32 0.0, %v2822
        %v2824 = vpop.f32.mrb[0].mxu0
        %2825 = vmatprep.mubr.f32.mxu0 0.0
        %2826 = vmatmul.mubr.f32.gmra.mrb[0].mxu0 %v2726
        %v2827 = vpop.f32.mrb[0].mxu0
        %v2828 = vadd.f32 0.0, %v2827
        %v2829 = vpop.f32.mrb[0].mxu0
        %2830 = vmatprep.mubr.f32.mxu0 0.0
        %2831 = vmatmul.mubr.f32.gmra.mrb[0].mxu0 %v2729
        %v2832 = vpop.f32.mrb[0].mxu0
        %v2833 = vadd.f32 0.0, %v2832
        %v2834 = vpop.f32.mrb[0].mxu0
        %2835 = vdwg.mxu0
        %2844 = vrot.lane.b32.xlu0 %v2128, 112
        %v2845 = vpop.permute.xlu0 %2844
        %2846 = vrot.lane.b32.xlu0 %v2129, 112
        %v2847 = vpop.permute.xlu0 %2846
        %2848 = vrot.lane.b32.xlu0 %v2130, 112
        %v2849 = vpop.permute.xlu0 %2848
        %2850 = vrot.lane.b32.xlu0 %v2131, 112
        %v2851 = vpop.permute.xlu0 %2850
        %2852 = vrot.lane.b32.xlu0 %v2132, 112
        %v2853 = vpop.permute.xlu0 %2852
        %2854 = vrot.lane.b32.xlu0 %v2133, 112
        %v2855 = vpop.permute.xlu0 %2854
        %2856 = vrot.lane.b32.xlu0 %v2134, 112
        %v2857 = vpop.permute.xlu0 %2856
        %2858 = vrot.lane.b32.xlu0 %v2135, 112
        %v2859 = vpop.permute.xlu0 %2858
        %v2869 = vsel %vm615, %v2612, 0
        %v2872 = vsel %vm615, %v2614, 0
        %v2875 = vsel %vm615, %v2616, 0
        %v2878 = vsel %vm615, %v2618, 0
        %v2881 = vsel %vm615, %v2620, 0
        %v2884 = vsel %vm615, %v2622, 0
        %v2887 = vsel %vm615, %v2624, 0
        %v2890 = vsel %vm615, %v2626, 0
        %2892 = vmatprep.subr.mxu0 0.0
        %2893 = vmatpush1.msra.mxu0 %v2845
        %2894 = vmatprep.subr.mxu0 0.0
        %2895 = vmatpush1.msra.mxu0 %v2847
        %2896 = vmatprep.subr.mxu0 0.0
        %2897 = vmatpush1.msra.mxu0 %v2849
        %2898 = vmatprep.subr.mxu0 0.0
        %2899 = vmatpush1.msra.mxu0 %v2851
        %2900 = vmatprep.subr.mxu0 0.0
        %2901 = vmatpush1.msra.mxu0 %v2853
        %2902 = vmatprep.subr.mxu0 0.0
        %2903 = vmatpush1.msra.mxu0 %v2855
        %2904 = vmatprep.subr.mxu0 0.0
        %2905 = vmatpush1.msra.mxu0 %v2857
        %2906 = vmatprep.subr.mxu0 0.0
        %2907 = vmatpush1.msra.mxu0 %v2859
        %2908 = vmatprep.subr.mxu0 0.0
        %2909 = vmatpush1.msra.mxu0 0.0
        %2910 = vmatprep.subr.mxu0 0.0
        %2911 = vmatpush1.msra.mxu0 0.0
        %2912 = vmatprep.subr.mxu0 0.0
        %2913 = vmatpush1.msra.mxu0 0.0
        %2914 = vmatprep.subr.mxu0 0.0
        %2915 = vmatpush1.msra.mxu0 0.0
        %2916 = vmatprep.subr.mxu0 0.0
        %2917 = vmatpush1.msra.mxu0 0.0
        %2918 = vmatprep.subr.mxu0 0.0
        %2919 = vmatpush1.msra.mxu0 0.0
        %2920 = vmatprep.subr.mxu0 0.0
        %2921 = vmatpush1.msra.mxu0 0.0
        %2922 = vmatprep.subr.mxu0 0.0
        %2923 = vmatpush1.msra.mxu0 0.0
        %2924 = vmatprep.subr.mxu0 0.0
        %2925 = vmatpush1.msra.mxu0 0.0
        %2926 = vmatprep.subr.mxu0 0.0
        %2927 = vmatpush1.msra.mxu0 0.0
        %2928 = vmatprep.subr.mxu0 0.0
        %2929 = vmatpush1.msra.mxu0 0.0
        %2930 = vmatprep.subr.mxu0 0.0
        %2931 = vmatpush1.msra.mxu0 0.0
        %2932 = vmatprep.subr.mxu0 0.0
        %2933 = vmatpush1.msra.mxu0 0.0
        %2934 = vmatprep.subr.mxu0 0.0
        %2935 = vmatpush1.msra.mxu0 0.0
        %2936 = vmatprep.subr.mxu0 0.0
        %2937 = vmatpush1.msra.mxu0 0.0
        %2938 = vmatprep.subr.mxu0 0.0
        %2939 = vmatpush1.msra.mxu0 0.0
        %2940 = vmatprep.subr.mxu0 0.0
        %2941 = vmatpush1.msra.mxu0 0.0
        %2942 = vmatprep.subr.mxu0 0.0
        %2943 = vmatpush1.msra.mxu0 0.0
        %2944 = vmatprep.subr.mxu0 0.0
        %2945 = vmatpush1.msra.mxu0 0.0
        %2946 = vmatprep.subr.mxu0 0.0
        %2947 = vmatpush1.msra.mxu0 0.0
        %2948 = vmatprep.subr.mxu0 0.0
        %2949 = vmatpush1.msra.mxu0 0.0
        %2950 = vmatprep.subr.mxu0 0.0
        %2951 = vmatpush1.msra.mxu0 0.0
        %2952 = vmatprep.subr.mxu0 0.0
        %2953 = vmatpush1.msra.mxu0 0.0
        %2954 = vmatprep.subr.mxu0 0.0
        %2955 = vmatpush1.msra.mxu0 0.0
        %2956 = vmatprep.mubr.f32.mxu0 0.0
        %2957 = vmatmul.mubr.f32.gmra.mrb[0].mxu0 %v2869
        %v2958 = vpop.f32.mrb[0].mxu0
        %v2959 = vadd.f32 0.0, %v2958
        %v2960 = vpop.f32.mrb[0].mxu0
        %2961 = vmatprep.mubr.f32.mxu0 0.0
        %2962 = vmatmul.mubr.f32.gmra.mrb[0].mxu0 %v2872
        %v2963 = vpop.f32.mrb[0].mxu0
        %v2964 = vadd.f32 0.0, %v2963
        %v2965 = vpop.f32.mrb[0].mxu0
        %2966 = vmatprep.mubr.f32.mxu0 0.0
        %2967 = vmatmul.mubr.f32.gmra.mrb[0].mxu0 %v2875
        %v2968 = vpop.f32.mrb[0].mxu0
        %v2969 = vadd.f32 0.0, %v2968
        %v2970 = vpop.f32.mrb[0].mxu0
        %2971 = vmatprep.mubr.f32.mxu0 0.0
        %2972 = vmatmul.mubr.f32.gmra.mrb[0].mxu0 %v2878
        %v2973 = vpop.f32.mrb[0].mxu0
        %v2974 = vadd.f32 0.0, %v2973
        %v2975 = vpop.f32.mrb[0].mxu0
        %2976 = vmatprep.mubr.f32.mxu0 0.0
        %2977 = vmatmul.mubr.f32.gmra.mrb[0].mxu0 %v2881
        %v2978 = vpop.f32.mrb[0].mxu0
        %v2979 = vadd.f32 0.0, %v2978
        %v2980 = vpop.f32.mrb[0].mxu0
        %2981 = vmatprep.mubr.f32.mxu0 0.0
        %2982 = vmatmul.mubr.f32.gmra.mrb[0].mxu0 %v2884
        %v2983 = vpop.f32.mrb[0].mxu0
        %v2984 = vadd.f32 0.0, %v2983
        %v2985 = vpop.f32.mrb[0].mxu0
        %2986 = vmatprep.mubr.f32.mxu0 0.0
        %2987 = vmatmul.mubr.f32.gmra.mrb[0].mxu0 %v2887
        %v2988 = vpop.f32.mrb[0].mxu0
        %v2989 = vadd.f32 0.0, %v2988
        %v2990 = vpop.f32.mrb[0].mxu0
        %2991 = vmatprep.mubr.f32.mxu0 0.0
        %2992 = vmatmul.mubr.f32.gmra.mrb[0].mxu0 %v2890
        %v2993 = vpop.f32.mrb[0].mxu0
        %v2994 = vadd.f32 0.0, %v2993
        %v2995 = vpop.f32.mrb[0].mxu0
        %2996 = vdwg.mxu0
        %v2997 = vrcp.pop %v2629
        %v2998 = vrcp.pop %v2632
        %v2999 = vrcp.pop %v2635
        %v3000 = vrcp.pop %v2638
        %v3001 = vrcp.pop %v2641
        %v3002 = vrcp.pop %v2644
        %v3003 = vrcp.pop %v2647
        %v3004 = vrcp.pop %v2650
        %v3005 = vrcp.pop %v2653
        %v3006 = vrcp.pop %v2656
        %v3007 = vrcp.pop %v2659
        %v3008 = vrcp.pop %v2662
        %v3009 = vrcp.pop %v2665
        %v3010 = vrcp.pop %v2668
        %v3011 = vrcp.pop %v2671
        %v3012 = vrcp.pop %v2674
        %v3013 = vmul.f32 %v2798, %v2997
        %v3014 = vmul.f32 %v2803, %v2998
        %v3015 = vmul.f32 %v2808, %v2999
        %v3016 = vmul.f32 %v2813, %v3000
        %v3017 = vmul.f32 %v2818, %v3001
        %v3018 = vmul.f32 %v2823, %v3002
        %v3019 = vmul.f32 %v2828, %v3003
        %v3020 = vmul.f32 %v2833, %v3004
        %v3021 = vmul.f32 %v2959, %v3005
        %v3022 = vmul.f32 %v2964, %v3006
        %v3023 = vmul.f32 %v2969, %v3007
        %v3024 = vmul.f32 %v2974, %v3008
        %v3025 = vmul.f32 %v2979, %v3009
        %v3026 = vmul.f32 %v2984, %v3010
        %v3027 = vmul.f32 %v2989, %v3011
        %v3028 = vmul.f32 %v2994, %v3012
        %3045 = vrot.lane.b32.xlu0 %v3013, 16
        %v3046 = vpop.permute.xlu0 %3045
        %3047 = vrot.lane.b32.xlu0 %v3014, 16
        %v3048 = vpop.permute.xlu0 %3047
        %3049 = vrot.lane.b32.xlu0 %v3015, 16
        %v3050 = vpop.permute.xlu0 %3049
        %3051 = vrot.lane.b32.xlu0 %v3016, 16
        %v3052 = vpop.permute.xlu0 %3051
        %3053 = vrot.lane.b32.xlu0 %v3017, 16
        %v3054 = vpop.permute.xlu0 %3053
        %3055 = vrot.lane.b32.xlu0 %v3018, 16
        %v3056 = vpop.permute.xlu0 %3055
        %3057 = vrot.lane.b32.xlu0 %v3019, 16
        %v3058 = vpop.permute.xlu0 %3057
        %3059 = vrot.lane.b32.xlu0 %v3020, 16
        %v3060 = vpop.permute.xlu0 %3059
        %3061 = vrot.lane.b32.xlu0 %v3021, 16
        %v3062 = vpop.permute.xlu0 %3061
        %3063 = vrot.lane.b32.xlu0 %v3022, 16
        %v3064 = vpop.permute.xlu0 %3063
        %3065 = vrot.lane.b32.xlu0 %v3023, 16
        %v3066 = vpop.permute.xlu0 %3065
        %3067 = vrot.lane.b32.xlu0 %v3024, 16
        %v3068 = vpop.permute.xlu0 %3067
        %3069 = vrot.lane.b32.xlu0 %v3025, 16
        %v3070 = vpop.permute.xlu0 %3069
        %3071 = vrot.lane.b32.xlu0 %v3026, 16
        %v3072 = vpop.permute.xlu0 %3071
        %3073 = vrot.lane.b32.xlu0 %v3027, 16
        %v3074 = vpop.permute.xlu0 %3073
        %3075 = vrot.lane.b32.xlu0 %v3028, 16
        %v3076 = vpop.permute.xlu0 %3075
        %vm3093 = vcmask 195712
        %3094 = vst.msk [vmem:[#allocation2] sm:$0xff] %vm3093, %v3046
        %3095 = vst.msk [vmem:[#allocation2 + $0x8] sm:$0xff] %vm3093, %v3048
        %3096 = vst.msk [vmem:[#allocation2 + $0x10] sm:$0xff] %vm3093, %v3050
        %3097 = vst.msk [vmem:[#allocation2 + $0x18] sm:$0xff] %vm3093, %v3052
        %3098 = vst.msk [vmem:[#allocation2 + $0x20] sm:$0xff] %vm3093, %v3054
        %3099 = vst.msk [vmem:[#allocation2 + $0x28] sm:$0xff] %vm3093, %v3056
        %3100 = vst.msk [vmem:[#allocation2 + $0x30] sm:$0xff] %vm3093, %v3058
        %3101 = vst.msk [vmem:[#allocation2 + $0x38] sm:$0xff] %vm3093, %v3060
        %3102 = vst.msk [vmem:[#allocation2 + $0x80] sm:$0xff] %vm3093, %v3062
        %3103 = vst.msk [vmem:[#allocation2 + $0x88] sm:$0xff] %vm3093, %v3064
        %3104 = vst.msk [vmem:[#allocation2 + $0x90] sm:$0xff] %vm3093, %v3066
        %3105 = vst.msk [vmem:[#allocation2 + $0x98] sm:$0xff] %vm3093, %v3068
        %3106 = vst.msk [vmem:[#allocation2 + $0xa0] sm:$0xff] %vm3093, %v3070
        %3107 = vst.msk [vmem:[#allocation2 + $0xa8] sm:$0xff] %vm3093, %v3072
        %3108 = vst.msk [vmem:[#allocation2 + $0xb0] sm:$0xff] %vm3093, %v3074
        %3109 = vst.msk [vmem:[#allocation2 + $0xb8] sm:$0xff] %vm3093, %v3076
        %v3110 = vld [vmem:[%s196] sm:$0xff]
        %v3111 = vld [vmem:[%s196 + $0x10] sm:$0xff]
        %v3112 = vld [vmem:[%s196 + $0x20] sm:$0xff]
        %v3113 = vld [vmem:[%s196 + $0x30] sm:$0xff]
        %v3114 = vld [vmem:[%s196 + $0x40] sm:$0xff]
        %v3115 = vld [vmem:[%s196 + $0x50] sm:$0xff]
        %v3116 = vld [vmem:[%s196 + $0x60] sm:$0xff]
        %v3117 = vld [vmem:[%s196 + $0x70] sm:$0xff]
        %v3118 = vld [vmem:[%s196 + $0x80] sm:$0xff]
        %v3119 = vld [vmem:[%s196 + $0x90] sm:$0xff]
        %v3120 = vld [vmem:[%s196 + $0xa0] sm:$0xff]
        %v3121 = vld [vmem:[%s196 + $0xb0] sm:$0xff]
        %v3122 = vld [vmem:[%s196 + $0xc0] sm:$0xff]
        %v3123 = vld [vmem:[%s196 + $0xd0] sm:$0xff]
        %v3124 = vld [vmem:[%s196 + $0xe0] sm:$0xff]
        %v3125 = vld [vmem:[%s196 + $0xf0] sm:$0xff]
        %v3126 = vld [vmem:[%s250] sm:$0xff]
        %v3127 = vld [vmem:[%s250 + $0x10] sm:$0xff]
        %v3128 = vld [vmem:[%s250 + $0x20] sm:$0xff]
        %v3129 = vld [vmem:[%s250 + $0x30] sm:$0xff]
        %v3130 = vld [vmem:[%s250 + $0x40] sm:$0xff]
        %v3131 = vld [vmem:[%s250 + $0x50] sm:$0xff]
        %v3132 = vld [vmem:[%s250 + $0x60] sm:$0xff]
        %v3133 = vld [vmem:[%s250 + $0x70] sm:$0xff]
        %v3134 = vld [vmem:[%s250 + $0x80] sm:$0xff]
        %v3135 = vld [vmem:[%s250 + $0x90] sm:$0xff]
        %v3136 = vld [vmem:[%s250 + $0xa0] sm:$0xff]
        %v3137 = vld [vmem:[%s250 + $0xb0] sm:$0xff]
        %v3138 = vld [vmem:[%s250 + $0xc0] sm:$0xff]
        %v3139 = vld [vmem:[%s250 + $0xd0] sm:$0xff]
        %v3140 = vld [vmem:[%s250 + $0xe0] sm:$0xff]
        %v3141 = vld [vmem:[%s250 + $0xf0] sm:$0xff]
        %v3142 = vld [vmem:[%s267] sm:$0xff]
        %v3143 = vld [vmem:[%s267 + $0x10] sm:$0xff]
        %v3144 = vld [vmem:[%s267 + $0x20] sm:$0xff]
        %v3145 = vld [vmem:[%s267 + $0x30] sm:$0xff]
        %v3146 = vld [vmem:[%s267 + $0x40] sm:$0xff]
        %v3147 = vld [vmem:[%s267 + $0x50] sm:$0xff]
        %v3148 = vld [vmem:[%s267 + $0x60] sm:$0xff]
        %v3149 = vld [vmem:[%s267 + $0x70] sm:$0xff]
        %v3150 = vld [vmem:[%s267 + $0x80] sm:$0xff]
        %v3151 = vld [vmem:[%s267 + $0x90] sm:$0xff]
        %v3152 = vld [vmem:[%s267 + $0xa0] sm:$0xff]
        %v3153 = vld [vmem:[%s267 + $0xb0] sm:$0xff]
        %v3154 = vld [vmem:[%s267 + $0xc0] sm:$0xff]
        %v3155 = vld [vmem:[%s267 + $0xd0] sm:$0xff]
        %v3156 = vld [vmem:[%s267 + $0xe0] sm:$0xff]
        %v3157 = vld [vmem:[%s267 + $0xf0] sm:$0xff]
        %v3158 = vmul.f32 %v3110, 0.35355338
        %v3159 = vmul.f32 %v3111, 0.35355338
        %v3160 = vmul.f32 %v3112, 0.35355338
        %v3161 = vmul.f32 %v3113, 0.35355338
        %v3162 = vmul.f32 %v3114, 0.35355338
        %v3163 = vmul.f32 %v3115, 0.35355338
        %v3164 = vmul.f32 %v3116, 0.35355338
        %v3165 = vmul.f32 %v3117, 0.35355338
        %v3166 = vmul.f32 %v3118, 0.35355338
        %v3167 = vmul.f32 %v3119, 0.35355338
        %v3168 = vmul.f32 %v3120, 0.35355338
        %v3169 = vmul.f32 %v3121, 0.35355338
        %v3170 = vmul.f32 %v3122, 0.35355338
        %v3171 = vmul.f32 %v3123, 0.35355338
        %v3172 = vmul.f32 %v3124, 0.35355338
        %v3173 = vmul.f32 %v3125, 0.35355338
        %s3174 = scalar_lea.vmem [#allocation3], 192
        %v3175 = vld [vmem:[%s3174] sm:$0xff]
        %v3176 = vld [vmem:[%s3174 + $0x8] sm:$0xff]
        %v3177 = vld [vmem:[%s3174 + $0x10] sm:$0xff]
        %v3178 = vld [vmem:[%s3174 + $0x18] sm:$0xff]
        %v3179 = vld [vmem:[%s3174 + $0x20] sm:$0xff]
        %v3180 = vld [vmem:[%s3174 + $0x28] sm:$0xff]
        %v3181 = vld [vmem:[%s3174 + $0x30] sm:$0xff]
        %v3182 = vld [vmem:[%s3174 + $0x38] sm:$0xff]
        %3191 = vrot.lane.b32.xlu0 %v3158, 104
        %v3192 = vpop.permute.xlu0 %3191
        %3193 = vrot.lane.b32.xlu0 %v3159, 104
        %v3194 = vpop.permute.xlu0 %3193
        %3195 = vrot.lane.b32.xlu0 %v3160, 104
        %v3196 = vpop.permute.xlu0 %3195
        %3197 = vrot.lane.b32.xlu0 %v3161, 104
        %v3198 = vpop.permute.xlu0 %3197
        %3199 = vrot.lane.b32.xlu0 %v3162, 104
        %v3200 = vpop.permute.xlu0 %3199
        %3201 = vrot.lane.b32.xlu0 %v3163, 104
        %v3202 = vpop.permute.xlu0 %3201
        %3203 = vrot.lane.b32.xlu0 %v3164, 104
        %v3204 = vpop.permute.xlu0 %3203
        %3205 = vrot.lane.b32.xlu0 %v3165, 104
        %v3206 = vpop.permute.xlu0 %3205
        %3215 = vrot.lane.b32.xlu0 %v3126, 104
        %v3216 = vpop.permute.xlu0 %3215
        %3217 = vrot.lane.b32.xlu0 %v3127, 104
        %v3218 = vpop.permute.xlu0 %3217
        %3219 = vrot.lane.b32.xlu0 %v3128, 104
        %v3220 = vpop.permute.xlu0 %3219
        %3221 = vrot.lane.b32.xlu0 %v3129, 104
        %v3222 = vpop.permute.xlu0 %3221
        %3223 = vrot.lane.b32.xlu0 %v3130, 104
        %v3224 = vpop.permute.xlu0 %3223
        %3225 = vrot.lane.b32.xlu0 %v3131, 104
        %v3226 = vpop.permute.xlu0 %3225
        %3227 = vrot.lane.b32.xlu0 %v3132, 104
        %v3228 = vpop.permute.xlu0 %3227
        %3229 = vrot.lane.b32.xlu0 %v3133, 104
        %v3230 = vpop.permute.xlu0 %3229
        %v3231 = vsel %vm308, %v3192, 0
        %v3233 = vsel %vm308, %v3194, 0
        %v3235 = vsel %vm308, %v3196, 0
        %v3237 = vsel %vm308, %v3198, 0
        %v3239 = vsel %vm308, %v3200, 0
        %v3241 = vsel %vm308, %v3202, 0
        %v3243 = vsel %vm308, %v3204, 0
        %v3245 = vsel %vm308, %v3206, 0
        %v3247 = vsel %vm308, %v3216, 0
        %v3249 = vsel %vm308, %v3218, 0
        %v3251 = vsel %vm308, %v3220, 0
        %v3253 = vsel %vm308, %v3222, 0
        %v3255 = vsel %vm308, %v3224, 0
        %v3257 = vsel %vm308, %v3226, 0
        %v3259 = vsel %vm308, %v3228, 0
        %v3261 = vsel %vm308, %v3230, 0
        %3263 = vmatprep.subr.mxu0 0.0
        %3264 = vmatpush1.xpose.msra.mxu0 %v3247
        %3265 = vmatprep.subr.mxu0 0.0
        %3266 = vmatpush1.xpose.msra.mxu0 %v3249
        %3267 = vmatprep.subr.mxu0 0.0
        %3268 = vmatpush1.xpose.msra.mxu0 %v3251
        %3269 = vmatprep.subr.mxu0 0.0
        %3270 = vmatpush1.xpose.msra.mxu0 %v3253
        %3271 = vmatprep.subr.mxu0 0.0
        %3272 = vmatpush1.xpose.msra.mxu0 %v3255
        %3273 = vmatprep.subr.mxu0 0.0
        %3274 = vmatpush1.xpose.msra.mxu0 %v3257
        %3275 = vmatprep.subr.mxu0 0.0
        %3276 = vmatpush1.xpose.msra.mxu0 %v3259
        %3277 = vmatprep.subr.mxu0 0.0
        %3278 = vmatpush1.xpose.msra.mxu0 %v3261
        %3279 = vmatprep.subr.mxu0 0.0
        %3280 = vmatpush1.xpose.msra.mxu0 0.0
        %3281 = vmatprep.subr.mxu0 0.0
        %3282 = vmatpush1.xpose.msra.mxu0 0.0
        %3283 = vmatprep.subr.mxu0 0.0
        %3284 = vmatpush1.xpose.msra.mxu0 0.0
        %3285 = vmatprep.subr.mxu0 0.0
        %3286 = vmatpush1.xpose.msra.mxu0 0.0
        %3287 = vmatprep.subr.mxu0 0.0
        %3288 = vmatpush1.xpose.msra.mxu0 0.0
        %3289 = vmatprep.subr.mxu0 0.0
        %3290 = vmatpush1.xpose.msra.mxu0 0.0
        %3291 = vmatprep.subr.mxu0 0.0
        %3292 = vmatpush1.xpose.msra.mxu0 0.0
        %3293 = vmatprep.subr.mxu0 0.0
        %3294 = vmatpush1.xpose.msra.mxu0 0.0
        %3295 = vmatprep.subr.mxu0 0.0
        %3296 = vmatpush1.xpose.msra.mxu0 0.0
        %3297 = vmatprep.subr.mxu0 0.0
        %3298 = vmatpush1.xpose.msra.mxu0 0.0
        %3299 = vmatprep.subr.mxu0 0.0
        %3300 = vmatpush1.xpose.msra.mxu0 0.0
        %3301 = vmatprep.subr.mxu0 0.0
        %3302 = vmatpush1.xpose.msra.mxu0 0.0
        %3303 = vmatprep.subr.mxu0 0.0
        %3304 = vmatpush1.xpose.msra.mxu0 0.0
        %3305 = vmatprep.subr.mxu0 0.0
        %3306 = vmatpush1.xpose.msra.mxu0 0.0
        %3307 = vmatprep.subr.mxu0 0.0
        %3308 = vmatpush1.xpose.msra.mxu0 0.0
        %3309 = vmatprep.subr.mxu0 0.0
        %3310 = vmatpush1.xpose.msra.mxu0 0.0
        %3311 = vmatprep.subr.mxu0 0.0
        %3312 = vmatpush1.xpose.msra.mxu0 0.0
        %3313 = vmatprep.subr.mxu0 0.0
        %3314 = vmatpush1.xpose.msra.mxu0 0.0
        %3315 = vmatprep.subr.mxu0 0.0
        %3316 = vmatpush1.xpose.msra.mxu0 0.0
        %3317 = vmatprep.subr.mxu0 0.0
        %3318 = vmatpush1.xpose.msra.mxu0 0.0
        %3319 = vmatprep.subr.mxu0 0.0
        %3320 = vmatpush1.xpose.msra.mxu0 0.0
        %3321 = vmatprep.subr.mxu0 0.0
        %3322 = vmatpush1.xpose.msra.mxu0 0.0
        %3323 = vmatprep.subr.mxu0 0.0
        %3324 = vmatpush1.xpose.msra.mxu0 0.0
        %3325 = vmatprep.subr.mxu0 0.0
        %3326 = vmatpush1.xpose.msra.mxu0 0.0
        %3327 = vmatprep.mubr.f32.mxu0 0.0
        %3328 = vmatmul.mubr.f32.gmra.mrb[0].mxu0 %v3231
        %v3329 = vpop.f32.mrb[0].mxu0
        %v3330 = vadd.f32 %v3175, %v3329
        %v3331 = vpop.f32.mrb[0].mxu0
        %3332 = vmatprep.mubr.f32.mxu0 0.0
        %3333 = vmatmul.mubr.f32.gmra.mrb[0].mxu0 %v3233
        %v3334 = vpop.f32.mrb[0].mxu0
        %v3335 = vadd.f32 %v3176, %v3334
        %v3336 = vpop.f32.mrb[0].mxu0
        %3337 = vmatprep.mubr.f32.mxu0 0.0
        %3338 = vmatmul.mubr.f32.gmra.mrb[0].mxu0 %v3235
        %v3339 = vpop.f32.mrb[0].mxu0
        %v3340 = vadd.f32 %v3177, %v3339
        %v3341 = vpop.f32.mrb[0].mxu0
        %3342 = vmatprep.mubr.f32.mxu0 0.0
        %3343 = vmatmul.mubr.f32.gmra.mrb[0].mxu0 %v3237
        %v3344 = vpop.f32.mrb[0].mxu0
        %v3345 = vadd.f32 %v3178, %v3344
        %v3346 = vpop.f32.mrb[0].mxu0
        %3347 = vmatprep.mubr.f32.mxu0 0.0
        %3348 = vmatmul.mubr.f32.gmra.mrb[0].mxu0 %v3239
        %v3349 = vpop.f32.mrb[0].mxu0
        %v3350 = vadd.f32 %v3179, %v3349
        %v3351 = vpop.f32.mrb[0].mxu0
        %3352 = vmatprep.mubr.f32.mxu0 0.0
        %3353 = vmatmul.mubr.f32.gmra.mrb[0].mxu0 %v3241
        %v3354 = vpop.f32.mrb[0].mxu0
        %v3355 = vadd.f32 %v3180, %v3354
        %v3356 = vpop.f32.mrb[0].mxu0
        %3357 = vmatprep.mubr.f32.mxu0 0.0
        %3358 = vmatmul.mubr.f32.gmra.mrb[0].mxu0 %v3243
        %v3359 = vpop.f32.mrb[0].mxu0
        %v3360 = vadd.f32 %v3181, %v3359
        %v3361 = vpop.f32.mrb[0].mxu0
        %3362 = vmatprep.mubr.f32.mxu0 0.0
        %3363 = vmatmul.mubr.f32.gmra.mrb[0].mxu0 %v3245
        %v3364 = vpop.f32.mrb[0].mxu0
        %v3365 = vadd.f32 %v3182, %v3364
        %v3366 = vpop.f32.mrb[0].mxu0
        %3367 = vdwg.mxu0
        %3376 = vrot.lane.b32.xlu0 %v3166, 104
        %v3377 = vpop.permute.xlu0 %3376
        %3378 = vrot.lane.b32.xlu0 %v3167, 104
        %v3379 = vpop.permute.xlu0 %3378
        %3380 = vrot.lane.b32.xlu0 %v3168, 104
        %v3381 = vpop.permute.xlu0 %3380
        %3382 = vrot.lane.b32.xlu0 %v3169, 104
        %v3383 = vpop.permute.xlu0 %3382
        %3384 = vrot.lane.b32.xlu0 %v3170, 104
        %v3385 = vpop.permute.xlu0 %3384
        %3386 = vrot.lane.b32.xlu0 %v3171, 104
        %v3387 = vpop.permute.xlu0 %3386
        %3388 = vrot.lane.b32.xlu0 %v3172, 104
        %v3389 = vpop.permute.xlu0 %3388
        %3390 = vrot.lane.b32.xlu0 %v3173, 104
        %v3391 = vpop.permute.xlu0 %3390
        %3400 = vrot.lane.b32.xlu0 %v3134, 104
        %v3401 = vpop.permute.xlu0 %3400
        %3402 = vrot.lane.b32.xlu0 %v3135, 104
        %v3403 = vpop.permute.xlu0 %3402
        %3404 = vrot.lane.b32.xlu0 %v3136, 104
        %v3405 = vpop.permute.xlu0 %3404
        %3406 = vrot.lane.b32.xlu0 %v3137, 104
        %v3407 = vpop.permute.xlu0 %3406
        %3408 = vrot.lane.b32.xlu0 %v3138, 104
        %v3409 = vpop.permute.xlu0 %3408
        %3410 = vrot.lane.b32.xlu0 %v3139, 104
        %v3411 = vpop.permute.xlu0 %3410
        %3412 = vrot.lane.b32.xlu0 %v3140, 104
        %v3413 = vpop.permute.xlu0 %3412
        %3414 = vrot.lane.b32.xlu0 %v3141, 104
        %v3415 = vpop.permute.xlu0 %3414
        %v3416 = vsel %vm308, %v3377, 0
        %v3418 = vsel %vm308, %v3379, 0
        %v3420 = vsel %vm308, %v3381, 0
        %v3422 = vsel %vm308, %v3383, 0
        %v3424 = vsel %vm308, %v3385, 0
        %v3426 = vsel %vm308, %v3387, 0
        %v3428 = vsel %vm308, %v3389, 0
        %v3430 = vsel %vm308, %v3391, 0
        %v3432 = vsel %vm308, %v3401, 0
        %v3434 = vsel %vm308, %v3403, 0
        %v3436 = vsel %vm308, %v3405, 0
        %v3438 = vsel %vm308, %v3407, 0
        %v3440 = vsel %vm308, %v3409, 0
        %v3442 = vsel %vm308, %v3411, 0
        %v3444 = vsel %vm308, %v3413, 0
        %v3446 = vsel %vm308, %v3415, 0
        %3448 = vmatprep.subr.mxu0 0.0
        %3449 = vmatpush1.xpose.msra.mxu0 %v3432
        %3450 = vmatprep.subr.mxu0 0.0
        %3451 = vmatpush1.xpose.msra.mxu0 %v3434
        %3452 = vmatprep.subr.mxu0 0.0
        %3453 = vmatpush1.xpose.msra.mxu0 %v3436
        %3454 = vmatprep.subr.mxu0 0.0
        %3455 = vmatpush1.xpose.msra.mxu0 %v3438
        %3456 = vmatprep.subr.mxu0 0.0
        %3457 = vmatpush1.xpose.msra.mxu0 %v3440
        %3458 = vmatprep.subr.mxu0 0.0
        %3459 = vmatpush1.xpose.msra.mxu0 %v3442
        %3460 = vmatprep.subr.mxu0 0.0
        %3461 = vmatpush1.xpose.msra.mxu0 %v3444
        %3462 = vmatprep.subr.mxu0 0.0
        %3463 = vmatpush1.xpose.msra.mxu0 %v3446
        %3464 = vmatprep.subr.mxu0 0.0
        %3465 = vmatpush1.xpose.msra.mxu0 0.0
        %3466 = vmatprep.subr.mxu0 0.0
        %3467 = vmatpush1.xpose.msra.mxu0 0.0
        %3468 = vmatprep.subr.mxu0 0.0
        %3469 = vmatpush1.xpose.msra.mxu0 0.0
        %3470 = vmatprep.subr.mxu0 0.0
        %3471 = vmatpush1.xpose.msra.mxu0 0.0
        %3472 = vmatprep.subr.mxu0 0.0
        %3473 = vmatpush1.xpose.msra.mxu0 0.0
        %3474 = vmatprep.subr.mxu0 0.0
        %3475 = vmatpush1.xpose.msra.mxu0 0.0
        %3476 = vmatprep.subr.mxu0 0.0
        %3477 = vmatpush1.xpose.msra.mxu0 0.0
        %3478 = vmatprep.subr.mxu0 0.0
        %3479 = vmatpush1.xpose.msra.mxu0 0.0
        %3480 = vmatprep.subr.mxu0 0.0
        %3481 = vmatpush1.xpose.msra.mxu0 0.0
        %3482 = vmatprep.subr.mxu0 0.0
        %3483 = vmatpush1.xpose.msra.mxu0 0.0
        %3484 = vmatprep.subr.mxu0 0.0
        %3485 = vmatpush1.xpose.msra.mxu0 0.0
        %3486 = vmatprep.subr.mxu0 0.0
        %3487 = vmatpush1.xpose.msra.mxu0 0.0
        %3488 = vmatprep.subr.mxu0 0.0
        %3489 = vmatpush1.xpose.msra.mxu0 0.0
        %3490 = vmatprep.subr.mxu0 0.0
        %3491 = vmatpush1.xpose.msra.mxu0 0.0
        %3492 = vmatprep.subr.mxu0 0.0
        %3493 = vmatpush1.xpose.msra.mxu0 0.0
        %3494 = vmatprep.subr.mxu0 0.0
        %3495 = vmatpush1.xpose.msra.mxu0 0.0
        %3496 = vmatprep.subr.mxu0 0.0
        %3497 = vmatpush1.xpose.msra.mxu0 0.0
        %3498 = vmatprep.subr.mxu0 0.0
        %3499 = vmatpush1.xpose.msra.mxu0 0.0
        %3500 = vmatprep.subr.mxu0 0.0
        %3501 = vmatpush1.xpose.msra.mxu0 0.0
        %3502 = vmatprep.subr.mxu0 0.0
        %3503 = vmatpush1.xpose.msra.mxu0 0.0
        %3504 = vmatprep.subr.mxu0 0.0
        %3505 = vmatpush1.xpose.msra.mxu0 0.0
        %3506 = vmatprep.subr.mxu0 0.0
        %3507 = vmatpush1.xpose.msra.mxu0 0.0
        %3508 = vmatprep.subr.mxu0 0.0
        %3509 = vmatpush1.xpose.msra.mxu0 0.0
        %3510 = vmatprep.subr.mxu0 0.0
        %3511 = vmatpush1.xpose.msra.mxu0 0.0
        %3512 = vmatprep.mubr.f32.mxu0 0.0
        %3513 = vmatmul.mubr.f32.gmra.mrb[0].mxu0 %v3416
        %v3514 = vpop.f32.mrb[0].mxu0
        %v3515 = vadd.f32 %v3175, %v3514
        %v3516 = vpop.f32.mrb[0].mxu0
        %3517 = vmatprep.mubr.f32.mxu0 0.0
        %3518 = vmatmul.mubr.f32.gmra.mrb[0].mxu0 %v3418
        %v3519 = vpop.f32.mrb[0].mxu0
        %v3520 = vadd.f32 %v3176, %v3519
        %v3521 = vpop.f32.mrb[0].mxu0
        %3522 = vmatprep.mubr.f32.mxu0 0.0
        %3523 = vmatmul.mubr.f32.gmra.mrb[0].mxu0 %v3420
        %v3524 = vpop.f32.mrb[0].mxu0
        %v3525 = vadd.f32 %v3177, %v3524
        %v3526 = vpop.f32.mrb[0].mxu0
        %3527 = vmatprep.mubr.f32.mxu0 0.0
        %3528 = vmatmul.mubr.f32.gmra.mrb[0].mxu0 %v3422
        %v3529 = vpop.f32.mrb[0].mxu0
        %v3530 = vadd.f32 %v3178, %v3529
        %v3531 = vpop.f32.mrb[0].mxu0
        %3532 = vmatprep.mubr.f32.mxu0 0.0
        %3533 = vmatmul.mubr.f32.gmra.mrb[0].mxu0 %v3424
        %v3534 = vpop.f32.mrb[0].mxu0
        %v3535 = vadd.f32 %v3179, %v3534
        %v3536 = vpop.f32.mrb[0].mxu0
        %3537 = vmatprep.mubr.f32.mxu0 0.0
        %3538 = vmatmul.mubr.f32.gmra.mrb[0].mxu0 %v3426
        %v3539 = vpop.f32.mrb[0].mxu0
        %v3540 = vadd.f32 %v3180, %v3539
        %v3541 = vpop.f32.mrb[0].mxu0
        %3542 = vmatprep.mubr.f32.mxu0 0.0
        %3543 = vmatmul.mubr.f32.gmra.mrb[0].mxu0 %v3428
        %v3544 = vpop.f32.mrb[0].mxu0
        %v3545 = vadd.f32 %v3181, %v3544
        %v3546 = vpop.f32.mrb[0].mxu0
        %3547 = vmatprep.mubr.f32.mxu0 0.0
        %3548 = vmatmul.mubr.f32.gmra.mrb[0].mxu0 %v3430
        %v3549 = vpop.f32.mrb[0].mxu0
        %v3550 = vadd.f32 %v3182, %v3549
        %v3551 = vpop.f32.mrb[0].mxu0
        %3552 = vdwg.mxu0
        %v3553 = vsel %vm615, %v3330, -inf
        %3554 = vmax.xlane.f32.xlu0 %v3553
        %v3555 = vpop.xlane.xlu0 %3554
        %v3556 = vsel %vm615, %v3335, -inf
        %3557 = vmax.xlane.f32.xlu0 %v3556
        %v3558 = vpop.xlane.xlu0 %3557
        %v3559 = vsel %vm615, %v3340, -inf
        %3560 = vmax.xlane.f32.xlu0 %v3559
        %v3561 = vpop.xlane.xlu0 %3560
        %v3562 = vsel %vm615, %v3345, -inf
        %3563 = vmax.xlane.f32.xlu0 %v3562
        %v3564 = vpop.xlane.xlu0 %3563
        %v3565 = vsel %vm615, %v3350, -inf
        %3566 = vmax.xlane.f32.xlu0 %v3565
        %v3567 = vpop.xlane.xlu0 %3566
        %v3568 = vsel %vm615, %v3355, -inf
        %3569 = vmax.xlane.f32.xlu0 %v3568
        %v3570 = vpop.xlane.xlu0 %3569
        %v3571 = vsel %vm615, %v3360, -inf
        %3572 = vmax.xlane.f32.xlu0 %v3571
        %v3573 = vpop.xlane.xlu0 %3572
        %v3574 = vsel %vm615, %v3365, -inf
        %3575 = vmax.xlane.f32.xlu0 %v3574
        %v3576 = vpop.xlane.xlu0 %3575
        %v3577 = vsel %vm615, %v3515, -inf
        %3578 = vmax.xlane.f32.xlu0 %v3577
        %v3579 = vpop.xlane.xlu0 %3578
        %v3580 = vsel %vm615, %v3520, -inf
        %3581 = vmax.xlane.f32.xlu0 %v3580
        %v3582 = vpop.xlane.xlu0 %3581
        %v3583 = vsel %vm615, %v3525, -inf
        %3584 = vmax.xlane.f32.xlu0 %v3583
        %v3585 = vpop.xlane.xlu0 %3584
        %v3586 = vsel %vm615, %v3530, -inf
        %3587 = vmax.xlane.f32.xlu0 %v3586
        %v3588 = vpop.xlane.xlu0 %3587
        %v3589 = vsel %vm615, %v3535, -inf
        %3590 = vmax.xlane.f32.xlu0 %v3589
        %v3591 = vpop.xlane.xlu0 %3590
        %v3592 = vsel %vm615, %v3540, -inf
        %3593 = vmax.xlane.f32.xlu0 %v3592
        %v3594 = vpop.xlane.xlu0 %3593
        %v3595 = vsel %vm615, %v3545, -inf
        %3596 = vmax.xlane.f32.xlu0 %v3595
        %v3597 = vpop.xlane.xlu0 %3596
        %v3598 = vsel %vm615, %v3550, -inf
        %3599 = vmax.xlane.f32.xlu0 %v3598
        %v3600 = vpop.xlane.xlu0 %3599
        %v3601 = vsub.f32 %v3330, %v3555
        %v3602 = vsub.f32 %v3335, %v3558
        %v3603 = vsub.f32 %v3340, %v3561
        %v3604 = vsub.f32 %v3345, %v3564
        %v3605 = vsub.f32 %v3350, %v3567
        %v3606 = vsub.f32 %v3355, %v3570
        %v3607 = vsub.f32 %v3360, %v3573
        %v3608 = vsub.f32 %v3365, %v3576
        %v3609 = vsub.f32 %v3515, %v3579
        %v3610 = vsub.f32 %v3520, %v3582
        %v3611 = vsub.f32 %v3525, %v3585
        %v3612 = vsub.f32 %v3530, %v3588
        %v3613 = vsub.f32 %v3535, %v3591
        %v3614 = vsub.f32 %v3540, %v3594
        %v3615 = vsub.f32 %v3545, %v3597
        %v3616 = vsub.f32 %v3550, %v3600
        %v3617 = vmul.f32 %v3601, 1.442695
        %v3618 = vpow.pop %v3617
        %v3619 = vmul.f32 %v3602, 1.442695
        %v3620 = vpow.pop %v3619
        %v3621 = vmul.f32 %v3603, 1.442695
        %v3622 = vpow.pop %v3621
        %v3623 = vmul.f32 %v3604, 1.442695
        %v3624 = vpow.pop %v3623
        %v3625 = vmul.f32 %v3605, 1.442695
        %v3626 = vpow.pop %v3625
        %v3627 = vmul.f32 %v3606, 1.442695
        %v3628 = vpow.pop %v3627
        %v3629 = vmul.f32 %v3607, 1.442695
        %v3630 = vpow.pop %v3629
        %v3631 = vmul.f32 %v3608, 1.442695
        %v3632 = vpow.pop %v3631
        %v3633 = vmul.f32 %v3609, 1.442695
        %v3634 = vpow.pop %v3633
        %v3635 = vmul.f32 %v3610, 1.442695
        %v3636 = vpow.pop %v3635
        %v3637 = vmul.f32 %v3611, 1.442695
        %v3638 = vpow.pop %v3637
        %v3639 = vmul.f32 %v3612, 1.442695
        %v3640 = vpow.pop %v3639
        %v3641 = vmul.f32 %v3613, 1.442695
        %v3642 = vpow.pop %v3641
        %v3643 = vmul.f32 %v3614, 1.442695
        %v3644 = vpow.pop %v3643
        %v3645 = vmul.f32 %v3615, 1.442695
        %v3646 = vpow.pop %v3645
        %v3647 = vmul.f32 %v3616, 1.442695
        %v3648 = vpow.pop %v3647
        %v3649 = vsel %vm615, %v3618, 0.0
        %3650 = vadd.xlane.f32.xlu0 %v3649
        %v3651 = vpop.xlane.xlu0 %3650
        %v3652 = vsel %vm615, %v3620, 0.0
        %3653 = vadd.xlane.f32.xlu0 %v3652
        %v3654 = vpop.xlane.xlu0 %3653
        %v3655 = vsel %vm615, %v3622, 0.0
        %3656 = vadd.xlane.f32.xlu0 %v3655
        %v3657 = vpop.xlane.xlu0 %3656
        %v3658 = vsel %vm615, %v3624, 0.0
        %3659 = vadd.xlane.f32.xlu0 %v3658
        %v3660 = vpop.xlane.xlu0 %3659
        %v3661 = vsel %vm615, %v3626, 0.0
        %3662 = vadd.xlane.f32.xlu0 %v3661
        %v3663 = vpop.xlane.xlu0 %3662
        %v3664 = vsel %vm615, %v3628, 0.0
        %3665 = vadd.xlane.f32.xlu0 %v3664
        %v3666 = vpop.xlane.xlu0 %3665
        %v3667 = vsel %vm615, %v3630, 0.0
        %3668 = vadd.xlane.f32.xlu0 %v3667
        %v3669 = vpop.xlane.xlu0 %3668
        %v3670 = vsel %vm615, %v3632, 0.0
        %3671 = vadd.xlane.f32.xlu0 %v3670
        %v3672 = vpop.xlane.xlu0 %3671
        %v3673 = vsel %vm615, %v3634, 0.0
        %3674 = vadd.xlane.f32.xlu0 %v3673
        %v3675 = vpop.xlane.xlu0 %3674
        %v3676 = vsel %vm615, %v3636, 0.0
        %3677 = vadd.xlane.f32.xlu0 %v3676
        %v3678 = vpop.xlane.xlu0 %3677
        %v3679 = vsel %vm615, %v3638, 0.0
        %3680 = vadd.xlane.f32.xlu0 %v3679
        %v3681 = vpop.xlane.xlu0 %3680
        %v3682 = vsel %vm615, %v3640, 0.0
        %3683 = vadd.xlane.f32.xlu0 %v3682
        %v3684 = vpop.xlane.xlu0 %3683
        %v3685 = vsel %vm615, %v3642, 0.0
        %3686 = vadd.xlane.f32.xlu0 %v3685
        %v3687 = vpop.xlane.xlu0 %3686
        %v3688 = vsel %vm615, %v3644, 0.0
        %3689 = vadd.xlane.f32.xlu0 %v3688
        %v3690 = vpop.xlane.xlu0 %3689
        %v3691 = vsel %vm615, %v3646, 0.0
        %3692 = vadd.xlane.f32.xlu0 %v3691
        %v3693 = vpop.xlane.xlu0 %3692
        %v3694 = vsel %vm615, %v3648, 0.0
        %3695 = vadd.xlane.f32.xlu0 %v3694
        %v3696 = vpop.xlane.xlu0 %3695
        %3705 = vrot.lane.b32.xlu0 %v3142, 104
        %v3706 = vpop.permute.xlu0 %3705
        %3707 = vrot.lane.b32.xlu0 %v3143, 104
        %v3708 = vpop.permute.xlu0 %3707
        %3709 = vrot.lane.b32.xlu0 %v3144, 104
        %v3710 = vpop.permute.xlu0 %3709
        %3711 = vrot.lane.b32.xlu0 %v3145, 104
        %v3712 = vpop.permute.xlu0 %3711
        %3713 = vrot.lane.b32.xlu0 %v3146, 104
        %v3714 = vpop.permute.xlu0 %3713
        %3715 = vrot.lane.b32.xlu0 %v3147, 104
        %v3716 = vpop.permute.xlu0 %3715
        %3717 = vrot.lane.b32.xlu0 %v3148, 104
        %v3718 = vpop.permute.xlu0 %3717
        %3719 = vrot.lane.b32.xlu0 %v3149, 104
        %v3720 = vpop.permute.xlu0 %3719
        %v3730 = vsel %vm615, %v3618, 0
        %v3733 = vsel %vm615, %v3620, 0
        %v3736 = vsel %vm615, %v3622, 0
        %v3739 = vsel %vm615, %v3624, 0
        %v3742 = vsel %vm615, %v3626, 0
        %v3745 = vsel %vm615, %v3628, 0
        %v3748 = vsel %vm615, %v3630, 0
        %v3751 = vsel %vm615, %v3632, 0
        %3753 = vmatprep.subr.mxu0 0.0
        %3754 = vmatpush1.msra.mxu0 %v3706
        %3755 = vmatprep.subr.mxu0 0.0
        %3756 = vmatpush1.msra.mxu0 %v3708
        %3757 = vmatprep.subr.mxu0 0.0
        %3758 = vmatpush1.msra.mxu0 %v3710
        %3759 = vmatprep.subr.mxu0 0.0
        %3760 = vmatpush1.msra.mxu0 %v3712
        %3761 = vmatprep.subr.mxu0 0.0
        %3762 = vmatpush1.msra.mxu0 %v3714
        %3763 = vmatprep.subr.mxu0 0.0
        %3764 = vmatpush1.msra.mxu0 %v3716
        %3765 = vmatprep.subr.mxu0 0.0
        %3766 = vmatpush1.msra.mxu0 %v3718
        %3767 = vmatprep.subr.mxu0 0.0
        %3768 = vmatpush1.msra.mxu0 %v3720
        %3769 = vmatprep.subr.mxu0 0.0
        %3770 = vmatpush1.msra.mxu0 0.0
        %3771 = vmatprep.subr.mxu0 0.0
        %3772 = vmatpush1.msra.mxu0 0.0
        %3773 = vmatprep.subr.mxu0 0.0
        %3774 = vmatpush1.msra.mxu0 0.0
        %3775 = vmatprep.subr.mxu0 0.0
        %3776 = vmatpush1.msra.mxu0 0.0
        %3777 = vmatprep.subr.mxu0 0.0
        %3778 = vmatpush1.msra.mxu0 0.0
        %3779 = vmatprep.subr.mxu0 0.0
        %3780 = vmatpush1.msra.mxu0 0.0
        %3781 = vmatprep.subr.mxu0 0.0
        %3782 = vmatpush1.msra.mxu0 0.0
        %3783 = vmatprep.subr.mxu0 0.0
        %3784 = vmatpush1.msra.mxu0 0.0
        %3785 = vmatprep.subr.mxu0 0.0
        %3786 = vmatpush1.msra.mxu0 0.0
        %3787 = vmatprep.subr.mxu0 0.0
        %3788 = vmatpush1.msra.mxu0 0.0
        %3789 = vmatprep.subr.mxu0 0.0
        %3790 = vmatpush1.msra.mxu0 0.0
        %3791 = vmatprep.subr.mxu0 0.0
        %3792 = vmatpush1.msra.mxu0 0.0
        %3793 = vmatprep.subr.mxu0 0.0
        %3794 = vmatpush1.msra.mxu0 0.0
        %3795 = vmatprep.subr.mxu0 0.0
        %3796 = vmatpush1.msra.mxu0 0.0
        %3797 = vmatprep.subr.mxu0 0.0
        %3798 = vmatpush1.msra.mxu0 0.0
        %3799 = vmatprep.subr.mxu0 0.0
        %3800 = vmatpush1.msra.mxu0 0.0
        %3801 = vmatprep.subr.mxu0 0.0
        %3802 = vmatpush1.msra.mxu0 0.0
        %3803 = vmatprep.subr.mxu0 0.0
        %3804 = vmatpush1.msra.mxu0 0.0
        %3805 = vmatprep.subr.mxu0 0.0
        %3806 = vmatpush1.msra.mxu0 0.0
        %3807 = vmatprep.subr.mxu0 0.0
        %3808 = vmatpush1.msra.mxu0 0.0
        %3809 = vmatprep.subr.mxu0 0.0
        %3810 = vmatpush1.msra.mxu0 0.0
        %3811 = vmatprep.subr.mxu0 0.0
        %3812 = vmatpush1.msra.mxu0 0.0
        %3813 = vmatprep.subr.mxu0 0.0
        %3814 = vmatpush1.msra.mxu0 0.0
        %3815 = vmatprep.subr.mxu0 0.0
        %3816 = vmatpush1.msra.mxu0 0.0
        %3817 = vmatprep.mubr.f32.mxu0 0.0
        %3818 = vmatmul.mubr.f32.gmra.mrb[0].mxu0 %v3730
        %v3819 = vpop.f32.mrb[0].mxu0
        %v3820 = vadd.f32 0.0, %v3819
        %v3821 = vpop.f32.mrb[0].mxu0
        %3822 = vmatprep.mubr.f32.mxu0 0.0
        %3823 = vmatmul.mubr.f32.gmra.mrb[0].mxu0 %v3733
        %v3824 = vpop.f32.mrb[0].mxu0
        %v3825 = vadd.f32 0.0, %v3824
        %v3826 = vpop.f32.mrb[0].mxu0
        %3827 = vmatprep.mubr.f32.mxu0 0.0
        %3828 = vmatmul.mubr.f32.gmra.mrb[0].mxu0 %v3736
        %v3829 = vpop.f32.mrb[0].mxu0
        %v3830 = vadd.f32 0.0, %v3829
        %v3831 = vpop.f32.mrb[0].mxu0
        %3832 = vmatprep.mubr.f32.mxu0 0.0
        %3833 = vmatmul.mubr.f32.gmra.mrb[0].mxu0 %v3739
        %v3834 = vpop.f32.mrb[0].mxu0
        %v3835 = vadd.f32 0.0, %v3834
        %v3836 = vpop.f32.mrb[0].mxu0
        %3837 = vmatprep.mubr.f32.mxu0 0.0
        %3838 = vmatmul.mubr.f32.gmra.mrb[0].mxu0 %v3742
        %v3839 = vpop.f32.mrb[0].mxu0
        %v3840 = vadd.f32 0.0, %v3839
        %v3841 = vpop.f32.mrb[0].mxu0
        %3842 = vmatprep.mubr.f32.mxu0 0.0
        %3843 = vmatmul.mubr.f32.gmra.mrb[0].mxu0 %v3745
        %v3844 = vpop.f32.mrb[0].mxu0
        %v3845 = vadd.f32 0.0, %v3844
        %v3846 = vpop.f32.mrb[0].mxu0
        %3847 = vmatprep.mubr.f32.mxu0 0.0
        %3848 = vmatmul.mubr.f32.gmra.mrb[0].mxu0 %v3748
        %v3849 = vpop.f32.mrb[0].mxu0
        %v3850 = vadd.f32 0.0, %v3849
        %v3851 = vpop.f32.mrb[0].mxu0
        %3852 = vmatprep.mubr.f32.mxu0 0.0
        %3853 = vmatmul.mubr.f32.gmra.mrb[0].mxu0 %v3751
        %v3854 = vpop.f32.mrb[0].mxu0
        %v3855 = vadd.f32 0.0, %v3854
        %v3856 = vpop.f32.mrb[0].mxu0
        %3857 = vdwg.mxu0
        %3866 = vrot.lane.b32.xlu0 %v3150, 104
        %v3867 = vpop.permute.xlu0 %3866
        %3868 = vrot.lane.b32.xlu0 %v3151, 104
        %v3869 = vpop.permute.xlu0 %3868
        %3870 = vrot.lane.b32.xlu0 %v3152, 104
        %v3871 = vpop.permute.xlu0 %3870
        %3872 = vrot.lane.b32.xlu0 %v3153, 104
        %v3873 = vpop.permute.xlu0 %3872
        %3874 = vrot.lane.b32.xlu0 %v3154, 104
        %v3875 = vpop.permute.xlu0 %3874
        %3876 = vrot.lane.b32.xlu0 %v3155, 104
        %v3877 = vpop.permute.xlu0 %3876
        %3878 = vrot.lane.b32.xlu0 %v3156, 104
        %v3879 = vpop.permute.xlu0 %3878
        %3880 = vrot.lane.b32.xlu0 %v3157, 104
        %v3881 = vpop.permute.xlu0 %3880
        %v3891 = vsel %vm615, %v3634, 0
        %v3894 = vsel %vm615, %v3636, 0
        %v3897 = vsel %vm615, %v3638, 0
        %v3900 = vsel %vm615, %v3640, 0
        %v3903 = vsel %vm615, %v3642, 0
        %v3906 = vsel %vm615, %v3644, 0
        %v3909 = vsel %vm615, %v3646, 0
        %v3912 = vsel %vm615, %v3648, 0
        %3914 = vmatprep.subr.mxu0 0.0
        %3915 = vmatpush1.msra.mxu0 %v3867
        %3916 = vmatprep.subr.mxu0 0.0
        %3917 = vmatpush1.msra.mxu0 %v3869
        %3918 = vmatprep.subr.mxu0 0.0
        %3919 = vmatpush1.msra.mxu0 %v3871
        %3920 = vmatprep.subr.mxu0 0.0
        %3921 = vmatpush1.msra.mxu0 %v3873
        %3922 = vmatprep.subr.mxu0 0.0
        %3923 = vmatpush1.msra.mxu0 %v3875
        %3924 = vmatprep.subr.mxu0 0.0
        %3925 = vmatpush1.msra.mxu0 %v3877
        %3926 = vmatprep.subr.mxu0 0.0
        %3927 = vmatpush1.msra.mxu0 %v3879
        %3928 = vmatprep.subr.mxu0 0.0
        %3929 = vmatpush1.msra.mxu0 %v3881
        %3930 = vmatprep.subr.mxu0 0.0
        %3931 = vmatpush1.msra.mxu0 0.0
        %3932 = vmatprep.subr.mxu0 0.0
        %3933 = vmatpush1.msra.mxu0 0.0
        %3934 = vmatprep.subr.mxu0 0.0
        %3935 = vmatpush1.msra.mxu0 0.0
        %3936 = vmatprep.subr.mxu0 0.0
        %3937 = vmatpush1.msra.mxu0 0.0
        %3938 = vmatprep.subr.mxu0 0.0
        %3939 = vmatpush1.msra.mxu0 0.0
        %3940 = vmatprep.subr.mxu0 0.0
        %3941 = vmatpush1.msra.mxu0 0.0
        %3942 = vmatprep.subr.mxu0 0.0
        %3943 = vmatpush1.msra.mxu0 0.0
        %3944 = vmatprep.subr.mxu0 0.0
        %3945 = vmatpush1.msra.mxu0 0.0
        %3946 = vmatprep.subr.mxu0 0.0
        %3947 = vmatpush1.msra.mxu0 0.0
        %3948 = vmatprep.subr.mxu0 0.0
        %3949 = vmatpush1.msra.mxu0 0.0
        %3950 = vmatprep.subr.mxu0 0.0
        %3951 = vmatpush1.msra.mxu0 0.0
        %3952 = vmatprep.subr.mxu0 0.0
        %3953 = vmatpush1.msra.mxu0 0.0
        %3954 = vmatprep.subr.mxu0 0.0
        %3955 = vmatpush1.msra.mxu0 0.0
        %3956 = vmatprep.subr.mxu0 0.0
        %3957 = vmatpush1.msra.mxu0 0.0
        %3958 = vmatprep.subr.mxu0 0.0
        %3959 = vmatpush1.msra.mxu0 0.0
        %3960 = vmatprep.subr.mxu0 0.0
        %3961 = vmatpush1.msra.mxu0 0.0
        %3962 = vmatprep.subr.mxu0 0.0
        %3963 = vmatpush1.msra.mxu0 0.0
        %3964 = vmatprep.subr.mxu0 0.0
        %3965 = vmatpush1.msra.mxu0 0.0
        %3966 = vmatprep.subr.mxu0 0.0
        %3967 = vmatpush1.msra.mxu0 0.0
        %3968 = vmatprep.subr.mxu0 0.0
        %3969 = vmatpush1.msra.mxu0 0.0
        %3970 = vmatprep.subr.mxu0 0.0
        %3971 = vmatpush1.msra.mxu0 0.0
        %3972 = vmatprep.subr.mxu0 0.0
        %3973 = vmatpush1.msra.mxu0 0.0
        %3974 = vmatprep.subr.mxu0 0.0
        %3975 = vmatpush1.msra.mxu0 0.0
        %3976 = vmatprep.subr.mxu0 0.0
        %3977 = vmatpush1.msra.mxu0 0.0
        %3978 = vmatprep.mubr.f32.mxu0 0.0
        %3979 = vmatmul.mubr.f32.gmra.mrb[0].mxu0 %v3891
        %v3980 = vpop.f32.mrb[0].mxu0
        %v3981 = vadd.f32 0.0, %v3980
        %v3982 = vpop.f32.mrb[0].mxu0
        %3983 = vmatprep.mubr.f32.mxu0 0.0
        %3984 = vmatmul.mubr.f32.gmra.mrb[0].mxu0 %v3894
        %v3985 = vpop.f32.mrb[0].mxu0
        %v3986 = vadd.f32 0.0, %v3985
        %v3987 = vpop.f32.mrb[0].mxu0
        %3988 = vmatprep.mubr.f32.mxu0 0.0
        %3989 = vmatmul.mubr.f32.gmra.mrb[0].mxu0 %v3897
        %v3990 = vpop.f32.mrb[0].mxu0
        %v3991 = vadd.f32 0.0, %v3990
        %v3992 = vpop.f32.mrb[0].mxu0
        %3993 = vmatprep.mubr.f32.mxu0 0.0
        %3994 = vmatmul.mubr.f32.gmra.mrb[0].mxu0 %v3900
        %v3995 = vpop.f32.mrb[0].mxu0
        %v3996 = vadd.f32 0.0, %v3995
        %v3997 = vpop.f32.mrb[0].mxu0
        %3998 = vmatprep.mubr.f32.mxu0 0.0
        %3999 = vmatmul.mubr.f32.gmra.mrb[0].mxu0 %v3903
        %v4000 = vpop.f32.mrb[0].mxu0
        %v4001 = vadd.f32 0.0, %v4000
        %v4002 = vpop.f32.mrb[0].mxu0
        %4003 = vmatprep.mubr.f32.mxu0 0.0
        %4004 = vmatmul.mubr.f32.gmra.mrb[0].mxu0 %v3906
        %v4005 = vpop.f32.mrb[0].mxu0
        %v4006 = vadd.f32 0.0, %v4005
        %v4007 = vpop.f32.mrb[0].mxu0
        %4008 = vmatprep.mubr.f32.mxu0 0.0
        %4009 = vmatmul.mubr.f32.gmra.mrb[0].mxu0 %v3909
        %v4010 = vpop.f32.mrb[0].mxu0
        %v4011 = vadd.f32 0.0, %v4010
        %v4012 = vpop.f32.mrb[0].mxu0
        %4013 = vmatprep.mubr.f32.mxu0 0.0
        %4014 = vmatmul.mubr.f32.gmra.mrb[0].mxu0 %v3912
        %v4015 = vpop.f32.mrb[0].mxu0
        %v4016 = vadd.f32 0.0, %v4015
        %v4017 = vpop.f32.mrb[0].mxu0
        %4018 = vdwg.mxu0
        %v4019 = vrcp.pop %v3651
        %v4020 = vrcp.pop %v3654
        %v4021 = vrcp.pop %v3657
        %v4022 = vrcp.pop %v3660
        %v4023 = vrcp.pop %v3663
        %v4024 = vrcp.pop %v3666
        %v4025 = vrcp.pop %v3669
        %v4026 = vrcp.pop %v3672
        %v4027 = vrcp.pop %v3675
        %v4028 = vrcp.pop %v3678
        %v4029 = vrcp.pop %v3681
        %v4030 = vrcp.pop %v3684
        %v4031 = vrcp.pop %v3687
        %v4032 = vrcp.pop %v3690
        %v4033 = vrcp.pop %v3693
        %v4034 = vrcp.pop %v3696
        %v4035 = vmul.f32 %v3820, %v4019
        %v4036 = vmul.f32 %v3825, %v4020
        %v4037 = vmul.f32 %v3830, %v4021
        %v4038 = vmul.f32 %v3835, %v4022
        %v4039 = vmul.f32 %v3840, %v4023
        %v4040 = vmul.f32 %v3845, %v4024
        %v4041 = vmul.f32 %v3850, %v4025
        %v4042 = vmul.f32 %v3855, %v4026
        %v4043 = vmul.f32 %v3981, %v4027
        %v4044 = vmul.f32 %v3986, %v4028
        %v4045 = vmul.f32 %v3991, %v4029
        %v4046 = vmul.f32 %v3996, %v4030
        %v4047 = vmul.f32 %v4001, %v4031
        %v4048 = vmul.f32 %v4006, %v4032
        %v4049 = vmul.f32 %v4011, %v4033
        %v4050 = vmul.f32 %v4016, %v4034
        %4067 = vrot.lane.b32.xlu0 %v4035, 24
        %v4068 = vpop.permute.xlu0 %4067
        %4069 = vrot.lane.b32.xlu0 %v4036, 24
        %v4070 = vpop.permute.xlu0 %4069
        %4071 = vrot.lane.b32.xlu0 %v4037, 24
        %v4072 = vpop.permute.xlu0 %4071
        %4073 = vrot.lane.b32.xlu0 %v4038, 24
        %v4074 = vpop.permute.xlu0 %4073
        %4075 = vrot.lane.b32.xlu0 %v4039, 24
        %v4076 = vpop.permute.xlu0 %4075
        %4077 = vrot.lane.b32.xlu0 %v4040, 24
        %v4078 = vpop.permute.xlu0 %4077
        %4079 = vrot.lane.b32.xlu0 %v4041, 24
        %v4080 = vpop.permute.xlu0 %4079
        %4081 = vrot.lane.b32.xlu0 %v4042, 24
        %v4082 = vpop.permute.xlu0 %4081
        %4083 = vrot.lane.b32.xlu0 %v4043, 24
        %v4084 = vpop.permute.xlu0 %4083
        %4085 = vrot.lane.b32.xlu0 %v4044, 24
        %v4086 = vpop.permute.xlu0 %4085
        %4087 = vrot.lane.b32.xlu0 %v4045, 24
        %v4088 = vpop.permute.xlu0 %4087
        %4089 = vrot.lane.b32.xlu0 %v4046, 24
        %v4090 = vpop.permute.xlu0 %4089
        %4091 = vrot.lane.b32.xlu0 %v4047, 24
        %v4092 = vpop.permute.xlu0 %4091
        %4093 = vrot.lane.b32.xlu0 %v4048, 24
        %v4094 = vpop.permute.xlu0 %4093
        %4095 = vrot.lane.b32.xlu0 %v4049, 24
        %v4096 = vpop.permute.xlu0 %4095
        %4097 = vrot.lane.b32.xlu0 %v4050, 24
        %v4098 = vpop.permute.xlu0 %4097
        %vm4115 = vcmask 261312
        %4116 = vst.msk [vmem:[#allocation2] sm:$0xff] %vm4115, %v4068
        %4117 = vst.msk [vmem:[#allocation2 + $0x8] sm:$0xff] %vm4115, %v4070
        %4118 = vst.msk [vmem:[#allocation2 + $0x10] sm:$0xff] %vm4115, %v4072
        %4119 = vst.msk [vmem:[#allocation2 + $0x18] sm:$0xff] %vm4115, %v4074
        %4120 = vst.msk [vmem:[#allocation2 + $0x20] sm:$0xff] %vm4115, %v4076
        %4121 = vst.msk [vmem:[#allocation2 + $0x28] sm:$0xff] %vm4115, %v4078
        %4122 = vst.msk [vmem:[#allocation2 + $0x30] sm:$0xff] %vm4115, %v4080
        %4123 = vst.msk [vmem:[#allocation2 + $0x38] sm:$0xff] %vm4115, %v4082
        %4124 = vst.msk [vmem:[#allocation2 + $0x80] sm:$0xff] %vm4115, %v4084
        %4125 = vst.msk [vmem:[#allocation2 + $0x88] sm:$0xff] %vm4115, %v4086
        %4126 = vst.msk [vmem:[#allocation2 + $0x90] sm:$0xff] %vm4115, %v4088
        %4127 = vst.msk [vmem:[#allocation2 + $0x98] sm:$0xff] %vm4115, %v4090
        %4128 = vst.msk [vmem:[#allocation2 + $0xa0] sm:$0xff] %vm4115, %v4092
        %4129 = vst.msk [vmem:[#allocation2 + $0xa8] sm:$0xff] %vm4115, %v4094
        %4130 = vst.msk [vmem:[#allocation2 + $0xb0] sm:$0xff] %vm4115, %v4096
        %4131 = vst.msk [vmem:[#allocation2 + $0xb8] sm:$0xff] %vm4115, %v4098
        %v4132 = vld [vmem:[%s196 + $0x8] sm:$0xff]
        %v4133 = vld [vmem:[%s196 + $0x18] sm:$0xff]
        %v4134 = vld [vmem:[%s196 + $0x28] sm:$0xff]
        %v4135 = vld [vmem:[%s196 + $0x38] sm:$0xff]
        %v4136 = vld [vmem:[%s196 + $0x48] sm:$0xff]
        %v4137 = vld [vmem:[%s196 + $0x58] sm:$0xff]
        %v4138 = vld [vmem:[%s196 + $0x68] sm:$0xff]
        %v4139 = vld [vmem:[%s196 + $0x78] sm:$0xff]
        %v4140 = vld [vmem:[%s196 + $0x88] sm:$0xff]
        %v4141 = vld [vmem:[%s196 + $0x98] sm:$0xff]
        %v4142 = vld [vmem:[%s196 + $0xa8] sm:$0xff]
        %v4143 = vld [vmem:[%s196 + $0xb8] sm:$0xff]
        %v4144 = vld [vmem:[%s196 + $0xc8] sm:$0xff]
        %v4145 = vld [vmem:[%s196 + $0xd8] sm:$0xff]
        %v4146 = vld [vmem:[%s196 + $0xe8] sm:$0xff]
        %v4147 = vld [vmem:[%s196 + $0xf8] sm:$0xff]
        %v4148 = vld [vmem:[%s250 + $0x8] sm:$0xff]
        %v4149 = vld [vmem:[%s250 + $0x18] sm:$0xff]
        %v4150 = vld [vmem:[%s250 + $0x28] sm:$0xff]
        %v4151 = vld [vmem:[%s250 + $0x38] sm:$0xff]
        %v4152 = vld [vmem:[%s250 + $0x48] sm:$0xff]
        %v4153 = vld [vmem:[%s250 + $0x58] sm:$0xff]
        %v4154 = vld [vmem:[%s250 + $0x68] sm:$0xff]
        %v4155 = vld [vmem:[%s250 + $0x78] sm:$0xff]
        %v4156 = vld [vmem:[%s250 + $0x88] sm:$0xff]
        %v4157 = vld [vmem:[%s250 + $0x98] sm:$0xff]
        %v4158 = vld [vmem:[%s250 + $0xa8] sm:$0xff]
        %v4159 = vld [vmem:[%s250 + $0xb8] sm:$0xff]
        %v4160 = vld [vmem:[%s250 + $0xc8] sm:$0xff]
        %v4161 = vld [vmem:[%s250 + $0xd8] sm:$0xff]
        %v4162 = vld [vmem:[%s250 + $0xe8] sm:$0xff]
        %v4163 = vld [vmem:[%s250 + $0xf8] sm:$0xff]
        %v4164 = vld [vmem:[%s267 + $0x8] sm:$0xff]
        %v4165 = vld [vmem:[%s267 + $0x18] sm:$0xff]
        %v4166 = vld [vmem:[%s267 + $0x28] sm:$0xff]
        %v4167 = vld [vmem:[%s267 + $0x38] sm:$0xff]
        %v4168 = vld [vmem:[%s267 + $0x48] sm:$0xff]
        %v4169 = vld [vmem:[%s267 + $0x58] sm:$0xff]
        %v4170 = vld [vmem:[%s267 + $0x68] sm:$0xff]
        %v4171 = vld [vmem:[%s267 + $0x78] sm:$0xff]
        %v4172 = vld [vmem:[%s267 + $0x88] sm:$0xff]
        %v4173 = vld [vmem:[%s267 + $0x98] sm:$0xff]
        %v4174 = vld [vmem:[%s267 + $0xa8] sm:$0xff]
        %v4175 = vld [vmem:[%s267 + $0xb8] sm:$0xff]
        %v4176 = vld [vmem:[%s267 + $0xc8] sm:$0xff]
        %v4177 = vld [vmem:[%s267 + $0xd8] sm:$0xff]
        %v4178 = vld [vmem:[%s267 + $0xe8] sm:$0xff]
        %v4179 = vld [vmem:[%s267 + $0xf8] sm:$0xff]
        %v4180 = vmul.f32 %v4132, 0.35355338
        %v4181 = vmul.f32 %v4133, 0.35355338
        %v4182 = vmul.f32 %v4134, 0.35355338
        %v4183 = vmul.f32 %v4135, 0.35355338
        %v4184 = vmul.f32 %v4136, 0.35355338
        %v4185 = vmul.f32 %v4137, 0.35355338
        %v4186 = vmul.f32 %v4138, 0.35355338
        %v4187 = vmul.f32 %v4139, 0.35355338
        %v4188 = vmul.f32 %v4140, 0.35355338
        %v4189 = vmul.f32 %v4141, 0.35355338
        %v4190 = vmul.f32 %v4142, 0.35355338
        %v4191 = vmul.f32 %v4143, 0.35355338
        %v4192 = vmul.f32 %v4144, 0.35355338
        %v4193 = vmul.f32 %v4145, 0.35355338
        %v4194 = vmul.f32 %v4146, 0.35355338
        %v4195 = vmul.f32 %v4147, 0.35355338
        %v4196 = vld [vmem:[#allocation3] sm:$0xff]
        %v4197 = vld [vmem:[#allocation3 + $0x8] sm:$0xff]
        %v4198 = vld [vmem:[#allocation3 + $0x10] sm:$0xff]
        %v4199 = vld [vmem:[#allocation3 + $0x18] sm:$0xff]
        %v4200 = vld [vmem:[#allocation3 + $0x20] sm:$0xff]
        %v4201 = vld [vmem:[#allocation3 + $0x28] sm:$0xff]
        %v4202 = vld [vmem:[#allocation3 + $0x30] sm:$0xff]
        %v4203 = vld [vmem:[#allocation3 + $0x38] sm:$0xff]
        %v4205 = vsel %vm308, %v4180, 0
        %v4208 = vsel %vm308, %v4181, 0
        %v4211 = vsel %vm308, %v4182, 0
        %v4214 = vsel %vm308, %v4183, 0
        %v4217 = vsel %vm308, %v4184, 0
        %v4220 = vsel %vm308, %v4185, 0
        %v4223 = vsel %vm308, %v4186, 0
        %v4226 = vsel %vm308, %v4187, 0
        %v4229 = vsel %vm308, %v4148, 0
        %v4232 = vsel %vm308, %v4149, 0
        %v4235 = vsel %vm308, %v4150, 0
        %v4238 = vsel %vm308, %v4151, 0
        %v4241 = vsel %vm308, %v4152, 0
        %v4244 = vsel %vm308, %v4153, 0
        %v4247 = vsel %vm308, %v4154, 0
        %v4250 = vsel %vm308, %v4155, 0
        %4252 = vmatprep.subr.mxu0 0.0
        %4253 = vmatpush1.xpose.msra.mxu0 %v4229
        %4254 = vmatprep.subr.mxu0 0.0
        %4255 = vmatpush1.xpose.msra.mxu0 %v4232
        %4256 = vmatprep.subr.mxu0 0.0
        %4257 = vmatpush1.xpose.msra.mxu0 %v4235
        %4258 = vmatprep.subr.mxu0 0.0
        %4259 = vmatpush1.xpose.msra.mxu0 %v4238
        %4260 = vmatprep.subr.mxu0 0.0
        %4261 = vmatpush1.xpose.msra.mxu0 %v4241
        %4262 = vmatprep.subr.mxu0 0.0
        %4263 = vmatpush1.xpose.msra.mxu0 %v4244
        %4264 = vmatprep.subr.mxu0 0.0
        %4265 = vmatpush1.xpose.msra.mxu0 %v4247
        %4266 = vmatprep.subr.mxu0 0.0
        %4267 = vmatpush1.xpose.msra.mxu0 %v4250
        %4268 = vmatprep.subr.mxu0 0.0
        %4269 = vmatpush1.xpose.msra.mxu0 0.0
        %4270 = vmatprep.subr.mxu0 0.0
        %4271 = vmatpush1.xpose.msra.mxu0 0.0
        %4272 = vmatprep.subr.mxu0 0.0
        %4273 = vmatpush1.xpose.msra.mxu0 0.0
        %4274 = vmatprep.subr.mxu0 0.0
        %4275 = vmatpush1.xpose.msra.mxu0 0.0
        %4276 = vmatprep.subr.mxu0 0.0
        %4277 = vmatpush1.xpose.msra.mxu0 0.0
        %4278 = vmatprep.subr.mxu0 0.0
        %4279 = vmatpush1.xpose.msra.mxu0 0.0
        %4280 = vmatprep.subr.mxu0 0.0
        %4281 = vmatpush1.xpose.msra.mxu0 0.0
        %4282 = vmatprep.subr.mxu0 0.0
        %4283 = vmatpush1.xpose.msra.mxu0 0.0
        %4284 = vmatprep.subr.mxu0 0.0
        %4285 = vmatpush1.xpose.msra.mxu0 0.0
        %4286 = vmatprep.subr.mxu0 0.0
        %4287 = vmatpush1.xpose.msra.mxu0 0.0
        %4288 = vmatprep.subr.mxu0 0.0
        %4289 = vmatpush1.xpose.msra.mxu0 0.0
        %4290 = vmatprep.subr.mxu0 0.0
        %4291 = vmatpush1.xpose.msra.mxu0 0.0
        %4292 = vmatprep.subr.mxu0 0.0
        %4293 = vmatpush1.xpose.msra.mxu0 0.0
        %4294 = vmatprep.subr.mxu0 0.0
        %4295 = vmatpush1.xpose.msra.mxu0 0.0
        %4296 = vmatprep.subr.mxu0 0.0
        %4297 = vmatpush1.xpose.msra.mxu0 0.0
        %4298 = vmatprep.subr.mxu0 0.0
        %4299 = vmatpush1.xpose.msra.mxu0 0.0
        %4300 = vmatprep.subr.mxu0 0.0
        %4301 = vmatpush1.xpose.msra.mxu0 0.0
        %4302 = vmatprep.subr.mxu0 0.0
        %4303 = vmatpush1.xpose.msra.mxu0 0.0
        %4304 = vmatprep.subr.mxu0 0.0
        %4305 = vmatpush1.xpose.msra.mxu0 0.0
        %4306 = vmatprep.subr.mxu0 0.0
        %4307 = vmatpush1.xpose.msra.mxu0 0.0
        %4308 = vmatprep.subr.mxu0 0.0
        %4309 = vmatpush1.xpose.msra.mxu0 0.0
        %4310 = vmatprep.subr.mxu0 0.0
        %4311 = vmatpush1.xpose.msra.mxu0 0.0
        %4312 = vmatprep.subr.mxu0 0.0
        %4313 = vmatpush1.xpose.msra.mxu0 0.0
        %4314 = vmatprep.subr.mxu0 0.0
        %4315 = vmatpush1.xpose.msra.mxu0 0.0
        %4316 = vmatprep.mubr.f32.mxu0 0.0
        %4317 = vmatmul.mubr.f32.gmra.mrb[0].mxu0 %v4205
        %v4318 = vpop.f32.mrb[0].mxu0
        %v4319 = vadd.f32 %v4196, %v4318
        %v4320 = vpop.f32.mrb[0].mxu0
        %4321 = vmatprep.mubr.f32.mxu0 0.0
        %4322 = vmatmul.mubr.f32.gmra.mrb[0].mxu0 %v4208
        %v4323 = vpop.f32.mrb[0].mxu0
        %v4324 = vadd.f32 %v4197, %v4323
        %v4325 = vpop.f32.mrb[0].mxu0
        %4326 = vmatprep.mubr.f32.mxu0 0.0
        %4327 = vmatmul.mubr.f32.gmra.mrb[0].mxu0 %v4211
        %v4328 = vpop.f32.mrb[0].mxu0
        %v4329 = vadd.f32 %v4198, %v4328
        %v4330 = vpop.f32.mrb[0].mxu0
        %4331 = vmatprep.mubr.f32.mxu0 0.0
        %4332 = vmatmul.mubr.f32.gmra.mrb[0].mxu0 %v4214
        %v4333 = vpop.f32.mrb[0].mxu0
        %v4334 = vadd.f32 %v4199, %v4333
        %v4335 = vpop.f32.mrb[0].mxu0
        %4336 = vmatprep.mubr.f32.mxu0 0.0
        %4337 = vmatmul.mubr.f32.gmra.mrb[0].mxu0 %v4217
        %v4338 = vpop.f32.mrb[0].mxu0
        %v4339 = vadd.f32 %v4200, %v4338
        %v4340 = vpop.f32.mrb[0].mxu0
        %4341 = vmatprep.mubr.f32.mxu0 0.0
        %4342 = vmatmul.mubr.f32.gmra.mrb[0].mxu0 %v4220
        %v4343 = vpop.f32.mrb[0].mxu0
        %v4344 = vadd.f32 %v4201, %v4343
        %v4345 = vpop.f32.mrb[0].mxu0
        %4346 = vmatprep.mubr.f32.mxu0 0.0
        %4347 = vmatmul.mubr.f32.gmra.mrb[0].mxu0 %v4223
        %v4348 = vpop.f32.mrb[0].mxu0
        %v4349 = vadd.f32 %v4202, %v4348
        %v4350 = vpop.f32.mrb[0].mxu0
        %4351 = vmatprep.mubr.f32.mxu0 0.0
        %4352 = vmatmul.mubr.f32.gmra.mrb[0].mxu0 %v4226
        %v4353 = vpop.f32.mrb[0].mxu0
        %v4354 = vadd.f32 %v4203, %v4353
        %v4355 = vpop.f32.mrb[0].mxu0
        %4356 = vdwg.mxu0
        %v4358 = vsel %vm308, %v4188, 0
        %v4361 = vsel %vm308, %v4189, 0
        %v4364 = vsel %vm308, %v4190, 0
        %v4367 = vsel %vm308, %v4191, 0
        %v4370 = vsel %vm308, %v4192, 0
        %v4373 = vsel %vm308, %v4193, 0
        %v4376 = vsel %vm308, %v4194, 0
        %v4379 = vsel %vm308, %v4195, 0
        %v4382 = vsel %vm308, %v4156, 0
        %v4385 = vsel %vm308, %v4157, 0
        %v4388 = vsel %vm308, %v4158, 0
        %v4391 = vsel %vm308, %v4159, 0
        %v4394 = vsel %vm308, %v4160, 0
        %v4397 = vsel %vm308, %v4161, 0
        %v4400 = vsel %vm308, %v4162, 0
        %v4403 = vsel %vm308, %v4163, 0
        %4405 = vmatprep.subr.mxu0 0.0
        %4406 = vmatpush1.xpose.msra.mxu0 %v4382
        %4407 = vmatprep.subr.mxu0 0.0
        %4408 = vmatpush1.xpose.msra.mxu0 %v4385
        %4409 = vmatprep.subr.mxu0 0.0
        %4410 = vmatpush1.xpose.msra.mxu0 %v4388
        %4411 = vmatprep.subr.mxu0 0.0
        %4412 = vmatpush1.xpose.msra.mxu0 %v4391
        %4413 = vmatprep.subr.mxu0 0.0
        %4414 = vmatpush1.xpose.msra.mxu0 %v4394
        %4415 = vmatprep.subr.mxu0 0.0
        %4416 = vmatpush1.xpose.msra.mxu0 %v4397
        %4417 = vmatprep.subr.mxu0 0.0
        %4418 = vmatpush1.xpose.msra.mxu0 %v4400
        %4419 = vmatprep.subr.mxu0 0.0
        %4420 = vmatpush1.xpose.msra.mxu0 %v4403
        %4421 = vmatprep.subr.mxu0 0.0
        %4422 = vmatpush1.xpose.msra.mxu0 0.0
        %4423 = vmatprep.subr.mxu0 0.0
        %4424 = vmatpush1.xpose.msra.mxu0 0.0
        %4425 = vmatprep.subr.mxu0 0.0
        %4426 = vmatpush1.xpose.msra.mxu0 0.0
        %4427 = vmatprep.subr.mxu0 0.0
        %4428 = vmatpush1.xpose.msra.mxu0 0.0
        %4429 = vmatprep.subr.mxu0 0.0
        %4430 = vmatpush1.xpose.msra.mxu0 0.0
        %4431 = vmatprep.subr.mxu0 0.0
        %4432 = vmatpush1.xpose.msra.mxu0 0.0
        %4433 = vmatprep.subr.mxu0 0.0
        %4434 = vmatpush1.xpose.msra.mxu0 0.0
        %4435 = vmatprep.subr.mxu0 0.0
        %4436 = vmatpush1.xpose.msra.mxu0 0.0
        %4437 = vmatprep.subr.mxu0 0.0
        %4438 = vmatpush1.xpose.msra.mxu0 0.0
        %4439 = vmatprep.subr.mxu0 0.0
        %4440 = vmatpush1.xpose.msra.mxu0 0.0
        %4441 = vmatprep.subr.mxu0 0.0
        %4442 = vmatpush1.xpose.msra.mxu0 0.0
        %4443 = vmatprep.subr.mxu0 0.0
        %4444 = vmatpush1.xpose.msra.mxu0 0.0
        %4445 = vmatprep.subr.mxu0 0.0
        %4446 = vmatpush1.xpose.msra.mxu0 0.0
        %4447 = vmatprep.subr.mxu0 0.0
        %4448 = vmatpush1.xpose.msra.mxu0 0.0
        %4449 = vmatprep.subr.mxu0 0.0
        %4450 = vmatpush1.xpose.msra.mxu0 0.0
        %4451 = vmatprep.subr.mxu0 0.0
        %4452 = vmatpush1.xpose.msra.mxu0 0.0
        %4453 = vmatprep.subr.mxu0 0.0
        %4454 = vmatpush1.xpose.msra.mxu0 0.0
        %4455 = vmatprep.subr.mxu0 0.0
        %4456 = vmatpush1.xpose.msra.mxu0 0.0
        %4457 = vmatprep.subr.mxu0 0.0
        %4458 = vmatpush1.xpose.msra.mxu0 0.0
        %4459 = vmatprep.subr.mxu0 0.0
        %4460 = vmatpush1.xpose.msra.mxu0 0.0
        %4461 = vmatprep.subr.mxu0 0.0
        %4462 = vmatpush1.xpose.msra.mxu0 0.0
        %4463 = vmatprep.subr.mxu0 0.0
        %4464 = vmatpush1.xpose.msra.mxu0 0.0
        %4465 = vmatprep.subr.mxu0 0.0
        %4466 = vmatpush1.xpose.msra.mxu0 0.0
        %4467 = vmatprep.subr.mxu0 0.0
        %4468 = vmatpush1.xpose.msra.mxu0 0.0
        %4469 = vmatprep.mubr.f32.mxu0 0.0
        %4470 = vmatmul.mubr.f32.gmra.mrb[0].mxu0 %v4358
        %v4471 = vpop.f32.mrb[0].mxu0
        %v4472 = vadd.f32 %v4196, %v4471
        %v4473 = vpop.f32.mrb[0].mxu0
        %4474 = vmatprep.mubr.f32.mxu0 0.0
        %4475 = vmatmul.mubr.f32.gmra.mrb[0].mxu0 %v4361
        %v4476 = vpop.f32.mrb[0].mxu0
        %v4477 = vadd.f32 %v4197, %v4476
        %v4478 = vpop.f32.mrb[0].mxu0
        %4479 = vmatprep.mubr.f32.mxu0 0.0
        %4480 = vmatmul.mubr.f32.gmra.mrb[0].mxu0 %v4364
        %v4481 = vpop.f32.mrb[0].mxu0
        %v4482 = vadd.f32 %v4198, %v4481
        %v4483 = vpop.f32.mrb[0].mxu0
        %4484 = vmatprep.mubr.f32.mxu0 0.0
        %4485 = vmatmul.mubr.f32.gmra.mrb[0].mxu0 %v4367
        %v4486 = vpop.f32.mrb[0].mxu0
        %v4487 = vadd.f32 %v4199, %v4486
        %v4488 = vpop.f32.mrb[0].mxu0
        %4489 = vmatprep.mubr.f32.mxu0 0.0
        %4490 = vmatmul.mubr.f32.gmra.mrb[0].mxu0 %v4370
        %v4491 = vpop.f32.mrb[0].mxu0
        %v4492 = vadd.f32 %v4200, %v4491
        %v4493 = vpop.f32.mrb[0].mxu0
        %4494 = vmatprep.mubr.f32.mxu0 0.0
        %4495 = vmatmul.mubr.f32.gmra.mrb[0].mxu0 %v4373
        %v4496 = vpop.f32.mrb[0].mxu0
        %v4497 = vadd.f32 %v4201, %v4496
        %v4498 = vpop.f32.mrb[0].mxu0
        %4499 = vmatprep.mubr.f32.mxu0 0.0
        %4500 = vmatmul.mubr.f32.gmra.mrb[0].mxu0 %v4376
        %v4501 = vpop.f32.mrb[0].mxu0
        %v4502 = vadd.f32 %v4202, %v4501
        %v4503 = vpop.f32.mrb[0].mxu0
        %4504 = vmatprep.mubr.f32.mxu0 0.0
        %4505 = vmatmul.mubr.f32.gmra.mrb[0].mxu0 %v4379
        %v4506 = vpop.f32.mrb[0].mxu0
        %v4507 = vadd.f32 %v4203, %v4506
        %v4508 = vpop.f32.mrb[0].mxu0
        %4509 = vdwg.mxu0
        %v4510 = vsel %vm615, %v4319, -inf
        %4511 = vmax.xlane.f32.xlu0 %v4510
        %v4512 = vpop.xlane.xlu0 %4511
        %v4513 = vsel %vm615, %v4324, -inf
        %4514 = vmax.xlane.f32.xlu0 %v4513
        %v4515 = vpop.xlane.xlu0 %4514
        %v4516 = vsel %vm615, %v4329, -inf
        %4517 = vmax.xlane.f32.xlu0 %v4516
        %v4518 = vpop.xlane.xlu0 %4517
        %v4519 = vsel %vm615, %v4334, -inf
        %4520 = vmax.xlane.f32.xlu0 %v4519
        %v4521 = vpop.xlane.xlu0 %4520
        %v4522 = vsel %vm615, %v4339, -inf
        %4523 = vmax.xlane.f32.xlu0 %v4522
        %v4524 = vpop.xlane.xlu0 %4523
        %v4525 = vsel %vm615, %v4344, -inf
        %4526 = vmax.xlane.f32.xlu0 %v4525
        %v4527 = vpop.xlane.xlu0 %4526
        %v4528 = vsel %vm615, %v4349, -inf
        %4529 = vmax.xlane.f32.xlu0 %v4528
        %v4530 = vpop.xlane.xlu0 %4529
        %v4531 = vsel %vm615, %v4354, -inf
        %4532 = vmax.xlane.f32.xlu0 %v4531
        %v4533 = vpop.xlane.xlu0 %4532
        %v4534 = vsel %vm615, %v4472, -inf
        %4535 = vmax.xlane.f32.xlu0 %v4534
        %v4536 = vpop.xlane.xlu0 %4535
        %v4537 = vsel %vm615, %v4477, -inf
        %4538 = vmax.xlane.f32.xlu0 %v4537
        %v4539 = vpop.xlane.xlu0 %4538
        %v4540 = vsel %vm615, %v4482, -inf
        %4541 = vmax.xlane.f32.xlu0 %v4540
        %v4542 = vpop.xlane.xlu0 %4541
        %v4543 = vsel %vm615, %v4487, -inf
        %4544 = vmax.xlane.f32.xlu0 %v4543
        %v4545 = vpop.xlane.xlu0 %4544
        %v4546 = vsel %vm615, %v4492, -inf
        %4547 = vmax.xlane.f32.xlu0 %v4546
        %v4548 = vpop.xlane.xlu0 %4547
        %v4549 = vsel %vm615, %v4497, -inf
        %4550 = vmax.xlane.f32.xlu0 %v4549
        %v4551 = vpop.xlane.xlu0 %4550
        %v4552 = vsel %vm615, %v4502, -inf
        %4553 = vmax.xlane.f32.xlu0 %v4552
        %v4554 = vpop.xlane.xlu0 %4553
        %v4555 = vsel %vm615, %v4507, -inf
        %4556 = vmax.xlane.f32.xlu0 %v4555
        %v4557 = vpop.xlane.xlu0 %4556
        %v4558 = vsub.f32 %v4319, %v4512
        %v4559 = vsub.f32 %v4324, %v4515
        %v4560 = vsub.f32 %v4329, %v4518
        %v4561 = vsub.f32 %v4334, %v4521
        %v4562 = vsub.f32 %v4339, %v4524
        %v4563 = vsub.f32 %v4344, %v4527
        %v4564 = vsub.f32 %v4349, %v4530
        %v4565 = vsub.f32 %v4354, %v4533
        %v4566 = vsub.f32 %v4472, %v4536
        %v4567 = vsub.f32 %v4477, %v4539
        %v4568 = vsub.f32 %v4482, %v4542
        %v4569 = vsub.f32 %v4487, %v4545
        %v4570 = vsub.f32 %v4492, %v4548
        %v4571 = vsub.f32 %v4497, %v4551
        %v4572 = vsub.f32 %v4502, %v4554
        %v4573 = vsub.f32 %v4507, %v4557
        %v4574 = vmul.f32 %v4558, 1.442695
        %v4575 = vpow.pop %v4574
        %v4576 = vmul.f32 %v4559, 1.442695
        %v4577 = vpow.pop %v4576
        %v4578 = vmul.f32 %v4560, 1.442695
        %v4579 = vpow.pop %v4578
        %v4580 = vmul.f32 %v4561, 1.442695
        %v4581 = vpow.pop %v4580
        %v4582 = vmul.f32 %v4562, 1.442695
        %v4583 = vpow.pop %v4582
        %v4584 = vmul.f32 %v4563, 1.442695
        %v4585 = vpow.pop %v4584
        %v4586 = vmul.f32 %v4564, 1.442695
        %v4587 = vpow.pop %v4586
        %v4588 = vmul.f32 %v4565, 1.442695
        %v4589 = vpow.pop %v4588
        %v4590 = vmul.f32 %v4566, 1.442695
        %v4591 = vpow.pop %v4590
        %v4592 = vmul.f32 %v4567, 1.442695
        %v4593 = vpow.pop %v4592
        %v4594 = vmul.f32 %v4568, 1.442695
        %v4595 = vpow.pop %v4594
        %v4596 = vmul.f32 %v4569, 1.442695
        %v4597 = vpow.pop %v4596
        %v4598 = vmul.f32 %v4570, 1.442695
        %v4599 = vpow.pop %v4598
        %v4600 = vmul.f32 %v4571, 1.442695
        %v4601 = vpow.pop %v4600
        %v4602 = vmul.f32 %v4572, 1.442695
        %v4603 = vpow.pop %v4602
        %v4604 = vmul.f32 %v4573, 1.442695
        %v4605 = vpow.pop %v4604
        %v4606 = vsel %vm615, %v4575, 0.0
        %4607 = vadd.xlane.f32.xlu0 %v4606
        %v4608 = vpop.xlane.xlu0 %4607
        %v4609 = vsel %vm615, %v4577, 0.0
        %4610 = vadd.xlane.f32.xlu0 %v4609
        %v4611 = vpop.xlane.xlu0 %4610
        %v4612 = vsel %vm615, %v4579, 0.0
        %4613 = vadd.xlane.f32.xlu0 %v4612
        %v4614 = vpop.xlane.xlu0 %4613
        %v4615 = vsel %vm615, %v4581, 0.0
        %4616 = vadd.xlane.f32.xlu0 %v4615
        %v4617 = vpop.xlane.xlu0 %4616
        %v4618 = vsel %vm615, %v4583, 0.0
        %4619 = vadd.xlane.f32.xlu0 %v4618
        %v4620 = vpop.xlane.xlu0 %4619
        %v4621 = vsel %vm615, %v4585, 0.0
        %4622 = vadd.xlane.f32.xlu0 %v4621
        %v4623 = vpop.xlane.xlu0 %4622
        %v4624 = vsel %vm615, %v4587, 0.0
        %4625 = vadd.xlane.f32.xlu0 %v4624
        %v4626 = vpop.xlane.xlu0 %4625
        %v4627 = vsel %vm615, %v4589, 0.0
        %4628 = vadd.xlane.f32.xlu0 %v4627
        %v4629 = vpop.xlane.xlu0 %4628
        %v4630 = vsel %vm615, %v4591, 0.0
        %4631 = vadd.xlane.f32.xlu0 %v4630
        %v4632 = vpop.xlane.xlu0 %4631
        %v4633 = vsel %vm615, %v4593, 0.0
        %4634 = vadd.xlane.f32.xlu0 %v4633
        %v4635 = vpop.xlane.xlu0 %4634
        %v4636 = vsel %vm615, %v4595, 0.0
        %4637 = vadd.xlane.f32.xlu0 %v4636
        %v4638 = vpop.xlane.xlu0 %4637
        %v4639 = vsel %vm615, %v4597, 0.0
        %4640 = vadd.xlane.f32.xlu0 %v4639
        %v4641 = vpop.xlane.xlu0 %4640
        %v4642 = vsel %vm615, %v4599, 0.0
        %4643 = vadd.xlane.f32.xlu0 %v4642
        %v4644 = vpop.xlane.xlu0 %4643
        %v4645 = vsel %vm615, %v4601, 0.0
        %4646 = vadd.xlane.f32.xlu0 %v4645
        %v4647 = vpop.xlane.xlu0 %4646
        %v4648 = vsel %vm615, %v4603, 0.0
        %4649 = vadd.xlane.f32.xlu0 %v4648
        %v4650 = vpop.xlane.xlu0 %4649
        %v4651 = vsel %vm615, %v4605, 0.0
        %4652 = vadd.xlane.f32.xlu0 %v4651
        %v4653 = vpop.xlane.xlu0 %4652
        %v4655 = vsel %vm615, %v4575, 0
        %v4658 = vsel %vm615, %v4577, 0
        %v4661 = vsel %vm615, %v4579, 0
        %v4664 = vsel %vm615, %v4581, 0
        %v4667 = vsel %vm615, %v4583, 0
        %v4670 = vsel %vm615, %v4585, 0
        %v4673 = vsel %vm615, %v4587, 0
        %v4676 = vsel %vm615, %v4589, 0
        %4678 = vmatprep.subr.mxu0 0.0
        %4679 = vmatpush1.msra.mxu0 %v4164
        %4680 = vmatprep.subr.mxu0 0.0
        %4681 = vmatpush1.msra.mxu0 %v4165
        %4682 = vmatprep.subr.mxu0 0.0
        %4683 = vmatpush1.msra.mxu0 %v4166
        %4684 = vmatprep.subr.mxu0 0.0
        %4685 = vmatpush1.msra.mxu0 %v4167
        %4686 = vmatprep.subr.mxu0 0.0
        %4687 = vmatpush1.msra.mxu0 %v4168
        %4688 = vmatprep.subr.mxu0 0.0
        %4689 = vmatpush1.msra.mxu0 %v4169
        %4690 = vmatprep.subr.mxu0 0.0
        %4691 = vmatpush1.msra.mxu0 %v4170
        %4692 = vmatprep.subr.mxu0 0.0
        %4693 = vmatpush1.msra.mxu0 %v4171
        %4694 = vmatprep.subr.mxu0 0.0
        %4695 = vmatpush1.msra.mxu0 0.0
        %4696 = vmatprep.subr.mxu0 0.0
        %4697 = vmatpush1.msra.mxu0 0.0
        %4698 = vmatprep.subr.mxu0 0.0
        %4699 = vmatpush1.msra.mxu0 0.0
        %4700 = vmatprep.subr.mxu0 0.0
        %4701 = vmatpush1.msra.mxu0 0.0
        %4702 = vmatprep.subr.mxu0 0.0
        %4703 = vmatpush1.msra.mxu0 0.0
        %4704 = vmatprep.subr.mxu0 0.0
        %4705 = vmatpush1.msra.mxu0 0.0
        %4706 = vmatprep.subr.mxu0 0.0
        %4707 = vmatpush1.msra.mxu0 0.0
        %4708 = vmatprep.subr.mxu0 0.0
        %4709 = vmatpush1.msra.mxu0 0.0
        %4710 = vmatprep.subr.mxu0 0.0
        %4711 = vmatpush1.msra.mxu0 0.0
        %4712 = vmatprep.subr.mxu0 0.0
        %4713 = vmatpush1.msra.mxu0 0.0
        %4714 = vmatprep.subr.mxu0 0.0
        %4715 = vmatpush1.msra.mxu0 0.0
        %4716 = vmatprep.subr.mxu0 0.0
        %4717 = vmatpush1.msra.mxu0 0.0
        %4718 = vmatprep.subr.mxu0 0.0
        %4719 = vmatpush1.msra.mxu0 0.0
        %4720 = vmatprep.subr.mxu0 0.0
        %4721 = vmatpush1.msra.mxu0 0.0
        %4722 = vmatprep.subr.mxu0 0.0
        %4723 = vmatpush1.msra.mxu0 0.0
        %4724 = vmatprep.subr.mxu0 0.0
        %4725 = vmatpush1.msra.mxu0 0.0
        %4726 = vmatprep.subr.mxu0 0.0
        %4727 = vmatpush1.msra.mxu0 0.0
        %4728 = vmatprep.subr.mxu0 0.0
        %4729 = vmatpush1.msra.mxu0 0.0
        %4730 = vmatprep.subr.mxu0 0.0
        %4731 = vmatpush1.msra.mxu0 0.0
        %4732 = vmatprep.subr.mxu0 0.0
        %4733 = vmatpush1.msra.mxu0 0.0
        %4734 = vmatprep.subr.mxu0 0.0
        %4735 = vmatpush1.msra.mxu0 0.0
        %4736 = vmatprep.subr.mxu0 0.0
        %4737 = vmatpush1.msra.mxu0 0.0
        %4738 = vmatprep.subr.mxu0 0.0
        %4739 = vmatpush1.msra.mxu0 0.0
        %4740 = vmatprep.subr.mxu0 0.0
        %4741 = vmatpush1.msra.mxu0 0.0
        %4742 = vmatprep.mubr.f32.mxu0 0.0
        %4743 = vmatmul.mubr.f32.gmra.mrb[0].mxu0 %v4655
        %v4744 = vpop.f32.mrb[0].mxu0
        %v4745 = vadd.f32 0.0, %v4744
        %v4746 = vpop.f32.mrb[0].mxu0
        %4747 = vmatprep.mubr.f32.mxu0 0.0
        %4748 = vmatmul.mubr.f32.gmra.mrb[0].mxu0 %v4658
        %v4749 = vpop.f32.mrb[0].mxu0
        %v4750 = vadd.f32 0.0, %v4749
        %v4751 = vpop.f32.mrb[0].mxu0
        %4752 = vmatprep.mubr.f32.mxu0 0.0
        %4753 = vmatmul.mubr.f32.gmra.mrb[0].mxu0 %v4661
        %v4754 = vpop.f32.mrb[0].mxu0
        %v4755 = vadd.f32 0.0, %v4754
        %v4756 = vpop.f32.mrb[0].mxu0
        %4757 = vmatprep.mubr.f32.mxu0 0.0
        %4758 = vmatmul.mubr.f32.gmra.mrb[0].mxu0 %v4664
        %v4759 = vpop.f32.mrb[0].mxu0
        %v4760 = vadd.f32 0.0, %v4759
        %v4761 = vpop.f32.mrb[0].mxu0
        %4762 = vmatprep.mubr.f32.mxu0 0.0
        %4763 = vmatmul.mubr.f32.gmra.mrb[0].mxu0 %v4667
        %v4764 = vpop.f32.mrb[0].mxu0
        %v4765 = vadd.f32 0.0, %v4764
        %v4766 = vpop.f32.mrb[0].mxu0
        %4767 = vmatprep.mubr.f32.mxu0 0.0
        %4768 = vmatmul.mubr.f32.gmra.mrb[0].mxu0 %v4670
        %v4769 = vpop.f32.mrb[0].mxu0
        %v4770 = vadd.f32 0.0, %v4769
        %v4771 = vpop.f32.mrb[0].mxu0
        %4772 = vmatprep.mubr.f32.mxu0 0.0
        %4773 = vmatmul.mubr.f32.gmra.mrb[0].mxu0 %v4673
        %v4774 = vpop.f32.mrb[0].mxu0
        %v4775 = vadd.f32 0.0, %v4774
        %v4776 = vpop.f32.mrb[0].mxu0
        %4777 = vmatprep.mubr.f32.mxu0 0.0
        %4778 = vmatmul.mubr.f32.gmra.mrb[0].mxu0 %v4676
        %v4779 = vpop.f32.mrb[0].mxu0
        %v4780 = vadd.f32 0.0, %v4779
        %v4781 = vpop.f32.mrb[0].mxu0
        %4782 = vdwg.mxu0
        %v4784 = vsel %vm615, %v4591, 0
        %v4787 = vsel %vm615, %v4593, 0
        %v4790 = vsel %vm615, %v4595, 0
        %v4793 = vsel %vm615, %v4597, 0
        %v4796 = vsel %vm615, %v4599, 0
        %v4799 = vsel %vm615, %v4601, 0
        %v4802 = vsel %vm615, %v4603, 0
        %v4805 = vsel %vm615, %v4605, 0
        %4807 = vmatprep.subr.mxu0 0.0
        %4808 = vmatpush1.msra.mxu0 %v4172
        %4809 = vmatprep.subr.mxu0 0.0
        %4810 = vmatpush1.msra.mxu0 %v4173
        %4811 = vmatprep.subr.mxu0 0.0
        %4812 = vmatpush1.msra.mxu0 %v4174
        %4813 = vmatprep.subr.mxu0 0.0
        %4814 = vmatpush1.msra.mxu0 %v4175
        %4815 = vmatprep.subr.mxu0 0.0
        %4816 = vmatpush1.msra.mxu0 %v4176
        %4817 = vmatprep.subr.mxu0 0.0
        %4818 = vmatpush1.msra.mxu0 %v4177
        %4819 = vmatprep.subr.mxu0 0.0
        %4820 = vmatpush1.msra.mxu0 %v4178
        %4821 = vmatprep.subr.mxu0 0.0
        %4822 = vmatpush1.msra.mxu0 %v4179
        %4823 = vmatprep.subr.mxu0 0.0
        %4824 = vmatpush1.msra.mxu0 0.0
        %4825 = vmatprep.subr.mxu0 0.0
        %4826 = vmatpush1.msra.mxu0 0.0
        %4827 = vmatprep.subr.mxu0 0.0
        %4828 = vmatpush1.msra.mxu0 0.0
        %4829 = vmatprep.subr.mxu0 0.0
        %4830 = vmatpush1.msra.mxu0 0.0
        %4831 = vmatprep.subr.mxu0 0.0
        %4832 = vmatpush1.msra.mxu0 0.0
        %4833 = vmatprep.subr.mxu0 0.0
        %4834 = vmatpush1.msra.mxu0 0.0
        %4835 = vmatprep.subr.mxu0 0.0
        %4836 = vmatpush1.msra.mxu0 0.0
        %4837 = vmatprep.subr.mxu0 0.0
        %4838 = vmatpush1.msra.mxu0 0.0
        %4839 = vmatprep.subr.mxu0 0.0
        %4840 = vmatpush1.msra.mxu0 0.0
        %4841 = vmatprep.subr.mxu0 0.0
        %4842 = vmatpush1.msra.mxu0 0.0
        %4843 = vmatprep.subr.mxu0 0.0
        %4844 = vmatpush1.msra.mxu0 0.0
        %4845 = vmatprep.subr.mxu0 0.0
        %4846 = vmatpush1.msra.mxu0 0.0
        %4847 = vmatprep.subr.mxu0 0.0
        %4848 = vmatpush1.msra.mxu0 0.0
        %4849 = vmatprep.subr.mxu0 0.0
        %4850 = vmatpush1.msra.mxu0 0.0
        %4851 = vmatprep.subr.mxu0 0.0
        %4852 = vmatpush1.msra.mxu0 0.0
        %4853 = vmatprep.subr.mxu0 0.0
        %4854 = vmatpush1.msra.mxu0 0.0
        %4855 = vmatprep.subr.mxu0 0.0
        %4856 = vmatpush1.msra.mxu0 0.0
        %4857 = vmatprep.subr.mxu0 0.0
        %4858 = vmatpush1.msra.mxu0 0.0
        %4859 = vmatprep.subr.mxu0 0.0
        %4860 = vmatpush1.msra.mxu0 0.0
        %4861 = vmatprep.subr.mxu0 0.0
        %4862 = vmatpush1.msra.mxu0 0.0
        %4863 = vmatprep.subr.mxu0 0.0
        %4864 = vmatpush1.msra.mxu0 0.0
        %4865 = vmatprep.subr.mxu0 0.0
        %4866 = vmatpush1.msra.mxu0 0.0
        %4867 = vmatprep.subr.mxu0 0.0
        %4868 = vmatpush1.msra.mxu0 0.0
        %4869 = vmatprep.subr.mxu0 0.0
        %4870 = vmatpush1.msra.mxu0 0.0
        %4871 = vmatprep.mubr.f32.mxu0 0.0
        %4872 = vmatmul.mubr.f32.gmra.mrb[0].mxu0 %v4784
        %v4873 = vpop.f32.mrb[0].mxu0
        %v4874 = vadd.f32 0.0, %v4873
        %v4875 = vpop.f32.mrb[0].mxu0
        %4876 = vmatprep.mubr.f32.mxu0 0.0
        %4877 = vmatmul.mubr.f32.gmra.mrb[0].mxu0 %v4787
        %v4878 = vpop.f32.mrb[0].mxu0
        %v4879 = vadd.f32 0.0, %v4878
        %v4880 = vpop.f32.mrb[0].mxu0
        %4881 = vmatprep.mubr.f32.mxu0 0.0
        %4882 = vmatmul.mubr.f32.gmra.mrb[0].mxu0 %v4790
        %v4883 = vpop.f32.mrb[0].mxu0
        %v4884 = vadd.f32 0.0, %v4883
        %v4885 = vpop.f32.mrb[0].mxu0
        %4886 = vmatprep.mubr.f32.mxu0 0.0
        %4887 = vmatmul.mubr.f32.gmra.mrb[0].mxu0 %v4793
        %v4888 = vpop.f32.mrb[0].mxu0
        %v4889 = vadd.f32 0.0, %v4888
        %v4890 = vpop.f32.mrb[0].mxu0
        %4891 = vmatprep.mubr.f32.mxu0 0.0
        %4892 = vmatmul.mubr.f32.gmra.mrb[0].mxu0 %v4796
        %v4893 = vpop.f32.mrb[0].mxu0
        %v4894 = vadd.f32 0.0, %v4893
        %v4895 = vpop.f32.mrb[0].mxu0
        %4896 = vmatprep.mubr.f32.mxu0 0.0
        %4897 = vmatmul.mubr.f32.gmra.mrb[0].mxu0 %v4799
        %v4898 = vpop.f32.mrb[0].mxu0
        %v4899 = vadd.f32 0.0, %v4898
        %v4900 = vpop.f32.mrb[0].mxu0
        %4901 = vmatprep.mubr.f32.mxu0 0.0
        %4902 = vmatmul.mubr.f32.gmra.mrb[0].mxu0 %v4802
        %v4903 = vpop.f32.mrb[0].mxu0
        %v4904 = vadd.f32 0.0, %v4903
        %v4905 = vpop.f32.mrb[0].mxu0
        %4906 = vmatprep.mubr.f32.mxu0 0.0
        %4907 = vmatmul.mubr.f32.gmra.mrb[0].mxu0 %v4805
        %v4908 = vpop.f32.mrb[0].mxu0
        %v4909 = vadd.f32 0.0, %v4908
        %v4910 = vpop.f32.mrb[0].mxu0
        %4911 = vdwg.mxu0
        %v4912 = vrcp.pop %v4608
        %v4913 = vrcp.pop %v4611
        %v4914 = vrcp.pop %v4614
        %v4915 = vrcp.pop %v4617
        %v4916 = vrcp.pop %v4620
        %v4917 = vrcp.pop %v4623
        %v4918 = vrcp.pop %v4626
        %v4919 = vrcp.pop %v4629
        %v4920 = vrcp.pop %v4632
        %v4921 = vrcp.pop %v4635
        %v4922 = vrcp.pop %v4638
        %v4923 = vrcp.pop %v4641
        %v4924 = vrcp.pop %v4644
        %v4925 = vrcp.pop %v4647
        %v4926 = vrcp.pop %v4650
        %v4927 = vrcp.pop %v4653
        %v4928 = vmul.f32 %v4745, %v4912
        %v4929 = vmul.f32 %v4750, %v4913
        %v4930 = vmul.f32 %v4755, %v4914
        %v4931 = vmul.f32 %v4760, %v4915
        %v4932 = vmul.f32 %v4765, %v4916
        %v4933 = vmul.f32 %v4770, %v4917
        %v4934 = vmul.f32 %v4775, %v4918
        %v4935 = vmul.f32 %v4780, %v4919
        %v4936 = vmul.f32 %v4874, %v4920
        %v4937 = vmul.f32 %v4879, %v4921
        %v4938 = vmul.f32 %v4884, %v4922
        %v4939 = vmul.f32 %v4889, %v4923
        %v4940 = vmul.f32 %v4894, %v4924
        %v4941 = vmul.f32 %v4899, %v4925
        %v4942 = vmul.f32 %v4904, %v4926
        %v4943 = vmul.f32 %v4909, %v4927
        %s4944 = scalar_lea.vmem [#allocation2], 64
        %4945 = vst.msk [vmem:[%s4944] sm:$0xff] %vm308, %v4928
        %4946 = vst.msk [vmem:[%s4944 + $0x8] sm:$0xff] %vm308, %v4929
        %4947 = vst.msk [vmem:[%s4944 + $0x10] sm:$0xff] %vm308, %v4930
        %4948 = vst.msk [vmem:[%s4944 + $0x18] sm:$0xff] %vm308, %v4931
        %4949 = vst.msk [vmem:[%s4944 + $0x20] sm:$0xff] %vm308, %v4932
        %4950 = vst.msk [vmem:[%s4944 + $0x28] sm:$0xff] %vm308, %v4933
        %4951 = vst.msk [vmem:[%s4944 + $0x30] sm:$0xff] %vm308, %v4934
        %4952 = vst.msk [vmem:[%s4944 + $0x38] sm:$0xff] %vm308, %v4935
        %4953 = vst.msk [vmem:[%s4944 + $0x80] sm:$0xff] %vm308, %v4936
        %4954 = vst.msk [vmem:[%s4944 + $0x88] sm:$0xff] %vm308, %v4937
        %4955 = vst.msk [vmem:[%s4944 + $0x90] sm:$0xff] %vm308, %v4938
        %4956 = vst.msk [vmem:[%s4944 + $0x98] sm:$0xff] %vm308, %v4939
        %4957 = vst.msk [vmem:[%s4944 + $0xa0] sm:$0xff] %vm308, %v4940
        %4958 = vst.msk [vmem:[%s4944 + $0xa8] sm:$0xff] %vm308, %v4941
        %4959 = vst.msk [vmem:[%s4944 + $0xb0] sm:$0xff] %vm308, %v4942
        %4960 = vst.msk [vmem:[%s4944 + $0xb8] sm:$0xff] %vm308, %v4943
        %v4961 = vld [vmem:[%s196 + $0x8] sm:$0xff]
        %v4962 = vld [vmem:[%s196 + $0x18] sm:$0xff]
        %v4963 = vld [vmem:[%s196 + $0x28] sm:$0xff]
        %v4964 = vld [vmem:[%s196 + $0x38] sm:$0xff]
        %v4965 = vld [vmem:[%s196 + $0x48] sm:$0xff]
        %v4966 = vld [vmem:[%s196 + $0x58] sm:$0xff]
        %v4967 = vld [vmem:[%s196 + $0x68] sm:$0xff]
        %v4968 = vld [vmem:[%s196 + $0x78] sm:$0xff]
        %v4969 = vld [vmem:[%s196 + $0x88] sm:$0xff]
        %v4970 = vld [vmem:[%s196 + $0x98] sm:$0xff]
        %v4971 = vld [vmem:[%s196 + $0xa8] sm:$0xff]
        %v4972 = vld [vmem:[%s196 + $0xb8] sm:$0xff]
        %v4973 = vld [vmem:[%s196 + $0xc8] sm:$0xff]
        %v4974 = vld [vmem:[%s196 + $0xd8] sm:$0xff]
        %v4975 = vld [vmem:[%s196 + $0xe8] sm:$0xff]
        %v4976 = vld [vmem:[%s196 + $0xf8] sm:$0xff]
        %v4977 = vld [vmem:[%s250 + $0x8] sm:$0xff]
        %v4978 = vld [vmem:[%s250 + $0x18] sm:$0xff]
        %v4979 = vld [vmem:[%s250 + $0x28] sm:$0xff]
        %v4980 = vld [vmem:[%s250 + $0x38] sm:$0xff]
        %v4981 = vld [vmem:[%s250 + $0x48] sm:$0xff]
        %v4982 = vld [vmem:[%s250 + $0x58] sm:$0xff]
        %v4983 = vld [vmem:[%s250 + $0x68] sm:$0xff]
        %v4984 = vld [vmem:[%s250 + $0x78] sm:$0xff]
        %v4985 = vld [vmem:[%s250 + $0x88] sm:$0xff]
        %v4986 = vld [vmem:[%s250 + $0x98] sm:$0xff]
        %v4987 = vld [vmem:[%s250 + $0xa8] sm:$0xff]
        %v4988 = vld [vmem:[%s250 + $0xb8] sm:$0xff]
        %v4989 = vld [vmem:[%s250 + $0xc8] sm:$0xff]
        %v4990 = vld [vmem:[%s250 + $0xd8] sm:$0xff]
        %v4991 = vld [vmem:[%s250 + $0xe8] sm:$0xff]
        %v4992 = vld [vmem:[%s250 + $0xf8] sm:$0xff]
        %v4993 = vld [vmem:[%s267 + $0x8] sm:$0xff]
        %v4994 = vld [vmem:[%s267 + $0x18] sm:$0xff]
        %v4995 = vld [vmem:[%s267 + $0x28] sm:$0xff]
        %v4996 = vld [vmem:[%s267 + $0x38] sm:$0xff]
        %v4997 = vld [vmem:[%s267 + $0x48] sm:$0xff]
        %v4998 = vld [vmem:[%s267 + $0x58] sm:$0xff]
        %v4999 = vld [vmem:[%s267 + $0x68] sm:$0xff]
        %v5000 = vld [vmem:[%s267 + $0x78] sm:$0xff]
        %v5001 = vld [vmem:[%s267 + $0x88] sm:$0xff]
        %v5002 = vld [vmem:[%s267 + $0x98] sm:$0xff]
        %v5003 = vld [vmem:[%s267 + $0xa8] sm:$0xff]
        %v5004 = vld [vmem:[%s267 + $0xb8] sm:$0xff]
        %v5005 = vld [vmem:[%s267 + $0xc8] sm:$0xff]
        %v5006 = vld [vmem:[%s267 + $0xd8] sm:$0xff]
        %v5007 = vld [vmem:[%s267 + $0xe8] sm:$0xff]
        %v5008 = vld [vmem:[%s267 + $0xf8] sm:$0xff]
        %v5009 = vmul.f32 %v4961, 0.35355338
        %v5010 = vmul.f32 %v4962, 0.35355338
        %v5011 = vmul.f32 %v4963, 0.35355338
        %v5012 = vmul.f32 %v4964, 0.35355338
        %v5013 = vmul.f32 %v4965, 0.35355338
        %v5014 = vmul.f32 %v4966, 0.35355338
        %v5015 = vmul.f32 %v4967, 0.35355338
        %v5016 = vmul.f32 %v4968, 0.35355338
        %v5017 = vmul.f32 %v4969, 0.35355338
        %v5018 = vmul.f32 %v4970, 0.35355338
        %v5019 = vmul.f32 %v4971, 0.35355338
        %v5020 = vmul.f32 %v4972, 0.35355338
        %v5021 = vmul.f32 %v4973, 0.35355338
        %v5022 = vmul.f32 %v4974, 0.35355338
        %v5023 = vmul.f32 %v4975, 0.35355338
        %v5024 = vmul.f32 %v4976, 0.35355338
        %v5025 = vld [vmem:[%s1130] sm:$0xff]
        %v5026 = vld [vmem:[%s1130 + $0x8] sm:$0xff]
        %v5027 = vld [vmem:[%s1130 + $0x10] sm:$0xff]
        %v5028 = vld [vmem:[%s1130 + $0x18] sm:$0xff]
        %v5029 = vld [vmem:[%s1130 + $0x20] sm:$0xff]
        %v5030 = vld [vmem:[%s1130 + $0x28] sm:$0xff]
        %v5031 = vld [vmem:[%s1130 + $0x30] sm:$0xff]
        %v5032 = vld [vmem:[%s1130 + $0x38] sm:$0xff]
        %5041 = vrot.lane.b32.xlu0 %v5009, 120
        %v5042 = vpop.permute.xlu0 %5041
        %5043 = vrot.lane.b32.xlu0 %v5010, 120
        %v5044 = vpop.permute.xlu0 %5043
        %5045 = vrot.lane.b32.xlu0 %v5011, 120
        %v5046 = vpop.permute.xlu0 %5045
        %5047 = vrot.lane.b32.xlu0 %v5012, 120
        %v5048 = vpop.permute.xlu0 %5047
        %5049 = vrot.lane.b32.xlu0 %v5013, 120
        %v5050 = vpop.permute.xlu0 %5049
        %5051 = vrot.lane.b32.xlu0 %v5014, 120
        %v5052 = vpop.permute.xlu0 %5051
        %5053 = vrot.lane.b32.xlu0 %v5015, 120
        %v5054 = vpop.permute.xlu0 %5053
        %5055 = vrot.lane.b32.xlu0 %v5016, 120
        %v5056 = vpop.permute.xlu0 %5055
        %5065 = vrot.lane.b32.xlu0 %v4977, 120
        %v5066 = vpop.permute.xlu0 %5065
        %5067 = vrot.lane.b32.xlu0 %v4978, 120
        %v5068 = vpop.permute.xlu0 %5067
        %5069 = vrot.lane.b32.xlu0 %v4979, 120
        %v5070 = vpop.permute.xlu0 %5069
        %5071 = vrot.lane.b32.xlu0 %v4980, 120
        %v5072 = vpop.permute.xlu0 %5071
        %5073 = vrot.lane.b32.xlu0 %v4981, 120
        %v5074 = vpop.permute.xlu0 %5073
        %5075 = vrot.lane.b32.xlu0 %v4982, 120
        %v5076 = vpop.permute.xlu0 %5075
        %5077 = vrot.lane.b32.xlu0 %v4983, 120
        %v5078 = vpop.permute.xlu0 %5077
        %5079 = vrot.lane.b32.xlu0 %v4984, 120
        %v5080 = vpop.permute.xlu0 %5079
        %v5081 = vsel %vm308, %v5042, 0
        %v5083 = vsel %vm308, %v5044, 0
        %v5085 = vsel %vm308, %v5046, 0
        %v5087 = vsel %vm308, %v5048, 0
        %v5089 = vsel %vm308, %v5050, 0
        %v5091 = vsel %vm308, %v5052, 0
        %v5093 = vsel %vm308, %v5054, 0
        %v5095 = vsel %vm308, %v5056, 0
        %v5097 = vsel %vm308, %v5066, 0
        %v5099 = vsel %vm308, %v5068, 0
        %v5101 = vsel %vm308, %v5070, 0
        %v5103 = vsel %vm308, %v5072, 0
        %v5105 = vsel %vm308, %v5074, 0
        %v5107 = vsel %vm308, %v5076, 0
        %v5109 = vsel %vm308, %v5078, 0
        %v5111 = vsel %vm308, %v5080, 0
        %5113 = vmatprep.subr.mxu0 0.0
        %5114 = vmatpush1.xpose.msra.mxu0 %v5097
        %5115 = vmatprep.subr.mxu0 0.0
        %5116 = vmatpush1.xpose.msra.mxu0 %v5099
        %5117 = vmatprep.subr.mxu0 0.0
        %5118 = vmatpush1.xpose.msra.mxu0 %v5101
        %5119 = vmatprep.subr.mxu0 0.0
        %5120 = vmatpush1.xpose.msra.mxu0 %v5103
        %5121 = vmatprep.subr.mxu0 0.0
        %5122 = vmatpush1.xpose.msra.mxu0 %v5105
        %5123 = vmatprep.subr.mxu0 0.0
        %5124 = vmatpush1.xpose.msra.mxu0 %v5107
        %5125 = vmatprep.subr.mxu0 0.0
        %5126 = vmatpush1.xpose.msra.mxu0 %v5109
        %5127 = vmatprep.subr.mxu0 0.0
        %5128 = vmatpush1.xpose.msra.mxu0 %v5111
        %5129 = vmatprep.subr.mxu0 0.0
        %5130 = vmatpush1.xpose.msra.mxu0 0.0
        %5131 = vmatprep.subr.mxu0 0.0
        %5132 = vmatpush1.xpose.msra.mxu0 0.0
        %5133 = vmatprep.subr.mxu0 0.0
        %5134 = vmatpush1.xpose.msra.mxu0 0.0
        %5135 = vmatprep.subr.mxu0 0.0
        %5136 = vmatpush1.xpose.msra.mxu0 0.0
        %5137 = vmatprep.subr.mxu0 0.0
        %5138 = vmatpush1.xpose.msra.mxu0 0.0
        %5139 = vmatprep.subr.mxu0 0.0
        %5140 = vmatpush1.xpose.msra.mxu0 0.0
        %5141 = vmatprep.subr.mxu0 0.0
        %5142 = vmatpush1.xpose.msra.mxu0 0.0
        %5143 = vmatprep.subr.mxu0 0.0
        %5144 = vmatpush1.xpose.msra.mxu0 0.0
        %5145 = vmatprep.subr.mxu0 0.0
        %5146 = vmatpush1.xpose.msra.mxu0 0.0
        %5147 = vmatprep.subr.mxu0 0.0
        %5148 = vmatpush1.xpose.msra.mxu0 0.0
        %5149 = vmatprep.subr.mxu0 0.0
        %5150 = vmatpush1.xpose.msra.mxu0 0.0
        %5151 = vmatprep.subr.mxu0 0.0
        %5152 = vmatpush1.xpose.msra.mxu0 0.0
        %5153 = vmatprep.subr.mxu0 0.0
        %5154 = vmatpush1.xpose.msra.mxu0 0.0
        %5155 = vmatprep.subr.mxu0 0.0
        %5156 = vmatpush1.xpose.msra.mxu0 0.0
        %5157 = vmatprep.subr.mxu0 0.0
        %5158 = vmatpush1.xpose.msra.mxu0 0.0
        %5159 = vmatprep.subr.mxu0 0.0
        %5160 = vmatpush1.xpose.msra.mxu0 0.0
        %5161 = vmatprep.subr.mxu0 0.0
        %5162 = vmatpush1.xpose.msra.mxu0 0.0
        %5163 = vmatprep.subr.mxu0 0.0
        %5164 = vmatpush1.xpose.msra.mxu0 0.0
        %5165 = vmatprep.subr.mxu0 0.0
        %5166 = vmatpush1.xpose.msra.mxu0 0.0
        %5167 = vmatprep.subr.mxu0 0.0
        %5168 = vmatpush1.xpose.msra.mxu0 0.0
        %5169 = vmatprep.subr.mxu0 0.0
        %5170 = vmatpush1.xpose.msra.mxu0 0.0
        %5171 = vmatprep.subr.mxu0 0.0
        %5172 = vmatpush1.xpose.msra.mxu0 0.0
        %5173 = vmatprep.subr.mxu0 0.0
        %5174 = vmatpush1.xpose.msra.mxu0 0.0
        %5175 = vmatprep.subr.mxu0 0.0
        %5176 = vmatpush1.xpose.msra.mxu0 0.0
        %5177 = vmatprep.mubr.f32.mxu0 0.0
        %5178 = vmatmul.mubr.f32.gmra.mrb[0].mxu0 %v5081
        %v5179 = vpop.f32.mrb[0].mxu0
        %v5180 = vadd.f32 %v5025, %v5179
        %v5181 = vpop.f32.mrb[0].mxu0
        %5182 = vmatprep.mubr.f32.mxu0 0.0
        %5183 = vmatmul.mubr.f32.gmra.mrb[0].mxu0 %v5083
        %v5184 = vpop.f32.mrb[0].mxu0
        %v5185 = vadd.f32 %v5026, %v5184
        %v5186 = vpop.f32.mrb[0].mxu0
        %5187 = vmatprep.mubr.f32.mxu0 0.0
        %5188 = vmatmul.mubr.f32.gmra.mrb[0].mxu0 %v5085
        %v5189 = vpop.f32.mrb[0].mxu0
        %v5190 = vadd.f32 %v5027, %v5189
        %v5191 = vpop.f32.mrb[0].mxu0
        %5192 = vmatprep.mubr.f32.mxu0 0.0
        %5193 = vmatmul.mubr.f32.gmra.mrb[0].mxu0 %v5087
        %v5194 = vpop.f32.mrb[0].mxu0
        %v5195 = vadd.f32 %v5028, %v5194
        %v5196 = vpop.f32.mrb[0].mxu0
        %5197 = vmatprep.mubr.f32.mxu0 0.0
        %5198 = vmatmul.mubr.f32.gmra.mrb[0].mxu0 %v5089
        %v5199 = vpop.f32.mrb[0].mxu0
        %v5200 = vadd.f32 %v5029, %v5199
        %v5201 = vpop.f32.mrb[0].mxu0
        %5202 = vmatprep.mubr.f32.mxu0 0.0
        %5203 = vmatmul.mubr.f32.gmra.mrb[0].mxu0 %v5091
        %v5204 = vpop.f32.mrb[0].mxu0
        %v5205 = vadd.f32 %v5030, %v5204
        %v5206 = vpop.f32.mrb[0].mxu0
        %5207 = vmatprep.mubr.f32.mxu0 0.0
        %5208 = vmatmul.mubr.f32.gmra.mrb[0].mxu0 %v5093
        %v5209 = vpop.f32.mrb[0].mxu0
        %v5210 = vadd.f32 %v5031, %v5209
        %v5211 = vpop.f32.mrb[0].mxu0
        %5212 = vmatprep.mubr.f32.mxu0 0.0
        %5213 = vmatmul.mubr.f32.gmra.mrb[0].mxu0 %v5095
        %v5214 = vpop.f32.mrb[0].mxu0
        %v5215 = vadd.f32 %v5032, %v5214
        %v5216 = vpop.f32.mrb[0].mxu0
        %5217 = vdwg.mxu0
        %5226 = vrot.lane.b32.xlu0 %v5017, 120
        %v5227 = vpop.permute.xlu0 %5226
        %5228 = vrot.lane.b32.xlu0 %v5018, 120
        %v5229 = vpop.permute.xlu0 %5228
        %5230 = vrot.lane.b32.xlu0 %v5019, 120
        %v5231 = vpop.permute.xlu0 %5230
        %5232 = vrot.lane.b32.xlu0 %v5020, 120
        %v5233 = vpop.permute.xlu0 %5232
        %5234 = vrot.lane.b32.xlu0 %v5021, 120
        %v5235 = vpop.permute.xlu0 %5234
        %5236 = vrot.lane.b32.xlu0 %v5022, 120
        %v5237 = vpop.permute.xlu0 %5236
        %5238 = vrot.lane.b32.xlu0 %v5023, 120
        %v5239 = vpop.permute.xlu0 %5238
        %5240 = vrot.lane.b32.xlu0 %v5024, 120
        %v5241 = vpop.permute.xlu0 %5240
        %5250 = vrot.lane.b32.xlu0 %v4985, 120
        %v5251 = vpop.permute.xlu0 %5250
        %5252 = vrot.lane.b32.xlu0 %v4986, 120
        %v5253 = vpop.permute.xlu0 %5252
        %5254 = vrot.lane.b32.xlu0 %v4987, 120
        %v5255 = vpop.permute.xlu0 %5254
        %5256 = vrot.lane.b32.xlu0 %v4988, 120
        %v5257 = vpop.permute.xlu0 %5256
        %5258 = vrot.lane.b32.xlu0 %v4989, 120
        %v5259 = vpop.permute.xlu0 %5258
        %5260 = vrot.lane.b32.xlu0 %v4990, 120
        %v5261 = vpop.permute.xlu0 %5260
        %5262 = vrot.lane.b32.xlu0 %v4991, 120
        %v5263 = vpop.permute.xlu0 %5262
        %5264 = vrot.lane.b32.xlu0 %v4992, 120
        %v5265 = vpop.permute.xlu0 %5264
        %v5266 = vsel %vm308, %v5227, 0
        %v5268 = vsel %vm308, %v5229, 0
        %v5270 = vsel %vm308, %v5231, 0
        %v5272 = vsel %vm308, %v5233, 0
        %v5274 = vsel %vm308, %v5235, 0
        %v5276 = vsel %vm308, %v5237, 0
        %v5278 = vsel %vm308, %v5239, 0
        %v5280 = vsel %vm308, %v5241, 0
        %v5282 = vsel %vm308, %v5251, 0
        %v5284 = vsel %vm308, %v5253, 0
        %v5286 = vsel %vm308, %v5255, 0
        %v5288 = vsel %vm308, %v5257, 0
        %v5290 = vsel %vm308, %v5259, 0
        %v5292 = vsel %vm308, %v5261, 0
        %v5294 = vsel %vm308, %v5263, 0
        %v5296 = vsel %vm308, %v5265, 0
        %5298 = vmatprep.subr.mxu0 0.0
        %5299 = vmatpush1.xpose.msra.mxu0 %v5282
        %5300 = vmatprep.subr.mxu0 0.0
        %5301 = vmatpush1.xpose.msra.mxu0 %v5284
        %5302 = vmatprep.subr.mxu0 0.0
        %5303 = vmatpush1.xpose.msra.mxu0 %v5286
        %5304 = vmatprep.subr.mxu0 0.0
        %5305 = vmatpush1.xpose.msra.mxu0 %v5288
        %5306 = vmatprep.subr.mxu0 0.0
        %5307 = vmatpush1.xpose.msra.mxu0 %v5290
        %5308 = vmatprep.subr.mxu0 0.0
        %5309 = vmatpush1.xpose.msra.mxu0 %v5292
        %5310 = vmatprep.subr.mxu0 0.0
        %5311 = vmatpush1.xpose.msra.mxu0 %v5294
        %5312 = vmatprep.subr.mxu0 0.0
        %5313 = vmatpush1.xpose.msra.mxu0 %v5296
        %5314 = vmatprep.subr.mxu0 0.0
        %5315 = vmatpush1.xpose.msra.mxu0 0.0
        %5316 = vmatprep.subr.mxu0 0.0
        %5317 = vmatpush1.xpose.msra.mxu0 0.0
        %5318 = vmatprep.subr.mxu0 0.0
        %5319 = vmatpush1.xpose.msra.mxu0 0.0
        %5320 = vmatprep.subr.mxu0 0.0
        %5321 = vmatpush1.xpose.msra.mxu0 0.0
        %5322 = vmatprep.subr.mxu0 0.0
        %5323 = vmatpush1.xpose.msra.mxu0 0.0
        %5324 = vmatprep.subr.mxu0 0.0
        %5325 = vmatpush1.xpose.msra.mxu0 0.0
        %5326 = vmatprep.subr.mxu0 0.0
        %5327 = vmatpush1.xpose.msra.mxu0 0.0
        %5328 = vmatprep.subr.mxu0 0.0
        %5329 = vmatpush1.xpose.msra.mxu0 0.0
        %5330 = vmatprep.subr.mxu0 0.0
        %5331 = vmatpush1.xpose.msra.mxu0 0.0
        %5332 = vmatprep.subr.mxu0 0.0
        %5333 = vmatpush1.xpose.msra.mxu0 0.0
        %5334 = vmatprep.subr.mxu0 0.0
        %5335 = vmatpush1.xpose.msra.mxu0 0.0
        %5336 = vmatprep.subr.mxu0 0.0
        %5337 = vmatpush1.xpose.msra.mxu0 0.0
        %5338 = vmatprep.subr.mxu0 0.0
        %5339 = vmatpush1.xpose.msra.mxu0 0.0
        %5340 = vmatprep.subr.mxu0 0.0
        %5341 = vmatpush1.xpose.msra.mxu0 0.0
        %5342 = vmatprep.subr.mxu0 0.0
        %5343 = vmatpush1.xpose.msra.mxu0 0.0
        %5344 = vmatprep.subr.mxu0 0.0
        %5345 = vmatpush1.xpose.msra.mxu0 0.0
        %5346 = vmatprep.subr.mxu0 0.0
        %5347 = vmatpush1.xpose.msra.mxu0 0.0
        %5348 = vmatprep.subr.mxu0 0.0
        %5349 = vmatpush1.xpose.msra.mxu0 0.0
        %5350 = vmatprep.subr.mxu0 0.0
        %5351 = vmatpush1.xpose.msra.mxu0 0.0
        %5352 = vmatprep.subr.mxu0 0.0
        %5353 = vmatpush1.xpose.msra.mxu0 0.0
        %5354 = vmatprep.subr.mxu0 0.0
        %5355 = vmatpush1.xpose.msra.mxu0 0.0
        %5356 = vmatprep.subr.mxu0 0.0
        %5357 = vmatpush1.xpose.msra.mxu0 0.0
        %5358 = vmatprep.subr.mxu0 0.0
        %5359 = vmatpush1.xpose.msra.mxu0 0.0
        %5360 = vmatprep.subr.mxu0 0.0
        %5361 = vmatpush1.xpose.msra.mxu0 0.0
        %5362 = vmatprep.mubr.f32.mxu0 0.0
        %5363 = vmatmul.mubr.f32.gmra.mrb[0].mxu0 %v5266
        %v5364 = vpop.f32.mrb[0].mxu0
        %v5365 = vadd.f32 %v5025, %v5364
        %v5366 = vpop.f32.mrb[0].mxu0
        %5367 = vmatprep.mubr.f32.mxu0 0.0
        %5368 = vmatmul.mubr.f32.gmra.mrb[0].mxu0 %v5268
        %v5369 = vpop.f32.mrb[0].mxu0
        %v5370 = vadd.f32 %v5026, %v5369
        %v5371 = vpop.f32.mrb[0].mxu0
        %5372 = vmatprep.mubr.f32.mxu0 0.0
        %5373 = vmatmul.mubr.f32.gmra.mrb[0].mxu0 %v5270
        %v5374 = vpop.f32.mrb[0].mxu0
        %v5375 = vadd.f32 %v5027, %v5374
        %v5376 = vpop.f32.mrb[0].mxu0
        %5377 = vmatprep.mubr.f32.mxu0 0.0
        %5378 = vmatmul.mubr.f32.gmra.mrb[0].mxu0 %v5272
        %v5379 = vpop.f32.mrb[0].mxu0
        %v5380 = vadd.f32 %v5028, %v5379
        %v5381 = vpop.f32.mrb[0].mxu0
        %5382 = vmatprep.mubr.f32.mxu0 0.0
        %5383 = vmatmul.mubr.f32.gmra.mrb[0].mxu0 %v5274
        %v5384 = vpop.f32.mrb[0].mxu0
        %v5385 = vadd.f32 %v5029, %v5384
        %v5386 = vpop.f32.mrb[0].mxu0
        %5387 = vmatprep.mubr.f32.mxu0 0.0
        %5388 = vmatmul.mubr.f32.gmra.mrb[0].mxu0 %v5276
        %v5389 = vpop.f32.mrb[0].mxu0
        %v5390 = vadd.f32 %v5030, %v5389
        %v5391 = vpop.f32.mrb[0].mxu0
        %5392 = vmatprep.mubr.f32.mxu0 0.0
        %5393 = vmatmul.mubr.f32.gmra.mrb[0].mxu0 %v5278
        %v5394 = vpop.f32.mrb[0].mxu0
        %v5395 = vadd.f32 %v5031, %v5394
        %v5396 = vpop.f32.mrb[0].mxu0
        %5397 = vmatprep.mubr.f32.mxu0 0.0
        %5398 = vmatmul.mubr.f32.gmra.mrb[0].mxu0 %v5280
        %v5399 = vpop.f32.mrb[0].mxu0
        %v5400 = vadd.f32 %v5032, %v5399
        %v5401 = vpop.f32.mrb[0].mxu0
        %5402 = vdwg.mxu0
        %v5403 = vsel %vm615, %v5180, -inf
        %5404 = vmax.xlane.f32.xlu0 %v5403
        %v5405 = vpop.xlane.xlu0 %5404
        %v5406 = vsel %vm615, %v5185, -inf
        %5407 = vmax.xlane.f32.xlu0 %v5406
        %v5408 = vpop.xlane.xlu0 %5407
        %v5409 = vsel %vm615, %v5190, -inf
        %5410 = vmax.xlane.f32.xlu0 %v5409
        %v5411 = vpop.xlane.xlu0 %5410
        %v5412 = vsel %vm615, %v5195, -inf
        %5413 = vmax.xlane.f32.xlu0 %v5412
        %v5414 = vpop.xlane.xlu0 %5413
        %v5415 = vsel %vm615, %v5200, -inf
        %5416 = vmax.xlane.f32.xlu0 %v5415
        %v5417 = vpop.xlane.xlu0 %5416
        %v5418 = vsel %vm615, %v5205, -inf
        %5419 = vmax.xlane.f32.xlu0 %v5418
        %v5420 = vpop.xlane.xlu0 %5419
        %v5421 = vsel %vm615, %v5210, -inf
        %5422 = vmax.xlane.f32.xlu0 %v5421
        %v5423 = vpop.xlane.xlu0 %5422
        %v5424 = vsel %vm615, %v5215, -inf
        %5425 = vmax.xlane.f32.xlu0 %v5424
        %v5426 = vpop.xlane.xlu0 %5425
        %v5427 = vsel %vm615, %v5365, -inf
        %5428 = vmax.xlane.f32.xlu0 %v5427
        %v5429 = vpop.xlane.xlu0 %5428
        %v5430 = vsel %vm615, %v5370, -inf
        %5431 = vmax.xlane.f32.xlu0 %v5430
        %v5432 = vpop.xlane.xlu0 %5431
        %v5433 = vsel %vm615, %v5375, -inf
        %5434 = vmax.xlane.f32.xlu0 %v5433
        %v5435 = vpop.xlane.xlu0 %5434
        %v5436 = vsel %vm615, %v5380, -inf
        %5437 = vmax.xlane.f32.xlu0 %v5436
        %v5438 = vpop.xlane.xlu0 %5437
        %v5439 = vsel %vm615, %v5385, -inf
        %5440 = vmax.xlane.f32.xlu0 %v5439
        %v5441 = vpop.xlane.xlu0 %5440
        %v5442 = vsel %vm615, %v5390, -inf
        %5443 = vmax.xlane.f32.xlu0 %v5442
        %v5444 = vpop.xlane.xlu0 %5443
        %v5445 = vsel %vm615, %v5395, -inf
        %5446 = vmax.xlane.f32.xlu0 %v5445
        %v5447 = vpop.xlane.xlu0 %5446
        %v5448 = vsel %vm615, %v5400, -inf
        %5449 = vmax.xlane.f32.xlu0 %v5448
        %v5450 = vpop.xlane.xlu0 %5449
        %v5451 = vsub.f32 %v5180, %v5405
        %v5452 = vsub.f32 %v5185, %v5408
        %v5453 = vsub.f32 %v5190, %v5411
        %v5454 = vsub.f32 %v5195, %v5414
        %v5455 = vsub.f32 %v5200, %v5417
        %v5456 = vsub.f32 %v5205, %v5420
        %v5457 = vsub.f32 %v5210, %v5423
        %v5458 = vsub.f32 %v5215, %v5426
        %v5459 = vsub.f32 %v5365, %v5429
        %v5460 = vsub.f32 %v5370, %v5432
        %v5461 = vsub.f32 %v5375, %v5435
        %v5462 = vsub.f32 %v5380, %v5438
        %v5463 = vsub.f32 %v5385, %v5441
        %v5464 = vsub.f32 %v5390, %v5444
        %v5465 = vsub.f32 %v5395, %v5447
        %v5466 = vsub.f32 %v5400, %v5450
        %v5467 = vmul.f32 %v5451, 1.442695
        %v5468 = vpow.pop %v5467
        %v5469 = vmul.f32 %v5452, 1.442695
        %v5470 = vpow.pop %v5469
        %v5471 = vmul.f32 %v5453, 1.442695
        %v5472 = vpow.pop %v5471
        %v5473 = vmul.f32 %v5454, 1.442695
        %v5474 = vpow.pop %v5473
        %v5475 = vmul.f32 %v5455, 1.442695
        %v5476 = vpow.pop %v5475
        %v5477 = vmul.f32 %v5456, 1.442695
        %v5478 = vpow.pop %v5477
        %v5479 = vmul.f32 %v5457, 1.442695
        %v5480 = vpow.pop %v5479
        %v5481 = vmul.f32 %v5458, 1.442695
        %v5482 = vpow.pop %v5481
        %v5483 = vmul.f32 %v5459, 1.442695
        %v5484 = vpow.pop %v5483
        %v5485 = vmul.f32 %v5460, 1.442695
        %v5486 = vpow.pop %v5485
        %v5487 = vmul.f32 %v5461, 1.442695
        %v5488 = vpow.pop %v5487
        %v5489 = vmul.f32 %v5462, 1.442695
        %v5490 = vpow.pop %v5489
        %v5491 = vmul.f32 %v5463, 1.442695
        %v5492 = vpow.pop %v5491
        %v5493 = vmul.f32 %v5464, 1.442695
        %v5494 = vpow.pop %v5493
        %v5495 = vmul.f32 %v5465, 1.442695
        %v5496 = vpow.pop %v5495
        %v5497 = vmul.f32 %v5466, 1.442695
        %v5498 = vpow.pop %v5497
        %v5499 = vsel %vm615, %v5468, 0.0
        %5500 = vadd.xlane.f32.xlu0 %v5499
        %v5501 = vpop.xlane.xlu0 %5500
        %v5502 = vsel %vm615, %v5470, 0.0
        %5503 = vadd.xlane.f32.xlu0 %v5502
        %v5504 = vpop.xlane.xlu0 %5503
        %v5505 = vsel %vm615, %v5472, 0.0
        %5506 = vadd.xlane.f32.xlu0 %v5505
        %v5507 = vpop.xlane.xlu0 %5506
        %v5508 = vsel %vm615, %v5474, 0.0
        %5509 = vadd.xlane.f32.xlu0 %v5508
        %v5510 = vpop.xlane.xlu0 %5509
        %v5511 = vsel %vm615, %v5476, 0.0
        %5512 = vadd.xlane.f32.xlu0 %v5511
        %v5513 = vpop.xlane.xlu0 %5512
        %v5514 = vsel %vm615, %v5478, 0.0
        %5515 = vadd.xlane.f32.xlu0 %v5514
        %v5516 = vpop.xlane.xlu0 %5515
        %v5517 = vsel %vm615, %v5480, 0.0
        %5518 = vadd.xlane.f32.xlu0 %v5517
        %v5519 = vpop.xlane.xlu0 %5518
        %v5520 = vsel %vm615, %v5482, 0.0
        %5521 = vadd.xlane.f32.xlu0 %v5520
        %v5522 = vpop.xlane.xlu0 %5521
        %v5523 = vsel %vm615, %v5484, 0.0
        %5524 = vadd.xlane.f32.xlu0 %v5523
        %v5525 = vpop.xlane.xlu0 %5524
        %v5526 = vsel %vm615, %v5486, 0.0
        %5527 = vadd.xlane.f32.xlu0 %v5526
        %v5528 = vpop.xlane.xlu0 %5527
        %v5529 = vsel %vm615, %v5488, 0.0
        %5530 = vadd.xlane.f32.xlu0 %v5529
        %v5531 = vpop.xlane.xlu0 %5530
        %v5532 = vsel %vm615, %v5490, 0.0
        %5533 = vadd.xlane.f32.xlu0 %v5532
        %v5534 = vpop.xlane.xlu0 %5533
        %v5535 = vsel %vm615, %v5492, 0.0
        %5536 = vadd.xlane.f32.xlu0 %v5535
        %v5537 = vpop.xlane.xlu0 %5536
        %v5538 = vsel %vm615, %v5494, 0.0
        %5539 = vadd.xlane.f32.xlu0 %v5538
        %v5540 = vpop.xlane.xlu0 %5539
        %v5541 = vsel %vm615, %v5496, 0.0
        %5542 = vadd.xlane.f32.xlu0 %v5541
        %v5543 = vpop.xlane.xlu0 %5542
        %v5544 = vsel %vm615, %v5498, 0.0
        %5545 = vadd.xlane.f32.xlu0 %v5544
        %v5546 = vpop.xlane.xlu0 %5545
        %5555 = vrot.lane.b32.xlu0 %v4993, 120
        %v5556 = vpop.permute.xlu0 %5555
        %5557 = vrot.lane.b32.xlu0 %v4994, 120
        %v5558 = vpop.permute.xlu0 %5557
        %5559 = vrot.lane.b32.xlu0 %v4995, 120
        %v5560 = vpop.permute.xlu0 %5559
        %5561 = vrot.lane.b32.xlu0 %v4996, 120
        %v5562 = vpop.permute.xlu0 %5561
        %5563 = vrot.lane.b32.xlu0 %v4997, 120
        %v5564 = vpop.permute.xlu0 %5563
        %5565 = vrot.lane.b32.xlu0 %v4998, 120
        %v5566 = vpop.permute.xlu0 %5565
        %5567 = vrot.lane.b32.xlu0 %v4999, 120
        %v5568 = vpop.permute.xlu0 %5567
        %5569 = vrot.lane.b32.xlu0 %v5000, 120
        %v5570 = vpop.permute.xlu0 %5569
        %v5580 = vsel %vm615, %v5468, 0
        %v5583 = vsel %vm615, %v5470, 0
        %v5586 = vsel %vm615, %v5472, 0
        %v5589 = vsel %vm615, %v5474, 0
        %v5592 = vsel %vm615, %v5476, 0
        %v5595 = vsel %vm615, %v5478, 0
        %v5598 = vsel %vm615, %v5480, 0
        %v5601 = vsel %vm615, %v5482, 0
        %5603 = vmatprep.subr.mxu0 0.0
        %5604 = vmatpush1.msra.mxu0 %v5556
        %5605 = vmatprep.subr.mxu0 0.0
        %5606 = vmatpush1.msra.mxu0 %v5558
        %5607 = vmatprep.subr.mxu0 0.0
        %5608 = vmatpush1.msra.mxu0 %v5560
        %5609 = vmatprep.subr.mxu0 0.0
        %5610 = vmatpush1.msra.mxu0 %v5562
        %5611 = vmatprep.subr.mxu0 0.0
        %5612 = vmatpush1.msra.mxu0 %v5564
        %5613 = vmatprep.subr.mxu0 0.0
        %5614 = vmatpush1.msra.mxu0 %v5566
        %5615 = vmatprep.subr.mxu0 0.0
        %5616 = vmatpush1.msra.mxu0 %v5568
        %5617 = vmatprep.subr.mxu0 0.0
        %5618 = vmatpush1.msra.mxu0 %v5570
        %5619 = vmatprep.subr.mxu0 0.0
        %5620 = vmatpush1.msra.mxu0 0.0
        %5621 = vmatprep.subr.mxu0 0.0
        %5622 = vmatpush1.msra.mxu0 0.0
        %5623 = vmatprep.subr.mxu0 0.0
        %5624 = vmatpush1.msra.mxu0 0.0
        %5625 = vmatprep.subr.mxu0 0.0
        %5626 = vmatpush1.msra.mxu0 0.0
        %5627 = vmatprep.subr.mxu0 0.0
        %5628 = vmatpush1.msra.mxu0 0.0
        %5629 = vmatprep.subr.mxu0 0.0
        %5630 = vmatpush1.msra.mxu0 0.0
        %5631 = vmatprep.subr.mxu0 0.0
        %5632 = vmatpush1.msra.mxu0 0.0
        %5633 = vmatprep.subr.mxu0 0.0
        %5634 = vmatpush1.msra.mxu0 0.0
        %5635 = vmatprep.subr.mxu0 0.0
        %5636 = vmatpush1.msra.mxu0 0.0
        %5637 = vmatprep.subr.mxu0 0.0
        %5638 = vmatpush1.msra.mxu0 0.0
        %5639 = vmatprep.subr.mxu0 0.0
        %5640 = vmatpush1.msra.mxu0 0.0
        %5641 = vmatprep.subr.mxu0 0.0
        %5642 = vmatpush1.msra.mxu0 0.0
        %5643 = vmatprep.subr.mxu0 0.0
        %5644 = vmatpush1.msra.mxu0 0.0
        %5645 = vmatprep.subr.mxu0 0.0
        %5646 = vmatpush1.msra.mxu0 0.0
        %5647 = vmatprep.subr.mxu0 0.0
        %5648 = vmatpush1.msra.mxu0 0.0
        %5649 = vmatprep.subr.mxu0 0.0
        %5650 = vmatpush1.msra.mxu0 0.0
        %5651 = vmatprep.subr.mxu0 0.0
        %5652 = vmatpush1.msra.mxu0 0.0
        %5653 = vmatprep.subr.mxu0 0.0
        %5654 = vmatpush1.msra.mxu0 0.0
        %5655 = vmatprep.subr.mxu0 0.0
        %5656 = vmatpush1.msra.mxu0 0.0
        %5657 = vmatprep.subr.mxu0 0.0
        %5658 = vmatpush1.msra.mxu0 0.0
        %5659 = vmatprep.subr.mxu0 0.0
        %5660 = vmatpush1.msra.mxu0 0.0
        %5661 = vmatprep.subr.mxu0 0.0
        %5662 = vmatpush1.msra.mxu0 0.0
        %5663 = vmatprep.subr.mxu0 0.0
        %5664 = vmatpush1.msra.mxu0 0.0
        %5665 = vmatprep.subr.mxu0 0.0
        %5666 = vmatpush1.msra.mxu0 0.0
        %5667 = vmatprep.mubr.f32.mxu0 0.0
        %5668 = vmatmul.mubr.f32.gmra.mrb[0].mxu0 %v5580
        %v5669 = vpop.f32.mrb[0].mxu0
        %v5670 = vadd.f32 0.0, %v5669
        %v5671 = vpop.f32.mrb[0].mxu0
        %5672 = vmatprep.mubr.f32.mxu0 0.0
        %5673 = vmatmul.mubr.f32.gmra.mrb[0].mxu0 %v5583
        %v5674 = vpop.f32.mrb[0].mxu0
        %v5675 = vadd.f32 0.0, %v5674
        %v5676 = vpop.f32.mrb[0].mxu0
        %5677 = vmatprep.mubr.f32.mxu0 0.0
        %5678 = vmatmul.mubr.f32.gmra.mrb[0].mxu0 %v5586
        %v5679 = vpop.f32.mrb[0].mxu0
        %v5680 = vadd.f32 0.0, %v5679
        %v5681 = vpop.f32.mrb[0].mxu0
        %5682 = vmatprep.mubr.f32.mxu0 0.0
        %5683 = vmatmul.mubr.f32.gmra.mrb[0].mxu0 %v5589
        %v5684 = vpop.f32.mrb[0].mxu0
        %v5685 = vadd.f32 0.0, %v5684
        %v5686 = vpop.f32.mrb[0].mxu0
        %5687 = vmatprep.mubr.f32.mxu0 0.0
        %5688 = vmatmul.mubr.f32.gmra.mrb[0].mxu0 %v5592
        %v5689 = vpop.f32.mrb[0].mxu0
        %v5690 = vadd.f32 0.0, %v5689
        %v5691 = vpop.f32.mrb[0].mxu0
        %5692 = vmatprep.mubr.f32.mxu0 0.0
        %5693 = vmatmul.mubr.f32.gmra.mrb[0].mxu0 %v5595
        %v5694 = vpop.f32.mrb[0].mxu0
        %v5695 = vadd.f32 0.0, %v5694
        %v5696 = vpop.f32.mrb[0].mxu0
        %5697 = vmatprep.mubr.f32.mxu0 0.0
        %5698 = vmatmul.mubr.f32.gmra.mrb[0].mxu0 %v5598
        %v5699 = vpop.f32.mrb[0].mxu0
        %v5700 = vadd.f32 0.0, %v5699
        %v5701 = vpop.f32.mrb[0].mxu0
        %5702 = vmatprep.mubr.f32.mxu0 0.0
        %5703 = vmatmul.mubr.f32.gmra.mrb[0].mxu0 %v5601
        %v5704 = vpop.f32.mrb[0].mxu0
        %v5705 = vadd.f32 0.0, %v5704
        %v5706 = vpop.f32.mrb[0].mxu0
        %5707 = vdwg.mxu0
        %5716 = vrot.lane.b32.xlu0 %v5001, 120
        %v5717 = vpop.permute.xlu0 %5716
        %5718 = vrot.lane.b32.xlu0 %v5002, 120
        %v5719 = vpop.permute.xlu0 %5718
        %5720 = vrot.lane.b32.xlu0 %v5003, 120
        %v5721 = vpop.permute.xlu0 %5720
        %5722 = vrot.lane.b32.xlu0 %v5004, 120
        %v5723 = vpop.permute.xlu0 %5722
        %5724 = vrot.lane.b32.xlu0 %v5005, 120
        %v5725 = vpop.permute.xlu0 %5724
        %5726 = vrot.lane.b32.xlu0 %v5006, 120
        %v5727 = vpop.permute.xlu0 %5726
        %5728 = vrot.lane.b32.xlu0 %v5007, 120
        %v5729 = vpop.permute.xlu0 %5728
        %5730 = vrot.lane.b32.xlu0 %v5008, 120
        %v5731 = vpop.permute.xlu0 %5730
        %v5741 = vsel %vm615, %v5484, 0
        %v5744 = vsel %vm615, %v5486, 0
        %v5747 = vsel %vm615, %v5488, 0
        %v5750 = vsel %vm615, %v5490, 0
        %v5753 = vsel %vm615, %v5492, 0
        %v5756 = vsel %vm615, %v5494, 0
        %v5759 = vsel %vm615, %v5496, 0
        %v5762 = vsel %vm615, %v5498, 0
        %5764 = vmatprep.subr.mxu0 0.0
        %5765 = vmatpush1.msra.mxu0 %v5717
        %5766 = vmatprep.subr.mxu0 0.0
        %5767 = vmatpush1.msra.mxu0 %v5719
        %5768 = vmatprep.subr.mxu0 0.0
        %5769 = vmatpush1.msra.mxu0 %v5721
        %5770 = vmatprep.subr.mxu0 0.0
        %5771 = vmatpush1.msra.mxu0 %v5723
        %5772 = vmatprep.subr.mxu0 0.0
        %5773 = vmatpush1.msra.mxu0 %v5725
        %5774 = vmatprep.subr.mxu0 0.0
        %5775 = vmatpush1.msra.mxu0 %v5727
        %5776 = vmatprep.subr.mxu0 0.0
        %5777 = vmatpush1.msra.mxu0 %v5729
        %5778 = vmatprep.subr.mxu0 0.0
        %5779 = vmatpush1.msra.mxu0 %v5731
        %5780 = vmatprep.subr.mxu0 0.0
        %5781 = vmatpush1.msra.mxu0 0.0
        %5782 = vmatprep.subr.mxu0 0.0
        %5783 = vmatpush1.msra.mxu0 0.0
        %5784 = vmatprep.subr.mxu0 0.0
        %5785 = vmatpush1.msra.mxu0 0.0
        %5786 = vmatprep.subr.mxu0 0.0
        %5787 = vmatpush1.msra.mxu0 0.0
        %5788 = vmatprep.subr.mxu0 0.0
        %5789 = vmatpush1.msra.mxu0 0.0
        %5790 = vmatprep.subr.mxu0 0.0
        %5791 = vmatpush1.msra.mxu0 0.0
        %5792 = vmatprep.subr.mxu0 0.0
        %5793 = vmatpush1.msra.mxu0 0.0
        %5794 = vmatprep.subr.mxu0 0.0
        %5795 = vmatpush1.msra.mxu0 0.0
        %5796 = vmatprep.subr.mxu0 0.0
        %5797 = vmatpush1.msra.mxu0 0.0
        %5798 = vmatprep.subr.mxu0 0.0
        %5799 = vmatpush1.msra.mxu0 0.0
        %5800 = vmatprep.subr.mxu0 0.0
        %5801 = vmatpush1.msra.mxu0 0.0
        %5802 = vmatprep.subr.mxu0 0.0
        %5803 = vmatpush1.msra.mxu0 0.0
        %5804 = vmatprep.subr.mxu0 0.0
        %5805 = vmatpush1.msra.mxu0 0.0
        %5806 = vmatprep.subr.mxu0 0.0
        %5807 = vmatpush1.msra.mxu0 0.0
        %5808 = vmatprep.subr.mxu0 0.0
        %5809 = vmatpush1.msra.mxu0 0.0
        %5810 = vmatprep.subr.mxu0 0.0
        %5811 = vmatpush1.msra.mxu0 0.0
        %5812 = vmatprep.subr.mxu0 0.0
        %5813 = vmatpush1.msra.mxu0 0.0
        %5814 = vmatprep.subr.mxu0 0.0
        %5815 = vmatpush1.msra.mxu0 0.0
        %5816 = vmatprep.subr.mxu0 0.0
        %5817 = vmatpush1.msra.mxu0 0.0
        %5818 = vmatprep.subr.mxu0 0.0
        %5819 = vmatpush1.msra.mxu0 0.0
        %5820 = vmatprep.subr.mxu0 0.0
        %5821 = vmatpush1.msra.mxu0 0.0
        %5822 = vmatprep.subr.mxu0 0.0
        %5823 = vmatpush1.msra.mxu0 0.0
        %5824 = vmatprep.subr.mxu0 0.0
        %5825 = vmatpush1.msra.mxu0 0.0
        %5826 = vmatprep.subr.mxu0 0.0
        %5827 = vmatpush1.msra.mxu0 0.0
        %5828 = vmatprep.mubr.f32.mxu0 0.0
        %5829 = vmatmul.mubr.f32.gmra.mrb[0].mxu0 %v5741
        %v5830 = vpop.f32.mrb[0].mxu0
        %v5831 = vadd.f32 0.0, %v5830
        %v5832 = vpop.f32.mrb[0].mxu0
        %5833 = vmatprep.mubr.f32.mxu0 0.0
        %5834 = vmatmul.mubr.f32.gmra.mrb[0].mxu0 %v5744
        %v5835 = vpop.f32.mrb[0].mxu0
        %v5836 = vadd.f32 0.0, %v5835
        %v5837 = vpop.f32.mrb[0].mxu0
        %5838 = vmatprep.mubr.f32.mxu0 0.0
        %5839 = vmatmul.mubr.f32.gmra.mrb[0].mxu0 %v5747
        %v5840 = vpop.f32.mrb[0].mxu0
        %v5841 = vadd.f32 0.0, %v5840
        %v5842 = vpop.f32.mrb[0].mxu0
        %5843 = vmatprep.mubr.f32.mxu0 0.0
        %5844 = vmatmul.mubr.f32.gmra.mrb[0].mxu0 %v5750
        %v5845 = vpop.f32.mrb[0].mxu0
        %v5846 = vadd.f32 0.0, %v5845
        %v5847 = vpop.f32.mrb[0].mxu0
        %5848 = vmatprep.mubr.f32.mxu0 0.0
        %5849 = vmatmul.mubr.f32.gmra.mrb[0].mxu0 %v5753
        %v5850 = vpop.f32.mrb[0].mxu0
        %v5851 = vadd.f32 0.0, %v5850
        %v5852 = vpop.f32.mrb[0].mxu0
        %5853 = vmatprep.mubr.f32.mxu0 0.0
        %5854 = vmatmul.mubr.f32.gmra.mrb[0].mxu0 %v5756
        %v5855 = vpop.f32.mrb[0].mxu0
        %v5856 = vadd.f32 0.0, %v5855
        %v5857 = vpop.f32.mrb[0].mxu0
        %5858 = vmatprep.mubr.f32.mxu0 0.0
        %5859 = vmatmul.mubr.f32.gmra.mrb[0].mxu0 %v5759
        %v5860 = vpop.f32.mrb[0].mxu0
        %v5861 = vadd.f32 0.0, %v5860
        %v5862 = vpop.f32.mrb[0].mxu0
        %5863 = vmatprep.mubr.f32.mxu0 0.0
        %5864 = vmatmul.mubr.f32.gmra.mrb[0].mxu0 %v5762
        %v5865 = vpop.f32.mrb[0].mxu0
        %v5866 = vadd.f32 0.0, %v5865
        %v5867 = vpop.f32.mrb[0].mxu0
        %5868 = vdwg.mxu0
        %v5869 = vrcp.pop %v5501
        %v5870 = vrcp.pop %v5504
        %v5871 = vrcp.pop %v5507
        %v5872 = vrcp.pop %v5510
        %v5873 = vrcp.pop %v5513
        %v5874 = vrcp.pop %v5516
        %v5875 = vrcp.pop %v5519
        %v5876 = vrcp.pop %v5522
        %v5877 = vrcp.pop %v5525
        %v5878 = vrcp.pop %v5528
        %v5879 = vrcp.pop %v5531
        %v5880 = vrcp.pop %v5534
        %v5881 = vrcp.pop %v5537
        %v5882 = vrcp.pop %v5540
        %v5883 = vrcp.pop %v5543
        %v5884 = vrcp.pop %v5546
        %v5885 = vmul.f32 %v5670, %v5869
        %v5886 = vmul.f32 %v5675, %v5870
        %v5887 = vmul.f32 %v5680, %v5871
        %v5888 = vmul.f32 %v5685, %v5872
        %v5889 = vmul.f32 %v5690, %v5873
        %v5890 = vmul.f32 %v5695, %v5874
        %v5891 = vmul.f32 %v5700, %v5875
        %v5892 = vmul.f32 %v5705, %v5876
        %v5893 = vmul.f32 %v5831, %v5877
        %v5894 = vmul.f32 %v5836, %v5878
        %v5895 = vmul.f32 %v5841, %v5879
        %v5896 = vmul.f32 %v5846, %v5880
        %v5897 = vmul.f32 %v5851, %v5881
        %v5898 = vmul.f32 %v5856, %v5882
        %v5899 = vmul.f32 %v5861, %v5883
        %v5900 = vmul.f32 %v5866, %v5884
        %5917 = vrot.lane.b32.xlu0 %v5885, 8
        %v5918 = vpop.permute.xlu0 %5917
        %5919 = vrot.lane.b32.xlu0 %v5886, 8
        %v5920 = vpop.permute.xlu0 %5919
        %5921 = vrot.lane.b32.xlu0 %v5887, 8
        %v5922 = vpop.permute.xlu0 %5921
        %5923 = vrot.lane.b32.xlu0 %v5888, 8
        %v5924 = vpop.permute.xlu0 %5923
        %5925 = vrot.lane.b32.xlu0 %v5889, 8
        %v5926 = vpop.permute.xlu0 %5925
        %5927 = vrot.lane.b32.xlu0 %v5890, 8
        %v5928 = vpop.permute.xlu0 %5927
        %5929 = vrot.lane.b32.xlu0 %v5891, 8
        %v5930 = vpop.permute.xlu0 %5929
        %5931 = vrot.lane.b32.xlu0 %v5892, 8
        %v5932 = vpop.permute.xlu0 %5931
        %5933 = vrot.lane.b32.xlu0 %v5893, 8
        %v5934 = vpop.permute.xlu0 %5933
        %5935 = vrot.lane.b32.xlu0 %v5894, 8
        %v5936 = vpop.permute.xlu0 %5935
        %5937 = vrot.lane.b32.xlu0 %v5895, 8
        %v5938 = vpop.permute.xlu0 %5937
        %5939 = vrot.lane.b32.xlu0 %v5896, 8
        %v5940 = vpop.permute.xlu0 %5939
        %5941 = vrot.lane.b32.xlu0 %v5897, 8
        %v5942 = vpop.permute.xlu0 %5941
        %5943 = vrot.lane.b32.xlu0 %v5898, 8
        %v5944 = vpop.permute.xlu0 %5943
        %5945 = vrot.lane.b32.xlu0 %v5899, 8
        %v5946 = vpop.permute.xlu0 %5945
        %5947 = vrot.lane.b32.xlu0 %v5900, 8
        %v5948 = vpop.permute.xlu0 %5947
        %5965 = vst.msk [vmem:[%s4944] sm:$0xff] %vm2071, %v5918
        %5966 = vst.msk [vmem:[%s4944 + $0x8] sm:$0xff] %vm2071, %v5920
        %5967 = vst.msk [vmem:[%s4944 + $0x10] sm:$0xff] %vm2071, %v5922
        %5968 = vst.msk [vmem:[%s4944 + $0x18] sm:$0xff] %vm2071, %v5924
        %5969 = vst.msk [vmem:[%s4944 + $0x20] sm:$0xff] %vm2071, %v5926
        %5970 = vst.msk [vmem:[%s4944 + $0x28] sm:$0xff] %vm2071, %v5928
        %5971 = vst.msk [vmem:[%s4944 + $0x30] sm:$0xff] %vm2071, %v5930
        %5972 = vst.msk [vmem:[%s4944 + $0x38] sm:$0xff] %vm2071, %v5932
        %5973 = vst.msk [vmem:[%s4944 + $0x80] sm:$0xff] %vm2071, %v5934
        %5974 = vst.msk [vmem:[%s4944 + $0x88] sm:$0xff] %vm2071, %v5936
        %5975 = vst.msk [vmem:[%s4944 + $0x90] sm:$0xff] %vm2071, %v5938
        %5976 = vst.msk [vmem:[%s4944 + $0x98] sm:$0xff] %vm2071, %v5940
        %5977 = vst.msk [vmem:[%s4944 + $0xa0] sm:$0xff] %vm2071, %v5942
        %5978 = vst.msk [vmem:[%s4944 + $0xa8] sm:$0xff] %vm2071, %v5944
        %5979 = vst.msk [vmem:[%s4944 + $0xb0] sm:$0xff] %vm2071, %v5946
        %5980 = vst.msk [vmem:[%s4944 + $0xb8] sm:$0xff] %vm2071, %v5948
        %v5981 = vld [vmem:[%s196 + $0x8] sm:$0xff]
        %v5982 = vld [vmem:[%s196 + $0x18] sm:$0xff]
        %v5983 = vld [vmem:[%s196 + $0x28] sm:$0xff]
        %v5984 = vld [vmem:[%s196 + $0x38] sm:$0xff]
        %v5985 = vld [vmem:[%s196 + $0x48] sm:$0xff]
        %v5986 = vld [vmem:[%s196 + $0x58] sm:$0xff]
        %v5987 = vld [vmem:[%s196 + $0x68] sm:$0xff]
        %v5988 = vld [vmem:[%s196 + $0x78] sm:$0xff]
        %v5989 = vld [vmem:[%s196 + $0x88] sm:$0xff]
        %v5990 = vld [vmem:[%s196 + $0x98] sm:$0xff]
        %v5991 = vld [vmem:[%s196 + $0xa8] sm:$0xff]
        %v5992 = vld [vmem:[%s196 + $0xb8] sm:$0xff]
        %v5993 = vld [vmem:[%s196 + $0xc8] sm:$0xff]
        %v5994 = vld [vmem:[%s196 + $0xd8] sm:$0xff]
        %v5995 = vld [vmem:[%s196 + $0xe8] sm:$0xff]
        %v5996 = vld [vmem:[%s196 + $0xf8] sm:$0xff]
        %v5997 = vld [vmem:[%s250 + $0x8] sm:$0xff]
        %v5998 = vld [vmem:[%s250 + $0x18] sm:$0xff]
        %v5999 = vld [vmem:[%s250 + $0x28] sm:$0xff]
        %v6000 = vld [vmem:[%s250 + $0x38] sm:$0xff]
        %v6001 = vld [vmem:[%s250 + $0x48] sm:$0xff]
        %v6002 = vld [vmem:[%s250 + $0x58] sm:$0xff]
        %v6003 = vld [vmem:[%s250 + $0x68] sm:$0xff]
        %v6004 = vld [vmem:[%s250 + $0x78] sm:$0xff]
        %v6005 = vld [vmem:[%s250 + $0x88] sm:$0xff]
        %v6006 = vld [vmem:[%s250 + $0x98] sm:$0xff]
        %v6007 = vld [vmem:[%s250 + $0xa8] sm:$0xff]
        %v6008 = vld [vmem:[%s250 + $0xb8] sm:$0xff]
        %v6009 = vld [vmem:[%s250 + $0xc8] sm:$0xff]
        %v6010 = vld [vmem:[%s250 + $0xd8] sm:$0xff]
        %v6011 = vld [vmem:[%s250 + $0xe8] sm:$0xff]
        %v6012 = vld [vmem:[%s250 + $0xf8] sm:$0xff]
        %v6013 = vld [vmem:[%s267 + $0x8] sm:$0xff]
        %v6014 = vld [vmem:[%s267 + $0x18] sm:$0xff]
        %v6015 = vld [vmem:[%s267 + $0x28] sm:$0xff]
        %v6016 = vld [vmem:[%s267 + $0x38] sm:$0xff]
        %v6017 = vld [vmem:[%s267 + $0x48] sm:$0xff]
        %v6018 = vld [vmem:[%s267 + $0x58] sm:$0xff]
        %v6019 = vld [vmem:[%s267 + $0x68] sm:$0xff]
        %v6020 = vld [vmem:[%s267 + $0x78] sm:$0xff]
        %v6021 = vld [vmem:[%s267 + $0x88] sm:$0xff]
        %v6022 = vld [vmem:[%s267 + $0x98] sm:$0xff]
        %v6023 = vld [vmem:[%s267 + $0xa8] sm:$0xff]
        %v6024 = vld [vmem:[%s267 + $0xb8] sm:$0xff]
        %v6025 = vld [vmem:[%s267 + $0xc8] sm:$0xff]
        %v6026 = vld [vmem:[%s267 + $0xd8] sm:$0xff]
        %v6027 = vld [vmem:[%s267 + $0xe8] sm:$0xff]
        %v6028 = vld [vmem:[%s267 + $0xf8] sm:$0xff]
        %v6029 = vmul.f32 %v5981, 0.35355338
        %v6030 = vmul.f32 %v5982, 0.35355338
        %v6031 = vmul.f32 %v5983, 0.35355338
        %v6032 = vmul.f32 %v5984, 0.35355338
        %v6033 = vmul.f32 %v5985, 0.35355338
        %v6034 = vmul.f32 %v5986, 0.35355338
        %v6035 = vmul.f32 %v5987, 0.35355338
        %v6036 = vmul.f32 %v5988, 0.35355338
        %v6037 = vmul.f32 %v5989, 0.35355338
        %v6038 = vmul.f32 %v5990, 0.35355338
        %v6039 = vmul.f32 %v5991, 0.35355338
        %v6040 = vmul.f32 %v5992, 0.35355338
        %v6041 = vmul.f32 %v5993, 0.35355338
        %v6042 = vmul.f32 %v5994, 0.35355338
        %v6043 = vmul.f32 %v5995, 0.35355338
        %v6044 = vmul.f32 %v5996, 0.35355338
        %v6045 = vld [vmem:[%s2152] sm:$0xff]
        %v6046 = vld [vmem:[%s2152 + $0x8] sm:$0xff]
        %v6047 = vld [vmem:[%s2152 + $0x10] sm:$0xff]
        %v6048 = vld [vmem:[%s2152 + $0x18] sm:$0xff]
        %v6049 = vld [vmem:[%s2152 + $0x20] sm:$0xff]
        %v6050 = vld [vmem:[%s2152 + $0x28] sm:$0xff]
        %v6051 = vld [vmem:[%s2152 + $0x30] sm:$0xff]
        %v6052 = vld [vmem:[%s2152 + $0x38] sm:$0xff]
        %6061 = vrot.lane.b32.xlu0 %v6029, 112
        %v6062 = vpop.permute.xlu0 %6061
        %6063 = vrot.lane.b32.xlu0 %v6030, 112
        %v6064 = vpop.permute.xlu0 %6063
        %6065 = vrot.lane.b32.xlu0 %v6031, 112
        %v6066 = vpop.permute.xlu0 %6065
        %6067 = vrot.lane.b32.xlu0 %v6032, 112
        %v6068 = vpop.permute.xlu0 %6067
        %6069 = vrot.lane.b32.xlu0 %v6033, 112
        %v6070 = vpop.permute.xlu0 %6069
        %6071 = vrot.lane.b32.xlu0 %v6034, 112
        %v6072 = vpop.permute.xlu0 %6071
        %6073 = vrot.lane.b32.xlu0 %v6035, 112
        %v6074 = vpop.permute.xlu0 %6073
        %6075 = vrot.lane.b32.xlu0 %v6036, 112
        %v6076 = vpop.permute.xlu0 %6075
        %6085 = vrot.lane.b32.xlu0 %v5997, 112
        %v6086 = vpop.permute.xlu0 %6085
        %6087 = vrot.lane.b32.xlu0 %v5998, 112
        %v6088 = vpop.permute.xlu0 %6087
        %6089 = vrot.lane.b32.xlu0 %v5999, 112
        %v6090 = vpop.permute.xlu0 %6089
        %6091 = vrot.lane.b32.xlu0 %v6000, 112
        %v6092 = vpop.permute.xlu0 %6091
        %6093 = vrot.lane.b32.xlu0 %v6001, 112
        %v6094 = vpop.permute.xlu0 %6093
        %6095 = vrot.lane.b32.xlu0 %v6002, 112
        %v6096 = vpop.permute.xlu0 %6095
        %6097 = vrot.lane.b32.xlu0 %v6003, 112
        %v6098 = vpop.permute.xlu0 %6097
        %6099 = vrot.lane.b32.xlu0 %v6004, 112
        %v6100 = vpop.permute.xlu0 %6099
        %v6101 = vsel %vm308, %v6062, 0
        %v6103 = vsel %vm308, %v6064, 0
        %v6105 = vsel %vm308, %v6066, 0
        %v6107 = vsel %vm308, %v6068, 0
        %v6109 = vsel %vm308, %v6070, 0
        %v6111 = vsel %vm308, %v6072, 0
        %v6113 = vsel %vm308, %v6074, 0
        %v6115 = vsel %vm308, %v6076, 0
        %v6117 = vsel %vm308, %v6086, 0
        %v6119 = vsel %vm308, %v6088, 0
        %v6121 = vsel %vm308, %v6090, 0
        %v6123 = vsel %vm308, %v6092, 0
        %v6125 = vsel %vm308, %v6094, 0
        %v6127 = vsel %vm308, %v6096, 0
        %v6129 = vsel %vm308, %v6098, 0
        %v6131 = vsel %vm308, %v6100, 0
        %6133 = vmatprep.subr.mxu0 0.0
        %6134 = vmatpush1.xpose.msra.mxu0 %v6117
        %6135 = vmatprep.subr.mxu0 0.0
        %6136 = vmatpush1.xpose.msra.mxu0 %v6119
        %6137 = vmatprep.subr.mxu0 0.0
        %6138 = vmatpush1.xpose.msra.mxu0 %v6121
        %6139 = vmatprep.subr.mxu0 0.0
        %6140 = vmatpush1.xpose.msra.mxu0 %v6123
        %6141 = vmatprep.subr.mxu0 0.0
        %6142 = vmatpush1.xpose.msra.mxu0 %v6125
        %6143 = vmatprep.subr.mxu0 0.0
        %6144 = vmatpush1.xpose.msra.mxu0 %v6127
        %6145 = vmatprep.subr.mxu0 0.0
        %6146 = vmatpush1.xpose.msra.mxu0 %v6129
        %6147 = vmatprep.subr.mxu0 0.0
        %6148 = vmatpush1.xpose.msra.mxu0 %v6131
        %6149 = vmatprep.subr.mxu0 0.0
        %6150 = vmatpush1.xpose.msra.mxu0 0.0
        %6151 = vmatprep.subr.mxu0 0.0
        %6152 = vmatpush1.xpose.msra.mxu0 0.0
        %6153 = vmatprep.subr.mxu0 0.0
        %6154 = vmatpush1.xpose.msra.mxu0 0.0
        %6155 = vmatprep.subr.mxu0 0.0
        %6156 = vmatpush1.xpose.msra.mxu0 0.0
        %6157 = vmatprep.subr.mxu0 0.0
        %6158 = vmatpush1.xpose.msra.mxu0 0.0
        %6159 = vmatprep.subr.mxu0 0.0
        %6160 = vmatpush1.xpose.msra.mxu0 0.0
        %6161 = vmatprep.subr.mxu0 0.0
        %6162 = vmatpush1.xpose.msra.mxu0 0.0
        %6163 = vmatprep.subr.mxu0 0.0
        %6164 = vmatpush1.xpose.msra.mxu0 0.0
        %6165 = vmatprep.subr.mxu0 0.0
        %6166 = vmatpush1.xpose.msra.mxu0 0.0
        %6167 = vmatprep.subr.mxu0 0.0
        %6168 = vmatpush1.xpose.msra.mxu0 0.0
        %6169 = vmatprep.subr.mxu0 0.0
        %6170 = vmatpush1.xpose.msra.mxu0 0.0
        %6171 = vmatprep.subr.mxu0 0.0
        %6172 = vmatpush1.xpose.msra.mxu0 0.0
        %6173 = vmatprep.subr.mxu0 0.0
        %6174 = vmatpush1.xpose.msra.mxu0 0.0
        %6175 = vmatprep.subr.mxu0 0.0
        %6176 = vmatpush1.xpose.msra.mxu0 0.0
        %6177 = vmatprep.subr.mxu0 0.0
        %6178 = vmatpush1.xpose.msra.mxu0 0.0
        %6179 = vmatprep.subr.mxu0 0.0
        %6180 = vmatpush1.xpose.msra.mxu0 0.0
        %6181 = vmatprep.subr.mxu0 0.0
        %6182 = vmatpush1.xpose.msra.mxu0 0.0
        %6183 = vmatprep.subr.mxu0 0.0
        %6184 = vmatpush1.xpose.msra.mxu0 0.0
        %6185 = vmatprep.subr.mxu0 0.0
        %6186 = vmatpush1.xpose.msra.mxu0 0.0
        %6187 = vmatprep.subr.mxu0 0.0
        %6188 = vmatpush1.xpose.msra.mxu0 0.0
        %6189 = vmatprep.subr.mxu0 0.0
        %6190 = vmatpush1.xpose.msra.mxu0 0.0
        %6191 = vmatprep.subr.mxu0 0.0
        %6192 = vmatpush1.xpose.msra.mxu0 0.0
        %6193 = vmatprep.subr.mxu0 0.0
        %6194 = vmatpush1.xpose.msra.mxu0 0.0
        %6195 = vmatprep.subr.mxu0 0.0
        %6196 = vmatpush1.xpose.msra.mxu0 0.0
        %6197 = vmatprep.mubr.f32.mxu0 0.0
        %6198 = vmatmul.mubr.f32.gmra.mrb[0].mxu0 %v6101
        %v6199 = vpop.f32.mrb[0].mxu0
        %v6200 = vadd.f32 %v6045, %v6199
        %v6201 = vpop.f32.mrb[0].mxu0
        %6202 = vmatprep.mubr.f32.mxu0 0.0
        %6203 = vmatmul.mubr.f32.gmra.mrb[0].mxu0 %v6103
        %v6204 = vpop.f32.mrb[0].mxu0
        %v6205 = vadd.f32 %v6046, %v6204
        %v6206 = vpop.f32.mrb[0].mxu0
        %6207 = vmatprep.mubr.f32.mxu0 0.0
        %6208 = vmatmul.mubr.f32.gmra.mrb[0].mxu0 %v6105
        %v6209 = vpop.f32.mrb[0].mxu0
        %v6210 = vadd.f32 %v6047, %v6209
        %v6211 = vpop.f32.mrb[0].mxu0
        %6212 = vmatprep.mubr.f32.mxu0 0.0
        %6213 = vmatmul.mubr.f32.gmra.mrb[0].mxu0 %v6107
        %v6214 = vpop.f32.mrb[0].mxu0
        %v6215 = vadd.f32 %v6048, %v6214
        %v6216 = vpop.f32.mrb[0].mxu0
        %6217 = vmatprep.mubr.f32.mxu0 0.0
        %6218 = vmatmul.mubr.f32.gmra.mrb[0].mxu0 %v6109
        %v6219 = vpop.f32.mrb[0].mxu0
        %v6220 = vadd.f32 %v6049, %v6219
        %v6221 = vpop.f32.mrb[0].mxu0
        %6222 = vmatprep.mubr.f32.mxu0 0.0
        %6223 = vmatmul.mubr.f32.gmra.mrb[0].mxu0 %v6111
        %v6224 = vpop.f32.mrb[0].mxu0
        %v6225 = vadd.f32 %v6050, %v6224
        %v6226 = vpop.f32.mrb[0].mxu0
        %6227 = vmatprep.mubr.f32.mxu0 0.0
        %6228 = vmatmul.mubr.f32.gmra.mrb[0].mxu0 %v6113
        %v6229 = vpop.f32.mrb[0].mxu0
        %v6230 = vadd.f32 %v6051, %v6229
        %v6231 = vpop.f32.mrb[0].mxu0
        %6232 = vmatprep.mubr.f32.mxu0 0.0
        %6233 = vmatmul.mubr.f32.gmra.mrb[0].mxu0 %v6115
        %v6234 = vpop.f32.mrb[0].mxu0
        %v6235 = vadd.f32 %v6052, %v6234
        %v6236 = vpop.f32.mrb[0].mxu0
        %6237 = vdwg.mxu0
        %6246 = vrot.lane.b32.xlu0 %v6037, 112
        %v6247 = vpop.permute.xlu0 %6246
        %6248 = vrot.lane.b32.xlu0 %v6038, 112
        %v6249 = vpop.permute.xlu0 %6248
        %6250 = vrot.lane.b32.xlu0 %v6039, 112
        %v6251 = vpop.permute.xlu0 %6250
        %6252 = vrot.lane.b32.xlu0 %v6040, 112
        %v6253 = vpop.permute.xlu0 %6252
        %6254 = vrot.lane.b32.xlu0 %v6041, 112
        %v6255 = vpop.permute.xlu0 %6254
        %6256 = vrot.lane.b32.xlu0 %v6042, 112
        %v6257 = vpop.permute.xlu0 %6256
        %6258 = vrot.lane.b32.xlu0 %v6043, 112
        %v6259 = vpop.permute.xlu0 %6258
        %6260 = vrot.lane.b32.xlu0 %v6044, 112
        %v6261 = vpop.permute.xlu0 %6260
        %6270 = vrot.lane.b32.xlu0 %v6005, 112
        %v6271 = vpop.permute.xlu0 %6270
        %6272 = vrot.lane.b32.xlu0 %v6006, 112
        %v6273 = vpop.permute.xlu0 %6272
        %6274 = vrot.lane.b32.xlu0 %v6007, 112
        %v6275 = vpop.permute.xlu0 %6274
        %6276 = vrot.lane.b32.xlu0 %v6008, 112
        %v6277 = vpop.permute.xlu0 %6276
        %6278 = vrot.lane.b32.xlu0 %v6009, 112
        %v6279 = vpop.permute.xlu0 %6278
        %6280 = vrot.lane.b32.xlu0 %v6010, 112
        %v6281 = vpop.permute.xlu0 %6280
        %6282 = vrot.lane.b32.xlu0 %v6011, 112
        %v6283 = vpop.permute.xlu0 %6282
        %6284 = vrot.lane.b32.xlu0 %v6012, 112
        %v6285 = vpop.permute.xlu0 %6284
        %v6286 = vsel %vm308, %v6247, 0
        %v6288 = vsel %vm308, %v6249, 0
        %v6290 = vsel %vm308, %v6251, 0
        %v6292 = vsel %vm308, %v6253, 0
        %v6294 = vsel %vm308, %v6255, 0
        %v6296 = vsel %vm308, %v6257, 0
        %v6298 = vsel %vm308, %v6259, 0
        %v6300 = vsel %vm308, %v6261, 0
        %v6302 = vsel %vm308, %v6271, 0
        %v6304 = vsel %vm308, %v6273, 0
        %v6306 = vsel %vm308, %v6275, 0
        %v6308 = vsel %vm308, %v6277, 0
        %v6310 = vsel %vm308, %v6279, 0
        %v6312 = vsel %vm308, %v6281, 0
        %v6314 = vsel %vm308, %v6283, 0
        %v6316 = vsel %vm308, %v6285, 0
        %6318 = vmatprep.subr.mxu0 0.0
        %6319 = vmatpush1.xpose.msra.mxu0 %v6302
        %6320 = vmatprep.subr.mxu0 0.0
        %6321 = vmatpush1.xpose.msra.mxu0 %v6304
        %6322 = vmatprep.subr.mxu0 0.0
        %6323 = vmatpush1.xpose.msra.mxu0 %v6306
        %6324 = vmatprep.subr.mxu0 0.0
        %6325 = vmatpush1.xpose.msra.mxu0 %v6308
        %6326 = vmatprep.subr.mxu0 0.0
        %6327 = vmatpush1.xpose.msra.mxu0 %v6310
        %6328 = vmatprep.subr.mxu0 0.0
        %6329 = vmatpush1.xpose.msra.mxu0 %v6312
        %6330 = vmatprep.subr.mxu0 0.0
        %6331 = vmatpush1.xpose.msra.mxu0 %v6314
        %6332 = vmatprep.subr.mxu0 0.0
        %6333 = vmatpush1.xpose.msra.mxu0 %v6316
        %6334 = vmatprep.subr.mxu0 0.0
        %6335 = vmatpush1.xpose.msra.mxu0 0.0
        %6336 = vmatprep.subr.mxu0 0.0
        %6337 = vmatpush1.xpose.msra.mxu0 0.0
        %6338 = vmatprep.subr.mxu0 0.0
        %6339 = vmatpush1.xpose.msra.mxu0 0.0
        %6340 = vmatprep.subr.mxu0 0.0
        %6341 = vmatpush1.xpose.msra.mxu0 0.0
        %6342 = vmatprep.subr.mxu0 0.0
        %6343 = vmatpush1.xpose.msra.mxu0 0.0
        %6344 = vmatprep.subr.mxu0 0.0
        %6345 = vmatpush1.xpose.msra.mxu0 0.0
        %6346 = vmatprep.subr.mxu0 0.0
        %6347 = vmatpush1.xpose.msra.mxu0 0.0
        %6348 = vmatprep.subr.mxu0 0.0
        %6349 = vmatpush1.xpose.msra.mxu0 0.0
        %6350 = vmatprep.subr.mxu0 0.0
        %6351 = vmatpush1.xpose.msra.mxu0 0.0
        %6352 = vmatprep.subr.mxu0 0.0
        %6353 = vmatpush1.xpose.msra.mxu0 0.0
        %6354 = vmatprep.subr.mxu0 0.0
        %6355 = vmatpush1.xpose.msra.mxu0 0.0
        %6356 = vmatprep.subr.mxu0 0.0
        %6357 = vmatpush1.xpose.msra.mxu0 0.0
        %6358 = vmatprep.subr.mxu0 0.0
        %6359 = vmatpush1.xpose.msra.mxu0 0.0
        %6360 = vmatprep.subr.mxu0 0.0
        %6361 = vmatpush1.xpose.msra.mxu0 0.0
        %6362 = vmatprep.subr.mxu0 0.0
        %6363 = vmatpush1.xpose.msra.mxu0 0.0
        %6364 = vmatprep.subr.mxu0 0.0
        %6365 = vmatpush1.xpose.msra.mxu0 0.0
        %6366 = vmatprep.subr.mxu0 0.0
        %6367 = vmatpush1.xpose.msra.mxu0 0.0
        %6368 = vmatprep.subr.mxu0 0.0
        %6369 = vmatpush1.xpose.msra.mxu0 0.0
        %6370 = vmatprep.subr.mxu0 0.0
        %6371 = vmatpush1.xpose.msra.mxu0 0.0
        %6372 = vmatprep.subr.mxu0 0.0
        %6373 = vmatpush1.xpose.msra.mxu0 0.0
        %6374 = vmatprep.subr.mxu0 0.0
        %6375 = vmatpush1.xpose.msra.mxu0 0.0
        %6376 = vmatprep.subr.mxu0 0.0
        %6377 = vmatpush1.xpose.msra.mxu0 0.0
        %6378 = vmatprep.subr.mxu0 0.0
        %6379 = vmatpush1.xpose.msra.mxu0 0.0
        %6380 = vmatprep.subr.mxu0 0.0
        %6381 = vmatpush1.xpose.msra.mxu0 0.0
        %6382 = vmatprep.mubr.f32.mxu0 0.0
        %6383 = vmatmul.mubr.f32.gmra.mrb[0].mxu0 %v6286
        %v6384 = vpop.f32.mrb[0].mxu0
        %v6385 = vadd.f32 %v6045, %v6384
        %v6386 = vpop.f32.mrb[0].mxu0
        %6387 = vmatprep.mubr.f32.mxu0 0.0
        %6388 = vmatmul.mubr.f32.gmra.mrb[0].mxu0 %v6288
        %v6389 = vpop.f32.mrb[0].mxu0
        %v6390 = vadd.f32 %v6046, %v6389
        %v6391 = vpop.f32.mrb[0].mxu0
        %6392 = vmatprep.mubr.f32.mxu0 0.0
        %6393 = vmatmul.mubr.f32.gmra.mrb[0].mxu0 %v6290
        %v6394 = vpop.f32.mrb[0].mxu0
        %v6395 = vadd.f32 %v6047, %v6394
        %v6396 = vpop.f32.mrb[0].mxu0
        %6397 = vmatprep.mubr.f32.mxu0 0.0
        %6398 = vmatmul.mubr.f32.gmra.mrb[0].mxu0 %v6292
        %v6399 = vpop.f32.mrb[0].mxu0
        %v6400 = vadd.f32 %v6048, %v6399
        %v6401 = vpop.f32.mrb[0].mxu0
        %6402 = vmatprep.mubr.f32.mxu0 0.0
        %6403 = vmatmul.mubr.f32.gmra.mrb[0].mxu0 %v6294
        %v6404 = vpop.f32.mrb[0].mxu0
        %v6405 = vadd.f32 %v6049, %v6404
        %v6406 = vpop.f32.mrb[0].mxu0
        %6407 = vmatprep.mubr.f32.mxu0 0.0
        %6408 = vmatmul.mubr.f32.gmra.mrb[0].mxu0 %v6296
        %v6409 = vpop.f32.mrb[0].mxu0
        %v6410 = vadd.f32 %v6050, %v6409
        %v6411 = vpop.f32.mrb[0].mxu0
        %6412 = vmatprep.mubr.f32.mxu0 0.0
        %6413 = vmatmul.mubr.f32.gmra.mrb[0].mxu0 %v6298
        %v6414 = vpop.f32.mrb[0].mxu0
        %v6415 = vadd.f32 %v6051, %v6414
        %v6416 = vpop.f32.mrb[0].mxu0
        %6417 = vmatprep.mubr.f32.mxu0 0.0
        %6418 = vmatmul.mubr.f32.gmra.mrb[0].mxu0 %v6300
        %v6419 = vpop.f32.mrb[0].mxu0
        %v6420 = vadd.f32 %v6052, %v6419
        %v6421 = vpop.f32.mrb[0].mxu0
        %6422 = vdwg.mxu0
        %v6423 = vsel %vm615, %v6200, -inf
        %6424 = vmax.xlane.f32.xlu0 %v6423
        %v6425 = vpop.xlane.xlu0 %6424
        %v6426 = vsel %vm615, %v6205, -inf
        %6427 = vmax.xlane.f32.xlu0 %v6426
        %v6428 = vpop.xlane.xlu0 %6427
        %v6429 = vsel %vm615, %v6210, -inf
        %6430 = vmax.xlane.f32.xlu0 %v6429
        %v6431 = vpop.xlane.xlu0 %6430
        %v6432 = vsel %vm615, %v6215, -inf
        %6433 = vmax.xlane.f32.xlu0 %v6432
        %v6434 = vpop.xlane.xlu0 %6433
        %v6435 = vsel %vm615, %v6220, -inf
        %6436 = vmax.xlane.f32.xlu0 %v6435
        %v6437 = vpop.xlane.xlu0 %6436
        %v6438 = vsel %vm615, %v6225, -inf
        %6439 = vmax.xlane.f32.xlu0 %v6438
        %v6440 = vpop.xlane.xlu0 %6439
        %v6441 = vsel %vm615, %v6230, -inf
        %6442 = vmax.xlane.f32.xlu0 %v6441
        %v6443 = vpop.xlane.xlu0 %6442
        %v6444 = vsel %vm615, %v6235, -inf
        %6445 = vmax.xlane.f32.xlu0 %v6444
        %v6446 = vpop.xlane.xlu0 %6445
        %v6447 = vsel %vm615, %v6385, -inf
        %6448 = vmax.xlane.f32.xlu0 %v6447
        %v6449 = vpop.xlane.xlu0 %6448
        %v6450 = vsel %vm615, %v6390, -inf
        %6451 = vmax.xlane.f32.xlu0 %v6450
        %v6452 = vpop.xlane.xlu0 %6451
        %v6453 = vsel %vm615, %v6395, -inf
        %6454 = vmax.xlane.f32.xlu0 %v6453
        %v6455 = vpop.xlane.xlu0 %6454
        %v6456 = vsel %vm615, %v6400, -inf
        %6457 = vmax.xlane.f32.xlu0 %v6456
        %v6458 = vpop.xlane.xlu0 %6457
        %v6459 = vsel %vm615, %v6405, -inf
        %6460 = vmax.xlane.f32.xlu0 %v6459
        %v6461 = vpop.xlane.xlu0 %6460
        %v6462 = vsel %vm615, %v6410, -inf
        %6463 = vmax.xlane.f32.xlu0 %v6462
        %v6464 = vpop.xlane.xlu0 %6463
        %v6465 = vsel %vm615, %v6415, -inf
        %6466 = vmax.xlane.f32.xlu0 %v6465
        %v6467 = vpop.xlane.xlu0 %6466
        %v6468 = vsel %vm615, %v6420, -inf
        %6469 = vmax.xlane.f32.xlu0 %v6468
        %v6470 = vpop.xlane.xlu0 %6469
        %v6471 = vsub.f32 %v6200, %v6425
        %v6472 = vsub.f32 %v6205, %v6428
        %v6473 = vsub.f32 %v6210, %v6431
        %v6474 = vsub.f32 %v6215, %v6434
        %v6475 = vsub.f32 %v6220, %v6437
        %v6476 = vsub.f32 %v6225, %v6440
        %v6477 = vsub.f32 %v6230, %v6443
        %v6478 = vsub.f32 %v6235, %v6446
        %v6479 = vsub.f32 %v6385, %v6449
        %v6480 = vsub.f32 %v6390, %v6452
        %v6481 = vsub.f32 %v6395, %v6455
        %v6482 = vsub.f32 %v6400, %v6458
        %v6483 = vsub.f32 %v6405, %v6461
        %v6484 = vsub.f32 %v6410, %v6464
        %v6485 = vsub.f32 %v6415, %v6467
        %v6486 = vsub.f32 %v6420, %v6470
        %v6487 = vmul.f32 %v6471, 1.442695
        %v6488 = vpow.pop %v6487
        %v6489 = vmul.f32 %v6472, 1.442695
        %v6490 = vpow.pop %v6489
        %v6491 = vmul.f32 %v6473, 1.442695
        %v6492 = vpow.pop %v6491
        %v6493 = vmul.f32 %v6474, 1.442695
        %v6494 = vpow.pop %v6493
        %v6495 = vmul.f32 %v6475, 1.442695
        %v6496 = vpow.pop %v6495
        %v6497 = vmul.f32 %v6476, 1.442695
        %v6498 = vpow.pop %v6497
        %v6499 = vmul.f32 %v6477, 1.442695
        %v6500 = vpow.pop %v6499
        %v6501 = vmul.f32 %v6478, 1.442695
        %v6502 = vpow.pop %v6501
        %v6503 = vmul.f32 %v6479, 1.442695
        %v6504 = vpow.pop %v6503
        %v6505 = vmul.f32 %v6480, 1.442695
        %v6506 = vpow.pop %v6505
        %v6507 = vmul.f32 %v6481, 1.442695
        %v6508 = vpow.pop %v6507
        %v6509 = vmul.f32 %v6482, 1.442695
        %v6510 = vpow.pop %v6509
        %v6511 = vmul.f32 %v6483, 1.442695
        %v6512 = vpow.pop %v6511
        %v6513 = vmul.f32 %v6484, 1.442695
        %v6514 = vpow.pop %v6513
        %v6515 = vmul.f32 %v6485, 1.442695
        %v6516 = vpow.pop %v6515
        %v6517 = vmul.f32 %v6486, 1.442695
        %v6518 = vpow.pop %v6517
        %v6519 = vsel %vm615, %v6488, 0.0
        %6520 = vadd.xlane.f32.xlu0 %v6519
        %v6521 = vpop.xlane.xlu0 %6520
        %v6522 = vsel %vm615, %v6490, 0.0
        %6523 = vadd.xlane.f32.xlu0 %v6522
        %v6524 = vpop.xlane.xlu0 %6523
        %v6525 = vsel %vm615, %v6492, 0.0
        %6526 = vadd.xlane.f32.xlu0 %v6525
        %v6527 = vpop.xlane.xlu0 %6526
        %v6528 = vsel %vm615, %v6494, 0.0
        %6529 = vadd.xlane.f32.xlu0 %v6528
        %v6530 = vpop.xlane.xlu0 %6529
        %v6531 = vsel %vm615, %v6496, 0.0
        %6532 = vadd.xlane.f32.xlu0 %v6531
        %v6533 = vpop.xlane.xlu0 %6532
        %v6534 = vsel %vm615, %v6498, 0.0
        %6535 = vadd.xlane.f32.xlu0 %v6534
        %v6536 = vpop.xlane.xlu0 %6535
        %v6537 = vsel %vm615, %v6500, 0.0
        %6538 = vadd.xlane.f32.xlu0 %v6537
        %v6539 = vpop.xlane.xlu0 %6538
        %v6540 = vsel %vm615, %v6502, 0.0
        %6541 = vadd.xlane.f32.xlu0 %v6540
        %v6542 = vpop.xlane.xlu0 %6541
        %v6543 = vsel %vm615, %v6504, 0.0
        %6544 = vadd.xlane.f32.xlu0 %v6543
        %v6545 = vpop.xlane.xlu0 %6544
        %v6546 = vsel %vm615, %v6506, 0.0
        %6547 = vadd.xlane.f32.xlu0 %v6546
        %v6548 = vpop.xlane.xlu0 %6547
        %v6549 = vsel %vm615, %v6508, 0.0
        %6550 = vadd.xlane.f32.xlu0 %v6549
        %v6551 = vpop.xlane.xlu0 %6550
        %v6552 = vsel %vm615, %v6510, 0.0
        %6553 = vadd.xlane.f32.xlu0 %v6552
        %v6554 = vpop.xlane.xlu0 %6553
        %v6555 = vsel %vm615, %v6512, 0.0
        %6556 = vadd.xlane.f32.xlu0 %v6555
        %v6557 = vpop.xlane.xlu0 %6556
        %v6558 = vsel %vm615, %v6514, 0.0
        %6559 = vadd.xlane.f32.xlu0 %v6558
        %v6560 = vpop.xlane.xlu0 %6559
        %v6561 = vsel %vm615, %v6516, 0.0
        %6562 = vadd.xlane.f32.xlu0 %v6561
        %v6563 = vpop.xlane.xlu0 %6562
        %v6564 = vsel %vm615, %v6518, 0.0
        %6565 = vadd.xlane.f32.xlu0 %v6564
        %v6566 = vpop.xlane.xlu0 %6565
        %6575 = vrot.lane.b32.xlu0 %v6013, 112
        %v6576 = vpop.permute.xlu0 %6575
        %6577 = vrot.lane.b32.xlu0 %v6014, 112
        %v6578 = vpop.permute.xlu0 %6577
        %6579 = vrot.lane.b32.xlu0 %v6015, 112
        %v6580 = vpop.permute.xlu0 %6579
        %6581 = vrot.lane.b32.xlu0 %v6016, 112
        %v6582 = vpop.permute.xlu0 %6581
        %6583 = vrot.lane.b32.xlu0 %v6017, 112
        %v6584 = vpop.permute.xlu0 %6583
        %6585 = vrot.lane.b32.xlu0 %v6018, 112
        %v6586 = vpop.permute.xlu0 %6585
        %6587 = vrot.lane.b32.xlu0 %v6019, 112
        %v6588 = vpop.permute.xlu0 %6587
        %6589 = vrot.lane.b32.xlu0 %v6020, 112
        %v6590 = vpop.permute.xlu0 %6589
        %v6600 = vsel %vm615, %v6488, 0
        %v6603 = vsel %vm615, %v6490, 0
        %v6606 = vsel %vm615, %v6492, 0
        %v6609 = vsel %vm615, %v6494, 0
        %v6612 = vsel %vm615, %v6496, 0
        %v6615 = vsel %vm615, %v6498, 0
        %v6618 = vsel %vm615, %v6500, 0
        %v6621 = vsel %vm615, %v6502, 0
        %6623 = vmatprep.subr.mxu0 0.0
        %6624 = vmatpush1.msra.mxu0 %v6576
        %6625 = vmatprep.subr.mxu0 0.0
        %6626 = vmatpush1.msra.mxu0 %v6578
        %6627 = vmatprep.subr.mxu0 0.0
        %6628 = vmatpush1.msra.mxu0 %v6580
        %6629 = vmatprep.subr.mxu0 0.0
        %6630 = vmatpush1.msra.mxu0 %v6582
        %6631 = vmatprep.subr.mxu0 0.0
        %6632 = vmatpush1.msra.mxu0 %v6584
        %6633 = vmatprep.subr.mxu0 0.0
        %6634 = vmatpush1.msra.mxu0 %v6586
        %6635 = vmatprep.subr.mxu0 0.0
        %6636 = vmatpush1.msra.mxu0 %v6588
        %6637 = vmatprep.subr.mxu0 0.0
        %6638 = vmatpush1.msra.mxu0 %v6590
        %6639 = vmatprep.subr.mxu0 0.0
        %6640 = vmatpush1.msra.mxu0 0.0
        %6641 = vmatprep.subr.mxu0 0.0
        %6642 = vmatpush1.msra.mxu0 0.0
        %6643 = vmatprep.subr.mxu0 0.0
        %6644 = vmatpush1.msra.mxu0 0.0
        %6645 = vmatprep.subr.mxu0 0.0
        %6646 = vmatpush1.msra.mxu0 0.0
        %6647 = vmatprep.subr.mxu0 0.0
        %6648 = vmatpush1.msra.mxu0 0.0
        %6649 = vmatprep.subr.mxu0 0.0
        %6650 = vmatpush1.msra.mxu0 0.0
        %6651 = vmatprep.subr.mxu0 0.0
        %6652 = vmatpush1.msra.mxu0 0.0
        %6653 = vmatprep.subr.mxu0 0.0
        %6654 = vmatpush1.msra.mxu0 0.0
        %6655 = vmatprep.subr.mxu0 0.0
        %6656 = vmatpush1.msra.mxu0 0.0
        %6657 = vmatprep.subr.mxu0 0.0
        %6658 = vmatpush1.msra.mxu0 0.0
        %6659 = vmatprep.subr.mxu0 0.0
        %6660 = vmatpush1.msra.mxu0 0.0
        %6661 = vmatprep.subr.mxu0 0.0
        %6662 = vmatpush1.msra.mxu0 0.0
        %6663 = vmatprep.subr.mxu0 0.0
        %6664 = vmatpush1.msra.mxu0 0.0
        %6665 = vmatprep.subr.mxu0 0.0
        %6666 = vmatpush1.msra.mxu0 0.0
        %6667 = vmatprep.subr.mxu0 0.0
        %6668 = vmatpush1.msra.mxu0 0.0
        %6669 = vmatprep.subr.mxu0 0.0
        %6670 = vmatpush1.msra.mxu0 0.0
        %6671 = vmatprep.subr.mxu0 0.0
        %6672 = vmatpush1.msra.mxu0 0.0
        %6673 = vmatprep.subr.mxu0 0.0
        %6674 = vmatpush1.msra.mxu0 0.0
        %6675 = vmatprep.subr.mxu0 0.0
        %6676 = vmatpush1.msra.mxu0 0.0
        %6677 = vmatprep.subr.mxu0 0.0
        %6678 = vmatpush1.msra.mxu0 0.0
        %6679 = vmatprep.subr.mxu0 0.0
        %6680 = vmatpush1.msra.mxu0 0.0
        %6681 = vmatprep.subr.mxu0 0.0
        %6682 = vmatpush1.msra.mxu0 0.0
        %6683 = vmatprep.subr.mxu0 0.0
        %6684 = vmatpush1.msra.mxu0 0.0
        %6685 = vmatprep.subr.mxu0 0.0
        %6686 = vmatpush1.msra.mxu0 0.0
        %6687 = vmatprep.mubr.f32.mxu0 0.0
        %6688 = vmatmul.mubr.f32.gmra.mrb[0].mxu0 %v6600
        %v6689 = vpop.f32.mrb[0].mxu0
        %v6690 = vadd.f32 0.0, %v6689
        %v6691 = vpop.f32.mrb[0].mxu0
        %6692 = vmatprep.mubr.f32.mxu0 0.0
        %6693 = vmatmul.mubr.f32.gmra.mrb[0].mxu0 %v6603
        %v6694 = vpop.f32.mrb[0].mxu0
        %v6695 = vadd.f32 0.0, %v6694
        %v6696 = vpop.f32.mrb[0].mxu0
        %6697 = vmatprep.mubr.f32.mxu0 0.0
        %6698 = vmatmul.mubr.f32.gmra.mrb[0].mxu0 %v6606
        %v6699 = vpop.f32.mrb[0].mxu0
        %v6700 = vadd.f32 0.0, %v6699
        %v6701 = vpop.f32.mrb[0].mxu0
        %6702 = vmatprep.mubr.f32.mxu0 0.0
        %6703 = vmatmul.mubr.f32.gmra.mrb[0].mxu0 %v6609
        %v6704 = vpop.f32.mrb[0].mxu0
        %v6705 = vadd.f32 0.0, %v6704
        %v6706 = vpop.f32.mrb[0].mxu0
        %6707 = vmatprep.mubr.f32.mxu0 0.0
        %6708 = vmatmul.mubr.f32.gmra.mrb[0].mxu0 %v6612
        %v6709 = vpop.f32.mrb[0].mxu0
        %v6710 = vadd.f32 0.0, %v6709
        %v6711 = vpop.f32.mrb[0].mxu0
        %6712 = vmatprep.mubr.f32.mxu0 0.0
        %6713 = vmatmul.mubr.f32.gmra.mrb[0].mxu0 %v6615
        %v6714 = vpop.f32.mrb[0].mxu0
        %v6715 = vadd.f32 0.0, %v6714
        %v6716 = vpop.f32.mrb[0].mxu0
        %6717 = vmatprep.mubr.f32.mxu0 0.0
        %6718 = vmatmul.mubr.f32.gmra.mrb[0].mxu0 %v6618
        %v6719 = vpop.f32.mrb[0].mxu0
        %v6720 = vadd.f32 0.0, %v6719
        %v6721 = vpop.f32.mrb[0].mxu0
        %6722 = vmatprep.mubr.f32.mxu0 0.0
        %6723 = vmatmul.mubr.f32.gmra.mrb[0].mxu0 %v6621
        %v6724 = vpop.f32.mrb[0].mxu0
        %v6725 = vadd.f32 0.0, %v6724
        %v6726 = vpop.f32.mrb[0].mxu0
        %6727 = vdwg.mxu0
        %6736 = vrot.lane.b32.xlu0 %v6021, 112
        %v6737 = vpop.permute.xlu0 %6736
        %6738 = vrot.lane.b32.xlu0 %v6022, 112
        %v6739 = vpop.permute.xlu0 %6738
        %6740 = vrot.lane.b32.xlu0 %v6023, 112
        %v6741 = vpop.permute.xlu0 %6740
        %6742 = vrot.lane.b32.xlu0 %v6024, 112
        %v6743 = vpop.permute.xlu0 %6742
        %6744 = vrot.lane.b32.xlu0 %v6025, 112
        %v6745 = vpop.permute.xlu0 %6744
        %6746 = vrot.lane.b32.xlu0 %v6026, 112
        %v6747 = vpop.permute.xlu0 %6746
        %6748 = vrot.lane.b32.xlu0 %v6027, 112
        %v6749 = vpop.permute.xlu0 %6748
        %6750 = vrot.lane.b32.xlu0 %v6028, 112
        %v6751 = vpop.permute.xlu0 %6750
        %v6761 = vsel %vm615, %v6504, 0
        %v6764 = vsel %vm615, %v6506, 0
        %v6767 = vsel %vm615, %v6508, 0
        %v6770 = vsel %vm615, %v6510, 0
        %v6773 = vsel %vm615, %v6512, 0
        %v6776 = vsel %vm615, %v6514, 0
        %v6779 = vsel %vm615, %v6516, 0
        %v6782 = vsel %vm615, %v6518, 0
        %6784 = vmatprep.subr.mxu0 0.0
        %6785 = vmatpush1.msra.mxu0 %v6737
        %6786 = vmatprep.subr.mxu0 0.0
        %6787 = vmatpush1.msra.mxu0 %v6739
        %6788 = vmatprep.subr.mxu0 0.0
        %6789 = vmatpush1.msra.mxu0 %v6741
        %6790 = vmatprep.subr.mxu0 0.0
        %6791 = vmatpush1.msra.mxu0 %v6743
        %6792 = vmatprep.subr.mxu0 0.0
        %6793 = vmatpush1.msra.mxu0 %v6745
        %6794 = vmatprep.subr.mxu0 0.0
        %6795 = vmatpush1.msra.mxu0 %v6747
        %6796 = vmatprep.subr.mxu0 0.0
        %6797 = vmatpush1.msra.mxu0 %v6749
        %6798 = vmatprep.subr.mxu0 0.0
        %6799 = vmatpush1.msra.mxu0 %v6751
        %6800 = vmatprep.subr.mxu0 0.0
        %6801 = vmatpush1.msra.mxu0 0.0
        %6802 = vmatprep.subr.mxu0 0.0
        %6803 = vmatpush1.msra.mxu0 0.0
        %6804 = vmatprep.subr.mxu0 0.0
        %6805 = vmatpush1.msra.mxu0 0.0
        %6806 = vmatprep.subr.mxu0 0.0
        %6807 = vmatpush1.msra.mxu0 0.0
        %6808 = vmatprep.subr.mxu0 0.0
        %6809 = vmatpush1.msra.mxu0 0.0
        %6810 = vmatprep.subr.mxu0 0.0
        %6811 = vmatpush1.msra.mxu0 0.0
        %6812 = vmatprep.subr.mxu0 0.0
        %6813 = vmatpush1.msra.mxu0 0.0
        %6814 = vmatprep.subr.mxu0 0.0
        %6815 = vmatpush1.msra.mxu0 0.0
        %6816 = vmatprep.subr.mxu0 0.0
        %6817 = vmatpush1.msra.mxu0 0.0
        %6818 = vmatprep.subr.mxu0 0.0
        %6819 = vmatpush1.msra.mxu0 0.0
        %6820 = vmatprep.subr.mxu0 0.0
        %6821 = vmatpush1.msra.mxu0 0.0
        %6822 = vmatprep.subr.mxu0 0.0
        %6823 = vmatpush1.msra.mxu0 0.0
        %6824 = vmatprep.subr.mxu0 0.0
        %6825 = vmatpush1.msra.mxu0 0.0
        %6826 = vmatprep.subr.mxu0 0.0
        %6827 = vmatpush1.msra.mxu0 0.0
        %6828 = vmatprep.subr.mxu0 0.0
        %6829 = vmatpush1.msra.mxu0 0.0
        %6830 = vmatprep.subr.mxu0 0.0
        %6831 = vmatpush1.msra.mxu0 0.0
        %6832 = vmatprep.subr.mxu0 0.0
        %6833 = vmatpush1.msra.mxu0 0.0
        %6834 = vmatprep.subr.mxu0 0.0
        %6835 = vmatpush1.msra.mxu0 0.0
        %6836 = vmatprep.subr.mxu0 0.0
        %6837 = vmatpush1.msra.mxu0 0.0
        %6838 = vmatprep.subr.mxu0 0.0
        %6839 = vmatpush1.msra.mxu0 0.0
        %6840 = vmatprep.subr.mxu0 0.0
        %6841 = vmatpush1.msra.mxu0 0.0
        %6842 = vmatprep.subr.mxu0 0.0
        %6843 = vmatpush1.msra.mxu0 0.0
        %6844 = vmatprep.subr.mxu0 0.0
        %6845 = vmatpush1.msra.mxu0 0.0
        %6846 = vmatprep.subr.mxu0 0.0
        %6847 = vmatpush1.msra.mxu0 0.0
        %6848 = vmatprep.mubr.f32.mxu0 0.0
        %6849 = vmatmul.mubr.f32.gmra.mrb[0].mxu0 %v6761
        %v6850 = vpop.f32.mrb[0].mxu0
        %v6851 = vadd.f32 0.0, %v6850
        %v6852 = vpop.f32.mrb[0].mxu0
        %6853 = vmatprep.mubr.f32.mxu0 0.0
        %6854 = vmatmul.mubr.f32.gmra.mrb[0].mxu0 %v6764
        %v6855 = vpop.f32.mrb[0].mxu0
        %v6856 = vadd.f32 0.0, %v6855
        %v6857 = vpop.f32.mrb[0].mxu0
        %6858 = vmatprep.mubr.f32.mxu0 0.0
        %6859 = vmatmul.mubr.f32.gmra.mrb[0].mxu0 %v6767
        %v6860 = vpop.f32.mrb[0].mxu0
        %v6861 = vadd.f32 0.0, %v6860
        %v6862 = vpop.f32.mrb[0].mxu0
        %6863 = vmatprep.mubr.f32.mxu0 0.0
        %6864 = vmatmul.mubr.f32.gmra.mrb[0].mxu0 %v6770
        %v6865 = vpop.f32.mrb[0].mxu0
        %v6866 = vadd.f32 0.0, %v6865
        %v6867 = vpop.f32.mrb[0].mxu0
        %6868 = vmatprep.mubr.f32.mxu0 0.0
        %6869 = vmatmul.mubr.f32.gmra.mrb[0].mxu0 %v6773
        %v6870 = vpop.f32.mrb[0].mxu0
        %v6871 = vadd.f32 0.0, %v6870
        %v6872 = vpop.f32.mrb[0].mxu0
        %6873 = vmatprep.mubr.f32.mxu0 0.0
        %6874 = vmatmul.mubr.f32.gmra.mrb[0].mxu0 %v6776
        %v6875 = vpop.f32.mrb[0].mxu0
        %v6876 = vadd.f32 0.0, %v6875
        %v6877 = vpop.f32.mrb[0].mxu0
        %6878 = vmatprep.mubr.f32.mxu0 0.0
        %6879 = vmatmul.mubr.f32.gmra.mrb[0].mxu0 %v6779
        %v6880 = vpop.f32.mrb[0].mxu0
        %v6881 = vadd.f32 0.0, %v6880
        %v6882 = vpop.f32.mrb[0].mxu0
        %6883 = vmatprep.mubr.f32.mxu0 0.0
        %6884 = vmatmul.mubr.f32.gmra.mrb[0].mxu0 %v6782
        %v6885 = vpop.f32.mrb[0].mxu0
        %v6886 = vadd.f32 0.0, %v6885
        %v6887 = vpop.f32.mrb[0].mxu0
        %6888 = vdwg.mxu0
        %v6889 = vrcp.pop %v6521
        %v6890 = vrcp.pop %v6524
        %v6891 = vrcp.pop %v6527
        %v6892 = vrcp.pop %v6530
        %v6893 = vrcp.pop %v6533
        %v6894 = vrcp.pop %v6536
        %v6895 = vrcp.pop %v6539
        %v6896 = vrcp.pop %v6542
        %v6897 = vrcp.pop %v6545
        %v6898 = vrcp.pop %v6548
        %v6899 = vrcp.pop %v6551
        %v6900 = vrcp.pop %v6554
        %v6901 = vrcp.pop %v6557
        %v6902 = vrcp.pop %v6560
        %v6903 = vrcp.pop %v6563
        %v6904 = vrcp.pop %v6566
        %v6905 = vmul.f32 %v6690, %v6889
        %v6906 = vmul.f32 %v6695, %v6890
        %v6907 = vmul.f32 %v6700, %v6891
        %v6908 = vmul.f32 %v6705, %v6892
        %v6909 = vmul.f32 %v6710, %v6893
        %v6910 = vmul.f32 %v6715, %v6894
        %v6911 = vmul.f32 %v6720, %v6895
        %v6912 = vmul.f32 %v6725, %v6896
        %v6913 = vmul.f32 %v6851, %v6897
        %v6914 = vmul.f32 %v6856, %v6898
        %v6915 = vmul.f32 %v6861, %v6899
        %v6916 = vmul.f32 %v6866, %v6900
        %v6917 = vmul.f32 %v6871, %v6901
        %v6918 = vmul.f32 %v6876, %v6902
        %v6919 = vmul.f32 %v6881, %v6903
        %v6920 = vmul.f32 %v6886, %v6904
        %6937 = vrot.lane.b32.xlu0 %v6905, 16
        %v6938 = vpop.permute.xlu0 %6937
        %6939 = vrot.lane.b32.xlu0 %v6906, 16
        %v6940 = vpop.permute.xlu0 %6939
        %6941 = vrot.lane.b32.xlu0 %v6907, 16
        %v6942 = vpop.permute.xlu0 %6941
        %6943 = vrot.lane.b32.xlu0 %v6908, 16
        %v6944 = vpop.permute.xlu0 %6943
        %6945 = vrot.lane.b32.xlu0 %v6909, 16
        %v6946 = vpop.permute.xlu0 %6945
        %6947 = vrot.lane.b32.xlu0 %v6910, 16
        %v6948 = vpop.permute.xlu0 %6947
        %6949 = vrot.lane.b32.xlu0 %v6911, 16
        %v6950 = vpop.permute.xlu0 %6949
        %6951 = vrot.lane.b32.xlu0 %v6912, 16
        %v6952 = vpop.permute.xlu0 %6951
        %6953 = vrot.lane.b32.xlu0 %v6913, 16
        %v6954 = vpop.permute.xlu0 %6953
        %6955 = vrot.lane.b32.xlu0 %v6914, 16
        %v6956 = vpop.permute.xlu0 %6955
        %6957 = vrot.lane.b32.xlu0 %v6915, 16
        %v6958 = vpop.permute.xlu0 %6957
        %6959 = vrot.lane.b32.xlu0 %v6916, 16
        %v6960 = vpop.permute.xlu0 %6959
        %6961 = vrot.lane.b32.xlu0 %v6917, 16
        %v6962 = vpop.permute.xlu0 %6961
        %6963 = vrot.lane.b32.xlu0 %v6918, 16
        %v6964 = vpop.permute.xlu0 %6963
        %6965 = vrot.lane.b32.xlu0 %v6919, 16
        %v6966 = vpop.permute.xlu0 %6965
        %6967 = vrot.lane.b32.xlu0 %v6920, 16
        %v6968 = vpop.permute.xlu0 %6967
        %6985 = vst.msk [vmem:[%s4944] sm:$0xff] %vm3093, %v6938
        %6986 = vst.msk [vmem:[%s4944 + $0x8] sm:$0xff] %vm3093, %v6940
        %6987 = vst.msk [vmem:[%s4944 + $0x10] sm:$0xff] %vm3093, %v6942
        %6988 = vst.msk [vmem:[%s4944 + $0x18] sm:$0xff] %vm3093, %v6944
        %6989 = vst.msk [vmem:[%s4944 + $0x20] sm:$0xff] %vm3093, %v6946
        %6990 = vst.msk [vmem:[%s4944 + $0x28] sm:$0xff] %vm3093, %v6948
        %6991 = vst.msk [vmem:[%s4944 + $0x30] sm:$0xff] %vm3093, %v6950
        %6992 = vst.msk [vmem:[%s4944 + $0x38] sm:$0xff] %vm3093, %v6952
        %6993 = vst.msk [vmem:[%s4944 + $0x80] sm:$0xff] %vm3093, %v6954
        %6994 = vst.msk [vmem:[%s4944 + $0x88] sm:$0xff] %vm3093, %v6956
        %6995 = vst.msk [vmem:[%s4944 + $0x90] sm:$0xff] %vm3093, %v6958
        %6996 = vst.msk [vmem:[%s4944 + $0x98] sm:$0xff] %vm3093, %v6960
        %6997 = vst.msk [vmem:[%s4944 + $0xa0] sm:$0xff] %vm3093, %v6962
        %6998 = vst.msk [vmem:[%s4944 + $0xa8] sm:$0xff] %vm3093, %v6964
        %6999 = vst.msk [vmem:[%s4944 + $0xb0] sm:$0xff] %vm3093, %v6966
        %7000 = vst.msk [vmem:[%s4944 + $0xb8] sm:$0xff] %vm3093, %v6968
        %v7001 = vld [vmem:[%s196 + $0x8] sm:$0xff]
        %v7002 = vld [vmem:[%s196 + $0x18] sm:$0xff]
        %v7003 = vld [vmem:[%s196 + $0x28] sm:$0xff]
        %v7004 = vld [vmem:[%s196 + $0x38] sm:$0xff]
        %v7005 = vld [vmem:[%s196 + $0x48] sm:$0xff]
        %v7006 = vld [vmem:[%s196 + $0x58] sm:$0xff]
        %v7007 = vld [vmem:[%s196 + $0x68] sm:$0xff]
        %v7008 = vld [vmem:[%s196 + $0x78] sm:$0xff]
        %v7009 = vld [vmem:[%s196 + $0x88] sm:$0xff]
        %v7010 = vld [vmem:[%s196 + $0x98] sm:$0xff]
        %v7011 = vld [vmem:[%s196 + $0xa8] sm:$0xff]
        %v7012 = vld [vmem:[%s196 + $0xb8] sm:$0xff]
        %v7013 = vld [vmem:[%s196 + $0xc8] sm:$0xff]
        %v7014 = vld [vmem:[%s196 + $0xd8] sm:$0xff]
        %v7015 = vld [vmem:[%s196 + $0xe8] sm:$0xff]
        %v7016 = vld [vmem:[%s196 + $0xf8] sm:$0xff]
        %v7017 = vld [vmem:[%s250 + $0x8] sm:$0xff]
        %v7018 = vld [vmem:[%s250 + $0x18] sm:$0xff]
        %v7019 = vld [vmem:[%s250 + $0x28] sm:$0xff]
        %v7020 = vld [vmem:[%s250 + $0x38] sm:$0xff]
        %v7021 = vld [vmem:[%s250 + $0x48] sm:$0xff]
        %v7022 = vld [vmem:[%s250 + $0x58] sm:$0xff]
        %v7023 = vld [vmem:[%s250 + $0x68] sm:$0xff]
        %v7024 = vld [vmem:[%s250 + $0x78] sm:$0xff]
        %v7025 = vld [vmem:[%s250 + $0x88] sm:$0xff]
        %v7026 = vld [vmem:[%s250 + $0x98] sm:$0xff]
        %v7027 = vld [vmem:[%s250 + $0xa8] sm:$0xff]
        %v7028 = vld [vmem:[%s250 + $0xb8] sm:$0xff]
        %v7029 = vld [vmem:[%s250 + $0xc8] sm:$0xff]
        %v7030 = vld [vmem:[%s250 + $0xd8] sm:$0xff]
        %v7031 = vld [vmem:[%s250 + $0xe8] sm:$0xff]
        %v7032 = vld [vmem:[%s250 + $0xf8] sm:$0xff]
        %v7033 = vld [vmem:[%s267 + $0x8] sm:$0xff]
        %v7034 = vld [vmem:[%s267 + $0x18] sm:$0xff]
        %v7035 = vld [vmem:[%s267 + $0x28] sm:$0xff]
        %v7036 = vld [vmem:[%s267 + $0x38] sm:$0xff]
        %v7037 = vld [vmem:[%s267 + $0x48] sm:$0xff]
        %v7038 = vld [vmem:[%s267 + $0x58] sm:$0xff]
        %v7039 = vld [vmem:[%s267 + $0x68] sm:$0xff]
        %v7040 = vld [vmem:[%s267 + $0x78] sm:$0xff]
        %v7041 = vld [vmem:[%s267 + $0x88] sm:$0xff]
        %v7042 = vld [vmem:[%s267 + $0x98] sm:$0xff]
        %v7043 = vld [vmem:[%s267 + $0xa8] sm:$0xff]
        %v7044 = vld [vmem:[%s267 + $0xb8] sm:$0xff]
        %v7045 = vld [vmem:[%s267 + $0xc8] sm:$0xff]
        %v7046 = vld [vmem:[%s267 + $0xd8] sm:$0xff]
        %v7047 = vld [vmem:[%s267 + $0xe8] sm:$0xff]
        %v7048 = vld [vmem:[%s267 + $0xf8] sm:$0xff]
        %v7049 = vmul.f32 %v7001, 0.35355338
        %v7050 = vmul.f32 %v7002, 0.35355338
        %v7051 = vmul.f32 %v7003, 0.35355338
        %v7052 = vmul.f32 %v7004, 0.35355338
        %v7053 = vmul.f32 %v7005, 0.35355338
        %v7054 = vmul.f32 %v7006, 0.35355338
        %v7055 = vmul.f32 %v7007, 0.35355338
        %v7056 = vmul.f32 %v7008, 0.35355338
        %v7057 = vmul.f32 %v7009, 0.35355338
        %v7058 = vmul.f32 %v7010, 0.35355338
        %v7059 = vmul.f32 %v7011, 0.35355338
        %v7060 = vmul.f32 %v7012, 0.35355338
        %v7061 = vmul.f32 %v7013, 0.35355338
        %v7062 = vmul.f32 %v7014, 0.35355338
        %v7063 = vmul.f32 %v7015, 0.35355338
        %v7064 = vmul.f32 %v7016, 0.35355338
        %v7065 = vld [vmem:[%s3174] sm:$0xff]
        %v7066 = vld [vmem:[%s3174 + $0x8] sm:$0xff]
        %v7067 = vld [vmem:[%s3174 + $0x10] sm:$0xff]
        %v7068 = vld [vmem:[%s3174 + $0x18] sm:$0xff]
        %v7069 = vld [vmem:[%s3174 + $0x20] sm:$0xff]
        %v7070 = vld [vmem:[%s3174 + $0x28] sm:$0xff]
        %v7071 = vld [vmem:[%s3174 + $0x30] sm:$0xff]
        %v7072 = vld [vmem:[%s3174 + $0x38] sm:$0xff]
        %7081 = vrot.lane.b32.xlu0 %v7049, 104
        %v7082 = vpop.permute.xlu0 %7081
        %7083 = vrot.lane.b32.xlu0 %v7050, 104
        %v7084 = vpop.permute.xlu0 %7083
        %7085 = vrot.lane.b32.xlu0 %v7051, 104
        %v7086 = vpop.permute.xlu0 %7085
        %7087 = vrot.lane.b32.xlu0 %v7052, 104
        %v7088 = vpop.permute.xlu0 %7087
        %7089 = vrot.lane.b32.xlu0 %v7053, 104
        %v7090 = vpop.permute.xlu0 %7089
        %7091 = vrot.lane.b32.xlu0 %v7054, 104
        %v7092 = vpop.permute.xlu0 %7091
        %7093 = vrot.lane.b32.xlu0 %v7055, 104
        %v7094 = vpop.permute.xlu0 %7093
        %7095 = vrot.lane.b32.xlu0 %v7056, 104
        %v7096 = vpop.permute.xlu0 %7095
        %7105 = vrot.lane.b32.xlu0 %v7017, 104
        %v7106 = vpop.permute.xlu0 %7105
        %7107 = vrot.lane.b32.xlu0 %v7018, 104
        %v7108 = vpop.permute.xlu0 %7107
        %7109 = vrot.lane.b32.xlu0 %v7019, 104
        %v7110 = vpop.permute.xlu0 %7109
        %7111 = vrot.lane.b32.xlu0 %v7020, 104
        %v7112 = vpop.permute.xlu0 %7111
        %7113 = vrot.lane.b32.xlu0 %v7021, 104
        %v7114 = vpop.permute.xlu0 %7113
        %7115 = vrot.lane.b32.xlu0 %v7022, 104
        %v7116 = vpop.permute.xlu0 %7115
        %7117 = vrot.lane.b32.xlu0 %v7023, 104
        %v7118 = vpop.permute.xlu0 %7117
        %7119 = vrot.lane.b32.xlu0 %v7024, 104
        %v7120 = vpop.permute.xlu0 %7119
        %v7121 = vsel %vm308, %v7082, 0
        %v7123 = vsel %vm308, %v7084, 0
        %v7125 = vsel %vm308, %v7086, 0
        %v7127 = vsel %vm308, %v7088, 0
        %v7129 = vsel %vm308, %v7090, 0
        %v7131 = vsel %vm308, %v7092, 0
        %v7133 = vsel %vm308, %v7094, 0
        %v7135 = vsel %vm308, %v7096, 0
        %v7137 = vsel %vm308, %v7106, 0
        %v7139 = vsel %vm308, %v7108, 0
        %v7141 = vsel %vm308, %v7110, 0
        %v7143 = vsel %vm308, %v7112, 0
        %v7145 = vsel %vm308, %v7114, 0
        %v7147 = vsel %vm308, %v7116, 0
        %v7149 = vsel %vm308, %v7118, 0
        %v7151 = vsel %vm308, %v7120, 0
        %7153 = vmatprep.subr.mxu0 0.0
        %7154 = vmatpush1.xpose.msra.mxu0 %v7137
        %7155 = vmatprep.subr.mxu0 0.0
        %7156 = vmatpush1.xpose.msra.mxu0 %v7139
        %7157 = vmatprep.subr.mxu0 0.0
        %7158 = vmatpush1.xpose.msra.mxu0 %v7141
        %7159 = vmatprep.subr.mxu0 0.0
        %7160 = vmatpush1.xpose.msra.mxu0 %v7143
        %7161 = vmatprep.subr.mxu0 0.0
        %7162 = vmatpush1.xpose.msra.mxu0 %v7145
        %7163 = vmatprep.subr.mxu0 0.0
        %7164 = vmatpush1.xpose.msra.mxu0 %v7147
        %7165 = vmatprep.subr.mxu0 0.0
        %7166 = vmatpush1.xpose.msra.mxu0 %v7149
        %7167 = vmatprep.subr.mxu0 0.0
        %7168 = vmatpush1.xpose.msra.mxu0 %v7151
        %7169 = vmatprep.subr.mxu0 0.0
        %7170 = vmatpush1.xpose.msra.mxu0 0.0
        %7171 = vmatprep.subr.mxu0 0.0
        %7172 = vmatpush1.xpose.msra.mxu0 0.0
        %7173 = vmatprep.subr.mxu0 0.0
        %7174 = vmatpush1.xpose.msra.mxu0 0.0
        %7175 = vmatprep.subr.mxu0 0.0
        %7176 = vmatpush1.xpose.msra.mxu0 0.0
        %7177 = vmatprep.subr.mxu0 0.0
        %7178 = vmatpush1.xpose.msra.mxu0 0.0
        %7179 = vmatprep.subr.mxu0 0.0
        %7180 = vmatpush1.xpose.msra.mxu0 0.0
        %7181 = vmatprep.subr.mxu0 0.0
        %7182 = vmatpush1.xpose.msra.mxu0 0.0
        %7183 = vmatprep.subr.mxu0 0.0
        %7184 = vmatpush1.xpose.msra.mxu0 0.0
        %7185 = vmatprep.subr.mxu0 0.0
        %7186 = vmatpush1.xpose.msra.mxu0 0.0
        %7187 = vmatprep.subr.mxu0 0.0
        %7188 = vmatpush1.xpose.msra.mxu0 0.0
        %7189 = vmatprep.subr.mxu0 0.0
        %7190 = vmatpush1.xpose.msra.mxu0 0.0
        %7191 = vmatprep.subr.mxu0 0.0
        %7192 = vmatpush1.xpose.msra.mxu0 0.0
        %7193 = vmatprep.subr.mxu0 0.0
        %7194 = vmatpush1.xpose.msra.mxu0 0.0
        %7195 = vmatprep.subr.mxu0 0.0
        %7196 = vmatpush1.xpose.msra.mxu0 0.0
        %7197 = vmatprep.subr.mxu0 0.0
        %7198 = vmatpush1.xpose.msra.mxu0 0.0
        %7199 = vmatprep.subr.mxu0 0.0
        %7200 = vmatpush1.xpose.msra.mxu0 0.0
        %7201 = vmatprep.subr.mxu0 0.0
        %7202 = vmatpush1.xpose.msra.mxu0 0.0
        %7203 = vmatprep.subr.mxu0 0.0
        %7204 = vmatpush1.xpose.msra.mxu0 0.0
        %7205 = vmatprep.subr.mxu0 0.0
        %7206 = vmatpush1.xpose.msra.mxu0 0.0
        %7207 = vmatprep.subr.mxu0 0.0
        %7208 = vmatpush1.xpose.msra.mxu0 0.0
        %7209 = vmatprep.subr.mxu0 0.0
        %7210 = vmatpush1.xpose.msra.mxu0 0.0
        %7211 = vmatprep.subr.mxu0 0.0
        %7212 = vmatpush1.xpose.msra.mxu0 0.0
        %7213 = vmatprep.subr.mxu0 0.0
        %7214 = vmatpush1.xpose.msra.mxu0 0.0
        %7215 = vmatprep.subr.mxu0 0.0
        %7216 = vmatpush1.xpose.msra.mxu0 0.0
        %7217 = vmatprep.mubr.f32.mxu0 0.0
        %7218 = vmatmul.mubr.f32.gmra.mrb[0].mxu0 %v7121
        %v7219 = vpop.f32.mrb[0].mxu0
        %v7220 = vadd.f32 %v7065, %v7219
        %v7221 = vpop.f32.mrb[0].mxu0
        %7222 = vmatprep.mubr.f32.mxu0 0.0
        %7223 = vmatmul.mubr.f32.gmra.mrb[0].mxu0 %v7123
        %v7224 = vpop.f32.mrb[0].mxu0
        %v7225 = vadd.f32 %v7066, %v7224
        %v7226 = vpop.f32.mrb[0].mxu0
        %7227 = vmatprep.mubr.f32.mxu0 0.0
        %7228 = vmatmul.mubr.f32.gmra.mrb[0].mxu0 %v7125
        %v7229 = vpop.f32.mrb[0].mxu0
        %v7230 = vadd.f32 %v7067, %v7229
        %v7231 = vpop.f32.mrb[0].mxu0
        %7232 = vmatprep.mubr.f32.mxu0 0.0
        %7233 = vmatmul.mubr.f32.gmra.mrb[0].mxu0 %v7127
        %v7234 = vpop.f32.mrb[0].mxu0
        %v7235 = vadd.f32 %v7068, %v7234
        %v7236 = vpop.f32.mrb[0].mxu0
        %7237 = vmatprep.mubr.f32.mxu0 0.0
        %7238 = vmatmul.mubr.f32.gmra.mrb[0].mxu0 %v7129
        %v7239 = vpop.f32.mrb[0].mxu0
        %v7240 = vadd.f32 %v7069, %v7239
        %v7241 = vpop.f32.mrb[0].mxu0
        %7242 = vmatprep.mubr.f32.mxu0 0.0
        %7243 = vmatmul.mubr.f32.gmra.mrb[0].mxu0 %v7131
        %v7244 = vpop.f32.mrb[0].mxu0
        %v7245 = vadd.f32 %v7070, %v7244
        %v7246 = vpop.f32.mrb[0].mxu0
        %7247 = vmatprep.mubr.f32.mxu0 0.0
        %7248 = vmatmul.mubr.f32.gmra.mrb[0].mxu0 %v7133
        %v7249 = vpop.f32.mrb[0].mxu0
        %v7250 = vadd.f32 %v7071, %v7249
        %v7251 = vpop.f32.mrb[0].mxu0
        %7252 = vmatprep.mubr.f32.mxu0 0.0
        %7253 = vmatmul.mubr.f32.gmra.mrb[0].mxu0 %v7135
        %v7254 = vpop.f32.mrb[0].mxu0
        %v7255 = vadd.f32 %v7072, %v7254
        %v7256 = vpop.f32.mrb[0].mxu0
        %7257 = vdwg.mxu0
        %7266 = vrot.lane.b32.xlu0 %v7057, 104
        %v7267 = vpop.permute.xlu0 %7266
        %7268 = vrot.lane.b32.xlu0 %v7058, 104
        %v7269 = vpop.permute.xlu0 %7268
        %7270 = vrot.lane.b32.xlu0 %v7059, 104
        %v7271 = vpop.permute.xlu0 %7270
        %7272 = vrot.lane.b32.xlu0 %v7060, 104
        %v7273 = vpop.permute.xlu0 %7272
        %7274 = vrot.lane.b32.xlu0 %v7061, 104
        %v7275 = vpop.permute.xlu0 %7274
        %7276 = vrot.lane.b32.xlu0 %v7062, 104
        %v7277 = vpop.permute.xlu0 %7276
        %7278 = vrot.lane.b32.xlu0 %v7063, 104
        %v7279 = vpop.permute.xlu0 %7278
        %7280 = vrot.lane.b32.xlu0 %v7064, 104
        %v7281 = vpop.permute.xlu0 %7280
        %7290 = vrot.lane.b32.xlu0 %v7025, 104
        %v7291 = vpop.permute.xlu0 %7290
        %7292 = vrot.lane.b32.xlu0 %v7026, 104
        %v7293 = vpop.permute.xlu0 %7292
        %7294 = vrot.lane.b32.xlu0 %v7027, 104
        %v7295 = vpop.permute.xlu0 %7294
        %7296 = vrot.lane.b32.xlu0 %v7028, 104
        %v7297 = vpop.permute.xlu0 %7296
        %7298 = vrot.lane.b32.xlu0 %v7029, 104
        %v7299 = vpop.permute.xlu0 %7298
        %7300 = vrot.lane.b32.xlu0 %v7030, 104
        %v7301 = vpop.permute.xlu0 %7300
        %7302 = vrot.lane.b32.xlu0 %v7031, 104
        %v7303 = vpop.permute.xlu0 %7302
        %7304 = vrot.lane.b32.xlu0 %v7032, 104
        %v7305 = vpop.permute.xlu0 %7304
        %v7306 = vsel %vm308, %v7267, 0
        %v7308 = vsel %vm308, %v7269, 0
        %v7310 = vsel %vm308, %v7271, 0
        %v7312 = vsel %vm308, %v7273, 0
        %v7314 = vsel %vm308, %v7275, 0
        %v7316 = vsel %vm308, %v7277, 0
        %v7318 = vsel %vm308, %v7279, 0
        %v7320 = vsel %vm308, %v7281, 0
        %v7322 = vsel %vm308, %v7291, 0
        %v7324 = vsel %vm308, %v7293, 0
        %v7326 = vsel %vm308, %v7295, 0
        %v7328 = vsel %vm308, %v7297, 0
        %v7330 = vsel %vm308, %v7299, 0
        %v7332 = vsel %vm308, %v7301, 0
        %v7334 = vsel %vm308, %v7303, 0
        %v7336 = vsel %vm308, %v7305, 0
        %7338 = vmatprep.subr.mxu0 0.0
        %7339 = vmatpush1.xpose.msra.mxu0 %v7322
        %7340 = vmatprep.subr.mxu0 0.0
        %7341 = vmatpush1.xpose.msra.mxu0 %v7324
        %7342 = vmatprep.subr.mxu0 0.0
        %7343 = vmatpush1.xpose.msra.mxu0 %v7326
        %7344 = vmatprep.subr.mxu0 0.0
        %7345 = vmatpush1.xpose.msra.mxu0 %v7328
        %7346 = vmatprep.subr.mxu0 0.0
        %7347 = vmatpush1.xpose.msra.mxu0 %v7330
        %7348 = vmatprep.subr.mxu0 0.0
        %7349 = vmatpush1.xpose.msra.mxu0 %v7332
        %7350 = vmatprep.subr.mxu0 0.0
        %7351 = vmatpush1.xpose.msra.mxu0 %v7334
        %7352 = vmatprep.subr.mxu0 0.0
        %7353 = vmatpush1.xpose.msra.mxu0 %v7336
        %7354 = vmatprep.subr.mxu0 0.0
        %7355 = vmatpush1.xpose.msra.mxu0 0.0
        %7356 = vmatprep.subr.mxu0 0.0
        %7357 = vmatpush1.xpose.msra.mxu0 0.0
        %7358 = vmatprep.subr.mxu0 0.0
        %7359 = vmatpush1.xpose.msra.mxu0 0.0
        %7360 = vmatprep.subr.mxu0 0.0
        %7361 = vmatpush1.xpose.msra.mxu0 0.0
        %7362 = vmatprep.subr.mxu0 0.0
        %7363 = vmatpush1.xpose.msra.mxu0 0.0
        %7364 = vmatprep.subr.mxu0 0.0
        %7365 = vmatpush1.xpose.msra.mxu0 0.0
        %7366 = vmatprep.subr.mxu0 0.0
        %7367 = vmatpush1.xpose.msra.mxu0 0.0
        %7368 = vmatprep.subr.mxu0 0.0
        %7369 = vmatpush1.xpose.msra.mxu0 0.0
        %7370 = vmatprep.subr.mxu0 0.0
        %7371 = vmatpush1.xpose.msra.mxu0 0.0
        %7372 = vmatprep.subr.mxu0 0.0
        %7373 = vmatpush1.xpose.msra.mxu0 0.0
        %7374 = vmatprep.subr.mxu0 0.0
        %7375 = vmatpush1.xpose.msra.mxu0 0.0
        %7376 = vmatprep.subr.mxu0 0.0
        %7377 = vmatpush1.xpose.msra.mxu0 0.0
        %7378 = vmatprep.subr.mxu0 0.0
        %7379 = vmatpush1.xpose.msra.mxu0 0.0
        %7380 = vmatprep.subr.mxu0 0.0
        %7381 = vmatpush1.xpose.msra.mxu0 0.0
        %7382 = vmatprep.subr.mxu0 0.0
        %7383 = vmatpush1.xpose.msra.mxu0 0.0
        %7384 = vmatprep.subr.mxu0 0.0
        %7385 = vmatpush1.xpose.msra.mxu0 0.0
        %7386 = vmatprep.subr.mxu0 0.0
        %7387 = vmatpush1.xpose.msra.mxu0 0.0
        %7388 = vmatprep.subr.mxu0 0.0
        %7389 = vmatpush1.xpose.msra.mxu0 0.0
        %7390 = vmatprep.subr.mxu0 0.0
        %7391 = vmatpush1.xpose.msra.mxu0 0.0
        %7392 = vmatprep.subr.mxu0 0.0
        %7393 = vmatpush1.xpose.msra.mxu0 0.0
        %7394 = vmatprep.subr.mxu0 0.0
        %7395 = vmatpush1.xpose.msra.mxu0 0.0
        %7396 = vmatprep.subr.mxu0 0.0
        %7397 = vmatpush1.xpose.msra.mxu0 0.0
        %7398 = vmatprep.subr.mxu0 0.0
        %7399 = vmatpush1.xpose.msra.mxu0 0.0
        %7400 = vmatprep.subr.mxu0 0.0
        %7401 = vmatpush1.xpose.msra.mxu0 0.0
        %7402 = vmatprep.mubr.f32.mxu0 0.0
        %7403 = vmatmul.mubr.f32.gmra.mrb[0].mxu0 %v7306
        %v7404 = vpop.f32.mrb[0].mxu0
        %v7405 = vadd.f32 %v7065, %v7404
        %v7406 = vpop.f32.mrb[0].mxu0
        %7407 = vmatprep.mubr.f32.mxu0 0.0
        %7408 = vmatmul.mubr.f32.gmra.mrb[0].mxu0 %v7308
        %v7409 = vpop.f32.mrb[0].mxu0
        %v7410 = vadd.f32 %v7066, %v7409
        %v7411 = vpop.f32.mrb[0].mxu0
        %7412 = vmatprep.mubr.f32.mxu0 0.0
        %7413 = vmatmul.mubr.f32.gmra.mrb[0].mxu0 %v7310
        %v7414 = vpop.f32.mrb[0].mxu0
        %v7415 = vadd.f32 %v7067, %v7414
        %v7416 = vpop.f32.mrb[0].mxu0
        %7417 = vmatprep.mubr.f32.mxu0 0.0
        %7418 = vmatmul.mubr.f32.gmra.mrb[0].mxu0 %v7312
        %v7419 = vpop.f32.mrb[0].mxu0
        %v7420 = vadd.f32 %v7068, %v7419
        %v7421 = vpop.f32.mrb[0].mxu0
        %7422 = vmatprep.mubr.f32.mxu0 0.0
        %7423 = vmatmul.mubr.f32.gmra.mrb[0].mxu0 %v7314
        %v7424 = vpop.f32.mrb[0].mxu0
        %v7425 = vadd.f32 %v7069, %v7424
        %v7426 = vpop.f32.mrb[0].mxu0
        %7427 = vmatprep.mubr.f32.mxu0 0.0
        %7428 = vmatmul.mubr.f32.gmra.mrb[0].mxu0 %v7316
        %v7429 = vpop.f32.mrb[0].mxu0
        %v7430 = vadd.f32 %v7070, %v7429
        %v7431 = vpop.f32.mrb[0].mxu0
        %7432 = vmatprep.mubr.f32.mxu0 0.0
        %7433 = vmatmul.mubr.f32.gmra.mrb[0].mxu0 %v7318
        %v7434 = vpop.f32.mrb[0].mxu0
        %v7435 = vadd.f32 %v7071, %v7434
        %v7436 = vpop.f32.mrb[0].mxu0
        %7437 = vmatprep.mubr.f32.mxu0 0.0
        %7438 = vmatmul.mubr.f32.gmra.mrb[0].mxu0 %v7320
        %v7439 = vpop.f32.mrb[0].mxu0
        %v7440 = vadd.f32 %v7072, %v7439
        %v7441 = vpop.f32.mrb[0].mxu0
        %7442 = vdwg.mxu0
        %v7443 = vsel %vm615, %v7220, -inf
        %7444 = vmax.xlane.f32.xlu0 %v7443
        %v7445 = vpop.xlane.xlu0 %7444
        %v7446 = vsel %vm615, %v7225, -inf
        %7447 = vmax.xlane.f32.xlu0 %v7446
        %v7448 = vpop.xlane.xlu0 %7447
        %v7449 = vsel %vm615, %v7230, -inf
        %7450 = vmax.xlane.f32.xlu0 %v7449
        %v7451 = vpop.xlane.xlu0 %7450
        %v7452 = vsel %vm615, %v7235, -inf
        %7453 = vmax.xlane.f32.xlu0 %v7452
        %v7454 = vpop.xlane.xlu0 %7453
        %v7455 = vsel %vm615, %v7240, -inf
        %7456 = vmax.xlane.f32.xlu0 %v7455
        %v7457 = vpop.xlane.xlu0 %7456
        %v7458 = vsel %vm615, %v7245, -inf
        %7459 = vmax.xlane.f32.xlu0 %v7458
        %v7460 = vpop.xlane.xlu0 %7459
        %v7461 = vsel %vm615, %v7250, -inf
        %7462 = vmax.xlane.f32.xlu0 %v7461
        %v7463 = vpop.xlane.xlu0 %7462
        %v7464 = vsel %vm615, %v7255, -inf
        %7465 = vmax.xlane.f32.xlu0 %v7464
        %v7466 = vpop.xlane.xlu0 %7465
        %v7467 = vsel %vm615, %v7405, -inf
        %7468 = vmax.xlane.f32.xlu0 %v7467
        %v7469 = vpop.xlane.xlu0 %7468
        %v7470 = vsel %vm615, %v7410, -inf
        %7471 = vmax.xlane.f32.xlu0 %v7470
        %v7472 = vpop.xlane.xlu0 %7471
        %v7473 = vsel %vm615, %v7415, -inf
        %7474 = vmax.xlane.f32.xlu0 %v7473
        %v7475 = vpop.xlane.xlu0 %7474
        %v7476 = vsel %vm615, %v7420, -inf
        %7477 = vmax.xlane.f32.xlu0 %v7476
        %v7478 = vpop.xlane.xlu0 %7477
        %v7479 = vsel %vm615, %v7425, -inf
        %7480 = vmax.xlane.f32.xlu0 %v7479
        %v7481 = vpop.xlane.xlu0 %7480
        %v7482 = vsel %vm615, %v7430, -inf
        %7483 = vmax.xlane.f32.xlu0 %v7482
        %v7484 = vpop.xlane.xlu0 %7483
        %v7485 = vsel %vm615, %v7435, -inf
        %7486 = vmax.xlane.f32.xlu0 %v7485
        %v7487 = vpop.xlane.xlu0 %7486
        %v7488 = vsel %vm615, %v7440, -inf
        %7489 = vmax.xlane.f32.xlu0 %v7488
        %v7490 = vpop.xlane.xlu0 %7489
        %v7491 = vsub.f32 %v7220, %v7445
        %v7492 = vsub.f32 %v7225, %v7448
        %v7493 = vsub.f32 %v7230, %v7451
        %v7494 = vsub.f32 %v7235, %v7454
        %v7495 = vsub.f32 %v7240, %v7457
        %v7496 = vsub.f32 %v7245, %v7460
        %v7497 = vsub.f32 %v7250, %v7463
        %v7498 = vsub.f32 %v7255, %v7466
        %v7499 = vsub.f32 %v7405, %v7469
        %v7500 = vsub.f32 %v7410, %v7472
        %v7501 = vsub.f32 %v7415, %v7475
        %v7502 = vsub.f32 %v7420, %v7478
        %v7503 = vsub.f32 %v7425, %v7481
        %v7504 = vsub.f32 %v7430, %v7484
        %v7505 = vsub.f32 %v7435, %v7487
        %v7506 = vsub.f32 %v7440, %v7490
        %v7507 = vmul.f32 %v7491, 1.442695
        %v7508 = vpow.pop %v7507
        %v7509 = vmul.f32 %v7492, 1.442695
        %v7510 = vpow.pop %v7509
        %v7511 = vmul.f32 %v7493, 1.442695
        %v7512 = vpow.pop %v7511
        %v7513 = vmul.f32 %v7494, 1.442695
        %v7514 = vpow.pop %v7513
        %v7515 = vmul.f32 %v7495, 1.442695
        %v7516 = vpow.pop %v7515
        %v7517 = vmul.f32 %v7496, 1.442695
        %v7518 = vpow.pop %v7517
        %v7519 = vmul.f32 %v7497, 1.442695
        %v7520 = vpow.pop %v7519
        %v7521 = vmul.f32 %v7498, 1.442695
        %v7522 = vpow.pop %v7521
        %v7523 = vmul.f32 %v7499, 1.442695
        %v7524 = vpow.pop %v7523
        %v7525 = vmul.f32 %v7500, 1.442695
        %v7526 = vpow.pop %v7525
        %v7527 = vmul.f32 %v7501, 1.442695
        %v7528 = vpow.pop %v7527
        %v7529 = vmul.f32 %v7502, 1.442695
        %v7530 = vpow.pop %v7529
        %v7531 = vmul.f32 %v7503, 1.442695
        %v7532 = vpow.pop %v7531
        %v7533 = vmul.f32 %v7504, 1.442695
        %v7534 = vpow.pop %v7533
        %v7535 = vmul.f32 %v7505, 1.442695
        %v7536 = vpow.pop %v7535
        %v7537 = vmul.f32 %v7506, 1.442695
        %v7538 = vpow.pop %v7537
        %v7539 = vsel %vm615, %v7508, 0.0
        %7540 = vadd.xlane.f32.xlu0 %v7539
        %v7541 = vpop.xlane.xlu0 %7540
        %v7542 = vsel %vm615, %v7510, 0.0
        %7543 = vadd.xlane.f32.xlu0 %v7542
        %v7544 = vpop.xlane.xlu0 %7543
        %v7545 = vsel %vm615, %v7512, 0.0
        %7546 = vadd.xlane.f32.xlu0 %v7545
        %v7547 = vpop.xlane.xlu0 %7546
        %v7548 = vsel %vm615, %v7514, 0.0
        %7549 = vadd.xlane.f32.xlu0 %v7548
        %v7550 = vpop.xlane.xlu0 %7549
        %v7551 = vsel %vm615, %v7516, 0.0
        %7552 = vadd.xlane.f32.xlu0 %v7551
        %v7553 = vpop.xlane.xlu0 %7552
        %v7554 = vsel %vm615, %v7518, 0.0
        %7555 = vadd.xlane.f32.xlu0 %v7554
        %v7556 = vpop.xlane.xlu0 %7555
        %v7557 = vsel %vm615, %v7520, 0.0
        %7558 = vadd.xlane.f32.xlu0 %v7557
        %v7559 = vpop.xlane.xlu0 %7558
        %v7560 = vsel %vm615, %v7522, 0.0
        %7561 = vadd.xlane.f32.xlu0 %v7560
        %v7562 = vpop.xlane.xlu0 %7561
        %v7563 = vsel %vm615, %v7524, 0.0
        %7564 = vadd.xlane.f32.xlu0 %v7563
        %v7565 = vpop.xlane.xlu0 %7564
        %v7566 = vsel %vm615, %v7526, 0.0
        %7567 = vadd.xlane.f32.xlu0 %v7566
        %v7568 = vpop.xlane.xlu0 %7567
        %v7569 = vsel %vm615, %v7528, 0.0
        %7570 = vadd.xlane.f32.xlu0 %v7569
        %v7571 = vpop.xlane.xlu0 %7570
        %v7572 = vsel %vm615, %v7530, 0.0
        %7573 = vadd.xlane.f32.xlu0 %v7572
        %v7574 = vpop.xlane.xlu0 %7573
        %v7575 = vsel %vm615, %v7532, 0.0
        %7576 = vadd.xlane.f32.xlu0 %v7575
        %v7577 = vpop.xlane.xlu0 %7576
        %v7578 = vsel %vm615, %v7534, 0.0
        %7579 = vadd.xlane.f32.xlu0 %v7578
        %v7580 = vpop.xlane.xlu0 %7579
        %v7581 = vsel %vm615, %v7536, 0.0
        %7582 = vadd.xlane.f32.xlu0 %v7581
        %v7583 = vpop.xlane.xlu0 %7582
        %v7584 = vsel %vm615, %v7538, 0.0
        %7585 = vadd.xlane.f32.xlu0 %v7584
        %v7586 = vpop.xlane.xlu0 %7585
        %7595 = vrot.lane.b32.xlu0 %v7033, 104
        %v7596 = vpop.permute.xlu0 %7595
        %7597 = vrot.lane.b32.xlu0 %v7034, 104
        %v7598 = vpop.permute.xlu0 %7597
        %7599 = vrot.lane.b32.xlu0 %v7035, 104
        %v7600 = vpop.permute.xlu0 %7599
        %7601 = vrot.lane.b32.xlu0 %v7036, 104
        %v7602 = vpop.permute.xlu0 %7601
        %7603 = vrot.lane.b32.xlu0 %v7037, 104
        %v7604 = vpop.permute.xlu0 %7603
        %7605 = vrot.lane.b32.xlu0 %v7038, 104
        %v7606 = vpop.permute.xlu0 %7605
        %7607 = vrot.lane.b32.xlu0 %v7039, 104
        %v7608 = vpop.permute.xlu0 %7607
        %7609 = vrot.lane.b32.xlu0 %v7040, 104
        %v7610 = vpop.permute.xlu0 %7609
        %v7620 = vsel %vm615, %v7508, 0
        %v7623 = vsel %vm615, %v7510, 0
        %v7626 = vsel %vm615, %v7512, 0
        %v7629 = vsel %vm615, %v7514, 0
        %v7632 = vsel %vm615, %v7516, 0
        %v7635 = vsel %vm615, %v7518, 0
        %v7638 = vsel %vm615, %v7520, 0
        %v7641 = vsel %vm615, %v7522, 0
        %7643 = vmatprep.subr.mxu0 0.0
        %7644 = vmatpush1.msra.mxu0 %v7596
        %7645 = vmatprep.subr.mxu0 0.0
        %7646 = vmatpush1.msra.mxu0 %v7598
        %7647 = vmatprep.subr.mxu0 0.0
        %7648 = vmatpush1.msra.mxu0 %v7600
        %7649 = vmatprep.subr.mxu0 0.0
        %7650 = vmatpush1.msra.mxu0 %v7602
        %7651 = vmatprep.subr.mxu0 0.0
        %7652 = vmatpush1.msra.mxu0 %v7604
        %7653 = vmatprep.subr.mxu0 0.0
        %7654 = vmatpush1.msra.mxu0 %v7606
        %7655 = vmatprep.subr.mxu0 0.0
        %7656 = vmatpush1.msra.mxu0 %v7608
        %7657 = vmatprep.subr.mxu0 0.0
        %7658 = vmatpush1.msra.mxu0 %v7610
        %7659 = vmatprep.subr.mxu0 0.0
        %7660 = vmatpush1.msra.mxu0 0.0
        %7661 = vmatprep.subr.mxu0 0.0
        %7662 = vmatpush1.msra.mxu0 0.0
        %7663 = vmatprep.subr.mxu0 0.0
        %7664 = vmatpush1.msra.mxu0 0.0
        %7665 = vmatprep.subr.mxu0 0.0
        %7666 = vmatpush1.msra.mxu0 0.0
        %7667 = vmatprep.subr.mxu0 0.0
        %7668 = vmatpush1.msra.mxu0 0.0
        %7669 = vmatprep.subr.mxu0 0.0
        %7670 = vmatpush1.msra.mxu0 0.0
        %7671 = vmatprep.subr.mxu0 0.0
        %7672 = vmatpush1.msra.mxu0 0.0
        %7673 = vmatprep.subr.mxu0 0.0
        %7674 = vmatpush1.msra.mxu0 0.0
        %7675 = vmatprep.subr.mxu0 0.0
        %7676 = vmatpush1.msra.mxu0 0.0
        %7677 = vmatprep.subr.mxu0 0.0
        %7678 = vmatpush1.msra.mxu0 0.0
        %7679 = vmatprep.subr.mxu0 0.0
        %7680 = vmatpush1.msra.mxu0 0.0
        %7681 = vmatprep.subr.mxu0 0.0
        %7682 = vmatpush1.msra.mxu0 0.0
        %7683 = vmatprep.subr.mxu0 0.0
        %7684 = vmatpush1.msra.mxu0 0.0
        %7685 = vmatprep.subr.mxu0 0.0
        %7686 = vmatpush1.msra.mxu0 0.0
        %7687 = vmatprep.subr.mxu0 0.0
        %7688 = vmatpush1.msra.mxu0 0.0
        %7689 = vmatprep.subr.mxu0 0.0
        %7690 = vmatpush1.msra.mxu0 0.0
        %7691 = vmatprep.subr.mxu0 0.0
        %7692 = vmatpush1.msra.mxu0 0.0
        %7693 = vmatprep.subr.mxu0 0.0
        %7694 = vmatpush1.msra.mxu0 0.0
        %7695 = vmatprep.subr.mxu0 0.0
        %7696 = vmatpush1.msra.mxu0 0.0
        %7697 = vmatprep.subr.mxu0 0.0
        %7698 = vmatpush1.msra.mxu0 0.0
        %7699 = vmatprep.subr.mxu0 0.0
        %7700 = vmatpush1.msra.mxu0 0.0
        %7701 = vmatprep.subr.mxu0 0.0
        %7702 = vmatpush1.msra.mxu0 0.0
        %7703 = vmatprep.subr.mxu0 0.0
        %7704 = vmatpush1.msra.mxu0 0.0
        %7705 = vmatprep.subr.mxu0 0.0
        %7706 = vmatpush1.msra.mxu0 0.0
        %7707 = vmatprep.mubr.f32.mxu0 0.0
        %7708 = vmatmul.mubr.f32.gmra.mrb[0].mxu0 %v7620
        %v7709 = vpop.f32.mrb[0].mxu0
        %v7710 = vadd.f32 0.0, %v7709
        %v7711 = vpop.f32.mrb[0].mxu0
        %7712 = vmatprep.mubr.f32.mxu0 0.0
        %7713 = vmatmul.mubr.f32.gmra.mrb[0].mxu0 %v7623
        %v7714 = vpop.f32.mrb[0].mxu0
        %v7715 = vadd.f32 0.0, %v7714
        %v7716 = vpop.f32.mrb[0].mxu0
        %7717 = vmatprep.mubr.f32.mxu0 0.0
        %7718 = vmatmul.mubr.f32.gmra.mrb[0].mxu0 %v7626
        %v7719 = vpop.f32.mrb[0].mxu0
        %v7720 = vadd.f32 0.0, %v7719
        %v7721 = vpop.f32.mrb[0].mxu0
        %7722 = vmatprep.mubr.f32.mxu0 0.0
        %7723 = vmatmul.mubr.f32.gmra.mrb[0].mxu0 %v7629
        %v7724 = vpop.f32.mrb[0].mxu0
        %v7725 = vadd.f32 0.0, %v7724
        %v7726 = vpop.f32.mrb[0].mxu0
        %7727 = vmatprep.mubr.f32.mxu0 0.0
        %7728 = vmatmul.mubr.f32.gmra.mrb[0].mxu0 %v7632
        %v7729 = vpop.f32.mrb[0].mxu0
        %v7730 = vadd.f32 0.0, %v7729
        %v7731 = vpop.f32.mrb[0].mxu0
        %7732 = vmatprep.mubr.f32.mxu0 0.0
        %7733 = vmatmul.mubr.f32.gmra.mrb[0].mxu0 %v7635
        %v7734 = vpop.f32.mrb[0].mxu0
        %v7735 = vadd.f32 0.0, %v7734
        %v7736 = vpop.f32.mrb[0].mxu0
        %7737 = vmatprep.mubr.f32.mxu0 0.0
        %7738 = vmatmul.mubr.f32.gmra.mrb[0].mxu0 %v7638
        %v7739 = vpop.f32.mrb[0].mxu0
        %v7740 = vadd.f32 0.0, %v7739
        %v7741 = vpop.f32.mrb[0].mxu0
        %7742 = vmatprep.mubr.f32.mxu0 0.0
        %7743 = vmatmul.mubr.f32.gmra.mrb[0].mxu0 %v7641
        %v7744 = vpop.f32.mrb[0].mxu0
        %v7745 = vadd.f32 0.0, %v7744
        %v7746 = vpop.f32.mrb[0].mxu0
        %7747 = vdwg.mxu0
        %7756 = vrot.lane.b32.xlu0 %v7041, 104
        %v7757 = vpop.permute.xlu0 %7756
        %7758 = vrot.lane.b32.xlu0 %v7042, 104
        %v7759 = vpop.permute.xlu0 %7758
        %7760 = vrot.lane.b32.xlu0 %v7043, 104
        %v7761 = vpop.permute.xlu0 %7760
        %7762 = vrot.lane.b32.xlu0 %v7044, 104
        %v7763 = vpop.permute.xlu0 %7762
        %7764 = vrot.lane.b32.xlu0 %v7045, 104
        %v7765 = vpop.permute.xlu0 %7764
        %7766 = vrot.lane.b32.xlu0 %v7046, 104
        %v7767 = vpop.permute.xlu0 %7766
        %7768 = vrot.lane.b32.xlu0 %v7047, 104
        %v7769 = vpop.permute.xlu0 %7768
        %7770 = vrot.lane.b32.xlu0 %v7048, 104
        %v7771 = vpop.permute.xlu0 %7770
        %v7781 = vsel %vm615, %v7524, 0
        %v7784 = vsel %vm615, %v7526, 0
        %v7787 = vsel %vm615, %v7528, 0
        %v7790 = vsel %vm615, %v7530, 0
        %v7793 = vsel %vm615, %v7532, 0
        %v7796 = vsel %vm615, %v7534, 0
        %v7799 = vsel %vm615, %v7536, 0
        %v7802 = vsel %vm615, %v7538, 0
        %7804 = vmatprep.subr.mxu0 0.0
        %7805 = vmatpush1.msra.mxu0 %v7757
        %7806 = vmatprep.subr.mxu0 0.0
        %7807 = vmatpush1.msra.mxu0 %v7759
        %7808 = vmatprep.subr.mxu0 0.0
        %7809 = vmatpush1.msra.mxu0 %v7761
        %7810 = vmatprep.subr.mxu0 0.0
        %7811 = vmatpush1.msra.mxu0 %v7763
        %7812 = vmatprep.subr.mxu0 0.0
        %7813 = vmatpush1.msra.mxu0 %v7765
        %7814 = vmatprep.subr.mxu0 0.0
        %7815 = vmatpush1.msra.mxu0 %v7767
        %7816 = vmatprep.subr.mxu0 0.0
        %7817 = vmatpush1.msra.mxu0 %v7769
        %7818 = vmatprep.subr.mxu0 0.0
        %7819 = vmatpush1.msra.mxu0 %v7771
        %7820 = vmatprep.subr.mxu0 0.0
        %7821 = vmatpush1.msra.mxu0 0.0
        %7822 = vmatprep.subr.mxu0 0.0
        %7823 = vmatpush1.msra.mxu0 0.0
        %7824 = vmatprep.subr.mxu0 0.0
        %7825 = vmatpush1.msra.mxu0 0.0
        %7826 = vmatprep.subr.mxu0 0.0
        %7827 = vmatpush1.msra.mxu0 0.0
        %7828 = vmatprep.subr.mxu0 0.0
        %7829 = vmatpush1.msra.mxu0 0.0
        %7830 = vmatprep.subr.mxu0 0.0
        %7831 = vmatpush1.msra.mxu0 0.0
        %7832 = vmatprep.subr.mxu0 0.0
        %7833 = vmatpush1.msra.mxu0 0.0
        %7834 = vmatprep.subr.mxu0 0.0
        %7835 = vmatpush1.msra.mxu0 0.0
        %7836 = vmatprep.subr.mxu0 0.0
        %7837 = vmatpush1.msra.mxu0 0.0
        %7838 = vmatprep.subr.mxu0 0.0
        %7839 = vmatpush1.msra.mxu0 0.0
        %7840 = vmatprep.subr.mxu0 0.0
        %7841 = vmatpush1.msra.mxu0 0.0
        %7842 = vmatprep.subr.mxu0 0.0
        %7843 = vmatpush1.msra.mxu0 0.0
        %7844 = vmatprep.subr.mxu0 0.0
        %7845 = vmatpush1.msra.mxu0 0.0
        %7846 = vmatprep.subr.mxu0 0.0
        %7847 = vmatpush1.msra.mxu0 0.0
        %7848 = vmatprep.subr.mxu0 0.0
        %7849 = vmatpush1.msra.mxu0 0.0
        %7850 = vmatprep.subr.mxu0 0.0
        %7851 = vmatpush1.msra.mxu0 0.0
        %7852 = vmatprep.subr.mxu0 0.0
        %7853 = vmatpush1.msra.mxu0 0.0
        %7854 = vmatprep.subr.mxu0 0.0
        %7855 = vmatpush1.msra.mxu0 0.0
        %7856 = vmatprep.subr.mxu0 0.0
        %7857 = vmatpush1.msra.mxu0 0.0
        %7858 = vmatprep.subr.mxu0 0.0
        %7859 = vmatpush1.msra.mxu0 0.0
        %7860 = vmatprep.subr.mxu0 0.0
        %7861 = vmatpush1.msra.mxu0 0.0
        %7862 = vmatprep.subr.mxu0 0.0
        %7863 = vmatpush1.msra.mxu0 0.0
        %7864 = vmatprep.subr.mxu0 0.0
        %7865 = vmatpush1.msra.mxu0 0.0
        %7866 = vmatprep.subr.mxu0 0.0
        %7867 = vmatpush1.msra.mxu0 0.0
        %7868 = vmatprep.mubr.f32.mxu0 0.0
        %7869 = vmatmul.mubr.f32.gmra.mrb[0].mxu0 %v7781
        %v7870 = vpop.f32.mrb[0].mxu0
        %v7871 = vadd.f32 0.0, %v7870
        %v7872 = vpop.f32.mrb[0].mxu0
        %7873 = vmatprep.mubr.f32.mxu0 0.0
        %7874 = vmatmul.mubr.f32.gmra.mrb[0].mxu0 %v7784
        %v7875 = vpop.f32.mrb[0].mxu0
        %v7876 = vadd.f32 0.0, %v7875
        %v7877 = vpop.f32.mrb[0].mxu0
        %7878 = vmatprep.mubr.f32.mxu0 0.0
        %7879 = vmatmul.mubr.f32.gmra.mrb[0].mxu0 %v7787
        %v7880 = vpop.f32.mrb[0].mxu0
        %v7881 = vadd.f32 0.0, %v7880
        %v7882 = vpop.f32.mrb[0].mxu0
        %7883 = vmatprep.mubr.f32.mxu0 0.0
        %7884 = vmatmul.mubr.f32.gmra.mrb[0].mxu0 %v7790
        %v7885 = vpop.f32.mrb[0].mxu0
        %v7886 = vadd.f32 0.0, %v7885
        %v7887 = vpop.f32.mrb[0].mxu0
        %7888 = vmatprep.mubr.f32.mxu0 0.0
        %7889 = vmatmul.mubr.f32.gmra.mrb[0].mxu0 %v7793
        %v7890 = vpop.f32.mrb[0].mxu0
        %v7891 = vadd.f32 0.0, %v7890
        %v7892 = vpop.f32.mrb[0].mxu0
        %7893 = vmatprep.mubr.f32.mxu0 0.0
        %7894 = vmatmul.mubr.f32.gmra.mrb[0].mxu0 %v7796
        %v7895 = vpop.f32.mrb[0].mxu0
        %v7896 = vadd.f32 0.0, %v7895
        %v7897 = vpop.f32.mrb[0].mxu0
        %7898 = vmatprep.mubr.f32.mxu0 0.0
        %7899 = vmatmul.mubr.f32.gmra.mrb[0].mxu0 %v7799
        %v7900 = vpop.f32.mrb[0].mxu0
        %v7901 = vadd.f32 0.0, %v7900
        %v7902 = vpop.f32.mrb[0].mxu0
        %7903 = vmatprep.mubr.f32.mxu0 0.0
        %7904 = vmatmul.mubr.f32.gmra.mrb[0].mxu0 %v7802
        %v7905 = vpop.f32.mrb[0].mxu0
        %v7906 = vadd.f32 0.0, %v7905
        %v7907 = vpop.f32.mrb[0].mxu0
        %7908 = vdwg.mxu0
        %v7909 = vrcp.pop %v7541
        %v7910 = vrcp.pop %v7544
        %v7911 = vrcp.pop %v7547
        %v7912 = vrcp.pop %v7550
        %v7913 = vrcp.pop %v7553
        %v7914 = vrcp.pop %v7556
        %v7915 = vrcp.pop %v7559
        %v7916 = vrcp.pop %v7562
        %v7917 = vrcp.pop %v7565
        %v7918 = vrcp.pop %v7568
        %v7919 = vrcp.pop %v7571
        %v7920 = vrcp.pop %v7574
        %v7921 = vrcp.pop %v7577
        %v7922 = vrcp.pop %v7580
        %v7923 = vrcp.pop %v7583
        %v7924 = vrcp.pop %v7586
        %v7925 = vmul.f32 %v7710, %v7909
        %v7926 = vmul.f32 %v7715, %v7910
        %v7927 = vmul.f32 %v7720, %v7911
        %v7928 = vmul.f32 %v7725, %v7912
        %v7929 = vmul.f32 %v7730, %v7913
        %v7930 = vmul.f32 %v7735, %v7914
        %v7931 = vmul.f32 %v7740, %v7915
        %v7932 = vmul.f32 %v7745, %v7916
        %v7933 = vmul.f32 %v7871, %v7917
        %v7934 = vmul.f32 %v7876, %v7918
        %v7935 = vmul.f32 %v7881, %v7919
        %v7936 = vmul.f32 %v7886, %v7920
        %v7937 = vmul.f32 %v7891, %v7921
        %v7938 = vmul.f32 %v7896, %v7922
        %v7939 = vmul.f32 %v7901, %v7923
        %v7940 = vmul.f32 %v7906, %v7924
        %7957 = vrot.lane.b32.xlu0 %v7925, 24
        %v7958 = vpop.permute.xlu0 %7957
        %7959 = vrot.lane.b32.xlu0 %v7926, 24
        %v7960 = vpop.permute.xlu0 %7959
        %7961 = vrot.lane.b32.xlu0 %v7927, 24
        %v7962 = vpop.permute.xlu0 %7961
        %7963 = vrot.lane.b32.xlu0 %v7928, 24
        %v7964 = vpop.permute.xlu0 %7963
        %7965 = vrot.lane.b32.xlu0 %v7929, 24
        %v7966 = vpop.permute.xlu0 %7965
        %7967 = vrot.lane.b32.xlu0 %v7930, 24
        %v7968 = vpop.permute.xlu0 %7967
        %7969 = vrot.lane.b32.xlu0 %v7931, 24
        %v7970 = vpop.permute.xlu0 %7969
        %7971 = vrot.lane.b32.xlu0 %v7932, 24
        %v7972 = vpop.permute.xlu0 %7971
        %7973 = vrot.lane.b32.xlu0 %v7933, 24
        %v7974 = vpop.permute.xlu0 %7973
        %7975 = vrot.lane.b32.xlu0 %v7934, 24
        %v7976 = vpop.permute.xlu0 %7975
        %7977 = vrot.lane.b32.xlu0 %v7935, 24
        %v7978 = vpop.permute.xlu0 %7977
        %7979 = vrot.lane.b32.xlu0 %v7936, 24
        %v7980 = vpop.permute.xlu0 %7979
        %7981 = vrot.lane.b32.xlu0 %v7937, 24
        %v7982 = vpop.permute.xlu0 %7981
        %7983 = vrot.lane.b32.xlu0 %v7938, 24
        %v7984 = vpop.permute.xlu0 %7983
        %7985 = vrot.lane.b32.xlu0 %v7939, 24
        %v7986 = vpop.permute.xlu0 %7985
        %7987 = vrot.lane.b32.xlu0 %v7940, 24
        %v7988 = vpop.permute.xlu0 %7987
        %8005 = vst.msk [vmem:[%s4944] sm:$0xff] %vm4115, %v7958
        %8006 = vst.msk [vmem:[%s4944 + $0x8] sm:$0xff] %vm4115, %v7960
        %8007 = vst.msk [vmem:[%s4944 + $0x10] sm:$0xff] %vm4115, %v7962
        %8008 = vst.msk [vmem:[%s4944 + $0x18] sm:$0xff] %vm4115, %v7964
        %8009 = vst.msk [vmem:[%s4944 + $0x20] sm:$0xff] %vm4115, %v7966
        %8010 = vst.msk [vmem:[%s4944 + $0x28] sm:$0xff] %vm4115, %v7968
        %8011 = vst.msk [vmem:[%s4944 + $0x30] sm:$0xff] %vm4115, %v7970
        %8012 = vst.msk [vmem:[%s4944 + $0x38] sm:$0xff] %vm4115, %v7972
        %8013 = vst.msk [vmem:[%s4944 + $0x80] sm:$0xff] %vm4115, %v7974
        %8014 = vst.msk [vmem:[%s4944 + $0x88] sm:$0xff] %vm4115, %v7976
        %8015 = vst.msk [vmem:[%s4944 + $0x90] sm:$0xff] %vm4115, %v7978
        %8016 = vst.msk [vmem:[%s4944 + $0x98] sm:$0xff] %vm4115, %v7980
        %8017 = vst.msk [vmem:[%s4944 + $0xa0] sm:$0xff] %vm4115, %v7982
        %8018 = vst.msk [vmem:[%s4944 + $0xa8] sm:$0xff] %vm4115, %v7984
        %8019 = vst.msk [vmem:[%s4944 + $0xb0] sm:$0xff] %vm4115, %v7986
        %8020 = vst.msk [vmem:[%s4944 + $0xb8] sm:$0xff] %vm4115, %v7988
        %v8021 = vld [vmem:[#allocation2] sm:$0xff]
        %v8022 = vld [vmem:[#allocation2 + $0x8] sm:$0xff]
        %v8023 = vld [vmem:[#allocation2 + $0x10] sm:$0xff]
        %v8024 = vld [vmem:[#allocation2 + $0x18] sm:$0xff]
        %v8025 = vld [vmem:[#allocation2 + $0x20] sm:$0xff]
        %v8026 = vld [vmem:[#allocation2 + $0x28] sm:$0xff]
        %v8027 = vld [vmem:[#allocation2 + $0x30] sm:$0xff]
        %v8028 = vld [vmem:[#allocation2 + $0x38] sm:$0xff]
        %v8029 = vld [vmem:[#allocation2 + $0x40] sm:$0xff]
        %v8030 = vld [vmem:[#allocation2 + $0x48] sm:$0xff]
        %v8031 = vld [vmem:[#allocation2 + $0x50] sm:$0xff]
        %v8032 = vld [vmem:[#allocation2 + $0x58] sm:$0xff]
        %v8033 = vld [vmem:[#allocation2 + $0x60] sm:$0xff]
        %v8034 = vld [vmem:[#allocation2 + $0x68] sm:$0xff]
        %v8035 = vld [vmem:[#allocation2 + $0x70] sm:$0xff]
        %v8036 = vld [vmem:[#allocation2 + $0x78] sm:$0xff]
        %v8037 = vld [vmem:[#allocation2 + $0x80] sm:$0xff]
        %v8038 = vld [vmem:[#allocation2 + $0x88] sm:$0xff]
        %v8039 = vld [vmem:[#allocation2 + $0x90] sm:$0xff]
        %v8040 = vld [vmem:[#allocation2 + $0x98] sm:$0xff]
        %v8041 = vld [vmem:[#allocation2 + $0xa0] sm:$0xff]
        %v8042 = vld [vmem:[#allocation2 + $0xa8] sm:$0xff]
        %v8043 = vld [vmem:[#allocation2 + $0xb0] sm:$0xff]
        %v8044 = vld [vmem:[#allocation2 + $0xb8] sm:$0xff]
        %v8045 = vld [vmem:[#allocation2 + $0xc0] sm:$0xff]
        %v8046 = vld [vmem:[#allocation2 + $0xc8] sm:$0xff]
        %v8047 = vld [vmem:[#allocation2 + $0xd0] sm:$0xff]
        %v8048 = vld [vmem:[#allocation2 + $0xd8] sm:$0xff]
        %v8049 = vld [vmem:[#allocation2 + $0xe0] sm:$0xff]
        %v8050 = vld [vmem:[#allocation2 + $0xe8] sm:$0xff]
        %v8051 = vld [vmem:[#allocation2 + $0xf0] sm:$0xff]
        %v8052 = vld [vmem:[#allocation2 + $0xf8] sm:$0xff]
        %vm8053 = vcmask 261120
        %8054 = vst.msk [vmem:[%s232] sm:$0xff] %vm8053, %v8021
        %8055 = vst.msk [vmem:[%s232 + $0x8] sm:$0xff] %vm8053, %v8022
        %8056 = vst.msk [vmem:[%s232 + $0x10] sm:$0xff] %vm8053, %v8023
        %8057 = vst.msk [vmem:[%s232 + $0x18] sm:$0xff] %vm8053, %v8024
        %8058 = vst.msk [vmem:[%s232 + $0x20] sm:$0xff] %vm8053, %v8025
        %8059 = vst.msk [vmem:[%s232 + $0x28] sm:$0xff] %vm8053, %v8026
        %8060 = vst.msk [vmem:[%s232 + $0x30] sm:$0xff] %vm8053, %v8027
        %8061 = vst.msk [vmem:[%s232 + $0x38] sm:$0xff] %vm8053, %v8028
        %8062 = vst.msk [vmem:[%s232 + $0x40] sm:$0xff] %vm8053, %v8029
        %8063 = vst.msk [vmem:[%s232 + $0x48] sm:$0xff] %vm8053, %v8030
        %8064 = vst.msk [vmem:[%s232 + $0x50] sm:$0xff] %vm8053, %v8031
        %8065 = vst.msk [vmem:[%s232 + $0x58] sm:$0xff] %vm8053, %v8032
        %8066 = vst.msk [vmem:[%s232 + $0x60] sm:$0xff] %vm8053, %v8033
        %8067 = vst.msk [vmem:[%s232 + $0x68] sm:$0xff] %vm8053, %v8034
        %8068 = vst.msk [vmem:[%s232 + $0x70] sm:$0xff] %vm8053, %v8035
        %8069 = vst.msk [vmem:[%s232 + $0x78] sm:$0xff] %vm8053, %v8036
        %8070 = vst.msk [vmem:[%s232 + $0x80] sm:$0xff] %vm8053, %v8037
        %8071 = vst.msk [vmem:[%s232 + $0x88] sm:$0xff] %vm8053, %v8038
        %8072 = vst.msk [vmem:[%s232 + $0x90] sm:$0xff] %vm8053, %v8039
        %8073 = vst.msk [vmem:[%s232 + $0x98] sm:$0xff] %vm8053, %v8040
        %8074 = vst.msk [vmem:[%s232 + $0xa0] sm:$0xff] %vm8053, %v8041
        %8075 = vst.msk [vmem:[%s232 + $0xa8] sm:$0xff] %vm8053, %v8042
        %8076 = vst.msk [vmem:[%s232 + $0xb0] sm:$0xff] %vm8053, %v8043
        %8077 = vst.msk [vmem:[%s232 + $0xb8] sm:$0xff] %vm8053, %v8044
        %8078 = vst.msk [vmem:[%s232 + $0xc0] sm:$0xff] %vm8053, %v8045
        %8079 = vst.msk [vmem:[%s232 + $0xc8] sm:$0xff] %vm8053, %v8046
        %8080 = vst.msk [vmem:[%s232 + $0xd0] sm:$0xff] %vm8053, %v8047
        %8081 = vst.msk [vmem:[%s232 + $0xd8] sm:$0xff] %vm8053, %v8048
        %8082 = vst.msk [vmem:[%s232 + $0xe0] sm:$0xff] %vm8053, %v8049
        %8083 = vst.msk [vmem:[%s232 + $0xe8] sm:$0xff] %vm8053, %v8050
        %8084 = vst.msk [vmem:[%s232 + $0xf0] sm:$0xff] %vm8053, %v8051
        %8085 = vst.msk [vmem:[%s232 + $0xf8] sm:$0xff] %vm8053, %v8052
        %s8086 = smul.u32 2, %s22
        %p8087 = scmp.lt.s32.totalorder %s21, 1
        %s8088 = scalar_select %p8087, %s21, 1
        %p8089 = scmp.lt.s32.totalorder %s8086, 1
        %s8090 = scalar_select %p8089, %s8086, 1
        %s8091 = smul.addr %s8090, 8
        %s8092 = smul.addr %s8088, 32
        %s8093 = sadd.s32 %s8091, %s8092
        %s8094 = smul.addr %s8093, 8
        %s8095 = scalar_lea.vmem %s2, %s8094
        // Predicated region
        $region37: #{tpu_custom_call.1} parent=27 // pred_check
          %p8096 = pneg %p98
        $region38: #{tpu_custom_call.1} parent=27 // pred_check_branch
          %8098 = sbr.rel (%p8096) target = $region40
        $region39: #{tpu_custom_call.1} parent=27 // pred_region
          %s8099 = smul.u32 2, %s22
        $region40: #{tpu_custom_call.1} parent=27 // pred_fallthru
          _
      $region28: #{tpu_custom_call.1} parent=5 // pred_fallthru
        _
      %p8100 = scmp.le.s32.totalorder 2, %s12
      // Predicated region
      $region41: #{tpu_custom_call.1} parent=5 // pred_check
        %p8101 = pneg %p8100
      $region42: #{tpu_custom_call.1} parent=5 // pred_check_branch
        %8103 = sbr.rel (%p8101) target = $region44
      $region43: #{tpu_custom_call.1} parent=5 // pred_region
        %s8104 = ssub.s32 %s12, 2
        // Predicated region
        $region45: #{tpu_custom_call.1} parent=43 // pred_check
          %p8105 = pneg %p104
        $region46: #{tpu_custom_call.1} parent=43 // pred_check_branch
          %8107 = sbr.rel (%p8105) target = $region48
        $region47: #{tpu_custom_call.1} parent=43 // pred_region
          %s8108 = smul.u32 2, %s24
          %p8109 = scmp.lt.s32.totalorder %s23, 1
          %s8110 = scalar_select %p8109, %s23, 1
          %p8111 = scmp.lt.s32.totalorder %s8108, 1
          %s8112 = scalar_select %p8111, %s8108, 1
          %s8113 = smul.addr %s8112, 8
          %s8114 = smul.addr %s8110, 32
          %s8115 = sadd.s32 %s8113, %s8114
          %s8116 = smul.addr %s8115, 8
          %s8117 = scalar_lea.vmem %s2, %s8116
        $region48: #{tpu_custom_call.1} parent=43 // pred_fallthru
          _
      $region44: #{tpu_custom_call.1} parent=5 // pred_fallthru
        _
    $region6: #{tpu_custom_call.1} parent=1 // loop_footer
      %s16 = sadd.s32 1, %s12
    $region7: #{tpu_custom_call.1} parent=1 // loop_footer_branch
      %11 = sbr.rel target = $region3
    $region8: #{tpu_custom_call.1} parent=1 // loop_exit
      _
    %8118 = vsyncpa [#allocation4], 1
    %s8119 = scalar_lea.sflag [#allocation4], 1
    %8120 = vsyncpa %s8119, 1
    %8121 = vsyncpa [#allocation6], 1
    %s8122 = scalar_lea.sflag [#allocation6], 1
    %8123 = vsyncpa %s8122, 1

</llo_original>
